<compile_context>
chip_gen: v7x
topology: tpu7x:2x2x1
jax: 0.10.0
libtpu: 0.0.40
codegen_flags: <defaults>
</compile_context>

<pallas_src>
import functools

import jax
import jax.numpy as jnp
from jax.experimental import pallas as pl
from jax.experimental.pallas import tpu as pltpu


def _round_up(x, m):
    return (x + m - 1) // m * m


# ----------------------------------------------------------------------------
# Pallas kernels
# ----------------------------------------------------------------------------
def _conv_bn_relu_pool_kernel(p_ref, w_ref, shift_ref, o_ref, *, tp, taps):
    """Fused conv(matmul) + BN + bias + ReLU + maxpool for one block of pooled positions.

    p_ref:     (taps*tp, K) bf16  rows [t*tp:(t+1)*tp] = pool-window tap t of the
                                  tp pooled positions handled by this block.
    w_ref:     (K, Cout)    bf16  conv weights with the BN scale folded in.
    shift_ref: (1, Cout)    f32   folded conv-bias + BN shift.
    o_ref:     (tp, Cout)   bf16  pooled activations for this block.
    """
    w = w_ref[...]
    shift = shift_ref[...]

    def tap(t):
        a = jnp.dot(p_ref[pl.ds(t * tp, tp), :], w,
                    preferred_element_type=jnp.float32)   # bf16 MXU, f32 accumulate
        return jnp.maximum(a + shift, 0.0)                # BN + bias + ReLU (f32 epilogue)

    m = tap(0)
    for t in range(1, taps):                              # maxpool over the 3x3 window taps
        m = jnp.maximum(m, tap(t))
    o_ref[...] = m.astype(o_ref.dtype)


def _mlp_kernel(x_ref, w1_ref, b1_ref, w2_ref, b2_ref, w3_ref, b3_ref, o_ref):
    """fc1 -> ReLU -> fc2 -> ReLU -> fc in one kernel; intermediates stay on-chip."""
    h = jnp.dot(x_ref[...], w1_ref[...], preferred_element_type=jnp.float32)
    h = jnp.maximum(h + b1_ref[...], 0.0)
    h = jnp.dot(h.astype(jnp.bfloat16), w2_ref[...], preferred_element_type=jnp.float32)
    h = jnp.maximum(h + b2_ref[...], 0.0)
    h = jnp.dot(h.astype(jnp.bfloat16), w3_ref[...], preferred_element_type=jnp.float32)
    o_ref[...] = h + b3_ref[...]


# ----------------------------------------------------------------------------
# XLA-side patch gathering (layout glue only; all compute happens in Pallas)
# ----------------------------------------------------------------------------
def _build_pool_patches(x, kh, kw, stride, pk, ps, tp):
    """x: (N, H, W, Cin) bf16.

    Returns (patches, pho, pwo, g) where patches has shape (N, G, pk*pk*tp, K):
    within block g, rows [t*tp:(t+1)*tp] hold the conv-input patch (K = kh*kw*Cin)
    of pool-window tap t for pooled positions [g*tp:(g+1)*tp) (row-major (py,px),
    zero-padded up to G*tp).
    """
    n, h, w, c = x.shape
    ho = (h - kh) // stride + 1
    wo = (w - kw) // stride + 1
    pho = (ho - pk) // ps + 1
    pwo = (wo - pk) // ps + 1
    k = kh * kw * c

    # conv im2col at every conv-output position: (N, ho, wo, K)
    cols = []
    for di in range(kh):
        for dj in range(kw):
            cols.append(x[:, di:di + stride * (ho - 1) + 1:stride,
                             dj:dj + stride * (wo - 1) + 1:stride, :])
    m0 = jnp.concatenate(cols, axis=-1)

    # group by pool windows: tap (dy, dx) at pooled position (py, px)
    p = pho * pwo
    g = _round_up(p, tp) // tp
    taps = []
    for dy in range(pk):
        for dx in range(pk):
            t = m0[:, dy:dy + ps * (pho - 1) + 1:ps,
                      dx:dx + ps * (pwo - 1) + 1:ps, :]        # (N, pho, pwo, K)
            t = t.reshape(n, p, k)
            t = jnp.pad(t, ((0, 0), (0, g * tp - p), (0, 0)))
            taps.append(t.reshape(n, g, tp, k))
    patches = jnp.stack(taps, axis=2)                          # (N, G, 9, tp, K)
    return patches.reshape(n, g, pk * pk * tp, k), pho, pwo, g


# ----------------------------------------------------------------------------
# Stage wrappers
# ----------------------------------------------------------------------------
def conv_bn_relu_pool(x, w, b, gamma, beta, mean, var, stride, tp, eps=1e-5):
    """x: (N, H, W, Cin) bf16.  w: (KH, KW, Cin, Cout) f32.

    Returns ((N, G*tp, Cout) bf16 pooled activations in row-major pooled order
    (rows >= pho*pwo are padding), pho, pwo)."""
    kh, kw, cin, cout = w.shape
    n = x.shape[0]
    inv_std = gamma / jnp.sqrt(var + eps)
    w_mat = (w.reshape(kh * kw * cin, cout) * inv_std[None, :]).astype(jnp.bfloat16)
    shift = ((b - mean) * inv_std + beta).reshape(1, cout).astype(jnp.float32)

    patches, pho, pwo, g = _build_pool_patches(x, kh, kw, stride, 3, 2, tp)
    k = kh * kw * cin
    taps = 9

    out = pl.pallas_call(
        functools.partial(_conv_bn_relu_pool_kernel, tp=tp, taps=taps),
        out_shape=jax.ShapeDtypeStruct((n, g * tp, cout), jnp.bfloat16),
        grid=(n, g),
        in_specs=[
            pl.BlockSpec((None, None, taps * tp, k), lambda b_, g_: (b_, g_, 0, 0)),
            pl.BlockSpec((k, cout), lambda b_, g_: (0, 0)),
            pl.BlockSpec((1, cout), lambda b_, g_: (0, 0)),
        ],
        out_specs=pl.BlockSpec((None, tp, cout), lambda b_, g_: (b_, g_, 0)),
        compiler_params=pltpu.CompilerParams(
            dimension_semantics=("parallel", "parallel")),
    )(patches, w_mat, shift)
    return out, pho, pwo


def mlp(x, w1, b1, w2, b2, w3, b3):
    """x: (M, Din) bf16; weights bf16, biases (1, D) f32. Returns (M, Dout) f32."""
    n, d_in = x.shape
    m = max(16, _round_up(n, 16))
    xp = jnp.pad(x, ((0, m - n), (0, 0)))
    d1, d2, d3 = w1.shape[1], w2.shape[1], w3.shape[1]

    out = pl.pallas_call(
        _mlp_kernel,
        out_shape=jax.ShapeDtypeStruct((m, d3), jnp.float32),
        grid=(1,),
        in_specs=[
            pl.BlockSpec((m, d_in), lambda i: (0, 0)),
            pl.BlockSpec((d_in, d1), lambda i: (0, 0)),
            pl.BlockSpec((1, d1), lambda i: (0, 0)),
            pl.BlockSpec((d1, d2), lambda i: (0, 0)),
            pl.BlockSpec((1, d2), lambda i: (0, 0)),
            pl.BlockSpec((d2, d3), lambda i: (0, 0)),
            pl.BlockSpec((1, d3), lambda i: (0, 0)),
        ],
        out_specs=pl.BlockSpec((m, d3), lambda i: (0, 0)),
        compiler_params=pltpu.CompilerParams(dimension_semantics=("arbitrary",)),
    )(xp, w1, b1, w2, b2, w3, b3)
    return out[:n]


# ----------------------------------------------------------------------------
# Parameter construction (deterministic, synthetic)
# ----------------------------------------------------------------------------
def init_params(key):
    def nrm(k, shape, s=0.05):
        return jax.random.normal(k, shape, dtype=jnp.float32) * s

    ks = jax.random.split(key, 24)
    p = {}
    # conv1: Conv2d(3, 16, 5, stride=4) + BN(16)
    p["w1"] = nrm(ks[0], (5, 5, 3, 16))
    p["b1"] = nrm(ks[1], (16,))
    p["bn1"] = dict(gamma=1.0 + nrm(ks[2], (16,)), beta=nrm(ks[3], (16,)),
                    mean=nrm(ks[4], (16,)), var=jnp.abs(nrm(ks[5], (16,))) + 1.0)
    # conv2: Conv2d(16, 16, 3) + BN(16)
    p["w2"] = nrm(ks[6], (3, 3, 16, 16))
    p["b2"] = nrm(ks[7], (16,))
    p["bn2"] = dict(gamma=1.0 + nrm(ks[8], (16,)), beta=nrm(ks[9], (16,)),
                    mean=nrm(ks[10], (16,)), var=jnp.abs(nrm(ks[11], (16,))) + 1.0)
    # conv3: Conv2d(16, 32, 3) + BN(32)
    p["w3"] = nrm(ks[12], (3, 3, 16, 32))
    p["b3"] = nrm(ks[13], (32,))
    p["bn3"] = dict(gamma=1.0 + nrm(ks[14], (32,)), beta=nrm(ks[15], (32,)),
                    mean=nrm(ks[16], (32,)), var=jnp.abs(nrm(ks[17], (32,))) + 1.0)
    # fc1: Linear(800, 120), fc2: Linear(120, 84), fc: Linear(84, 8)
    p["fw1"], p["fb1"] = nrm(ks[18], (800, 120)), nrm(ks[19], (120,))
    p["fw2"], p["fb2"] = nrm(ks[20], (120, 84)), nrm(ks[21], (84,))
    p["fw3"], p["fb3"] = nrm(ks[22], (84, 8)), nrm(ks[23], (8,))
    return p


# ----------------------------------------------------------------------------
# Forward pass (mirrors PokeNet.forward); BatchNorm is eval-mode (running stats).
# ----------------------------------------------------------------------------
def pokenet_forward(params, x_nchw):
    p = params
    n = x_nchw.shape[0]
    x = jnp.transpose(x_nchw, (0, 2, 3, 1)).astype(jnp.bfloat16)   # NCHW -> NHWC, bf16

    # stage 1: conv(3->16, 5x5, s=4) + BN + ReLU + maxpool(3, 2)
    a1, ph1, pw1 = conv_bn_relu_pool(x, p["w1"], p["b1"], **p["bn1"], stride=4, tp=256)
    x1 = a1[:, :ph1 * pw1, :].reshape(n, ph1, pw1, 16)             # (N, 31, 31, 16)

    # stage 2: conv(16->16, 3x3) + BN + ReLU + maxpool(3, 2)
    a2, ph2, pw2 = conv_bn_relu_pool(x1, p["w2"], p["b2"], **p["bn2"], stride=1, tp=208)
    x2 = a2[:, :ph2 * pw2, :].reshape(n, ph2, pw2, 16)             # (N, 14, 14, 16)

    # stage 3: conv(16->32, 3x3) + BN + ReLU + maxpool(3, 2)
    a3, ph3, pw3 = conv_bn_relu_pool(x2, p["w3"], p["b3"], **p["bn3"], stride=1, tp=32)
    x3 = a3[:, :ph3 * pw3, :]                                      # (N, 25, 32)  (hw, c)

    # torch flattens in NCHW order (c*25 + hw); we flatten in (hw, c) order and
    # permute fc1's weight rows accordingly (trace-time, free).
    xf = x3.reshape(n, ph3 * pw3 * 32)                             # (N, 800)
    hw = jnp.arange(ph3 * pw3)
    c = jnp.arange(32)
    perm = (c[None, :] * (ph3 * pw3) + hw[:, None]).reshape(-1)    # torch row for (hw, c)
    fw1_hwc = p["fw1"][perm, :]

    out = mlp(xf,
              fw1_hwc.astype(jnp.bfloat16), p["fb1"].reshape(1, -1),
              p["fw2"].astype(jnp.bfloat16), p["fb2"].reshape(1, -1),
              p["fw3"].astype(jnp.bfloat16), p["fb3"].reshape(1, -1))
    return out                                                     # (N, 8) f32


if __name__ == "__main__":
    key = jax.random.PRNGKey(0)
    k_param, k_x = jax.random.split(key)
    params = init_params(k_param)

    # Spatial size is pinned by fc1 = 32*5*5 -> 256x256 input (batch=2, RGB).
    x = jax.random.normal(k_x, (2, 3, 256, 256), dtype=jnp.float32)

    fwd = jax.jit(pokenet_forward)
    out = jax.block_until_ready(fwd(params, x))
    assert out.shape == (2, 8), out.shape
    assert bool(jnp.all(jnp.isfinite(out)))
    print("KERNEL_OK")
</pallas_src>

<mosaic_0001>
module attributes {stable_mosaic.version = 11 : i64} {
  func.func @_conv_bn_relu_pool_kernel(%arg0: i32, %arg1: i32, %arg2: memref<1x1x2304x75xbf16, #tpu.memory_space<vmem>>, %arg3: memref<75x16xbf16, #tpu.memory_space<vmem>>, %arg4: memref<1x16xf32, #tpu.memory_space<vmem>>, %arg5: memref<1x256x16xbf16, #tpu.memory_space<vmem>>) attributes {dimension_semantics = [#tpu.dimension_semantics<parallel>, #tpu.dimension_semantics<parallel>], iteration_bounds = array<i64: 2, 4>, scalar_prefetch = 0 : i64, scratch_operands = 0 : i64, tpu.core_type = #tpu.core_type<tc>, window_params = [{transform_indices = @transform_0, window_bounds = array<i64: 1, 1, 2304, 75>}, {pipeline_mode = #tpu.pipeline_mode<synchronous>, transform_indices = @transform_1, window_bounds = array<i64: 75, 16>}, {pipeline_mode = #tpu.pipeline_mode<synchronous>, transform_indices = @transform_2, window_bounds = array<i64: 1, 16>}, {transform_indices = @transform_3, window_bounds = array<i64: 1, 256, 16>}]} {
    %c0 = arith.constant 0 : index
    %c0_0 = arith.constant 0 : index
    %0 = vector.load %arg3[%c0, %c0_0] : memref<75x16xbf16, #tpu.memory_space<vmem>>, vector<75x16xbf16>
    %c0_1 = arith.constant 0 : index
    %c0_2 = arith.constant 0 : index
    %1 = vector.load %arg4[%c0_1, %c0_2] : memref<1x16xf32, #tpu.memory_space<vmem>>, vector<1x16xf32>
    %c0_3 = arith.constant 0 : index
    %c0_4 = arith.constant 0 : index
    %c0_5 = arith.constant 0 : index
    %c0_6 = arith.constant 0 : index
    %2 = vector.load %arg2[%c0_3, %c0_4, %c0_5, %c0_6] : memref<1x1x2304x75xbf16, #tpu.memory_space<vmem>>, vector<1x1x256x75xbf16>
    %3 = vector.shape_cast %2 : vector<1x1x256x75xbf16> to vector<256x75xbf16>
    %cst = arith.constant dense<0.000000e+00> : vector<256x16xf32>
    %4 = tpu.matmul %3, %0, %cst {dimension_numbers = #tpu.dot_dimension_numbers<[1], [0], [0], [1], [0, 0, 1, 1], [], []>} : vector<256x75xbf16>, vector<75x16xbf16>, vector<256x16xf32> -> vector<256x16xf32>
    %5 = vector.broadcast %1 : vector<1x16xf32> to vector<256x16xf32>
    %6 = arith.addf %4, %5 : vector<256x16xf32>
    %cst_7 = arith.constant 0.000000e+00 : f32
    %7 = vector.broadcast %cst_7 : f32 to vector<256x16xf32>
    %8 = arith.maximumf %6, %7 : vector<256x16xf32>
    %c0_8 = arith.constant 0 : index
    %c0_9 = arith.constant 0 : index
    %c256 = arith.constant 256 : index
    %c0_10 = arith.constant 0 : index
    %9 = vector.load %arg2[%c0_8, %c0_9, %c256, %c0_10] : memref<1x1x2304x75xbf16, #tpu.memory_space<vmem>>, vector<1x1x256x75xbf16>
    %10 = vector.shape_cast %9 : vector<1x1x256x75xbf16> to vector<256x75xbf16>
    %cst_11 = arith.constant dense<0.000000e+00> : vector<256x16xf32>
    %11 = tpu.matmul %10, %0, %cst_11 {dimension_numbers = #tpu.dot_dimension_numbers<[1], [0], [0], [1], [0, 0, 1, 1], [], []>} : vector<256x75xbf16>, vector<75x16xbf16>, vector<256x16xf32> -> vector<256x16xf32>
    %12 = vector.broadcast %1 : vector<1x16xf32> to vector<256x16xf32>
    %13 = arith.addf %11, %12 : vector<256x16xf32>
    %cst_12 = arith.constant 0.000000e+00 : f32
    %14 = vector.broadcast %cst_12 : f32 to vector<256x16xf32>
    %15 = arith.maximumf %13, %14 : vector<256x16xf32>
    %16 = arith.maximumf %8, %15 : vector<256x16xf32>
    %c0_13 = arith.constant 0 : index
    %c0_14 = arith.constant 0 : index
    %c512 = arith.constant 512 : index
    %c0_15 = arith.constant 0 : index
    %17 = vector.load %arg2[%c0_13, %c0_14, %c512, %c0_15] : memref<1x1x2304x75xbf16, #tpu.memory_space<vmem>>, vector<1x1x256x75xbf16>
    %18 = vector.shape_cast %17 : vector<1x1x256x75xbf16> to vector<256x75xbf16>
    %cst_16 = arith.constant dense<0.000000e+00> : vector<256x16xf32>
    %19 = tpu.matmul %18, %0, %cst_16 {dimension_numbers = #tpu.dot_dimension_numbers<[1], [0], [0], [1], [0, 0, 1, 1], [], []>} : vector<256x75xbf16>, vector<75x16xbf16>, vector<256x16xf32> -> vector<256x16xf32>
    %20 = vector.broadcast %1 : vector<1x16xf32> to vector<256x16xf32>
    %21 = arith.addf %19, %20 : vector<256x16xf32>
    %cst_17 = arith.constant 0.000000e+00 : f32
    %22 = vector.broadcast %cst_17 : f32 to vector<256x16xf32>
    %23 = arith.maximumf %21, %22 : vector<256x16xf32>
    %24 = arith.maximumf %16, %23 : vector<256x16xf32>
    %c0_18 = arith.constant 0 : index
    %c0_19 = arith.constant 0 : index
    %c768 = arith.constant 768 : index
    %c0_20 = arith.constant 0 : index
    %25 = vector.load %arg2[%c0_18, %c0_19, %c768, %c0_20] : memref<1x1x2304x75xbf16, #tpu.memory_space<vmem>>, vector<1x1x256x75xbf16>
    %26 = vector.shape_cast %25 : vector<1x1x256x75xbf16> to vector<256x75xbf16>
    %cst_21 = arith.constant dense<0.000000e+00> : vector<256x16xf32>
    %27 = tpu.matmul %26, %0, %cst_21 {dimension_numbers = #tpu.dot_dimension_numbers<[1], [0], [0], [1], [0, 0, 1, 1], [], []>} : vector<256x75xbf16>, vector<75x16xbf16>, vector<256x16xf32> -> vector<256x16xf32>
    %28 = vector.broadcast %1 : vector<1x16xf32> to vector<256x16xf32>
    %29 = arith.addf %27, %28 : vector<256x16xf32>
    %cst_22 = arith.constant 0.000000e+00 : f32
    %30 = vector.broadcast %cst_22 : f32 to vector<256x16xf32>
    %31 = arith.maximumf %29, %30 : vector<256x16xf32>
    %32 = arith.maximumf %24, %31 : vector<256x16xf32>
    %c0_23 = arith.constant 0 : index
    %c0_24 = arith.constant 0 : index
    %c1024 = arith.constant 1024 : index
    %c0_25 = arith.constant 0 : index
    %33 = vector.load %arg2[%c0_23, %c0_24, %c1024, %c0_25] : memref<1x1x2304x75xbf16, #tpu.memory_space<vmem>>, vector<1x1x256x75xbf16>
    %34 = vector.shape_cast %33 : vector<1x1x256x75xbf16> to vector<256x75xbf16>
    %cst_26 = arith.constant dense<0.000000e+00> : vector<256x16xf32>
    %35 = tpu.matmul %34, %0, %cst_26 {dimension_numbers = #tpu.dot_dimension_numbers<[1], [0], [0], [1], [0, 0, 1, 1], [], []>} : vector<256x75xbf16>, vector<75x16xbf16>, vector<256x16xf32> -> vector<256x16xf32>
    %36 = vector.broadcast %1 : vector<1x16xf32> to vector<256x16xf32>
    %37 = arith.addf %35, %36 : vector<256x16xf32>
    %cst_27 = arith.constant 0.000000e+00 : f32
    %38 = vector.broadcast %cst_27 : f32 to vector<256x16xf32>
    %39 = arith.maximumf %37, %38 : vector<256x16xf32>
    %40 = arith.maximumf %32, %39 : vector<256x16xf32>
    %c0_28 = arith.constant 0 : index
    %c0_29 = arith.constant 0 : index
    %c1280 = arith.constant 1280 : index
    %c0_30 = arith.constant 0 : index
    %41 = vector.load %arg2[%c0_28, %c0_29, %c1280, %c0_30] : memref<1x1x2304x75xbf16, #tpu.memory_space<vmem>>, vector<1x1x256x75xbf16>
    %42 = vector.shape_cast %41 : vector<1x1x256x75xbf16> to vector<256x75xbf16>
    %cst_31 = arith.constant dense<0.000000e+00> : vector<256x16xf32>
    %43 = tpu.matmul %42, %0, %cst_31 {dimension_numbers = #tpu.dot_dimension_numbers<[1], [0], [0], [1], [0, 0, 1, 1], [], []>} : vector<256x75xbf16>, vector<75x16xbf16>, vector<256x16xf32> -> vector<256x16xf32>
    %44 = vector.broadcast %1 : vector<1x16xf32> to vector<256x16xf32>
    %45 = arith.addf %43, %44 : vector<256x16xf32>
    %cst_32 = arith.constant 0.000000e+00 : f32
    %46 = vector.broadcast %cst_32 : f32 to vector<256x16xf32>
    %47 = arith.maximumf %45, %46 : vector<256x16xf32>
    %48 = arith.maximumf %40, %47 : vector<256x16xf32>
    %c0_33 = arith.constant 0 : index
    %c0_34 = arith.constant 0 : index
    %c1536 = arith.constant 1536 : index
    %c0_35 = arith.constant 0 : index
    %49 = vector.load %arg2[%c0_33, %c0_34, %c1536, %c0_35] : memref<1x1x2304x75xbf16, #tpu.memory_space<vmem>>, vector<1x1x256x75xbf16>
    %50 = vector.shape_cast %49 : vector<1x1x256x75xbf16> to vector<256x75xbf16>
    %cst_36 = arith.constant dense<0.000000e+00> : vector<256x16xf32>
    %51 = tpu.matmul %50, %0, %cst_36 {dimension_numbers = #tpu.dot_dimension_numbers<[1], [0], [0], [1], [0, 0, 1, 1], [], []>} : vector<256x75xbf16>, vector<75x16xbf16>, vector<256x16xf32> -> vector<256x16xf32>
    %52 = vector.broadcast %1 : vector<1x16xf32> to vector<256x16xf32>
    %53 = arith.addf %51, %52 : vector<256x16xf32>
    %cst_37 = arith.constant 0.000000e+00 : f32
    %54 = vector.broadcast %cst_37 : f32 to vector<256x16xf32>
    %55 = arith.maximumf %53, %54 : vector<256x16xf32>
    %56 = arith.maximumf %48, %55 : vector<256x16xf32>
    %c0_38 = arith.constant 0 : index
    %c0_39 = arith.constant 0 : index
    %c1792 = arith.constant 1792 : index
    %c0_40 = arith.constant 0 : index
    %57 = vector.load %arg2[%c0_38, %c0_39, %c1792, %c0_40] : memref<1x1x2304x75xbf16, #tpu.memory_space<vmem>>, vector<1x1x256x75xbf16>
    %58 = vector.shape_cast %57 : vector<1x1x256x75xbf16> to vector<256x75xbf16>
    %cst_41 = arith.constant dense<0.000000e+00> : vector<256x16xf32>
    %59 = tpu.matmul %58, %0, %cst_41 {dimension_numbers = #tpu.dot_dimension_numbers<[1], [0], [0], [1], [0, 0, 1, 1], [], []>} : vector<256x75xbf16>, vector<75x16xbf16>, vector<256x16xf32> -> vector<256x16xf32>
    %60 = vector.broadcast %1 : vector<1x16xf32> to vector<256x16xf32>
    %61 = arith.addf %59, %60 : vector<256x16xf32>
    %cst_42 = arith.constant 0.000000e+00 : f32
    %62 = vector.broadcast %cst_42 : f32 to vector<256x16xf32>
    %63 = arith.maximumf %61, %62 : vector<256x16xf32>
    %64 = arith.maximumf %56, %63 : vector<256x16xf32>
    %c0_43 = arith.constant 0 : index
    %c0_44 = arith.constant 0 : index
    %c2048 = arith.constant 2048 : index
    %c0_45 = arith.constant 0 : index
    %65 = vector.load %arg2[%c0_43, %c0_44, %c2048, %c0_45] : memref<1x1x2304x75xbf16, #tpu.memory_space<vmem>>, vector<1x1x256x75xbf16>
    %66 = vector.shape_cast %65 : vector<1x1x256x75xbf16> to vector<256x75xbf16>
    %cst_46 = arith.constant dense<0.000000e+00> : vector<256x16xf32>
    %67 = tpu.matmul %66, %0, %cst_46 {dimension_numbers = #tpu.dot_dimension_numbers<[1], [0], [0], [1], [0, 0, 1, 1], [], []>} : vector<256x75xbf16>, vector<75x16xbf16>, vector<256x16xf32> -> vector<256x16xf32>
    %68 = vector.broadcast %1 : vector<1x16xf32> to vector<256x16xf32>
    %69 = arith.addf %67, %68 : vector<256x16xf32>
    %cst_47 = arith.constant 0.000000e+00 : f32
    %70 = vector.broadcast %cst_47 : f32 to vector<256x16xf32>
    %71 = arith.maximumf %69, %70 : vector<256x16xf32>
    %72 = arith.maximumf %64, %71 : vector<256x16xf32>
    %73 = arith.truncf %72 : vector<256x16xf32> to vector<256x16xbf16>
    %c0_48 = arith.constant 0 : index
    %c0_49 = arith.constant 0 : index
    %c0_50 = arith.constant 0 : index
    %74 = vector.load %arg5[%c0_48, %c0_49, %c0_50] : memref<1x256x16xbf16, #tpu.memory_space<vmem>>, vector<1x256x16xbf16>
    %75 = vector.shape_cast %74 : vector<1x256x16xbf16> to vector<256x16xbf16>
    %76 = vector.shape_cast %73 : vector<256x16xbf16> to vector<1x256x16xbf16>
    tpu.vector_store %arg5[%c0_48, %c0_49, %c0_50], %76 {strides = array<i32>} : memref<1x256x16xbf16, #tpu.memory_space<vmem>>, vector<1x256x16xbf16>,
    return
  }
  func.func @transform_0(%arg0: i32, %arg1: i32) -> (i32, i32, i32, i32) {
    %c0_i32 = arith.constant 0 : i32
    %c0_i32_0 = arith.constant 0 : i32
    %c0_i32_1 = arith.constant 0 : i32
    return %arg0, %arg1, %c0_i32, %c0_i32_0 : i32, i32, i32, i32
  }
  func.func @transform_1(%arg0: i32, %arg1: i32) -> (i32, i32) {
    %c0_i32 = arith.constant 0 : i32
    %c0_i32_0 = arith.constant 0 : i32
    %c0_i32_1 = arith.constant 0 : i32
    return %c0_i32, %c0_i32_0 : i32, i32
  }
  func.func @transform_2(%arg0: i32, %arg1: i32) -> (i32, i32) {
    %c0_i32 = arith.constant 0 : i32
    %c0_i32_0 = arith.constant 0 : i32
    %c0_i32_1 = arith.constant 0 : i32
    return %c0_i32, %c0_i32_0 : i32, i32
  }
  func.func @transform_3(%arg0: i32, %arg1: i32) -> (i32, i32, i32) {
    %c0_i32 = arith.constant 0 : i32
    %c0_i32_0 = arith.constant 0 : i32
    return %arg0, %arg1, %c0_i32 : i32, i32, i32
  }
}

module attributes {stable_mosaic.version = 11 : i64} {
  func.func @_conv_bn_relu_pool_kernel(%arg0: i32, %arg1: i32, %arg2: memref<1x1x1872x144xbf16, #tpu.memory_space<vmem>>, %arg3: memref<144x16xbf16, #tpu.memory_space<vmem>>, %arg4: memref<1x16xf32, #tpu.memory_space<vmem>>, %arg5: memref<1x208x16xbf16, #tpu.memory_space<vmem>>) attributes {dimension_semantics = [#tpu.dimension_semantics<parallel>, #tpu.dimension_semantics<parallel>], iteration_bounds = array<i64: 2, 1>, scalar_prefetch = 0 : i64, scratch_operands = 0 : i64, tpu.core_type = #tpu.core_type<tc>, window_params = [{transform_indices = @transform_0, window_bounds = array<i64: 1, 1, 1872, 144>}, {pipeline_mode = #tpu.pipeline_mode<synchronous>, transform_indices = @transform_1, window_bounds = array<i64: 144, 16>}, {pipeline_mode = #tpu.pipeline_mode<synchronous>, transform_indices = @transform_2, window_bounds = array<i64: 1, 16>}, {transform_indices = @transform_3, window_bounds = array<i64: 1, 208, 16>}]} {
    %c0 = arith.constant 0 : index
    %c0_0 = arith.constant 0 : index
    %0 = vector.load %arg3[%c0, %c0_0] : memref<144x16xbf16, #tpu.memory_space<vmem>>, vector<144x16xbf16>
    %c0_1 = arith.constant 0 : index
    %c0_2 = arith.constant 0 : index
    %1 = vector.load %arg4[%c0_1, %c0_2] : memref<1x16xf32, #tpu.memory_space<vmem>>, vector<1x16xf32>
    %c0_3 = arith.constant 0 : index
    %c0_4 = arith.constant 0 : index
    %c0_5 = arith.constant 0 : index
    %c0_6 = arith.constant 0 : index
    %2 = vector.load %arg2[%c0_3, %c0_4, %c0_5, %c0_6] : memref<1x1x1872x144xbf16, #tpu.memory_space<vmem>>, vector<1x1x208x144xbf16>
    %3 = vector.shape_cast %2 : vector<1x1x208x144xbf16> to vector<208x144xbf16>
    %cst = arith.constant dense<0.000000e+00> : vector<208x16xf32>
    %4 = tpu.matmul %3, %0, %cst {dimension_numbers = #tpu.dot_dimension_numbers<[1], [0], [0], [1], [0, 0, 1, 1], [], []>} : vector<208x144xbf16>, vector<144x16xbf16>, vector<208x16xf32> -> vector<208x16xf32>
    %5 = vector.broadcast %1 : vector<1x16xf32> to vector<208x16xf32>
    %6 = arith.addf %4, %5 : vector<208x16xf32>
    %cst_7 = arith.constant 0.000000e+00 : f32
    %7 = vector.broadcast %cst_7 : f32 to vector<208x16xf32>
    %8 = arith.maximumf %6, %7 : vector<208x16xf32>
    %c0_8 = arith.constant 0 : index
    %c0_9 = arith.constant 0 : index
    %c208 = arith.constant 208 : index
    %c0_10 = arith.constant 0 : index
    %9 = vector.load %arg2[%c0_8, %c0_9, %c208, %c0_10] : memref<1x1x1872x144xbf16, #tpu.memory_space<vmem>>, vector<1x1x208x144xbf16>
    %10 = vector.shape_cast %9 : vector<1x1x208x144xbf16> to vector<208x144xbf16>
    %cst_11 = arith.constant dense<0.000000e+00> : vector<208x16xf32>
    %11 = tpu.matmul %10, %0, %cst_11 {dimension_numbers = #tpu.dot_dimension_numbers<[1], [0], [0], [1], [0, 0, 1, 1], [], []>} : vector<208x144xbf16>, vector<144x16xbf16>, vector<208x16xf32> -> vector<208x16xf32>
    %12 = vector.broadcast %1 : vector<1x16xf32> to vector<208x16xf32>
    %13 = arith.addf %11, %12 : vector<208x16xf32>
    %cst_12 = arith.constant 0.000000e+00 : f32
    %14 = vector.broadcast %cst_12 : f32 to vector<208x16xf32>
    %15 = arith.maximumf %13, %14 : vector<208x16xf32>
    %16 = arith.maximumf %8, %15 : vector<208x16xf32>
    %c0_13 = arith.constant 0 : index
    %c0_14 = arith.constant 0 : index
    %c416 = arith.constant 416 : index
    %c0_15 = arith.constant 0 : index
    %17 = vector.load %arg2[%c0_13, %c0_14, %c416, %c0_15] : memref<1x1x1872x144xbf16, #tpu.memory_space<vmem>>, vector<1x1x208x144xbf16>
    %18 = vector.shape_cast %17 : vector<1x1x208x144xbf16> to vector<208x144xbf16>
    %cst_16 = arith.constant dense<0.000000e+00> : vector<208x16xf32>
    %19 = tpu.matmul %18, %0, %cst_16 {dimension_numbers = #tpu.dot_dimension_numbers<[1], [0], [0], [1], [0, 0, 1, 1], [], []>} : vector<208x144xbf16>, vector<144x16xbf16>, vector<208x16xf32> -> vector<208x16xf32>
    %20 = vector.broadcast %1 : vector<1x16xf32> to vector<208x16xf32>
    %21 = arith.addf %19, %20 : vector<208x16xf32>
    %cst_17 = arith.constant 0.000000e+00 : f32
    %22 = vector.broadcast %cst_17 : f32 to vector<208x16xf32>
    %23 = arith.maximumf %21, %22 : vector<208x16xf32>
    %24 = arith.maximumf %16, %23 : vector<208x16xf32>
    %c0_18 = arith.constant 0 : index
    %c0_19 = arith.constant 0 : index
    %c624 = arith.constant 624 : index
    %c0_20 = arith.constant 0 : index
    %25 = vector.load %arg2[%c0_18, %c0_19, %c624, %c0_20] : memref<1x1x1872x144xbf16, #tpu.memory_space<vmem>>, vector<1x1x208x144xbf16>
    %26 = vector.shape_cast %25 : vector<1x1x208x144xbf16> to vector<208x144xbf16>
    %cst_21 = arith.constant dense<0.000000e+00> : vector<208x16xf32>
    %27 = tpu.matmul %26, %0, %cst_21 {dimension_numbers = #tpu.dot_dimension_numbers<[1], [0], [0], [1], [0, 0, 1, 1], [], []>} : vector<208x144xbf16>, vector<144x16xbf16>, vector<208x16xf32> -> vector<208x16xf32>
    %28 = vector.broadcast %1 : vector<1x16xf32> to vector<208x16xf32>
    %29 = arith.addf %27, %28 : vector<208x16xf32>
    %cst_22 = arith.constant 0.000000e+00 : f32
    %30 = vector.broadcast %cst_22 : f32 to vector<208x16xf32>
    %31 = arith.maximumf %29, %30 : vector<208x16xf32>
    %32 = arith.maximumf %24, %31 : vector<208x16xf32>
    %c0_23 = arith.constant 0 : index
    %c0_24 = arith.constant 0 : index
    %c832 = arith.constant 832 : index
    %c0_25 = arith.constant 0 : index
    %33 = vector.load %arg2[%c0_23, %c0_24, %c832, %c0_25] : memref<1x1x1872x144xbf16, #tpu.memory_space<vmem>>, vector<1x1x208x144xbf16>
    %34 = vector.shape_cast %33 : vector<1x1x208x144xbf16> to vector<208x144xbf16>
    %cst_26 = arith.constant dense<0.000000e+00> : vector<208x16xf32>
    %35 = tpu.matmul %34, %0, %cst_26 {dimension_numbers = #tpu.dot_dimension_numbers<[1], [0], [0], [1], [0, 0, 1, 1], [], []>} : vector<208x144xbf16>, vector<144x16xbf16>, vector<208x16xf32> -> vector<208x16xf32>
    %36 = vector.broadcast %1 : vector<1x16xf32> to vector<208x16xf32>
    %37 = arith.addf %35, %36 : vector<208x16xf32>
    %cst_27 = arith.constant 0.000000e+00 : f32
    %38 = vector.broadcast %cst_27 : f32 to vector<208x16xf32>
    %39 = arith.maximumf %37, %38 : vector<208x16xf32>
    %40 = arith.maximumf %32, %39 : vector<208x16xf32>
    %c0_28 = arith.constant 0 : index
    %c0_29 = arith.constant 0 : index
    %c1040 = arith.constant 1040 : index
    %c0_30 = arith.constant 0 : index
    %41 = vector.load %arg2[%c0_28, %c0_29, %c1040, %c0_30] : memref<1x1x1872x144xbf16, #tpu.memory_space<vmem>>, vector<1x1x208x144xbf16>
    %42 = vector.shape_cast %41 : vector<1x1x208x144xbf16> to vector<208x144xbf16>
    %cst_31 = arith.constant dense<0.000000e+00> : vector<208x16xf32>
    %43 = tpu.matmul %42, %0, %cst_31 {dimension_numbers = #tpu.dot_dimension_numbers<[1], [0], [0], [1], [0, 0, 1, 1], [], []>} : vector<208x144xbf16>, vector<144x16xbf16>, vector<208x16xf32> -> vector<208x16xf32>
    %44 = vector.broadcast %1 : vector<1x16xf32> to vector<208x16xf32>
    %45 = arith.addf %43, %44 : vector<208x16xf32>
    %cst_32 = arith.constant 0.000000e+00 : f32
    %46 = vector.broadcast %cst_32 : f32 to vector<208x16xf32>
    %47 = arith.maximumf %45, %46 : vector<208x16xf32>
    %48 = arith.maximumf %40, %47 : vector<208x16xf32>
    %c0_33 = arith.constant 0 : index
    %c0_34 = arith.constant 0 : index
    %c1248 = arith.constant 1248 : index
    %c0_35 = arith.constant 0 : index
    %49 = vector.load %arg2[%c0_33, %c0_34, %c1248, %c0_35] : memref<1x1x1872x144xbf16, #tpu.memory_space<vmem>>, vector<1x1x208x144xbf16>
    %50 = vector.shape_cast %49 : vector<1x1x208x144xbf16> to vector<208x144xbf16>
    %cst_36 = arith.constant dense<0.000000e+00> : vector<208x16xf32>
    %51 = tpu.matmul %50, %0, %cst_36 {dimension_numbers = #tpu.dot_dimension_numbers<[1], [0], [0], [1], [0, 0, 1, 1], [], []>} : vector<208x144xbf16>, vector<144x16xbf16>, vector<208x16xf32> -> vector<208x16xf32>
    %52 = vector.broadcast %1 : vector<1x16xf32> to vector<208x16xf32>
    %53 = arith.addf %51, %52 : vector<208x16xf32>
    %cst_37 = arith.constant 0.000000e+00 : f32
    %54 = vector.broadcast %cst_37 : f32 to vector<208x16xf32>
    %55 = arith.maximumf %53, %54 : vector<208x16xf32>
    %56 = arith.maximumf %48, %55 : vector<208x16xf32>
    %c0_38 = arith.constant 0 : index
    %c0_39 = arith.constant 0 : index
    %c1456 = arith.constant 1456 : index
    %c0_40 = arith.constant 0 : index
    %57 = vector.load %arg2[%c0_38, %c0_39, %c1456, %c0_40] : memref<1x1x1872x144xbf16, #tpu.memory_space<vmem>>, vector<1x1x208x144xbf16>
    %58 = vector.shape_cast %57 : vector<1x1x208x144xbf16> to vector<208x144xbf16>
    %cst_41 = arith.constant dense<0.000000e+00> : vector<208x16xf32>
    %59 = tpu.matmul %58, %0, %cst_41 {dimension_numbers = #tpu.dot_dimension_numbers<[1], [0], [0], [1], [0, 0, 1, 1], [], []>} : vector<208x144xbf16>, vector<144x16xbf16>, vector<208x16xf32> -> vector<208x16xf32>
    %60 = vector.broadcast %1 : vector<1x16xf32> to vector<208x16xf32>
    %61 = arith.addf %59, %60 : vector<208x16xf32>
    %cst_42 = arith.constant 0.000000e+00 : f32
    %62 = vector.broadcast %cst_42 : f32 to vector<208x16xf32>
    %63 = arith.maximumf %61, %62 : vector<208x16xf32>
    %64 = arith.maximumf %56, %63 : vector<208x16xf32>
    %c0_43 = arith.constant 0 : index
    %c0_44 = arith.constant 0 : index
    %c1664 = arith.constant 1664 : index
    %c0_45 = arith.constant 0 : index
    %65 = vector.load %arg2[%c0_43, %c0_44, %c1664, %c0_45] : memref<1x1x1872x144xbf16, #tpu.memory_space<vmem>>, vector<1x1x208x144xbf16>
    %66 = vector.shape_cast %65 : vector<1x1x208x144xbf16> to vector<208x144xbf16>
    %cst_46 = arith.constant dense<0.000000e+00> : vector<208x16xf32>
    %67 = tpu.matmul %66, %0, %cst_46 {dimension_numbers = #tpu.dot_dimension_numbers<[1], [0], [0], [1], [0, 0, 1, 1], [], []>} : vector<208x144xbf16>, vector<144x16xbf16>, vector<208x16xf32> -> vector<208x16xf32>
    %68 = vector.broadcast %1 : vector<1x16xf32> to vector<208x16xf32>
    %69 = arith.addf %67, %68 : vector<208x16xf32>
    %cst_47 = arith.constant 0.000000e+00 : f32
    %70 = vector.broadcast %cst_47 : f32 to vector<208x16xf32>
    %71 = arith.maximumf %69, %70 : vector<208x16xf32>
    %72 = arith.maximumf %64, %71 : vector<208x16xf32>
    %73 = arith.truncf %72 : vector<208x16xf32> to vector<208x16xbf16>
    %c0_48 = arith.constant 0 : index
    %c0_49 = arith.constant 0 : index
    %c0_50 = arith.constant 0 : index
    %74 = vector.load %arg5[%c0_48, %c0_49, %c0_50] : memref<1x208x16xbf16, #tpu.memory_space<vmem>>, vector<1x208x16xbf16>
    %75 = vector.shape_cast %74 : vector<1x208x16xbf16> to vector<208x16xbf16>
    %76 = vector.shape_cast %73 : vector<208x16xbf16> to vector<1x208x16xbf16>
    tpu.vector_store %arg5[%c0_48, %c0_49, %c0_50], %76 {strides = array<i32>} : memref<1x208x16xbf16, #tpu.memory_space<vmem>>, vector<1x208x16xbf16>,
    return
  }
  func.func @transform_0(%arg0: i32, %arg1: i32) -> (i32, i32, i32, i32) {
    %c0_i32 = arith.constant 0 : i32
    %c0_i32_0 = arith.constant 0 : i32
    %c0_i32_1 = arith.constant 0 : i32
    return %arg0, %arg1, %c0_i32, %c0_i32_0 : i32, i32, i32, i32
  }
  func.func @transform_1(%arg0: i32, %arg1: i32) -> (i32, i32) {
    %c0_i32 = arith.constant 0 : i32
    %c0_i32_0 = arith.constant 0 : i32
    %c0_i32_1 = arith.constant 0 : i32
    return %c0_i32, %c0_i32_0 : i32, i32
  }
  func.func @transform_2(%arg0: i32, %arg1: i32) -> (i32, i32) {
    %c0_i32 = arith.constant 0 : i32
    %c0_i32_0 = arith.constant 0 : i32
    %c0_i32_1 = arith.constant 0 : i32
    return %c0_i32, %c0_i32_0 : i32, i32
  }
  func.func @transform_3(%arg0: i32, %arg1: i32) -> (i32, i32, i32) {
    %c0_i32 = arith.constant 0 : i32
    %c0_i32_0 = arith.constant 0 : i32
    return %arg0, %arg1, %c0_i32 : i32, i32, i32
  }
}

module attributes {stable_mosaic.version = 11 : i64} {
  func.func @_conv_bn_relu_pool_kernel(%arg0: i32, %arg1: i32, %arg2: memref<1x1x288x144xbf16, #tpu.memory_space<vmem>>, %arg3: memref<144x32xbf16, #tpu.memory_space<vmem>>, %arg4: memref<1x32xf32, #tpu.memory_space<vmem>>, %arg5: memref<1x32x32xbf16, #tpu.memory_space<vmem>>) attributes {dimension_semantics = [#tpu.dimension_semantics<parallel>, #tpu.dimension_semantics<parallel>], iteration_bounds = array<i64: 2, 1>, scalar_prefetch = 0 : i64, scratch_operands = 0 : i64, tpu.core_type = #tpu.core_type<tc>, window_params = [{transform_indices = @transform_0, window_bounds = array<i64: 1, 1, 288, 144>}, {pipeline_mode = #tpu.pipeline_mode<synchronous>, transform_indices = @transform_1, window_bounds = array<i64: 144, 32>}, {pipeline_mode = #tpu.pipeline_mode<synchronous>, transform_indices = @transform_2, window_bounds = array<i64: 1, 32>}, {transform_indices = @transform_3, window_bounds = array<i64: 1, 32, 32>}]} {
    %c0 = arith.constant 0 : index
    %c0_0 = arith.constant 0 : index
    %0 = vector.load %arg3[%c0, %c0_0] : memref<144x32xbf16, #tpu.memory_space<vmem>>, vector<144x32xbf16>
    %c0_1 = arith.constant 0 : index
    %c0_2 = arith.constant 0 : index
    %1 = vector.load %arg4[%c0_1, %c0_2] : memref<1x32xf32, #tpu.memory_space<vmem>>, vector<1x32xf32>
    %c0_3 = arith.constant 0 : index
    %c0_4 = arith.constant 0 : index
    %c0_5 = arith.constant 0 : index
    %c0_6 = arith.constant 0 : index
    %2 = vector.load %arg2[%c0_3, %c0_4, %c0_5, %c0_6] : memref<1x1x288x144xbf16, #tpu.memory_space<vmem>>, vector<1x1x32x144xbf16>
    %3 = vector.shape_cast %2 : vector<1x1x32x144xbf16> to vector<32x144xbf16>
    %cst = arith.constant dense<0.000000e+00> : vector<32x32xf32>
    %4 = tpu.matmul %3, %0, %cst {dimension_numbers = #tpu.dot_dimension_numbers<[1], [0], [0], [1], [0, 0, 1, 1], [], []>} : vector<32x144xbf16>, vector<144x32xbf16>, vector<32x32xf32> -> vector<32x32xf32>
    %5 = vector.broadcast %1 : vector<1x32xf32> to vector<32x32xf32>
    %6 = arith.addf %4, %5 : vector<32x32xf32>
    %cst_7 = arith.constant 0.000000e+00 : f32
    %7 = vector.broadcast %cst_7 : f32 to vector<32x32xf32>
    %8 = arith.maximumf %6, %7 : vector<32x32xf32>
    %c0_8 = arith.constant 0 : index
    %c0_9 = arith.constant 0 : index
    %c32 = arith.constant 32 : index
    %c0_10 = arith.constant 0 : index
    %9 = vector.load %arg2[%c0_8, %c0_9, %c32, %c0_10] : memref<1x1x288x144xbf16, #tpu.memory_space<vmem>>, vector<1x1x32x144xbf16>
    %10 = vector.shape_cast %9 : vector<1x1x32x144xbf16> to vector<32x144xbf16>
    %cst_11 = arith.constant dense<0.000000e+00> : vector<32x32xf32>
    %11 = tpu.matmul %10, %0, %cst_11 {dimension_numbers = #tpu.dot_dimension_numbers<[1], [0], [0], [1], [0, 0, 1, 1], [], []>} : vector<32x144xbf16>, vector<144x32xbf16>, vector<32x32xf32> -> vector<32x32xf32>
    %12 = vector.broadcast %1 : vector<1x32xf32> to vector<32x32xf32>
    %13 = arith.addf %11, %12 : vector<32x32xf32>
    %cst_12 = arith.constant 0.000000e+00 : f32
    %14 = vector.broadcast %cst_12 : f32 to vector<32x32xf32>
    %15 = arith.maximumf %13, %14 : vector<32x32xf32>
    %16 = arith.maximumf %8, %15 : vector<32x32xf32>
    %c0_13 = arith.constant 0 : index
    %c0_14 = arith.constant 0 : index
    %c64 = arith.constant 64 : index
    %c0_15 = arith.constant 0 : index
    %17 = vector.load %arg2[%c0_13, %c0_14, %c64, %c0_15] : memref<1x1x288x144xbf16, #tpu.memory_space<vmem>>, vector<1x1x32x144xbf16>
    %18 = vector.shape_cast %17 : vector<1x1x32x144xbf16> to vector<32x144xbf16>
    %cst_16 = arith.constant dense<0.000000e+00> : vector<32x32xf32>
    %19 = tpu.matmul %18, %0, %cst_16 {dimension_numbers = #tpu.dot_dimension_numbers<[1], [0], [0], [1], [0, 0, 1, 1], [], []>} : vector<32x144xbf16>, vector<144x32xbf16>, vector<32x32xf32> -> vector<32x32xf32>
    %20 = vector.broadcast %1 : vector<1x32xf32> to vector<32x32xf32>
    %21 = arith.addf %19, %20 : vector<32x32xf32>
    %cst_17 = arith.constant 0.000000e+00 : f32
    %22 = vector.broadcast %cst_17 : f32 to vector<32x32xf32>
    %23 = arith.maximumf %21, %22 : vector<32x32xf32>
    %24 = arith.maximumf %16, %23 : vector<32x32xf32>
    %c0_18 = arith.constant 0 : index
    %c0_19 = arith.constant 0 : index
    %c96 = arith.constant 96 : index
    %c0_20 = arith.constant 0 : index
    %25 = vector.load %arg2[%c0_18, %c0_19, %c96, %c0_20] : memref<1x1x288x144xbf16, #tpu.memory_space<vmem>>, vector<1x1x32x144xbf16>
    %26 = vector.shape_cast %25 : vector<1x1x32x144xbf16> to vector<32x144xbf16>
    %cst_21 = arith.constant dense<0.000000e+00> : vector<32x32xf32>
    %27 = tpu.matmul %26, %0, %cst_21 {dimension_numbers = #tpu.dot_dimension_numbers<[1], [0], [0], [1], [0, 0, 1, 1], [], []>} : vector<32x144xbf16>, vector<144x32xbf16>, vector<32x32xf32> -> vector<32x32xf32>
    %28 = vector.broadcast %1 : vector<1x32xf32> to vector<32x32xf32>
    %29 = arith.addf %27, %28 : vector<32x32xf32>
    %cst_22 = arith.constant 0.000000e+00 : f32
    %30 = vector.broadcast %cst_22 : f32 to vector<32x32xf32>
    %31 = arith.maximumf %29, %30 : vector<32x32xf32>
    %32 = arith.maximumf %24, %31 : vector<32x32xf32>
    %c0_23 = arith.constant 0 : index
    %c0_24 = arith.constant 0 : index
    %c128 = arith.constant 128 : index
    %c0_25 = arith.constant 0 : index
    %33 = vector.load %arg2[%c0_23, %c0_24, %c128, %c0_25] : memref<1x1x288x144xbf16, #tpu.memory_space<vmem>>, vector<1x1x32x144xbf16>
    %34 = vector.shape_cast %33 : vector<1x1x32x144xbf16> to vector<32x144xbf16>
    %cst_26 = arith.constant dense<0.000000e+00> : vector<32x32xf32>
    %35 = tpu.matmul %34, %0, %cst_26 {dimension_numbers = #tpu.dot_dimension_numbers<[1], [0], [0], [1], [0, 0, 1, 1], [], []>} : vector<32x144xbf16>, vector<144x32xbf16>, vector<32x32xf32> -> vector<32x32xf32>
    %36 = vector.broadcast %1 : vector<1x32xf32> to vector<32x32xf32>
    %37 = arith.addf %35, %36 : vector<32x32xf32>
    %cst_27 = arith.constant 0.000000e+00 : f32
    %38 = vector.broadcast %cst_27 : f32 to vector<32x32xf32>
    %39 = arith.maximumf %37, %38 : vector<32x32xf32>
    %40 = arith.maximumf %32, %39 : vector<32x32xf32>
    %c0_28 = arith.constant 0 : index
    %c0_29 = arith.constant 0 : index
    %c160 = arith.constant 160 : index
    %c0_30 = arith.constant 0 : index
    %41 = vector.load %arg2[%c0_28, %c0_29, %c160, %c0_30] : memref<1x1x288x144xbf16, #tpu.memory_space<vmem>>, vector<1x1x32x144xbf16>
    %42 = vector.shape_cast %41 : vector<1x1x32x144xbf16> to vector<32x144xbf16>
    %cst_31 = arith.constant dense<0.000000e+00> : vector<32x32xf32>
    %43 = tpu.matmul %42, %0, %cst_31 {dimension_numbers = #tpu.dot_dimension_numbers<[1], [0], [0], [1], [0, 0, 1, 1], [], []>} : vector<32x144xbf16>, vector<144x32xbf16>, vector<32x32xf32> -> vector<32x32xf32>
    %44 = vector.broadcast %1 : vector<1x32xf32> to vector<32x32xf32>
    %45 = arith.addf %43, %44 : vector<32x32xf32>
    %cst_32 = arith.constant 0.000000e+00 : f32
    %46 = vector.broadcast %cst_32 : f32 to vector<32x32xf32>
    %47 = arith.maximumf %45, %46 : vector<32x32xf32>
    %48 = arith.maximumf %40, %47 : vector<32x32xf32>
    %c0_33 = arith.constant 0 : index
    %c0_34 = arith.constant 0 : index
    %c192 = arith.constant 192 : index
    %c0_35 = arith.constant 0 : index
    %49 = vector.load %arg2[%c0_33, %c0_34, %c192, %c0_35] : memref<1x1x288x144xbf16, #tpu.memory_space<vmem>>, vector<1x1x32x144xbf16>
    %50 = vector.shape_cast %49 : vector<1x1x32x144xbf16> to vector<32x144xbf16>
    %cst_36 = arith.constant dense<0.000000e+00> : vector<32x32xf32>
    %51 = tpu.matmul %50, %0, %cst_36 {dimension_numbers = #tpu.dot_dimension_numbers<[1], [0], [0], [1], [0, 0, 1, 1], [], []>} : vector<32x144xbf16>, vector<144x32xbf16>, vector<32x32xf32> -> vector<32x32xf32>
    %52 = vector.broadcast %1 : vector<1x32xf32> to vector<32x32xf32>
    %53 = arith.addf %51, %52 : vector<32x32xf32>
    %cst_37 = arith.constant 0.000000e+00 : f32
    %54 = vector.broadcast %cst_37 : f32 to vector<32x32xf32>
    %55 = arith.maximumf %53, %54 : vector<32x32xf32>
    %56 = arith.maximumf %48, %55 : vector<32x32xf32>
    %c0_38 = arith.constant 0 : index
    %c0_39 = arith.constant 0 : index
    %c224 = arith.constant 224 : index
    %c0_40 = arith.constant 0 : index
    %57 = vector.load %arg2[%c0_38, %c0_39, %c224, %c0_40] : memref<1x1x288x144xbf16, #tpu.memory_space<vmem>>, vector<1x1x32x144xbf16>
    %58 = vector.shape_cast %57 : vector<1x1x32x144xbf16> to vector<32x144xbf16>
    %cst_41 = arith.constant dense<0.000000e+00> : vector<32x32xf32>
    %59 = tpu.matmul %58, %0, %cst_41 {dimension_numbers = #tpu.dot_dimension_numbers<[1], [0], [0], [1], [0, 0, 1, 1], [], []>} : vector<32x144xbf16>, vector<144x32xbf16>, vector<32x32xf32> -> vector<32x32xf32>
    %60 = vector.broadcast %1 : vector<1x32xf32> to vector<32x32xf32>
    %61 = arith.addf %59, %60 : vector<32x32xf32>
    %cst_42 = arith.constant 0.000000e+00 : f32
    %62 = vector.broadcast %cst_42 : f32 to vector<32x32xf32>
    %63 = arith.maximumf %61, %62 : vector<32x32xf32>
    %64 = arith.maximumf %56, %63 : vector<32x32xf32>
    %c0_43 = arith.constant 0 : index
    %c0_44 = arith.constant 0 : index
    %c256 = arith.constant 256 : index
    %c0_45 = arith.constant 0 : index
    %65 = vector.load %arg2[%c0_43, %c0_44, %c256, %c0_45] : memref<1x1x288x144xbf16, #tpu.memory_space<vmem>>, vector<1x1x32x144xbf16>
    %66 = vector.shape_cast %65 : vector<1x1x32x144xbf16> to vector<32x144xbf16>
    %cst_46 = arith.constant dense<0.000000e+00> : vector<32x32xf32>
    %67 = tpu.matmul %66, %0, %cst_46 {dimension_numbers = #tpu.dot_dimension_numbers<[1], [0], [0], [1], [0, 0, 1, 1], [], []>} : vector<32x144xbf16>, vector<144x32xbf16>, vector<32x32xf32> -> vector<32x32xf32>
    %68 = vector.broadcast %1 : vector<1x32xf32> to vector<32x32xf32>
    %69 = arith.addf %67, %68 : vector<32x32xf32>
    %cst_47 = arith.constant 0.000000e+00 : f32
    %70 = vector.broadcast %cst_47 : f32 to vector<32x32xf32>
    %71 = arith.maximumf %69, %70 : vector<32x32xf32>
    %72 = arith.maximumf %64, %71 : vector<32x32xf32>
    %73 = arith.truncf %72 : vector<32x32xf32> to vector<32x32xbf16>
    %c0_48 = arith.constant 0 : index
    %c0_49 = arith.constant 0 : index
    %c0_50 = arith.constant 0 : index
    %74 = vector.load %arg5[%c0_48, %c0_49, %c0_50] : memref<1x32x32xbf16, #tpu.memory_space<vmem>>, vector<1x32x32xbf16>
    %75 = vector.shape_cast %74 : vector<1x32x32xbf16> to vector<32x32xbf16>
    %76 = vector.shape_cast %73 : vector<32x32xbf16> to vector<1x32x32xbf16>
    tpu.vector_store %arg5[%c0_48, %c0_49, %c0_50], %76 {strides = array<i32>} : memref<1x32x32xbf16, #tpu.memory_space<vmem>>, vector<1x32x32xbf16>,
    return
  }
  func.func @transform_0(%arg0: i32, %arg1: i32) -> (i32, i32, i32, i32) {
    %c0_i32 = arith.constant 0 : i32
    %c0_i32_0 = arith.constant 0 : i32
    %c0_i32_1 = arith.constant 0 : i32
    return %arg0, %arg1, %c0_i32, %c0_i32_0 : i32, i32, i32, i32
  }
  func.func @transform_1(%arg0: i32, %arg1: i32) -> (i32, i32) {
    %c0_i32 = arith.constant 0 : i32
    %c0_i32_0 = arith.constant 0 : i32
    %c0_i32_1 = arith.constant 0 : i32
    return %c0_i32, %c0_i32_0 : i32, i32
  }
  func.func @transform_2(%arg0: i32, %arg1: i32) -> (i32, i32) {
    %c0_i32 = arith.constant 0 : i32
    %c0_i32_0 = arith.constant 0 : i32
    %c0_i32_1 = arith.constant 0 : i32
    return %c0_i32, %c0_i32_0 : i32, i32
  }
  func.func @transform_3(%arg0: i32, %arg1: i32) -> (i32, i32, i32) {
    %c0_i32 = arith.constant 0 : i32
    %c0_i32_0 = arith.constant 0 : i32
    return %arg0, %arg1, %c0_i32 : i32, i32, i32
  }
}

module attributes {stable_mosaic.version = 11 : i64} {
  func.func @_mlp_kernel(%arg0: i32, %arg1: memref<16x800xbf16, #tpu.memory_space<vmem>>, %arg2: memref<800x120xbf16, #tpu.memory_space<vmem>>, %arg3: memref<1x120xf32, #tpu.memory_space<vmem>>, %arg4: memref<120x84xbf16, #tpu.memory_space<vmem>>, %arg5: memref<1x84xf32, #tpu.memory_space<vmem>>, %arg6: memref<84x8xbf16, #tpu.memory_space<vmem>>, %arg7: memref<1x8xf32, #tpu.memory_space<vmem>>, %arg8: memref<16x8xf32, #tpu.memory_space<vmem>>) attributes {dimension_semantics = [#tpu.dimension_semantics<arbitrary>], iteration_bounds = array<i64: 1>, scalar_prefetch = 0 : i64, scratch_operands = 0 : i64, tpu.core_type = #tpu.core_type<tc>, window_params = [{pipeline_mode = #tpu.pipeline_mode<synchronous>, transform_indices = @transform_0, window_bounds = array<i64: 16, 800>}, {pipeline_mode = #tpu.pipeline_mode<synchronous>, transform_indices = @transform_1, window_bounds = array<i64: 800, 120>}, {pipeline_mode = #tpu.pipeline_mode<synchronous>, transform_indices = @transform_2, window_bounds = array<i64: 1, 120>}, {pipeline_mode = #tpu.pipeline_mode<synchronous>, transform_indices = @transform_3, window_bounds = array<i64: 120, 84>}, {pipeline_mode = #tpu.pipeline_mode<synchronous>, transform_indices = @transform_4, window_bounds = array<i64: 1, 84>}, {pipeline_mode = #tpu.pipeline_mode<synchronous>, transform_indices = @transform_5, window_bounds = array<i64: 84, 8>}, {pipeline_mode = #tpu.pipeline_mode<synchronous>, transform_indices = @transform_6, window_bounds = array<i64: 1, 8>}, {pipeline_mode = #tpu.pipeline_mode<synchronous>, transform_indices = @transform_7, window_bounds = array<i64: 16, 8>}]} {
    %c0 = arith.constant 0 : index
    %c0_0 = arith.constant 0 : index
    %0 = vector.load %arg1[%c0, %c0_0] : memref<16x800xbf16, #tpu.memory_space<vmem>>, vector<16x800xbf16>
    %c0_1 = arith.constant 0 : index
    %c0_2 = arith.constant 0 : index
    %1 = vector.load %arg2[%c0_1, %c0_2] : memref<800x120xbf16, #tpu.memory_space<vmem>>, vector<800x120xbf16>
    %cst = arith.constant dense<0.000000e+00> : vector<16x120xf32>
    %2 = tpu.matmul %0, %1, %cst {dimension_numbers = #tpu.dot_dimension_numbers<[1], [0], [0], [1], [0, 0, 1, 1], [], []>} : vector<16x800xbf16>, vector<800x120xbf16>, vector<16x120xf32> -> vector<16x120xf32>
    %c0_3 = arith.constant 0 : index
    %c0_4 = arith.constant 0 : index
    %3 = vector.load %arg3[%c0_3, %c0_4] : memref<1x120xf32, #tpu.memory_space<vmem>>, vector<1x120xf32>
    %4 = vector.broadcast %3 : vector<1x120xf32> to vector<16x120xf32>
    %5 = arith.addf %2, %4 : vector<16x120xf32>
    %cst_5 = arith.constant 0.000000e+00 : f32
    %6 = vector.broadcast %cst_5 : f32 to vector<16x120xf32>
    %7 = arith.maximumf %5, %6 : vector<16x120xf32>
    %8 = arith.truncf %7 : vector<16x120xf32> to vector<16x120xbf16>
    %c0_6 = arith.constant 0 : index
    %c0_7 = arith.constant 0 : index
    %9 = vector.load %arg4[%c0_6, %c0_7] : memref<120x84xbf16, #tpu.memory_space<vmem>>, vector<120x84xbf16>
    %cst_8 = arith.constant dense<0.000000e+00> : vector<16x84xf32>
    %10 = tpu.matmul %8, %9, %cst_8 {dimension_numbers = #tpu.dot_dimension_numbers<[1], [0], [0], [1], [0, 0, 1, 1], [], []>} : vector<16x120xbf16>, vector<120x84xbf16>, vector<16x84xf32> -> vector<16x84xf32>
    %c0_9 = arith.constant 0 : index
    %c0_10 = arith.constant 0 : index
    %11 = vector.load %arg5[%c0_9, %c0_10] : memref<1x84xf32, #tpu.memory_space<vmem>>, vector<1x84xf32>
    %12 = vector.broadcast %11 : vector<1x84xf32> to vector<16x84xf32>
    %13 = arith.addf %10, %12 : vector<16x84xf32>
    %cst_11 = arith.constant 0.000000e+00 : f32
    %14 = vector.broadcast %cst_11 : f32 to vector<16x84xf32>
    %15 = arith.maximumf %13, %14 : vector<16x84xf32>
    %16 = arith.truncf %15 : vector<16x84xf32> to vector<16x84xbf16>
    %c0_12 = arith.constant 0 : index
    %c0_13 = arith.constant 0 : index
    %17 = vector.load %arg6[%c0_12, %c0_13] : memref<84x8xbf16, #tpu.memory_space<vmem>>, vector<84x8xbf16>
    %cst_14 = arith.constant dense<0.000000e+00> : vector<16x8xf32>
    %18 = tpu.matmul %16, %17, %cst_14 {dimension_numbers = #tpu.dot_dimension_numbers<[1], [0], [0], [1], [0, 0, 1, 1], [], []>} : vector<16x84xbf16>, vector<84x8xbf16>, vector<16x8xf32> -> vector<16x8xf32>
    %c0_15 = arith.constant 0 : index
    %c0_16 = arith.constant 0 : index
    %19 = vector.load %arg7[%c0_15, %c0_16] : memref<1x8xf32, #tpu.memory_space<vmem>>, vector<1x8xf32>
    %20 = vector.broadcast %19 : vector<1x8xf32> to vector<16x8xf32>
    %21 = arith.addf %18, %20 : vector<16x8xf32>
    %c0_17 = arith.constant 0 : index
    %c0_18 = arith.constant 0 : index
    %22 = vector.load %arg8[%c0_17, %c0_18] : memref<16x8xf32, #tpu.memory_space<vmem>>, vector<16x8xf32>
    tpu.vector_store %arg8[%c0_17, %c0_18], %21 {strides = array<i32>} : memref<16x8xf32, #tpu.memory_space<vmem>>, vector<16x8xf32>,
    return
  }
  func.func @transform_0(%arg0: i32) -> (i32, i32) {
    %c0_i32 = arith.constant 0 : i32
    %c0_i32_0 = arith.constant 0 : i32
    %c0_i32_1 = arith.constant 0 : i32
    return %c0_i32, %c0_i32_0 : i32, i32
  }
  func.func @transform_1(%arg0: i32) -> (i32, i32) {
    %c0_i32 = arith.constant 0 : i32
    %c0_i32_0 = arith.constant 0 : i32
    %c0_i32_1 = arith.constant 0 : i32
    return %c0_i32, %c0_i32_0 : i32, i32
  }
  func.func @transform_2(%arg0: i32) -> (i32, i32) {
    %c0_i32 = arith.constant 0 : i32
    %c0_i32_0 = arith.constant 0 : i32
    %c0_i32_1 = arith.constant 0 : i32
    return %c0_i32, %c0_i32_0 : i32, i32
  }
  func.func @transform_3(%arg0: i32) -> (i32, i32) {
    %c0_i32 = arith.constant 0 : i32
    %c0_i32_0 = arith.constant 0 : i32
    %c0_i32_1 = arith.constant 0 : i32
    return %c0_i32, %c0_i32_0 : i32, i32
  }
  func.func @transform_4(%arg0: i32) -> (i32, i32) {
    %c0_i32 = arith.constant 0 : i32
    %c0_i32_0 = arith.constant 0 : i32
    %c0_i32_1 = arith.constant 0 : i32
    return %c0_i32, %c0_i32_0 : i32, i32
  }
  func.func @transform_5(%arg0: i32) -> (i32, i32) {
    %c0_i32 = arith.constant 0 : i32
    %c0_i32_0 = arith.constant 0 : i32
    %c0_i32_1 = arith.constant 0 : i32
    return %c0_i32, %c0_i32_0 : i32, i32
  }
  func.func @transform_6(%arg0: i32) -> (i32, i32) {
    %c0_i32 = arith.constant 0 : i32
    %c0_i32_0 = arith.constant 0 : i32
    %c0_i32_1 = arith.constant 0 : i32
    return %c0_i32, %c0_i32_0 : i32, i32
  }
  func.func @transform_7(%arg0: i32) -> (i32, i32) {
    %c0_i32 = arith.constant 0 : i32
    %c0_i32_0 = arith.constant 0 : i32
    %c0_i32_1 = arith.constant 0 : i32
    return %c0_i32, %c0_i32_0 : i32, i32
  }
}

</mosaic_0001>

<llo_original>
// kernel: pokenet_forward.4
$region0: #{pokenet_forward.4}
  #allocation0 [shape = 'u32[]', space=smem, size = 0x4, offset = 0x4, fixed_abs, tag = 'smem constant byte address 0x4 - core index']
  #allocation1 [shape = 'u32[144,128]{1,0:T(1,128)}', space=vmem, size = 0x12000, scoped, tag = 'internal scratch']
  %s0 = inlined_call_operand.vmem [shape: bf16[2,4,2304,75], index: 0, kind: input, shape index: {}]
  %s1 = inlined_call_operand.vmem [shape: bf16[75,16], index: 1, kind: input, shape index: {}]
  %s2 = inlined_call_operand.vmem [shape: f32[1,16], index: 2, kind: input, shape index: {}]
  %s3 = inlined_call_operand.vmem [shape: bf16[2,1024,16], index: 3, kind: output, shape index: {}]
  %s4 = sld [smem:[#allocation0]]
  $region45: #{pokenet_forward.4} parent=0
    _
  %s6 = ssub.s32 1, %s4
  %s7 = scalar_select 0, %s6, %s4
  loop: start=0, step=1, limit=10
  $region2: #{pokenet_forward.4} parent=0 // loop_pre_header
    _
  $region3: #{pokenet_forward.4} parent=0 // loop_header
    %s9 = sphi 0, %s13
    %p10 = scmp.ge.s32.totalorder %s9, 10
    %s16 = sphi 0, %s28
    %s17 = sphi 0, %s24
    %s18 = sphi 0, %s16
    %s19 = sphi 0, %s17
    %s20 = sphi 0, %s18
    %s21 = sphi 0, %s19
    %s33 = sphi 0, %s35
    %s36 = sphi 0, %s33
    %s37 = sphi 0, %s36
    %s53 = sphi 0, %s37
    %s57 = sphi 0, %s57
    %s59 = sphi 0, %s57
    %s60 = sphi 0, %s59
    %s74 = sphi 0, %s60
    %s78 = sphi 0, %s78
    %s80 = sphi 0, %s78
    %s81 = sphi 0, %s80
    %s95 = sphi 0, %s81
    %s103 = sphi 0, %s105
    %s106 = sphi 0, %s103
    %s107 = sphi 0, %s106
    %s123 = sphi 0, %s107
  $region4: #{pokenet_forward.4} parent=0 // loop_header_branch
    %12 = sbr.rel (%p10) target = $region8
  $region5: #{pokenet_forward.4} parent=0 // loop_body
    %s14 = ssub.s32 %s9, 1
    %s15 = ssub.s32 %s9, 2
    %s22 = sadd.s32 1, %s17
    %p23 = scmp.ge.s32.totalorder %s22, 4
    %s24 = scalar_select %p23, 0, %s22
    %s25 = sadd.s32 1, %s16
    %s26 = scalar_select %p23, %s25, %s16
    %p27 = scmp.ge.s32.totalorder %s26, 2
    %s28 = scalar_select %p27, 0, %s26
    %s29 = ssub.s32 %s16, %s28
    %s30 = ssub.s32 %s17, %s24
    %s31 = sor.u32 %s29, %s30
    %p32 = scmp.eq.s32.totalorder %s31, 0
    %s34 = sadd.s32 %s33, 1
    %s35 = scalar_select %p32, %s33, %s34
    %p38 = pneg %p32
    %p39 = scmp.eq.s32.totalorder %s9, 7
    %p40 = por %p38, %p39
    %p41 = scmp.ne.s32.totalorder %s33, %s36
    %p42 = scmp.eq.s32.totalorder %s9, 0
    %p43 = por %p41, %p42
    %p44 = scmp.ne.s32.totalorder %s33, %s36
    %p45 = scmp.eq.s32.totalorder %s14, 7
    %p46 = por %p44, %p45
    %p47 = scmp.ne.s32.totalorder %s36, %s37
    %p48 = scmp.eq.s32.totalorder %s14, 0
    %p49 = por %p47, %p48
    %p50 = scmp.ne.s32.totalorder %s36, %s37
    %p51 = scmp.eq.s32.totalorder %s15, 7
    %p52 = por %p50, %p51
    %p54 = scmp.ne.s32.totalorder %s37, %s53
    %p55 = scmp.eq.s32.totalorder %s15, 0
    %p56 = por %p54, %p55
    %s58 = sadd.s32 %s57, 1
    %p61 = scmp.eq.s32.totalorder %s9, 7
    %p62 = scmp.ne.s32.totalorder %s57, %s59
    %p63 = scmp.eq.s32.totalorder %s9, 0
    %p64 = por %p62, %p63
    %p65 = scmp.ne.s32.totalorder %s57, %s59
    %p66 = scmp.eq.s32.totalorder %s14, 7
    %p67 = por %p65, %p66
    %p68 = scmp.ne.s32.totalorder %s59, %s60
    %p69 = scmp.eq.s32.totalorder %s14, 0
    %p70 = por %p68, %p69
    %p71 = scmp.ne.s32.totalorder %s59, %s60
    %p72 = scmp.eq.s32.totalorder %s15, 7
    %p73 = por %p71, %p72
    %p75 = scmp.ne.s32.totalorder %s60, %s74
    %p76 = scmp.eq.s32.totalorder %s15, 0
    %p77 = por %p75, %p76
    %s79 = sadd.s32 %s78, 1
    %p82 = scmp.eq.s32.totalorder %s9, 7
    %p83 = scmp.ne.s32.totalorder %s78, %s80
    %p84 = scmp.eq.s32.totalorder %s9, 0
    %p85 = por %p83, %p84
    %p86 = scmp.ne.s32.totalorder %s78, %s80
    %p87 = scmp.eq.s32.totalorder %s14, 7
    %p88 = por %p86, %p87
    %p89 = scmp.ne.s32.totalorder %s80, %s81
    %p90 = scmp.eq.s32.totalorder %s14, 0
    %p91 = por %p89, %p90
    %p92 = scmp.ne.s32.totalorder %s80, %s81
    %p93 = scmp.eq.s32.totalorder %s15, 7
    %p94 = por %p92, %p93
    %p96 = scmp.ne.s32.totalorder %s81, %s95
    %p97 = scmp.eq.s32.totalorder %s15, 0
    %p98 = por %p96, %p97
    %s99 = ssub.s32 %s16, %s28
    %s100 = ssub.s32 %s17, %s24
    %s101 = sor.u32 %s99, %s100
    %p102 = scmp.eq.s32.totalorder %s101, 0
    %s104 = sadd.s32 %s103, 1
    %s105 = scalar_select %p102, %s103, %s104
    %p108 = pneg %p102
    %p109 = scmp.eq.s32.totalorder %s9, 7
    %p110 = por %p108, %p109
    %p111 = scmp.ne.s32.totalorder %s103, %s106
    %p112 = scmp.eq.s32.totalorder %s9, 0
    %p113 = por %p111, %p112
    %p114 = scmp.ne.s32.totalorder %s103, %s106
    %p115 = scmp.eq.s32.totalorder %s14, 7
    %p116 = por %p114, %p115
    %p117 = scmp.ne.s32.totalorder %s106, %s107
    %p118 = scmp.eq.s32.totalorder %s14, 0
    %p119 = por %p117, %p118
    %p120 = scmp.ne.s32.totalorder %s106, %s107
    %p121 = scmp.eq.s32.totalorder %s15, 7
    %p122 = por %p120, %p121
    %p124 = scmp.ne.s32.totalorder %s107, %s123
    %p125 = scmp.eq.s32.totalorder %s15, 0
    %p126 = por %p124, %p125
    %p127 = scmp.le.s32.totalorder 1, %s9
    %p128 = scmp.lt.s32.totalorder %s9, 9
    %p129 = pnand %p127, %p128
    %p130 = pneg %p129
    // Predicated region
    $region9: #{pokenet_forward.4} parent=5 // pred_check
      _
    $region10: #{pokenet_forward.4} parent=5 // pred_check_branch
      %132 = sbr.rel (%p129) target = $region12
    $region11: #{pokenet_forward.4} parent=5 // pred_region
      %s133 = ssub.s32 %s9, 1
      // Predicated region
      $region13: #{pokenet_forward.4} parent=11 // pred_check
        %p134 = pneg %p70
      $region14: #{pokenet_forward.4} parent=11 // pred_check_branch
        %136 = sbr.rel (%p134) target = $region16
      $region15: #{pokenet_forward.4} parent=11 // pred_region
        _
      $region16: #{pokenet_forward.4} parent=11 // pred_fallthru
        _
      // Predicated region
      $region17: #{pokenet_forward.4} parent=11 // pred_check
        %p137 = pneg %p91
      $region18: #{pokenet_forward.4} parent=11 // pred_check_branch
        %139 = sbr.rel (%p137) target = $region20
      $region19: #{pokenet_forward.4} parent=11 // pred_region
        _
      $region20: #{pokenet_forward.4} parent=11 // pred_fallthru
        _
    $region12: #{pokenet_forward.4} parent=5 // pred_fallthru
      _
    %p140 = scmp.lt.s32.totalorder %s9, 8
    // Predicated region
    $region21: #{pokenet_forward.4} parent=5 // pred_check
      %p141 = pneg %p140
    $region22: #{pokenet_forward.4} parent=5 // pred_check_branch
      %143 = sbr.rel (%p141) target = $region24
    $region23: #{pokenet_forward.4} parent=5 // pred_region
      // Predicated region
      $region25: #{pokenet_forward.4} parent=23 // pred_check
        %p144 = pneg %p43
      $region26: #{pokenet_forward.4} parent=23 // pred_check_branch
        %146 = sbr.rel (%p144) target = $region28
      $region27: #{pokenet_forward.4} parent=23 // pred_region
        %p147 = scmp.lt.s32.totalorder %s16, 1
        %s148 = scalar_select %p147, %s16, 1
        %p149 = scmp.lt.s32.totalorder %s17, 3
        %s150 = scalar_select %p149, %s17, 3
        %s151 = smul.addr %s150, 288
        %s152 = smul.addr %s148, 1152
        %s153 = sadd.s32 %s151, %s152
        %s154 = smul.addr %s153, 4
        %s155 = scalar_lea.vmem %s0, %s154
      $region28: #{pokenet_forward.4} parent=23 // pred_fallthru
        _
    $region24: #{pokenet_forward.4} parent=5 // pred_fallthru
      _
    %p156 = scmp.le.s32.totalorder 1, %s9
    %p157 = scmp.lt.s32.totalorder %s9, 9
    %p158 = pnand %p156, %p157
    %p159 = pneg %p158
    // Predicated region
    $region29: #{pokenet_forward.4} parent=5 // pred_check
      _
    $region30: #{pokenet_forward.4} parent=5 // pred_check_branch
      %161 = sbr.rel (%p158) target = $region32
    $region31: #{pokenet_forward.4} parent=5 // pred_region
      %s162 = ssub.s32 %s9, 1
      %p163 = scmp.lt.s32.totalorder %s18, 1
      %s164 = scalar_select %p163, %s18, 1
      %p165 = scmp.lt.s32.totalorder %s19, 3
      %s166 = scalar_select %p165, %s19, 3
      %s167 = smul.addr %s166, 288
      %s168 = smul.addr %s164, 1152
      %s169 = sadd.s32 %s167, %s168
      %s170 = smul.addr %s169, 4
      %s171 = scalar_lea.vmem %s0, %s170
      %p172 = pneg %p49
      %p173 = pneg %p46
      %p174 = pneg %p70
      %p175 = pneg %p67
      %p176 = pneg %p91
      %p177 = pneg %p88
      %p178 = pneg %p119
      %p179 = pneg %p116
      %s180 = smul.u32 32, %s19
      %p181 = scmp.lt.s32.totalorder %s18, 1
      %s182 = scalar_select %p181, %s18, 1
      %p183 = scmp.lt.s32.totalorder %s180, 127
      %s184 = scalar_select %p183, %s180, 127
      %s185 = smul.addr %s182, 128
      %s186 = sadd.s32 %s184, %s185
      %s187 = smul.addr %s186, 4
      %s188 = scalar_lea.vmem %s3, %s187
      %p189 = scmp.lt.s32.totalorder %s18, 1
      %s190 = scalar_select %p189, %s18, 1
      %p191 = scmp.lt.s32.totalorder %s19, 3
      %s192 = scalar_select %p191, %s19, 3
      %s193 = smul.addr %s192, 288
      %s194 = smul.addr %s190, 1152
      %s195 = sadd.s32 %s193, %s194
      %s196 = smul.addr %s195, 4
      %s197 = scalar_lea.vmem %s0, %s196
      %s198 = smul.u32 32, %s19
      %p199 = scmp.lt.s32.totalorder %s18, 1
      %s200 = scalar_select %p199, %s18, 1
      %p201 = scmp.lt.s32.totalorder %s198, 127
      %s202 = scalar_select %p201, %s198, 127
      %s203 = smul.addr %s200, 128
      %s204 = sadd.s32 %s202, %s203
      %s205 = smul.addr %s204, 4
      %s206 = scalar_lea.vmem %s3, %s205
      %s207 = smul.u32 32, %s19
      %v209 = vld [vmem:[%s1] sm:$0xf]
      %v210 = vld [vmem:[%s1 + $0x4] sm:$0xf]
      %v211 = vld [vmem:[%s1 + $0x8] sm:$0xf]
      %v212 = vld [vmem:[%s1 + $0xc] sm:$0xf]
      %v213 = vld [vmem:[%s1 + $0x10] sm:$0xf]
      %v214 = vld [vmem:[%s1 + $0x14] sm:$0xf]
      %v215 = vld [vmem:[%s1 + $0x18] sm:$0xf]
      %v216 = vld [vmem:[%s1 + $0x1c] sm:$0xf]
      %v217 = vld [vmem:[%s1 + $0x20] sm:$0xf]
      %v218 = vld [vmem:[%s1 + $0x24] sm:$0x3]
      %v219 = vld [vmem:[%s2] sm:$0x1]
      %v220 = vld [vmem:[%s197] sm:$0xf]
      %v221 = vld [vmem:[%s197 + $0x4] sm:$0xf]
      %v222 = vld [vmem:[%s197 + $0x8] sm:$0xf]
      %v223 = vld [vmem:[%s197 + $0xc] sm:$0xf]
      %v224 = vld [vmem:[%s197 + $0x10] sm:$0xf]
      %v225 = vld [vmem:[%s197 + $0x14] sm:$0xf]
      %v226 = vld [vmem:[%s197 + $0x18] sm:$0xf]
      %v227 = vld [vmem:[%s197 + $0x1c] sm:$0xf]
      %v228 = vld [vmem:[%s197 + $0x20] sm:$0xf]
      %v229 = vld [vmem:[%s197 + $0x24] sm:$0xf]
      %v230 = vld [vmem:[%s197 + $0x28] sm:$0xf]
      %v231 = vld [vmem:[%s197 + $0x2c] sm:$0xf]
      %v232 = vld [vmem:[%s197 + $0x30] sm:$0xf]
      %v233 = vld [vmem:[%s197 + $0x34] sm:$0xf]
      %v234 = vld [vmem:[%s197 + $0x38] sm:$0xf]
      %v235 = vld [vmem:[%s197 + $0x3c] sm:$0xf]
      %v236 = vld [vmem:[%s197 + $0x40] sm:$0xf]
      %v237 = vld [vmem:[%s197 + $0x44] sm:$0xf]
      %v238 = vld [vmem:[%s197 + $0x48] sm:$0xf]
      %v239 = vld [vmem:[%s197 + $0x4c] sm:$0xf]
      %v240 = vld [vmem:[%s197 + $0x50] sm:$0xf]
      %v241 = vld [vmem:[%s197 + $0x54] sm:$0xf]
      %v242 = vld [vmem:[%s197 + $0x58] sm:$0xf]
      %v243 = vld [vmem:[%s197 + $0x5c] sm:$0xf]
      %v244 = vld [vmem:[%s197 + $0x60] sm:$0xf]
      %v245 = vld [vmem:[%s197 + $0x64] sm:$0xf]
      %v246 = vld [vmem:[%s197 + $0x68] sm:$0xf]
      %v247 = vld [vmem:[%s197 + $0x6c] sm:$0xf]
      %v248 = vld [vmem:[%s197 + $0x70] sm:$0xf]
      %v249 = vld [vmem:[%s197 + $0x74] sm:$0xf]
      %v250 = vld [vmem:[%s197 + $0x78] sm:$0xf]
      %v251 = vld [vmem:[%s197 + $0x7c] sm:$0xf]
      %v253 = vlaneseq
      %v254 = vshrl.u32 %v253, 7
      %v255 = vsub.s32 0, %v254
      %v256 = vrot.slane %v219, %v255
      %v290 = vunpack.c.l.b16 %v220
      %v291 = vunpack.c.l.b16 %v221
      %v292 = vunpack.c.l.b16 %v222
      %v293 = vunpack.c.l.b16 %v223
      %v294 = vunpack.c.l.b16 %v224
      %v295 = vunpack.c.l.b16 %v225
      %v296 = vunpack.c.l.b16 %v226
      %v297 = vunpack.c.l.b16 %v227
      %v298 = vunpack.c.l.b16 %v228
      %v299 = vunpack.c.l.b16 %v229
      %v300 = vunpack.c.l.b16 %v230
      %v301 = vunpack.c.l.b16 %v231
      %v302 = vunpack.c.l.b16 %v232
      %v303 = vunpack.c.l.b16 %v233
      %v304 = vunpack.c.l.b16 %v234
      %v305 = vunpack.c.l.b16 %v235
      %v306 = vunpack.c.l.b16 %v236
      %v307 = vunpack.c.l.b16 %v237
      %v308 = vunpack.c.l.b16 %v238
      %v309 = vunpack.c.l.b16 %v239
      %v310 = vunpack.c.l.b16 %v240
      %v311 = vunpack.c.l.b16 %v241
      %v312 = vunpack.c.l.b16 %v242
      %v313 = vunpack.c.l.b16 %v243
      %v314 = vunpack.c.l.b16 %v244
      %v315 = vunpack.c.l.b16 %v245
      %v316 = vunpack.c.l.b16 %v246
      %v317 = vunpack.c.l.b16 %v247
      %v318 = vunpack.c.l.b16 %v248
      %v319 = vunpack.c.l.b16 %v249
      %v320 = vunpack.c.l.b16 %v250
      %v321 = vunpack.c.l.b16 %v251
      %v322 = vpack.c.b16 %v291, %v290
      %v323 = vpack.c.b16 %v293, %v292
      %v324 = vpack.c.b16 %v295, %v294
      %v325 = vpack.c.b16 %v297, %v296
      %v326 = vpack.c.b16 %v299, %v298
      %v327 = vpack.c.b16 %v301, %v300
      %v328 = vpack.c.b16 %v303, %v302
      %v329 = vpack.c.b16 %v305, %v304
      %v330 = vpack.c.b16 %v307, %v306
      %v331 = vpack.c.b16 %v309, %v308
      %v332 = vpack.c.b16 %v311, %v310
      %v333 = vpack.c.b16 %v313, %v312
      %v334 = vpack.c.b16 %v315, %v314
      %v335 = vpack.c.b16 %v317, %v316
      %v336 = vpack.c.b16 %v319, %v318
      %v337 = vpack.c.b16 %v321, %v320
      %v348 = vunpack.c.l.b16 %v209
      %v349 = vunpack.c.l.b16 %v210
      %v350 = vunpack.c.l.b16 %v211
      %v351 = vunpack.c.l.b16 %v212
      %v352 = vunpack.c.l.b16 %v213
      %v353 = vunpack.c.l.b16 %v214
      %v354 = vunpack.c.l.b16 %v215
      %v355 = vunpack.c.l.b16 %v216
      %v356 = vunpack.c.l.b16 %v217
      %v357 = vunpack.c.l.b16 %v218
      %v358 = vpack.c.b16 %v349, %v348
      %v359 = vpack.c.b16 %v351, %v350
      %v360 = vpack.c.b16 %v353, %v352
      %v361 = vpack.c.b16 %v355, %v354
      %v362 = vpack.c.b16 %v357, %v356
      %vm367 = vcmask 613376
      %v369 = vsel %vm367, %v322, 0
      %v372 = vsel %vm367, %v323, 0
      %v375 = vsel %vm367, %v324, 0
      %v378 = vsel %vm367, %v325, 0
      %v381 = vsel %vm367, %v326, 0
      %v384 = vsel %vm367, %v327, 0
      %v387 = vsel %vm367, %v328, 0
      %v390 = vsel %vm367, %v329, 0
      %v393 = vsel %vm367, %v330, 0
      %v396 = vsel %vm367, %v331, 0
      %v399 = vsel %vm367, %v332, 0
      %v402 = vsel %vm367, %v333, 0
      %v405 = vsel %vm367, %v334, 0
      %v408 = vsel %vm367, %v335, 0
      %v411 = vsel %vm367, %v336, 0
      %v414 = vsel %vm367, %v337, 0
      %vm416 = vcmask 1044480
      %vm417 = vcmask 1045504
      %v418 = vsel %vm416, 4294967295, 65535
      %v419 = vsel %vm417, %v418, 0
      %v421 = vand.u32 %v362, %v419
      %423 = vmatprep.subr.bf16.mxu0 0
      %424 = vmatpush1.bf16.msra.mxu0 %v358
      %425 = vmatprep.subr.bf16.mxu0 0
      %426 = vmatpush1.bf16.msra.mxu0 %v359
      %427 = vmatprep.subr.bf16.mxu0 0
      %428 = vmatpush1.bf16.msra.mxu0 %v360
      %429 = vmatprep.subr.bf16.mxu0 0
      %430 = vmatpush1.bf16.msra.mxu0 %v361
      %431 = vmatprep.subr.bf16.mxu0 0
      %432 = vmatpush1.bf16.msra.mxu0 %v421
      %433 = vmatprep.subr.bf16.mxu0 0
      %434 = vmatpush1.bf16.msra.mxu0 0
      %435 = vmatprep.subr.bf16.mxu0 0
      %436 = vmatpush1.bf16.msra.mxu0 0
      %437 = vmatprep.subr.bf16.mxu0 0
      %438 = vmatpush1.bf16.msra.mxu0 0
      %439 = vmatprep.subr.bf16.mxu0 0
      %440 = vmatpush1.bf16.msra.mxu0 0
      %441 = vmatprep.subr.bf16.mxu0 0
      %442 = vmatpush1.bf16.msra.mxu0 0
      %443 = vmatprep.subr.bf16.mxu0 0
      %444 = vmatpush1.bf16.msra.mxu0 0
      %445 = vmatprep.subr.bf16.mxu0 0
      %446 = vmatpush1.bf16.msra.mxu0 0
      %447 = vmatprep.subr.bf16.mxu0 0
      %448 = vmatpush1.bf16.msra.mxu0 0
      %449 = vmatprep.subr.bf16.mxu0 0
      %450 = vmatpush1.bf16.msra.mxu0 0
      %451 = vmatprep.subr.bf16.mxu0 0
      %452 = vmatpush1.bf16.msra.mxu0 0
      %453 = vmatprep.subr.bf16.mxu0 0
      %454 = vmatpush1.bf16.msra.mxu0 0
      %455 = vmatprep.mubr.bf16.mxu0 0
      %456 = vmatmul.mubr.bf16.gmra.mrb[0].mxu0 %v369
      %v457 = vpop.f32.mrb[0].mxu0
      %v458 = vadd.f32 %v256, %v457
      %v459 = vpop.f32.mrb[0].mxu0
      %v460 = vpop.f32.mrb[0].mxu0
      %v461 = vadd.f32 %v256, %v460
      %v462 = vpop.f32.mrb[0].mxu0
      %463 = vmatprep.mubr.bf16.mxu0 0
      %464 = vmatmul.mubr.bf16.gmra.mrb[0].mxu0 %v372
      %v465 = vpop.f32.mrb[0].mxu0
      %v466 = vadd.f32 %v256, %v465
      %v467 = vpop.f32.mrb[0].mxu0
      %v468 = vpop.f32.mrb[0].mxu0
      %v469 = vadd.f32 %v256, %v468
      %v470 = vpop.f32.mrb[0].mxu0
      %471 = vmatprep.mubr.bf16.mxu0 0
      %472 = vmatmul.mubr.bf16.gmra.mrb[0].mxu0 %v375
      %v473 = vpop.f32.mrb[0].mxu0
      %v474 = vadd.f32 %v256, %v473
      %v475 = vpop.f32.mrb[0].mxu0
      %v476 = vpop.f32.mrb[0].mxu0
      %v477 = vadd.f32 %v256, %v476
      %v478 = vpop.f32.mrb[0].mxu0
      %479 = vmatprep.mubr.bf16.mxu0 0
      %480 = vmatmul.mubr.bf16.gmra.mrb[0].mxu0 %v378
      %v481 = vpop.f32.mrb[0].mxu0
      %v482 = vadd.f32 %v256, %v481
      %v483 = vpop.f32.mrb[0].mxu0
      %v484 = vpop.f32.mrb[0].mxu0
      %v485 = vadd.f32 %v256, %v484
      %v486 = vpop.f32.mrb[0].mxu0
      %487 = vmatprep.mubr.bf16.mxu0 0
      %488 = vmatmul.mubr.bf16.gmra.mrb[0].mxu0 %v381
      %v489 = vpop.f32.mrb[0].mxu0
      %v490 = vadd.f32 %v256, %v489
      %v491 = vpop.f32.mrb[0].mxu0
      %v492 = vpop.f32.mrb[0].mxu0
      %v493 = vadd.f32 %v256, %v492
      %v494 = vpop.f32.mrb[0].mxu0
      %495 = vmatprep.mubr.bf16.mxu0 0
      %496 = vmatmul.mubr.bf16.gmra.mrb[0].mxu0 %v384
      %v497 = vpop.f32.mrb[0].mxu0
      %v498 = vadd.f32 %v256, %v497
      %v499 = vpop.f32.mrb[0].mxu0
      %v500 = vpop.f32.mrb[0].mxu0
      %v501 = vadd.f32 %v256, %v500
      %v502 = vpop.f32.mrb[0].mxu0
      %503 = vmatprep.mubr.bf16.mxu0 0
      %504 = vmatmul.mubr.bf16.gmra.mrb[0].mxu0 %v387
      %v505 = vpop.f32.mrb[0].mxu0
      %v506 = vadd.f32 %v256, %v505
      %v507 = vpop.f32.mrb[0].mxu0
      %v508 = vpop.f32.mrb[0].mxu0
      %v509 = vadd.f32 %v256, %v508
      %v510 = vpop.f32.mrb[0].mxu0
      %511 = vmatprep.mubr.bf16.mxu0 0
      %512 = vmatmul.mubr.bf16.gmra.mrb[0].mxu0 %v390
      %v513 = vpop.f32.mrb[0].mxu0
      %v514 = vadd.f32 %v256, %v513
      %v515 = vpop.f32.mrb[0].mxu0
      %v516 = vpop.f32.mrb[0].mxu0
      %v517 = vadd.f32 %v256, %v516
      %v518 = vpop.f32.mrb[0].mxu0
      %519 = vmatprep.mubr.bf16.mxu0 0
      %520 = vmatmul.mubr.bf16.gmra.mrb[0].mxu0 %v393
      %v521 = vpop.f32.mrb[0].mxu0
      %v522 = vadd.f32 %v256, %v521
      %v523 = vpop.f32.mrb[0].mxu0
      %v524 = vpop.f32.mrb[0].mxu0
      %v525 = vadd.f32 %v256, %v524
      %v526 = vpop.f32.mrb[0].mxu0
      %527 = vmatprep.mubr.bf16.mxu0 0
      %528 = vmatmul.mubr.bf16.gmra.mrb[0].mxu0 %v396
      %v529 = vpop.f32.mrb[0].mxu0
      %v530 = vadd.f32 %v256, %v529
      %v531 = vpop.f32.mrb[0].mxu0
      %v532 = vpop.f32.mrb[0].mxu0
      %v533 = vadd.f32 %v256, %v532
      %v534 = vpop.f32.mrb[0].mxu0
      %535 = vmatprep.mubr.bf16.mxu0 0
      %536 = vmatmul.mubr.bf16.gmra.mrb[0].mxu0 %v399
      %v537 = vpop.f32.mrb[0].mxu0
      %v538 = vadd.f32 %v256, %v537
      %v539 = vpop.f32.mrb[0].mxu0
      %v540 = vpop.f32.mrb[0].mxu0
      %v541 = vadd.f32 %v256, %v540
      %v542 = vpop.f32.mrb[0].mxu0
      %543 = vmatprep.mubr.bf16.mxu0 0
      %544 = vmatmul.mubr.bf16.gmra.mrb[0].mxu0 %v402
      %v545 = vpop.f32.mrb[0].mxu0
      %v546 = vadd.f32 %v256, %v545
      %v547 = vpop.f32.mrb[0].mxu0
      %v548 = vpop.f32.mrb[0].mxu0
      %v549 = vadd.f32 %v256, %v548
      %v550 = vpop.f32.mrb[0].mxu0
      %551 = vmatprep.mubr.bf16.mxu0 0
      %552 = vmatmul.mubr.bf16.gmra.mrb[0].mxu0 %v405
      %v553 = vpop.f32.mrb[0].mxu0
      %v554 = vadd.f32 %v256, %v553
      %v555 = vpop.f32.mrb[0].mxu0
      %v556 = vpop.f32.mrb[0].mxu0
      %v557 = vadd.f32 %v256, %v556
      %v558 = vpop.f32.mrb[0].mxu0
      %559 = vmatprep.mubr.bf16.mxu0 0
      %560 = vmatmul.mubr.bf16.gmra.mrb[0].mxu0 %v408
      %v561 = vpop.f32.mrb[0].mxu0
      %v562 = vadd.f32 %v256, %v561
      %v563 = vpop.f32.mrb[0].mxu0
      %v564 = vpop.f32.mrb[0].mxu0
      %v565 = vadd.f32 %v256, %v564
      %v566 = vpop.f32.mrb[0].mxu0
      %567 = vmatprep.mubr.bf16.mxu0 0
      %568 = vmatmul.mubr.bf16.gmra.mrb[0].mxu0 %v411
      %v569 = vpop.f32.mrb[0].mxu0
      %v570 = vadd.f32 %v256, %v569
      %v571 = vpop.f32.mrb[0].mxu0
      %v572 = vpop.f32.mrb[0].mxu0
      %v573 = vadd.f32 %v256, %v572
      %v574 = vpop.f32.mrb[0].mxu0
      %575 = vmatprep.mubr.bf16.mxu0 0
      %576 = vmatmul.mubr.bf16.gmra.mrb[0].mxu0 %v414
      %v577 = vpop.f32.mrb[0].mxu0
      %v578 = vadd.f32 %v256, %v577
      %v579 = vpop.f32.mrb[0].mxu0
      %v580 = vpop.f32.mrb[0].mxu0
      %v581 = vadd.f32 %v256, %v580
      %v582 = vpop.f32.mrb[0].mxu0
      %583 = vdwg.mxu0
      %v584 = vmax.f32 %v458, 0.0
      %v585 = vmax.f32 %v461, 0.0
      %v586 = vmax.f32 %v466, 0.0
      %v587 = vmax.f32 %v469, 0.0
      %v588 = vmax.f32 %v474, 0.0
      %v589 = vmax.f32 %v477, 0.0
      %v590 = vmax.f32 %v482, 0.0
      %v591 = vmax.f32 %v485, 0.0
      %v592 = vmax.f32 %v490, 0.0
      %v593 = vmax.f32 %v493, 0.0
      %v594 = vmax.f32 %v498, 0.0
      %v595 = vmax.f32 %v501, 0.0
      %v596 = vmax.f32 %v506, 0.0
      %v597 = vmax.f32 %v509, 0.0
      %v598 = vmax.f32 %v514, 0.0
      %v599 = vmax.f32 %v517, 0.0
      %v600 = vmax.f32 %v522, 0.0
      %v601 = vmax.f32 %v525, 0.0
      %v602 = vmax.f32 %v530, 0.0
      %v603 = vmax.f32 %v533, 0.0
      %v604 = vmax.f32 %v538, 0.0
      %v605 = vmax.f32 %v541, 0.0
      %v606 = vmax.f32 %v546, 0.0
      %v607 = vmax.f32 %v549, 0.0
      %v608 = vmax.f32 %v554, 0.0
      %v609 = vmax.f32 %v557, 0.0
      %v610 = vmax.f32 %v562, 0.0
      %v611 = vmax.f32 %v565, 0.0
      %v612 = vmax.f32 %v570, 0.0
      %v613 = vmax.f32 %v573, 0.0
      %v614 = vmax.f32 %v578, 0.0
      %v615 = vmax.f32 %v581, 0.0
      %v616 = vld [vmem:[%s197 + $0x80] sm:$0xf]
      %v617 = vld [vmem:[%s197 + $0x84] sm:$0xf]
      %v618 = vld [vmem:[%s197 + $0x88] sm:$0xf]
      %v619 = vld [vmem:[%s197 + $0x8c] sm:$0xf]
      %v620 = vld [vmem:[%s197 + $0x90] sm:$0xf]
      %v621 = vld [vmem:[%s197 + $0x94] sm:$0xf]
      %v622 = vld [vmem:[%s197 + $0x98] sm:$0xf]
      %v623 = vld [vmem:[%s197 + $0x9c] sm:$0xf]
      %v624 = vld [vmem:[%s197 + $0xa0] sm:$0xf]
      %v625 = vld [vmem:[%s197 + $0xa4] sm:$0xf]
      %v626 = vld [vmem:[%s197 + $0xa8] sm:$0xf]
      %v627 = vld [vmem:[%s197 + $0xac] sm:$0xf]
      %v628 = vld [vmem:[%s197 + $0xb0] sm:$0xf]
      %v629 = vld [vmem:[%s197 + $0xb4] sm:$0xf]
      %v630 = vld [vmem:[%s197 + $0xb8] sm:$0xf]
      %v631 = vld [vmem:[%s197 + $0xbc] sm:$0xf]
      %v632 = vld [vmem:[%s197 + $0xc0] sm:$0xf]
      %v633 = vld [vmem:[%s197 + $0xc4] sm:$0xf]
      %v634 = vld [vmem:[%s197 + $0xc8] sm:$0xf]
      %v635 = vld [vmem:[%s197 + $0xcc] sm:$0xf]
      %v636 = vld [vmem:[%s197 + $0xd0] sm:$0xf]
      %v637 = vld [vmem:[%s197 + $0xd4] sm:$0xf]
      %v638 = vld [vmem:[%s197 + $0xd8] sm:$0xf]
      %v639 = vld [vmem:[%s197 + $0xdc] sm:$0xf]
      %v640 = vld [vmem:[%s197 + $0xe0] sm:$0xf]
      %v641 = vld [vmem:[%s197 + $0xe4] sm:$0xf]
      %v642 = vld [vmem:[%s197 + $0xe8] sm:$0xf]
      %v643 = vld [vmem:[%s197 + $0xec] sm:$0xf]
      %v644 = vld [vmem:[%s197 + $0xf0] sm:$0xf]
      %v645 = vld [vmem:[%s197 + $0xf4] sm:$0xf]
      %v646 = vld [vmem:[%s197 + $0xf8] sm:$0xf]
      %v647 = vld [vmem:[%s197 + $0xfc] sm:$0xf]
      %v680 = vunpack.c.l.b16 %v616
      %v681 = vunpack.c.l.b16 %v617
      %v682 = vunpack.c.l.b16 %v618
      %v683 = vunpack.c.l.b16 %v619
      %v684 = vunpack.c.l.b16 %v620
      %v685 = vunpack.c.l.b16 %v621
      %v686 = vunpack.c.l.b16 %v622
      %v687 = vunpack.c.l.b16 %v623
      %v688 = vunpack.c.l.b16 %v624
      %v689 = vunpack.c.l.b16 %v625
      %v690 = vunpack.c.l.b16 %v626
      %v691 = vunpack.c.l.b16 %v627
      %v692 = vunpack.c.l.b16 %v628
      %v693 = vunpack.c.l.b16 %v629
      %v694 = vunpack.c.l.b16 %v630
      %v695 = vunpack.c.l.b16 %v631
      %v696 = vunpack.c.l.b16 %v632
      %v697 = vunpack.c.l.b16 %v633
      %v698 = vunpack.c.l.b16 %v634
      %v699 = vunpack.c.l.b16 %v635
      %v700 = vunpack.c.l.b16 %v636
      %v701 = vunpack.c.l.b16 %v637
      %v702 = vunpack.c.l.b16 %v638
      %v703 = vunpack.c.l.b16 %v639
      %v704 = vunpack.c.l.b16 %v640
      %v705 = vunpack.c.l.b16 %v641
      %v706 = vunpack.c.l.b16 %v642
      %v707 = vunpack.c.l.b16 %v643
      %v708 = vunpack.c.l.b16 %v644
      %v709 = vunpack.c.l.b16 %v645
      %v710 = vunpack.c.l.b16 %v646
      %v711 = vunpack.c.l.b16 %v647
      %v712 = vpack.c.b16 %v681, %v680
      %v713 = vpack.c.b16 %v683, %v682
      %v714 = vpack.c.b16 %v685, %v684
      %v715 = vpack.c.b16 %v687, %v686
      %v716 = vpack.c.b16 %v689, %v688
      %v717 = vpack.c.b16 %v691, %v690
      %v718 = vpack.c.b16 %v693, %v692
      %v719 = vpack.c.b16 %v695, %v694
      %v720 = vpack.c.b16 %v697, %v696
      %v721 = vpack.c.b16 %v699, %v698
      %v722 = vpack.c.b16 %v701, %v700
      %v723 = vpack.c.b16 %v703, %v702
      %v724 = vpack.c.b16 %v705, %v704
      %v725 = vpack.c.b16 %v707, %v706
      %v726 = vpack.c.b16 %v709, %v708
      %v727 = vpack.c.b16 %v711, %v710
      %v729 = vsel %vm367, %v712, 0
      %v732 = vsel %vm367, %v713, 0
      %v735 = vsel %vm367, %v714, 0
      %v738 = vsel %vm367, %v715, 0
      %v741 = vsel %vm367, %v716, 0
      %v744 = vsel %vm367, %v717, 0
      %v747 = vsel %vm367, %v718, 0
      %v750 = vsel %vm367, %v719, 0
      %v753 = vsel %vm367, %v720, 0
      %v756 = vsel %vm367, %v721, 0
      %v759 = vsel %vm367, %v722, 0
      %v762 = vsel %vm367, %v723, 0
      %v765 = vsel %vm367, %v724, 0
      %v768 = vsel %vm367, %v725, 0
      %v771 = vsel %vm367, %v726, 0
      %v774 = vsel %vm367, %v727, 0
      %776 = vmatprep.subr.bf16.mxu0 0
      %777 = vmatpush1.bf16.msra.mxu0 %v358
      %778 = vmatprep.subr.bf16.mxu0 0
      %779 = vmatpush1.bf16.msra.mxu0 %v359
      %780 = vmatprep.subr.bf16.mxu0 0
      %781 = vmatpush1.bf16.msra.mxu0 %v360
      %782 = vmatprep.subr.bf16.mxu0 0
      %783 = vmatpush1.bf16.msra.mxu0 %v361
      %784 = vmatprep.subr.bf16.mxu0 0
      %785 = vmatpush1.bf16.msra.mxu0 %v421
      %786 = vmatprep.subr.bf16.mxu0 0
      %787 = vmatpush1.bf16.msra.mxu0 0
      %788 = vmatprep.subr.bf16.mxu0 0
      %789 = vmatpush1.bf16.msra.mxu0 0
      %790 = vmatprep.subr.bf16.mxu0 0
      %791 = vmatpush1.bf16.msra.mxu0 0
      %792 = vmatprep.subr.bf16.mxu0 0
      %793 = vmatpush1.bf16.msra.mxu0 0
      %794 = vmatprep.subr.bf16.mxu0 0
      %795 = vmatpush1.bf16.msra.mxu0 0
      %796 = vmatprep.subr.bf16.mxu0 0
      %797 = vmatpush1.bf16.msra.mxu0 0
      %798 = vmatprep.subr.bf16.mxu0 0
      %799 = vmatpush1.bf16.msra.mxu0 0
      %800 = vmatprep.subr.bf16.mxu0 0
      %801 = vmatpush1.bf16.msra.mxu0 0
      %802 = vmatprep.subr.bf16.mxu0 0
      %803 = vmatpush1.bf16.msra.mxu0 0
      %804 = vmatprep.subr.bf16.mxu0 0
      %805 = vmatpush1.bf16.msra.mxu0 0
      %806 = vmatprep.subr.bf16.mxu0 0
      %807 = vmatpush1.bf16.msra.mxu0 0
      %808 = vmatprep.mubr.bf16.mxu0 0
      %809 = vmatmul.mubr.bf16.gmra.mrb[0].mxu0 %v729
      %v810 = vpop.f32.mrb[0].mxu0
      %v811 = vadd.f32 %v256, %v810
      %v812 = vpop.f32.mrb[0].mxu0
      %v813 = vpop.f32.mrb[0].mxu0
      %v814 = vadd.f32 %v256, %v813
      %v815 = vpop.f32.mrb[0].mxu0
      %816 = vmatprep.mubr.bf16.mxu0 0
      %817 = vmatmul.mubr.bf16.gmra.mrb[0].mxu0 %v732
      %v818 = vpop.f32.mrb[0].mxu0
      %v819 = vadd.f32 %v256, %v818
      %v820 = vpop.f32.mrb[0].mxu0
      %v821 = vpop.f32.mrb[0].mxu0
      %v822 = vadd.f32 %v256, %v821
      %v823 = vpop.f32.mrb[0].mxu0
      %824 = vmatprep.mubr.bf16.mxu0 0
      %825 = vmatmul.mubr.bf16.gmra.mrb[0].mxu0 %v735
      %v826 = vpop.f32.mrb[0].mxu0
      %v827 = vadd.f32 %v256, %v826
      %v828 = vpop.f32.mrb[0].mxu0
      %v829 = vpop.f32.mrb[0].mxu0
      %v830 = vadd.f32 %v256, %v829
      %v831 = vpop.f32.mrb[0].mxu0
      %832 = vmatprep.mubr.bf16.mxu0 0
      %833 = vmatmul.mubr.bf16.gmra.mrb[0].mxu0 %v738
      %v834 = vpop.f32.mrb[0].mxu0
      %v835 = vadd.f32 %v256, %v834
      %v836 = vpop.f32.mrb[0].mxu0
      %v837 = vpop.f32.mrb[0].mxu0
      %v838 = vadd.f32 %v256, %v837
      %v839 = vpop.f32.mrb[0].mxu0
      %840 = vmatprep.mubr.bf16.mxu0 0
      %841 = vmatmul.mubr.bf16.gmra.mrb[0].mxu0 %v741
      %v842 = vpop.f32.mrb[0].mxu0
      %v843 = vadd.f32 %v256, %v842
      %v844 = vpop.f32.mrb[0].mxu0
      %v845 = vpop.f32.mrb[0].mxu0
      %v846 = vadd.f32 %v256, %v845
      %v847 = vpop.f32.mrb[0].mxu0
      %848 = vmatprep.mubr.bf16.mxu0 0
      %849 = vmatmul.mubr.bf16.gmra.mrb[0].mxu0 %v744
      %v850 = vpop.f32.mrb[0].mxu0
      %v851 = vadd.f32 %v256, %v850
      %v852 = vpop.f32.mrb[0].mxu0
      %v853 = vpop.f32.mrb[0].mxu0
      %v854 = vadd.f32 %v256, %v853
      %v855 = vpop.f32.mrb[0].mxu0
      %856 = vmatprep.mubr.bf16.mxu0 0
      %857 = vmatmul.mubr.bf16.gmra.mrb[0].mxu0 %v747
      %v858 = vpop.f32.mrb[0].mxu0
      %v859 = vadd.f32 %v256, %v858
      %v860 = vpop.f32.mrb[0].mxu0
      %v861 = vpop.f32.mrb[0].mxu0
      %v862 = vadd.f32 %v256, %v861
      %v863 = vpop.f32.mrb[0].mxu0
      %864 = vmatprep.mubr.bf16.mxu0 0
      %865 = vmatmul.mubr.bf16.gmra.mrb[0].mxu0 %v750
      %v866 = vpop.f32.mrb[0].mxu0
      %v867 = vadd.f32 %v256, %v866
      %v868 = vpop.f32.mrb[0].mxu0
      %v869 = vpop.f32.mrb[0].mxu0
      %v870 = vadd.f32 %v256, %v869
      %v871 = vpop.f32.mrb[0].mxu0
      %872 = vmatprep.mubr.bf16.mxu0 0
      %873 = vmatmul.mubr.bf16.gmra.mrb[0].mxu0 %v753
      %v874 = vpop.f32.mrb[0].mxu0
      %v875 = vadd.f32 %v256, %v874
      %v876 = vpop.f32.mrb[0].mxu0
      %v877 = vpop.f32.mrb[0].mxu0
      %v878 = vadd.f32 %v256, %v877
      %v879 = vpop.f32.mrb[0].mxu0
      %880 = vmatprep.mubr.bf16.mxu0 0
      %881 = vmatmul.mubr.bf16.gmra.mrb[0].mxu0 %v756
      %v882 = vpop.f32.mrb[0].mxu0
      %v883 = vadd.f32 %v256, %v882
      %v884 = vpop.f32.mrb[0].mxu0
      %v885 = vpop.f32.mrb[0].mxu0
      %v886 = vadd.f32 %v256, %v885
      %v887 = vpop.f32.mrb[0].mxu0
      %888 = vmatprep.mubr.bf16.mxu0 0
      %889 = vmatmul.mubr.bf16.gmra.mrb[0].mxu0 %v759
      %v890 = vpop.f32.mrb[0].mxu0
      %v891 = vadd.f32 %v256, %v890
      %v892 = vpop.f32.mrb[0].mxu0
      %v893 = vpop.f32.mrb[0].mxu0
      %v894 = vadd.f32 %v256, %v893
      %v895 = vpop.f32.mrb[0].mxu0
      %896 = vmatprep.mubr.bf16.mxu0 0
      %897 = vmatmul.mubr.bf16.gmra.mrb[0].mxu0 %v762
      %v898 = vpop.f32.mrb[0].mxu0
      %v899 = vadd.f32 %v256, %v898
      %v900 = vpop.f32.mrb[0].mxu0
      %v901 = vpop.f32.mrb[0].mxu0
      %v902 = vadd.f32 %v256, %v901
      %v903 = vpop.f32.mrb[0].mxu0
      %904 = vmatprep.mubr.bf16.mxu0 0
      %905 = vmatmul.mubr.bf16.gmra.mrb[0].mxu0 %v765
      %v906 = vpop.f32.mrb[0].mxu0
      %v907 = vadd.f32 %v256, %v906
      %v908 = vpop.f32.mrb[0].mxu0
      %v909 = vpop.f32.mrb[0].mxu0
      %v910 = vadd.f32 %v256, %v909
      %v911 = vpop.f32.mrb[0].mxu0
      %912 = vmatprep.mubr.bf16.mxu0 0
      %913 = vmatmul.mubr.bf16.gmra.mrb[0].mxu0 %v768
      %v914 = vpop.f32.mrb[0].mxu0
      %v915 = vadd.f32 %v256, %v914
      %v916 = vpop.f32.mrb[0].mxu0
      %v917 = vpop.f32.mrb[0].mxu0
      %v918 = vadd.f32 %v256, %v917
      %v919 = vpop.f32.mrb[0].mxu0
      %920 = vmatprep.mubr.bf16.mxu0 0
      %921 = vmatmul.mubr.bf16.gmra.mrb[0].mxu0 %v771
      %v922 = vpop.f32.mrb[0].mxu0
      %v923 = vadd.f32 %v256, %v922
      %v924 = vpop.f32.mrb[0].mxu0
      %v925 = vpop.f32.mrb[0].mxu0
      %v926 = vadd.f32 %v256, %v925
      %v927 = vpop.f32.mrb[0].mxu0
      %928 = vmatprep.mubr.bf16.mxu0 0
      %929 = vmatmul.mubr.bf16.gmra.mrb[0].mxu0 %v774
      %v930 = vpop.f32.mrb[0].mxu0
      %v931 = vadd.f32 %v256, %v930
      %v932 = vpop.f32.mrb[0].mxu0
      %v933 = vpop.f32.mrb[0].mxu0
      %v934 = vadd.f32 %v256, %v933
      %v935 = vpop.f32.mrb[0].mxu0
      %936 = vdwg.mxu0
      %v937 = vmax.f32 %v811, 0.0
      %v938 = vmax.f32 %v814, 0.0
      %v939 = vmax.f32 %v819, 0.0
      %v940 = vmax.f32 %v822, 0.0
      %v941 = vmax.f32 %v827, 0.0
      %v942 = vmax.f32 %v830, 0.0
      %v943 = vmax.f32 %v835, 0.0
      %v944 = vmax.f32 %v838, 0.0
      %v945 = vmax.f32 %v843, 0.0
      %v946 = vmax.f32 %v846, 0.0
      %v947 = vmax.f32 %v851, 0.0
      %v948 = vmax.f32 %v854, 0.0
      %v949 = vmax.f32 %v859, 0.0
      %v950 = vmax.f32 %v862, 0.0
      %v951 = vmax.f32 %v867, 0.0
      %v952 = vmax.f32 %v870, 0.0
      %v953 = vmax.f32 %v875, 0.0
      %v954 = vmax.f32 %v878, 0.0
      %v955 = vmax.f32 %v883, 0.0
      %v956 = vmax.f32 %v886, 0.0
      %v957 = vmax.f32 %v891, 0.0
      %v958 = vmax.f32 %v894, 0.0
      %v959 = vmax.f32 %v899, 0.0
      %v960 = vmax.f32 %v902, 0.0
      %v961 = vmax.f32 %v907, 0.0
      %v962 = vmax.f32 %v910, 0.0
      %v963 = vmax.f32 %v915, 0.0
      %v964 = vmax.f32 %v918, 0.0
      %v965 = vmax.f32 %v923, 0.0
      %v966 = vmax.f32 %v926, 0.0
      %v967 = vmax.f32 %v931, 0.0
      %v968 = vmax.f32 %v934, 0.0
      %v969 = vmax.f32 %v584, %v937
      %v970 = vmax.f32 %v585, %v938
      %v971 = vmax.f32 %v586, %v939
      %v972 = vmax.f32 %v587, %v940
      %v973 = vmax.f32 %v588, %v941
      %v974 = vmax.f32 %v589, %v942
      %v975 = vmax.f32 %v590, %v943
      %v976 = vmax.f32 %v591, %v944
      %v977 = vmax.f32 %v592, %v945
      %v978 = vmax.f32 %v593, %v946
      %v979 = vmax.f32 %v594, %v947
      %v980 = vmax.f32 %v595, %v948
      %v981 = vmax.f32 %v596, %v949
      %v982 = vmax.f32 %v597, %v950
      %v983 = vmax.f32 %v598, %v951
      %v984 = vmax.f32 %v599, %v952
      %v985 = vmax.f32 %v600, %v953
      %v986 = vmax.f32 %v601, %v954
      %v987 = vmax.f32 %v602, %v955
      %v988 = vmax.f32 %v603, %v956
      %v989 = vmax.f32 %v604, %v957
      %v990 = vmax.f32 %v605, %v958
      %v991 = vmax.f32 %v606, %v959
      %v992 = vmax.f32 %v607, %v960
      %v993 = vmax.f32 %v608, %v961
      %v994 = vmax.f32 %v609, %v962
      %v995 = vmax.f32 %v610, %v963
      %v996 = vmax.f32 %v611, %v964
      %v997 = vmax.f32 %v612, %v965
      %v998 = vmax.f32 %v613, %v966
      %v999 = vmax.f32 %v614, %v967
      %v1000 = vmax.f32 %v615, %v968
      %v1001 = vld [vmem:[%s197 + $0x100] sm:$0xf]
      %v1002 = vld [vmem:[%s197 + $0x104] sm:$0xf]
      %v1003 = vld [vmem:[%s197 + $0x108] sm:$0xf]
      %v1004 = vld [vmem:[%s197 + $0x10c] sm:$0xf]
      %v1005 = vld [vmem:[%s197 + $0x110] sm:$0xf]
      %v1006 = vld [vmem:[%s197 + $0x114] sm:$0xf]
      %v1007 = vld [vmem:[%s197 + $0x118] sm:$0xf]
      %v1008 = vld [vmem:[%s197 + $0x11c] sm:$0xf]
      %v1009 = vld [vmem:[%s197 + $0x120] sm:$0xf]
      %v1010 = vld [vmem:[%s197 + $0x124] sm:$0xf]
      %v1011 = vld [vmem:[%s197 + $0x128] sm:$0xf]
      %v1012 = vld [vmem:[%s197 + $0x12c] sm:$0xf]
      %v1013 = vld [vmem:[%s197 + $0x130] sm:$0xf]
      %v1014 = vld [vmem:[%s197 + $0x134] sm:$0xf]
      %v1015 = vld [vmem:[%s197 + $0x138] sm:$0xf]
      %v1016 = vld [vmem:[%s197 + $0x13c] sm:$0xf]
      %v1017 = vld [vmem:[%s197 + $0x140] sm:$0xf]
      %v1018 = vld [vmem:[%s197 + $0x144] sm:$0xf]
      %v1019 = vld [vmem:[%s197 + $0x148] sm:$0xf]
      %v1020 = vld [vmem:[%s197 + $0x14c] sm:$0xf]
      %v1021 = vld [vmem:[%s197 + $0x150] sm:$0xf]
      %v1022 = vld [vmem:[%s197 + $0x154] sm:$0xf]
      %v1023 = vld [vmem:[%s197 + $0x158] sm:$0xf]
      %v1024 = vld [vmem:[%s197 + $0x15c] sm:$0xf]
      %v1025 = vld [vmem:[%s197 + $0x160] sm:$0xf]
      %v1026 = vld [vmem:[%s197 + $0x164] sm:$0xf]
      %v1027 = vld [vmem:[%s197 + $0x168] sm:$0xf]
      %v1028 = vld [vmem:[%s197 + $0x16c] sm:$0xf]
      %v1029 = vld [vmem:[%s197 + $0x170] sm:$0xf]
      %v1030 = vld [vmem:[%s197 + $0x174] sm:$0xf]
      %v1031 = vld [vmem:[%s197 + $0x178] sm:$0xf]
      %v1032 = vld [vmem:[%s197 + $0x17c] sm:$0xf]
      %v1065 = vunpack.c.l.b16 %v1001
      %v1066 = vunpack.c.l.b16 %v1002
      %v1067 = vunpack.c.l.b16 %v1003
      %v1068 = vunpack.c.l.b16 %v1004
      %v1069 = vunpack.c.l.b16 %v1005
      %v1070 = vunpack.c.l.b16 %v1006
      %v1071 = vunpack.c.l.b16 %v1007
      %v1072 = vunpack.c.l.b16 %v1008
      %v1073 = vunpack.c.l.b16 %v1009
      %v1074 = vunpack.c.l.b16 %v1010
      %v1075 = vunpack.c.l.b16 %v1011
      %v1076 = vunpack.c.l.b16 %v1012
      %v1077 = vunpack.c.l.b16 %v1013
      %v1078 = vunpack.c.l.b16 %v1014
      %v1079 = vunpack.c.l.b16 %v1015
      %v1080 = vunpack.c.l.b16 %v1016
      %v1081 = vunpack.c.l.b16 %v1017
      %v1082 = vunpack.c.l.b16 %v1018
      %v1083 = vunpack.c.l.b16 %v1019
      %v1084 = vunpack.c.l.b16 %v1020
      %v1085 = vunpack.c.l.b16 %v1021
      %v1086 = vunpack.c.l.b16 %v1022
      %v1087 = vunpack.c.l.b16 %v1023
      %v1088 = vunpack.c.l.b16 %v1024
      %v1089 = vunpack.c.l.b16 %v1025
      %v1090 = vunpack.c.l.b16 %v1026
      %v1091 = vunpack.c.l.b16 %v1027
      %v1092 = vunpack.c.l.b16 %v1028
      %v1093 = vunpack.c.l.b16 %v1029
      %v1094 = vunpack.c.l.b16 %v1030
      %v1095 = vunpack.c.l.b16 %v1031
      %v1096 = vunpack.c.l.b16 %v1032
      %v1097 = vpack.c.b16 %v1066, %v1065
      %v1098 = vpack.c.b16 %v1068, %v1067
      %v1099 = vpack.c.b16 %v1070, %v1069
      %v1100 = vpack.c.b16 %v1072, %v1071
      %v1101 = vpack.c.b16 %v1074, %v1073
      %v1102 = vpack.c.b16 %v1076, %v1075
      %v1103 = vpack.c.b16 %v1078, %v1077
      %v1104 = vpack.c.b16 %v1080, %v1079
      %v1105 = vpack.c.b16 %v1082, %v1081
      %v1106 = vpack.c.b16 %v1084, %v1083
      %v1107 = vpack.c.b16 %v1086, %v1085
      %v1108 = vpack.c.b16 %v1088, %v1087
      %v1109 = vpack.c.b16 %v1090, %v1089
      %v1110 = vpack.c.b16 %v1092, %v1091
      %v1111 = vpack.c.b16 %v1094, %v1093
      %v1112 = vpack.c.b16 %v1096, %v1095
      %v1114 = vsel %vm367, %v1097, 0
      %v1117 = vsel %vm367, %v1098, 0
      %v1120 = vsel %vm367, %v1099, 0
      %v1123 = vsel %vm367, %v1100, 0
      %v1126 = vsel %vm367, %v1101, 0
      %v1129 = vsel %vm367, %v1102, 0
      %v1132 = vsel %vm367, %v1103, 0
      %v1135 = vsel %vm367, %v1104, 0
      %v1138 = vsel %vm367, %v1105, 0
      %v1141 = vsel %vm367, %v1106, 0
      %v1144 = vsel %vm367, %v1107, 0
      %v1147 = vsel %vm367, %v1108, 0
      %v1150 = vsel %vm367, %v1109, 0
      %v1153 = vsel %vm367, %v1110, 0
      %v1156 = vsel %vm367, %v1111, 0
      %v1159 = vsel %vm367, %v1112, 0
      %1161 = vmatprep.subr.bf16.mxu0 0
      %1162 = vmatpush1.bf16.msra.mxu0 %v358
      %1163 = vmatprep.subr.bf16.mxu0 0
      %1164 = vmatpush1.bf16.msra.mxu0 %v359
      %1165 = vmatprep.subr.bf16.mxu0 0
      %1166 = vmatpush1.bf16.msra.mxu0 %v360
      %1167 = vmatprep.subr.bf16.mxu0 0
      %1168 = vmatpush1.bf16.msra.mxu0 %v361
      %1169 = vmatprep.subr.bf16.mxu0 0
      %1170 = vmatpush1.bf16.msra.mxu0 %v421
      %1171 = vmatprep.subr.bf16.mxu0 0
      %1172 = vmatpush1.bf16.msra.mxu0 0
      %1173 = vmatprep.subr.bf16.mxu0 0
      %1174 = vmatpush1.bf16.msra.mxu0 0
      %1175 = vmatprep.subr.bf16.mxu0 0
      %1176 = vmatpush1.bf16.msra.mxu0 0
      %1177 = vmatprep.subr.bf16.mxu0 0
      %1178 = vmatpush1.bf16.msra.mxu0 0
      %1179 = vmatprep.subr.bf16.mxu0 0
      %1180 = vmatpush1.bf16.msra.mxu0 0
      %1181 = vmatprep.subr.bf16.mxu0 0
      %1182 = vmatpush1.bf16.msra.mxu0 0
      %1183 = vmatprep.subr.bf16.mxu0 0
      %1184 = vmatpush1.bf16.msra.mxu0 0
      %1185 = vmatprep.subr.bf16.mxu0 0
      %1186 = vmatpush1.bf16.msra.mxu0 0
      %1187 = vmatprep.subr.bf16.mxu0 0
      %1188 = vmatpush1.bf16.msra.mxu0 0
      %1189 = vmatprep.subr.bf16.mxu0 0
      %1190 = vmatpush1.bf16.msra.mxu0 0
      %1191 = vmatprep.subr.bf16.mxu0 0
      %1192 = vmatpush1.bf16.msra.mxu0 0
      %1193 = vmatprep.mubr.bf16.mxu0 0
      %1194 = vmatmul.mubr.bf16.gmra.mrb[0].mxu0 %v1114
      %v1195 = vpop.f32.mrb[0].mxu0
      %v1196 = vadd.f32 %v256, %v1195
      %v1197 = vpop.f32.mrb[0].mxu0
      %v1198 = vpop.f32.mrb[0].mxu0
      %v1199 = vadd.f32 %v256, %v1198
      %v1200 = vpop.f32.mrb[0].mxu0
      %1201 = vmatprep.mubr.bf16.mxu0 0
      %1202 = vmatmul.mubr.bf16.gmra.mrb[0].mxu0 %v1117
      %v1203 = vpop.f32.mrb[0].mxu0
      %v1204 = vadd.f32 %v256, %v1203
      %v1205 = vpop.f32.mrb[0].mxu0
      %v1206 = vpop.f32.mrb[0].mxu0
      %v1207 = vadd.f32 %v256, %v1206
      %v1208 = vpop.f32.mrb[0].mxu0
      %1209 = vmatprep.mubr.bf16.mxu0 0
      %1210 = vmatmul.mubr.bf16.gmra.mrb[0].mxu0 %v1120
      %v1211 = vpop.f32.mrb[0].mxu0
      %v1212 = vadd.f32 %v256, %v1211
      %v1213 = vpop.f32.mrb[0].mxu0
      %v1214 = vpop.f32.mrb[0].mxu0
      %v1215 = vadd.f32 %v256, %v1214
      %v1216 = vpop.f32.mrb[0].mxu0
      %1217 = vmatprep.mubr.bf16.mxu0 0
      %1218 = vmatmul.mubr.bf16.gmra.mrb[0].mxu0 %v1123
      %v1219 = vpop.f32.mrb[0].mxu0
      %v1220 = vadd.f32 %v256, %v1219
      %v1221 = vpop.f32.mrb[0].mxu0
      %v1222 = vpop.f32.mrb[0].mxu0
      %v1223 = vadd.f32 %v256, %v1222
      %v1224 = vpop.f32.mrb[0].mxu0
      %1225 = vmatprep.mubr.bf16.mxu0 0
      %1226 = vmatmul.mubr.bf16.gmra.mrb[0].mxu0 %v1126
      %v1227 = vpop.f32.mrb[0].mxu0
      %v1228 = vadd.f32 %v256, %v1227
      %v1229 = vpop.f32.mrb[0].mxu0
      %v1230 = vpop.f32.mrb[0].mxu0
      %v1231 = vadd.f32 %v256, %v1230
      %v1232 = vpop.f32.mrb[0].mxu0
      %1233 = vmatprep.mubr.bf16.mxu0 0
      %1234 = vmatmul.mubr.bf16.gmra.mrb[0].mxu0 %v1129
      %v1235 = vpop.f32.mrb[0].mxu0
      %v1236 = vadd.f32 %v256, %v1235
      %v1237 = vpop.f32.mrb[0].mxu0
      %v1238 = vpop.f32.mrb[0].mxu0
      %v1239 = vadd.f32 %v256, %v1238
      %v1240 = vpop.f32.mrb[0].mxu0
      %1241 = vmatprep.mubr.bf16.mxu0 0
      %1242 = vmatmul.mubr.bf16.gmra.mrb[0].mxu0 %v1132
      %v1243 = vpop.f32.mrb[0].mxu0
      %v1244 = vadd.f32 %v256, %v1243
      %v1245 = vpop.f32.mrb[0].mxu0
      %v1246 = vpop.f32.mrb[0].mxu0
      %v1247 = vadd.f32 %v256, %v1246
      %v1248 = vpop.f32.mrb[0].mxu0
      %1249 = vmatprep.mubr.bf16.mxu0 0
      %1250 = vmatmul.mubr.bf16.gmra.mrb[0].mxu0 %v1135
      %v1251 = vpop.f32.mrb[0].mxu0
      %v1252 = vadd.f32 %v256, %v1251
      %v1253 = vpop.f32.mrb[0].mxu0
      %v1254 = vpop.f32.mrb[0].mxu0
      %v1255 = vadd.f32 %v256, %v1254
      %v1256 = vpop.f32.mrb[0].mxu0
      %1257 = vmatprep.mubr.bf16.mxu0 0
      %1258 = vmatmul.mubr.bf16.gmra.mrb[0].mxu0 %v1138
      %v1259 = vpop.f32.mrb[0].mxu0
      %v1260 = vadd.f32 %v256, %v1259
      %v1261 = vpop.f32.mrb[0].mxu0
      %v1262 = vpop.f32.mrb[0].mxu0
      %v1263 = vadd.f32 %v256, %v1262
      %v1264 = vpop.f32.mrb[0].mxu0
      %1265 = vmatprep.mubr.bf16.mxu0 0
      %1266 = vmatmul.mubr.bf16.gmra.mrb[0].mxu0 %v1141
      %v1267 = vpop.f32.mrb[0].mxu0
      %v1268 = vadd.f32 %v256, %v1267
      %v1269 = vpop.f32.mrb[0].mxu0
      %v1270 = vpop.f32.mrb[0].mxu0
      %v1271 = vadd.f32 %v256, %v1270
      %v1272 = vpop.f32.mrb[0].mxu0
      %1273 = vmatprep.mubr.bf16.mxu0 0
      %1274 = vmatmul.mubr.bf16.gmra.mrb[0].mxu0 %v1144
      %v1275 = vpop.f32.mrb[0].mxu0
      %v1276 = vadd.f32 %v256, %v1275
      %v1277 = vpop.f32.mrb[0].mxu0
      %v1278 = vpop.f32.mrb[0].mxu0
      %v1279 = vadd.f32 %v256, %v1278
      %v1280 = vpop.f32.mrb[0].mxu0
      %1281 = vmatprep.mubr.bf16.mxu0 0
      %1282 = vmatmul.mubr.bf16.gmra.mrb[0].mxu0 %v1147
      %v1283 = vpop.f32.mrb[0].mxu0
      %v1284 = vadd.f32 %v256, %v1283
      %v1285 = vpop.f32.mrb[0].mxu0
      %v1286 = vpop.f32.mrb[0].mxu0
      %v1287 = vadd.f32 %v256, %v1286
      %v1288 = vpop.f32.mrb[0].mxu0
      %1289 = vmatprep.mubr.bf16.mxu0 0
      %1290 = vmatmul.mubr.bf16.gmra.mrb[0].mxu0 %v1150
      %v1291 = vpop.f32.mrb[0].mxu0
      %v1292 = vadd.f32 %v256, %v1291
      %v1293 = vpop.f32.mrb[0].mxu0
      %v1294 = vpop.f32.mrb[0].mxu0
      %v1295 = vadd.f32 %v256, %v1294
      %v1296 = vpop.f32.mrb[0].mxu0
      %1297 = vmatprep.mubr.bf16.mxu0 0
      %1298 = vmatmul.mubr.bf16.gmra.mrb[0].mxu0 %v1153
      %v1299 = vpop.f32.mrb[0].mxu0
      %v1300 = vadd.f32 %v256, %v1299
      %v1301 = vpop.f32.mrb[0].mxu0
      %v1302 = vpop.f32.mrb[0].mxu0
      %v1303 = vadd.f32 %v256, %v1302
      %v1304 = vpop.f32.mrb[0].mxu0
      %1305 = vmatprep.mubr.bf16.mxu0 0
      %1306 = vmatmul.mubr.bf16.gmra.mrb[0].mxu0 %v1156
      %v1307 = vpop.f32.mrb[0].mxu0
      %v1308 = vadd.f32 %v256, %v1307
      %v1309 = vpop.f32.mrb[0].mxu0
      %v1310 = vpop.f32.mrb[0].mxu0
      %v1311 = vadd.f32 %v256, %v1310
      %v1312 = vpop.f32.mrb[0].mxu0
      %1313 = vmatprep.mubr.bf16.mxu0 0
      %1314 = vmatmul.mubr.bf16.gmra.mrb[0].mxu0 %v1159
      %v1315 = vpop.f32.mrb[0].mxu0
      %v1316 = vadd.f32 %v256, %v1315
      %v1317 = vpop.f32.mrb[0].mxu0
      %v1318 = vpop.f32.mrb[0].mxu0
      %v1319 = vadd.f32 %v256, %v1318
      %v1320 = vpop.f32.mrb[0].mxu0
      %1321 = vdwg.mxu0
      %v1322 = vmax.f32 %v1196, 0.0
      %v1323 = vmax.f32 %v1199, 0.0
      %v1324 = vmax.f32 %v1204, 0.0
      %v1325 = vmax.f32 %v1207, 0.0
      %v1326 = vmax.f32 %v1212, 0.0
      %v1327 = vmax.f32 %v1215, 0.0
      %v1328 = vmax.f32 %v1220, 0.0
      %v1329 = vmax.f32 %v1223, 0.0
      %v1330 = vmax.f32 %v1228, 0.0
      %v1331 = vmax.f32 %v1231, 0.0
      %v1332 = vmax.f32 %v1236, 0.0
      %v1333 = vmax.f32 %v1239, 0.0
      %v1334 = vmax.f32 %v1244, 0.0
      %v1335 = vmax.f32 %v1247, 0.0
      %v1336 = vmax.f32 %v1252, 0.0
      %v1337 = vmax.f32 %v1255, 0.0
      %v1338 = vmax.f32 %v1260, 0.0
      %v1339 = vmax.f32 %v1263, 0.0
      %v1340 = vmax.f32 %v1268, 0.0
      %v1341 = vmax.f32 %v1271, 0.0
      %v1342 = vmax.f32 %v1276, 0.0
      %v1343 = vmax.f32 %v1279, 0.0
      %v1344 = vmax.f32 %v1284, 0.0
      %v1345 = vmax.f32 %v1287, 0.0
      %v1346 = vmax.f32 %v1292, 0.0
      %v1347 = vmax.f32 %v1295, 0.0
      %v1348 = vmax.f32 %v1300, 0.0
      %v1349 = vmax.f32 %v1303, 0.0
      %v1350 = vmax.f32 %v1308, 0.0
      %v1351 = vmax.f32 %v1311, 0.0
      %v1352 = vmax.f32 %v1316, 0.0
      %v1353 = vmax.f32 %v1319, 0.0
      %v1354 = vmax.f32 %v969, %v1322
      %v1355 = vmax.f32 %v970, %v1323
      %v1356 = vmax.f32 %v971, %v1324
      %v1357 = vmax.f32 %v972, %v1325
      %v1358 = vmax.f32 %v973, %v1326
      %v1359 = vmax.f32 %v974, %v1327
      %v1360 = vmax.f32 %v975, %v1328
      %v1361 = vmax.f32 %v976, %v1329
      %v1362 = vmax.f32 %v977, %v1330
      %v1363 = vmax.f32 %v978, %v1331
      %v1364 = vmax.f32 %v979, %v1332
      %v1365 = vmax.f32 %v980, %v1333
      %v1366 = vmax.f32 %v981, %v1334
      %v1367 = vmax.f32 %v982, %v1335
      %v1368 = vmax.f32 %v983, %v1336
      %v1369 = vmax.f32 %v984, %v1337
      %v1370 = vmax.f32 %v985, %v1338
      %v1371 = vmax.f32 %v986, %v1339
      %v1372 = vmax.f32 %v987, %v1340
      %v1373 = vmax.f32 %v988, %v1341
      %v1374 = vmax.f32 %v989, %v1342
      %v1375 = vmax.f32 %v990, %v1343
      %v1376 = vmax.f32 %v991, %v1344
      %v1377 = vmax.f32 %v992, %v1345
      %v1378 = vmax.f32 %v993, %v1346
      %v1379 = vmax.f32 %v994, %v1347
      %v1380 = vmax.f32 %v995, %v1348
      %v1381 = vmax.f32 %v996, %v1349
      %v1382 = vmax.f32 %v997, %v1350
      %v1383 = vmax.f32 %v998, %v1351
      %v1384 = vmax.f32 %v999, %v1352
      %v1385 = vmax.f32 %v1000, %v1353
      %v1386 = vld [vmem:[%s197 + $0x180] sm:$0xf]
      %v1387 = vld [vmem:[%s197 + $0x184] sm:$0xf]
      %v1388 = vld [vmem:[%s197 + $0x188] sm:$0xf]
      %v1389 = vld [vmem:[%s197 + $0x18c] sm:$0xf]
      %v1390 = vld [vmem:[%s197 + $0x190] sm:$0xf]
      %v1391 = vld [vmem:[%s197 + $0x194] sm:$0xf]
      %v1392 = vld [vmem:[%s197 + $0x198] sm:$0xf]
      %v1393 = vld [vmem:[%s197 + $0x19c] sm:$0xf]
      %v1394 = vld [vmem:[%s197 + $0x1a0] sm:$0xf]
      %v1395 = vld [vmem:[%s197 + $0x1a4] sm:$0xf]
      %v1396 = vld [vmem:[%s197 + $0x1a8] sm:$0xf]
      %v1397 = vld [vmem:[%s197 + $0x1ac] sm:$0xf]
      %v1398 = vld [vmem:[%s197 + $0x1b0] sm:$0xf]
      %v1399 = vld [vmem:[%s197 + $0x1b4] sm:$0xf]
      %v1400 = vld [vmem:[%s197 + $0x1b8] sm:$0xf]
      %v1401 = vld [vmem:[%s197 + $0x1bc] sm:$0xf]
      %v1402 = vld [vmem:[%s197 + $0x1c0] sm:$0xf]
      %v1403 = vld [vmem:[%s197 + $0x1c4] sm:$0xf]
      %v1404 = vld [vmem:[%s197 + $0x1c8] sm:$0xf]
      %v1405 = vld [vmem:[%s197 + $0x1cc] sm:$0xf]
      %v1406 = vld [vmem:[%s197 + $0x1d0] sm:$0xf]
      %v1407 = vld [vmem:[%s197 + $0x1d4] sm:$0xf]
      %v1408 = vld [vmem:[%s197 + $0x1d8] sm:$0xf]
      %v1409 = vld [vmem:[%s197 + $0x1dc] sm:$0xf]
      %v1410 = vld [vmem:[%s197 + $0x1e0] sm:$0xf]
      %v1411 = vld [vmem:[%s197 + $0x1e4] sm:$0xf]
      %v1412 = vld [vmem:[%s197 + $0x1e8] sm:$0xf]
      %v1413 = vld [vmem:[%s197 + $0x1ec] sm:$0xf]
      %v1414 = vld [vmem:[%s197 + $0x1f0] sm:$0xf]
      %v1415 = vld [vmem:[%s197 + $0x1f4] sm:$0xf]
      %v1416 = vld [vmem:[%s197 + $0x1f8] sm:$0xf]
      %v1417 = vld [vmem:[%s197 + $0x1fc] sm:$0xf]
      %v1450 = vunpack.c.l.b16 %v1386
      %v1451 = vunpack.c.l.b16 %v1387
      %v1452 = vunpack.c.l.b16 %v1388
      %v1453 = vunpack.c.l.b16 %v1389
      %v1454 = vunpack.c.l.b16 %v1390
      %v1455 = vunpack.c.l.b16 %v1391
      %v1456 = vunpack.c.l.b16 %v1392
      %v1457 = vunpack.c.l.b16 %v1393
      %v1458 = vunpack.c.l.b16 %v1394
      %v1459 = vunpack.c.l.b16 %v1395
      %v1460 = vunpack.c.l.b16 %v1396
      %v1461 = vunpack.c.l.b16 %v1397
      %v1462 = vunpack.c.l.b16 %v1398
      %v1463 = vunpack.c.l.b16 %v1399
      %v1464 = vunpack.c.l.b16 %v1400
      %v1465 = vunpack.c.l.b16 %v1401
      %v1466 = vunpack.c.l.b16 %v1402
      %v1467 = vunpack.c.l.b16 %v1403
      %v1468 = vunpack.c.l.b16 %v1404
      %v1469 = vunpack.c.l.b16 %v1405
      %v1470 = vunpack.c.l.b16 %v1406
      %v1471 = vunpack.c.l.b16 %v1407
      %v1472 = vunpack.c.l.b16 %v1408
      %v1473 = vunpack.c.l.b16 %v1409
      %v1474 = vunpack.c.l.b16 %v1410
      %v1475 = vunpack.c.l.b16 %v1411
      %v1476 = vunpack.c.l.b16 %v1412
      %v1477 = vunpack.c.l.b16 %v1413
      %v1478 = vunpack.c.l.b16 %v1414
      %v1479 = vunpack.c.l.b16 %v1415
      %v1480 = vunpack.c.l.b16 %v1416
      %v1481 = vunpack.c.l.b16 %v1417
      %v1482 = vpack.c.b16 %v1451, %v1450
      %v1483 = vpack.c.b16 %v1453, %v1452
      %v1484 = vpack.c.b16 %v1455, %v1454
      %v1485 = vpack.c.b16 %v1457, %v1456
      %v1486 = vpack.c.b16 %v1459, %v1458
      %v1487 = vpack.c.b16 %v1461, %v1460
      %v1488 = vpack.c.b16 %v1463, %v1462
      %v1489 = vpack.c.b16 %v1465, %v1464
      %v1490 = vpack.c.b16 %v1467, %v1466
      %v1491 = vpack.c.b16 %v1469, %v1468
      %v1492 = vpack.c.b16 %v1471, %v1470
      %v1493 = vpack.c.b16 %v1473, %v1472
      %v1494 = vpack.c.b16 %v1475, %v1474
      %v1495 = vpack.c.b16 %v1477, %v1476
      %v1496 = vpack.c.b16 %v1479, %v1478
      %v1497 = vpack.c.b16 %v1481, %v1480
      %v1499 = vsel %vm367, %v1482, 0
      %v1502 = vsel %vm367, %v1483, 0
      %v1505 = vsel %vm367, %v1484, 0
      %v1508 = vsel %vm367, %v1485, 0
      %v1511 = vsel %vm367, %v1486, 0
      %v1514 = vsel %vm367, %v1487, 0
      %v1517 = vsel %vm367, %v1488, 0
      %v1520 = vsel %vm367, %v1489, 0
      %v1523 = vsel %vm367, %v1490, 0
      %v1526 = vsel %vm367, %v1491, 0
      %v1529 = vsel %vm367, %v1492, 0
      %v1532 = vsel %vm367, %v1493, 0
      %v1535 = vsel %vm367, %v1494, 0
      %v1538 = vsel %vm367, %v1495, 0
      %v1541 = vsel %vm367, %v1496, 0
      %v1544 = vsel %vm367, %v1497, 0
      %1546 = vmatprep.subr.bf16.mxu0 0
      %1547 = vmatpush1.bf16.msra.mxu0 %v358
      %1548 = vmatprep.subr.bf16.mxu0 0
      %1549 = vmatpush1.bf16.msra.mxu0 %v359
      %1550 = vmatprep.subr.bf16.mxu0 0
      %1551 = vmatpush1.bf16.msra.mxu0 %v360
      %1552 = vmatprep.subr.bf16.mxu0 0
      %1553 = vmatpush1.bf16.msra.mxu0 %v361
      %1554 = vmatprep.subr.bf16.mxu0 0
      %1555 = vmatpush1.bf16.msra.mxu0 %v421
      %1556 = vmatprep.subr.bf16.mxu0 0
      %1557 = vmatpush1.bf16.msra.mxu0 0
      %1558 = vmatprep.subr.bf16.mxu0 0
      %1559 = vmatpush1.bf16.msra.mxu0 0
      %1560 = vmatprep.subr.bf16.mxu0 0
      %1561 = vmatpush1.bf16.msra.mxu0 0
      %1562 = vmatprep.subr.bf16.mxu0 0
      %1563 = vmatpush1.bf16.msra.mxu0 0
      %1564 = vmatprep.subr.bf16.mxu0 0
      %1565 = vmatpush1.bf16.msra.mxu0 0
      %1566 = vmatprep.subr.bf16.mxu0 0
      %1567 = vmatpush1.bf16.msra.mxu0 0
      %1568 = vmatprep.subr.bf16.mxu0 0
      %1569 = vmatpush1.bf16.msra.mxu0 0
      %1570 = vmatprep.subr.bf16.mxu0 0
      %1571 = vmatpush1.bf16.msra.mxu0 0
      %1572 = vmatprep.subr.bf16.mxu0 0
      %1573 = vmatpush1.bf16.msra.mxu0 0
      %1574 = vmatprep.subr.bf16.mxu0 0
      %1575 = vmatpush1.bf16.msra.mxu0 0
      %1576 = vmatprep.subr.bf16.mxu0 0
      %1577 = vmatpush1.bf16.msra.mxu0 0
      %1578 = vmatprep.mubr.bf16.mxu0 0
      %1579 = vmatmul.mubr.bf16.gmra.mrb[0].mxu0 %v1499
      %v1580 = vpop.f32.mrb[0].mxu0
      %v1581 = vadd.f32 %v256, %v1580
      %v1582 = vpop.f32.mrb[0].mxu0
      %v1583 = vpop.f32.mrb[0].mxu0
      %v1584 = vadd.f32 %v256, %v1583
      %v1585 = vpop.f32.mrb[0].mxu0
      %1586 = vmatprep.mubr.bf16.mxu0 0
      %1587 = vmatmul.mubr.bf16.gmra.mrb[0].mxu0 %v1502
      %v1588 = vpop.f32.mrb[0].mxu0
      %v1589 = vadd.f32 %v256, %v1588
      %v1590 = vpop.f32.mrb[0].mxu0
      %v1591 = vpop.f32.mrb[0].mxu0
      %v1592 = vadd.f32 %v256, %v1591
      %v1593 = vpop.f32.mrb[0].mxu0
      %1594 = vmatprep.mubr.bf16.mxu0 0
      %1595 = vmatmul.mubr.bf16.gmra.mrb[0].mxu0 %v1505
      %v1596 = vpop.f32.mrb[0].mxu0
      %v1597 = vadd.f32 %v256, %v1596
      %v1598 = vpop.f32.mrb[0].mxu0
      %v1599 = vpop.f32.mrb[0].mxu0
      %v1600 = vadd.f32 %v256, %v1599
      %v1601 = vpop.f32.mrb[0].mxu0
      %1602 = vmatprep.mubr.bf16.mxu0 0
      %1603 = vmatmul.mubr.bf16.gmra.mrb[0].mxu0 %v1508
      %v1604 = vpop.f32.mrb[0].mxu0
      %v1605 = vadd.f32 %v256, %v1604
      %v1606 = vpop.f32.mrb[0].mxu0
      %v1607 = vpop.f32.mrb[0].mxu0
      %v1608 = vadd.f32 %v256, %v1607
      %v1609 = vpop.f32.mrb[0].mxu0
      %1610 = vmatprep.mubr.bf16.mxu0 0
      %1611 = vmatmul.mubr.bf16.gmra.mrb[0].mxu0 %v1511
      %v1612 = vpop.f32.mrb[0].mxu0
      %v1613 = vadd.f32 %v256, %v1612
      %v1614 = vpop.f32.mrb[0].mxu0
      %v1615 = vpop.f32.mrb[0].mxu0
      %v1616 = vadd.f32 %v256, %v1615
      %v1617 = vpop.f32.mrb[0].mxu0
      %1618 = vmatprep.mubr.bf16.mxu0 0
      %1619 = vmatmul.mubr.bf16.gmra.mrb[0].mxu0 %v1514
      %v1620 = vpop.f32.mrb[0].mxu0
      %v1621 = vadd.f32 %v256, %v1620
      %v1622 = vpop.f32.mrb[0].mxu0
      %v1623 = vpop.f32.mrb[0].mxu0
      %v1624 = vadd.f32 %v256, %v1623
      %v1625 = vpop.f32.mrb[0].mxu0
      %1626 = vmatprep.mubr.bf16.mxu0 0
      %1627 = vmatmul.mubr.bf16.gmra.mrb[0].mxu0 %v1517
      %v1628 = vpop.f32.mrb[0].mxu0
      %v1629 = vadd.f32 %v256, %v1628
      %v1630 = vpop.f32.mrb[0].mxu0
      %v1631 = vpop.f32.mrb[0].mxu0
      %v1632 = vadd.f32 %v256, %v1631
      %v1633 = vpop.f32.mrb[0].mxu0
      %1634 = vmatprep.mubr.bf16.mxu0 0
      %1635 = vmatmul.mubr.bf16.gmra.mrb[0].mxu0 %v1520
      %v1636 = vpop.f32.mrb[0].mxu0
      %v1637 = vadd.f32 %v256, %v1636
      %v1638 = vpop.f32.mrb[0].mxu0
      %v1639 = vpop.f32.mrb[0].mxu0
      %v1640 = vadd.f32 %v256, %v1639
      %v1641 = vpop.f32.mrb[0].mxu0
      %1642 = vmatprep.mubr.bf16.mxu0 0
      %1643 = vmatmul.mubr.bf16.gmra.mrb[0].mxu0 %v1523
      %v1644 = vpop.f32.mrb[0].mxu0
      %v1645 = vadd.f32 %v256, %v1644
      %v1646 = vpop.f32.mrb[0].mxu0
      %v1647 = vpop.f32.mrb[0].mxu0
      %v1648 = vadd.f32 %v256, %v1647
      %v1649 = vpop.f32.mrb[0].mxu0
      %1650 = vmatprep.mubr.bf16.mxu0 0
      %1651 = vmatmul.mubr.bf16.gmra.mrb[0].mxu0 %v1526
      %v1652 = vpop.f32.mrb[0].mxu0
      %v1653 = vadd.f32 %v256, %v1652
      %v1654 = vpop.f32.mrb[0].mxu0
      %v1655 = vpop.f32.mrb[0].mxu0
      %v1656 = vadd.f32 %v256, %v1655
      %v1657 = vpop.f32.mrb[0].mxu0
      %1658 = vmatprep.mubr.bf16.mxu0 0
      %1659 = vmatmul.mubr.bf16.gmra.mrb[0].mxu0 %v1529
      %v1660 = vpop.f32.mrb[0].mxu0
      %v1661 = vadd.f32 %v256, %v1660
      %v1662 = vpop.f32.mrb[0].mxu0
      %v1663 = vpop.f32.mrb[0].mxu0
      %v1664 = vadd.f32 %v256, %v1663
      %v1665 = vpop.f32.mrb[0].mxu0
      %1666 = vmatprep.mubr.bf16.mxu0 0
      %1667 = vmatmul.mubr.bf16.gmra.mrb[0].mxu0 %v1532
      %v1668 = vpop.f32.mrb[0].mxu0
      %v1669 = vadd.f32 %v256, %v1668
      %v1670 = vpop.f32.mrb[0].mxu0
      %v1671 = vpop.f32.mrb[0].mxu0
      %v1672 = vadd.f32 %v256, %v1671
      %v1673 = vpop.f32.mrb[0].mxu0
      %1674 = vmatprep.mubr.bf16.mxu0 0
      %1675 = vmatmul.mubr.bf16.gmra.mrb[0].mxu0 %v1535
      %v1676 = vpop.f32.mrb[0].mxu0
      %v1677 = vadd.f32 %v256, %v1676
      %v1678 = vpop.f32.mrb[0].mxu0
      %v1679 = vpop.f32.mrb[0].mxu0
      %v1680 = vadd.f32 %v256, %v1679
      %v1681 = vpop.f32.mrb[0].mxu0
      %1682 = vmatprep.mubr.bf16.mxu0 0
      %1683 = vmatmul.mubr.bf16.gmra.mrb[0].mxu0 %v1538
      %v1684 = vpop.f32.mrb[0].mxu0
      %v1685 = vadd.f32 %v256, %v1684
      %v1686 = vpop.f32.mrb[0].mxu0
      %v1687 = vpop.f32.mrb[0].mxu0
      %v1688 = vadd.f32 %v256, %v1687
      %v1689 = vpop.f32.mrb[0].mxu0
      %1690 = vmatprep.mubr.bf16.mxu0 0
      %1691 = vmatmul.mubr.bf16.gmra.mrb[0].mxu0 %v1541
      %v1692 = vpop.f32.mrb[0].mxu0
      %v1693 = vadd.f32 %v256, %v1692
      %v1694 = vpop.f32.mrb[0].mxu0
      %v1695 = vpop.f32.mrb[0].mxu0
      %v1696 = vadd.f32 %v256, %v1695
      %v1697 = vpop.f32.mrb[0].mxu0
      %1698 = vmatprep.mubr.bf16.mxu0 0
      %1699 = vmatmul.mubr.bf16.gmra.mrb[0].mxu0 %v1544
      %v1700 = vpop.f32.mrb[0].mxu0
      %v1701 = vadd.f32 %v256, %v1700
      %v1702 = vpop.f32.mrb[0].mxu0
      %v1703 = vpop.f32.mrb[0].mxu0
      %v1704 = vadd.f32 %v256, %v1703
      %v1705 = vpop.f32.mrb[0].mxu0
      %1706 = vdwg.mxu0
      %v1707 = vmax.f32 %v1581, 0.0
      %v1708 = vmax.f32 %v1584, 0.0
      %v1709 = vmax.f32 %v1589, 0.0
      %v1710 = vmax.f32 %v1592, 0.0
      %v1711 = vmax.f32 %v1597, 0.0
      %v1712 = vmax.f32 %v1600, 0.0
      %v1713 = vmax.f32 %v1605, 0.0
      %v1714 = vmax.f32 %v1608, 0.0
      %v1715 = vmax.f32 %v1613, 0.0
      %v1716 = vmax.f32 %v1616, 0.0
      %v1717 = vmax.f32 %v1621, 0.0
      %v1718 = vmax.f32 %v1624, 0.0
      %v1719 = vmax.f32 %v1629, 0.0
      %v1720 = vmax.f32 %v1632, 0.0
      %v1721 = vmax.f32 %v1637, 0.0
      %v1722 = vmax.f32 %v1640, 0.0
      %v1723 = vmax.f32 %v1645, 0.0
      %v1724 = vmax.f32 %v1648, 0.0
      %v1725 = vmax.f32 %v1653, 0.0
      %v1726 = vmax.f32 %v1656, 0.0
      %v1727 = vmax.f32 %v1661, 0.0
      %v1728 = vmax.f32 %v1664, 0.0
      %v1729 = vmax.f32 %v1669, 0.0
      %v1730 = vmax.f32 %v1672, 0.0
      %v1731 = vmax.f32 %v1677, 0.0
      %v1732 = vmax.f32 %v1680, 0.0
      %v1733 = vmax.f32 %v1685, 0.0
      %v1734 = vmax.f32 %v1688, 0.0
      %v1735 = vmax.f32 %v1693, 0.0
      %v1736 = vmax.f32 %v1696, 0.0
      %v1737 = vmax.f32 %v1701, 0.0
      %v1738 = vmax.f32 %v1704, 0.0
      %v1739 = vmax.f32 %v1354, %v1707
      %v1740 = vmax.f32 %v1355, %v1708
      %v1741 = vmax.f32 %v1356, %v1709
      %v1742 = vmax.f32 %v1357, %v1710
      %v1743 = vmax.f32 %v1358, %v1711
      %v1744 = vmax.f32 %v1359, %v1712
      %v1745 = vmax.f32 %v1360, %v1713
      %v1746 = vmax.f32 %v1361, %v1714
      %v1747 = vmax.f32 %v1362, %v1715
      %v1748 = vmax.f32 %v1363, %v1716
      %v1749 = vmax.f32 %v1364, %v1717
      %v1750 = vmax.f32 %v1365, %v1718
      %v1751 = vmax.f32 %v1366, %v1719
      %v1752 = vmax.f32 %v1367, %v1720
      %v1753 = vmax.f32 %v1368, %v1721
      %v1754 = vmax.f32 %v1369, %v1722
      %v1755 = vmax.f32 %v1370, %v1723
      %v1756 = vmax.f32 %v1371, %v1724
      %v1757 = vmax.f32 %v1372, %v1725
      %v1758 = vmax.f32 %v1373, %v1726
      %v1759 = vmax.f32 %v1374, %v1727
      %v1760 = vmax.f32 %v1375, %v1728
      %v1761 = vmax.f32 %v1376, %v1729
      %v1762 = vmax.f32 %v1377, %v1730
      %v1763 = vmax.f32 %v1378, %v1731
      %v1764 = vmax.f32 %v1379, %v1732
      %v1765 = vmax.f32 %v1380, %v1733
      %v1766 = vmax.f32 %v1381, %v1734
      %v1767 = vmax.f32 %v1382, %v1735
      %v1768 = vmax.f32 %v1383, %v1736
      %v1769 = vmax.f32 %v1384, %v1737
      %v1770 = vmax.f32 %v1385, %v1738
      %v1771 = vld [vmem:[%s197 + $0x200] sm:$0xf]
      %v1772 = vld [vmem:[%s197 + $0x204] sm:$0xf]
      %v1773 = vld [vmem:[%s197 + $0x208] sm:$0xf]
      %v1774 = vld [vmem:[%s197 + $0x20c] sm:$0xf]
      %v1775 = vld [vmem:[%s197 + $0x210] sm:$0xf]
      %v1776 = vld [vmem:[%s197 + $0x214] sm:$0xf]
      %v1777 = vld [vmem:[%s197 + $0x218] sm:$0xf]
      %v1778 = vld [vmem:[%s197 + $0x21c] sm:$0xf]
      %v1779 = vld [vmem:[%s197 + $0x220] sm:$0xf]
      %v1780 = vld [vmem:[%s197 + $0x224] sm:$0xf]
      %v1781 = vld [vmem:[%s197 + $0x228] sm:$0xf]
      %v1782 = vld [vmem:[%s197 + $0x22c] sm:$0xf]
      %v1783 = vld [vmem:[%s197 + $0x230] sm:$0xf]
      %v1784 = vld [vmem:[%s197 + $0x234] sm:$0xf]
      %v1785 = vld [vmem:[%s197 + $0x238] sm:$0xf]
      %v1786 = vld [vmem:[%s197 + $0x23c] sm:$0xf]
      %v1787 = vld [vmem:[%s197 + $0x240] sm:$0xf]
      %v1788 = vld [vmem:[%s197 + $0x244] sm:$0xf]
      %v1789 = vld [vmem:[%s197 + $0x248] sm:$0xf]
      %v1790 = vld [vmem:[%s197 + $0x24c] sm:$0xf]
      %v1791 = vld [vmem:[%s197 + $0x250] sm:$0xf]
      %v1792 = vld [vmem:[%s197 + $0x254] sm:$0xf]
      %v1793 = vld [vmem:[%s197 + $0x258] sm:$0xf]
      %v1794 = vld [vmem:[%s197 + $0x25c] sm:$0xf]
      %v1795 = vld [vmem:[%s197 + $0x260] sm:$0xf]
      %v1796 = vld [vmem:[%s197 + $0x264] sm:$0xf]
      %v1797 = vld [vmem:[%s197 + $0x268] sm:$0xf]
      %v1798 = vld [vmem:[%s197 + $0x26c] sm:$0xf]
      %v1799 = vld [vmem:[%s197 + $0x270] sm:$0xf]
      %v1800 = vld [vmem:[%s197 + $0x274] sm:$0xf]
      %v1801 = vld [vmem:[%s197 + $0x278] sm:$0xf]
      %v1802 = vld [vmem:[%s197 + $0x27c] sm:$0xf]
      %v1835 = vunpack.c.l.b16 %v1771
      %v1836 = vunpack.c.l.b16 %v1772
      %v1837 = vunpack.c.l.b16 %v1773
      %v1838 = vunpack.c.l.b16 %v1774
      %v1839 = vunpack.c.l.b16 %v1775
      %v1840 = vunpack.c.l.b16 %v1776
      %v1841 = vunpack.c.l.b16 %v1777
      %v1842 = vunpack.c.l.b16 %v1778
      %v1843 = vunpack.c.l.b16 %v1779
      %v1844 = vunpack.c.l.b16 %v1780
      %v1845 = vunpack.c.l.b16 %v1781
      %v1846 = vunpack.c.l.b16 %v1782
      %v1847 = vunpack.c.l.b16 %v1783
      %v1848 = vunpack.c.l.b16 %v1784
      %v1849 = vunpack.c.l.b16 %v1785
      %v1850 = vunpack.c.l.b16 %v1786
      %v1851 = vunpack.c.l.b16 %v1787
      %v1852 = vunpack.c.l.b16 %v1788
      %v1853 = vunpack.c.l.b16 %v1789
      %v1854 = vunpack.c.l.b16 %v1790
      %v1855 = vunpack.c.l.b16 %v1791
      %v1856 = vunpack.c.l.b16 %v1792
      %v1857 = vunpack.c.l.b16 %v1793
      %v1858 = vunpack.c.l.b16 %v1794
      %v1859 = vunpack.c.l.b16 %v1795
      %v1860 = vunpack.c.l.b16 %v1796
      %v1861 = vunpack.c.l.b16 %v1797
      %v1862 = vunpack.c.l.b16 %v1798
      %v1863 = vunpack.c.l.b16 %v1799
      %v1864 = vunpack.c.l.b16 %v1800
      %v1865 = vunpack.c.l.b16 %v1801
      %v1866 = vunpack.c.l.b16 %v1802
      %v1867 = vpack.c.b16 %v1836, %v1835
      %v1868 = vpack.c.b16 %v1838, %v1837
      %v1869 = vpack.c.b16 %v1840, %v1839
      %v1870 = vpack.c.b16 %v1842, %v1841
      %v1871 = vpack.c.b16 %v1844, %v1843
      %v1872 = vpack.c.b16 %v1846, %v1845
      %v1873 = vpack.c.b16 %v1848, %v1847
      %v1874 = vpack.c.b16 %v1850, %v1849
      %v1875 = vpack.c.b16 %v1852, %v1851
      %v1876 = vpack.c.b16 %v1854, %v1853
      %v1877 = vpack.c.b16 %v1856, %v1855
      %v1878 = vpack.c.b16 %v1858, %v1857
      %v1879 = vpack.c.b16 %v1860, %v1859
      %v1880 = vpack.c.b16 %v1862, %v1861
      %v1881 = vpack.c.b16 %v1864, %v1863
      %v1882 = vpack.c.b16 %v1866, %v1865
      %v1884 = vsel %vm367, %v1867, 0
      %v1887 = vsel %vm367, %v1868, 0
      %v1890 = vsel %vm367, %v1869, 0
      %v1893 = vsel %vm367, %v1870, 0
      %v1896 = vsel %vm367, %v1871, 0
      %v1899 = vsel %vm367, %v1872, 0
      %v1902 = vsel %vm367, %v1873, 0
      %v1905 = vsel %vm367, %v1874, 0
      %v1908 = vsel %vm367, %v1875, 0
      %v1911 = vsel %vm367, %v1876, 0
      %v1914 = vsel %vm367, %v1877, 0
      %v1917 = vsel %vm367, %v1878, 0
      %v1920 = vsel %vm367, %v1879, 0
      %v1923 = vsel %vm367, %v1880, 0
      %v1926 = vsel %vm367, %v1881, 0
      %v1929 = vsel %vm367, %v1882, 0
      %1931 = vmatprep.subr.bf16.mxu0 0
      %1932 = vmatpush1.bf16.msra.mxu0 %v358
      %1933 = vmatprep.subr.bf16.mxu0 0
      %1934 = vmatpush1.bf16.msra.mxu0 %v359
      %1935 = vmatprep.subr.bf16.mxu0 0
      %1936 = vmatpush1.bf16.msra.mxu0 %v360
      %1937 = vmatprep.subr.bf16.mxu0 0
      %1938 = vmatpush1.bf16.msra.mxu0 %v361
      %1939 = vmatprep.subr.bf16.mxu0 0
      %1940 = vmatpush1.bf16.msra.mxu0 %v421
      %1941 = vmatprep.subr.bf16.mxu0 0
      %1942 = vmatpush1.bf16.msra.mxu0 0
      %1943 = vmatprep.subr.bf16.mxu0 0
      %1944 = vmatpush1.bf16.msra.mxu0 0
      %1945 = vmatprep.subr.bf16.mxu0 0
      %1946 = vmatpush1.bf16.msra.mxu0 0
      %1947 = vmatprep.subr.bf16.mxu0 0
      %1948 = vmatpush1.bf16.msra.mxu0 0
      %1949 = vmatprep.subr.bf16.mxu0 0
      %1950 = vmatpush1.bf16.msra.mxu0 0
      %1951 = vmatprep.subr.bf16.mxu0 0
      %1952 = vmatpush1.bf16.msra.mxu0 0
      %1953 = vmatprep.subr.bf16.mxu0 0
      %1954 = vmatpush1.bf16.msra.mxu0 0
      %1955 = vmatprep.subr.bf16.mxu0 0
      %1956 = vmatpush1.bf16.msra.mxu0 0
      %1957 = vmatprep.subr.bf16.mxu0 0
      %1958 = vmatpush1.bf16.msra.mxu0 0
      %1959 = vmatprep.subr.bf16.mxu0 0
      %1960 = vmatpush1.bf16.msra.mxu0 0
      %1961 = vmatprep.subr.bf16.mxu0 0
      %1962 = vmatpush1.bf16.msra.mxu0 0
      %1963 = vmatprep.mubr.bf16.mxu0 0
      %1964 = vmatmul.mubr.bf16.gmra.mrb[0].mxu0 %v1884
      %v1965 = vpop.f32.mrb[0].mxu0
      %v1966 = vadd.f32 %v256, %v1965
      %v1967 = vpop.f32.mrb[0].mxu0
      %v1968 = vpop.f32.mrb[0].mxu0
      %v1969 = vadd.f32 %v256, %v1968
      %v1970 = vpop.f32.mrb[0].mxu0
      %1971 = vmatprep.mubr.bf16.mxu0 0
      %1972 = vmatmul.mubr.bf16.gmra.mrb[0].mxu0 %v1887
      %v1973 = vpop.f32.mrb[0].mxu0
      %v1974 = vadd.f32 %v256, %v1973
      %v1975 = vpop.f32.mrb[0].mxu0
      %v1976 = vpop.f32.mrb[0].mxu0
      %v1977 = vadd.f32 %v256, %v1976
      %v1978 = vpop.f32.mrb[0].mxu0
      %1979 = vmatprep.mubr.bf16.mxu0 0
      %1980 = vmatmul.mubr.bf16.gmra.mrb[0].mxu0 %v1890
      %v1981 = vpop.f32.mrb[0].mxu0
      %v1982 = vadd.f32 %v256, %v1981
      %v1983 = vpop.f32.mrb[0].mxu0
      %v1984 = vpop.f32.mrb[0].mxu0
      %v1985 = vadd.f32 %v256, %v1984
      %v1986 = vpop.f32.mrb[0].mxu0
      %1987 = vmatprep.mubr.bf16.mxu0 0
      %1988 = vmatmul.mubr.bf16.gmra.mrb[0].mxu0 %v1893
      %v1989 = vpop.f32.mrb[0].mxu0
      %v1990 = vadd.f32 %v256, %v1989
      %v1991 = vpop.f32.mrb[0].mxu0
      %v1992 = vpop.f32.mrb[0].mxu0
      %v1993 = vadd.f32 %v256, %v1992
      %v1994 = vpop.f32.mrb[0].mxu0
      %1995 = vmatprep.mubr.bf16.mxu0 0
      %1996 = vmatmul.mubr.bf16.gmra.mrb[0].mxu0 %v1896
      %v1997 = vpop.f32.mrb[0].mxu0
      %v1998 = vadd.f32 %v256, %v1997
      %v1999 = vpop.f32.mrb[0].mxu0
      %v2000 = vpop.f32.mrb[0].mxu0
      %v2001 = vadd.f32 %v256, %v2000
      %v2002 = vpop.f32.mrb[0].mxu0
      %2003 = vmatprep.mubr.bf16.mxu0 0
      %2004 = vmatmul.mubr.bf16.gmra.mrb[0].mxu0 %v1899
      %v2005 = vpop.f32.mrb[0].mxu0
      %v2006 = vadd.f32 %v256, %v2005
      %v2007 = vpop.f32.mrb[0].mxu0
      %v2008 = vpop.f32.mrb[0].mxu0
      %v2009 = vadd.f32 %v256, %v2008
      %v2010 = vpop.f32.mrb[0].mxu0
      %2011 = vmatprep.mubr.bf16.mxu0 0
      %2012 = vmatmul.mubr.bf16.gmra.mrb[0].mxu0 %v1902
      %v2013 = vpop.f32.mrb[0].mxu0
      %v2014 = vadd.f32 %v256, %v2013
      %v2015 = vpop.f32.mrb[0].mxu0
      %v2016 = vpop.f32.mrb[0].mxu0
      %v2017 = vadd.f32 %v256, %v2016
      %v2018 = vpop.f32.mrb[0].mxu0
      %2019 = vmatprep.mubr.bf16.mxu0 0
      %2020 = vmatmul.mubr.bf16.gmra.mrb[0].mxu0 %v1905
      %v2021 = vpop.f32.mrb[0].mxu0
      %v2022 = vadd.f32 %v256, %v2021
      %v2023 = vpop.f32.mrb[0].mxu0
      %v2024 = vpop.f32.mrb[0].mxu0
      %v2025 = vadd.f32 %v256, %v2024
      %v2026 = vpop.f32.mrb[0].mxu0
      %2027 = vmatprep.mubr.bf16.mxu0 0
      %2028 = vmatmul.mubr.bf16.gmra.mrb[0].mxu0 %v1908
      %v2029 = vpop.f32.mrb[0].mxu0
      %v2030 = vadd.f32 %v256, %v2029
      %v2031 = vpop.f32.mrb[0].mxu0
      %v2032 = vpop.f32.mrb[0].mxu0
      %v2033 = vadd.f32 %v256, %v2032
      %v2034 = vpop.f32.mrb[0].mxu0
      %2035 = vmatprep.mubr.bf16.mxu0 0
      %2036 = vmatmul.mubr.bf16.gmra.mrb[0].mxu0 %v1911
      %v2037 = vpop.f32.mrb[0].mxu0
      %v2038 = vadd.f32 %v256, %v2037
      %v2039 = vpop.f32.mrb[0].mxu0
      %v2040 = vpop.f32.mrb[0].mxu0
      %v2041 = vadd.f32 %v256, %v2040
      %v2042 = vpop.f32.mrb[0].mxu0
      %2043 = vmatprep.mubr.bf16.mxu0 0
      %2044 = vmatmul.mubr.bf16.gmra.mrb[0].mxu0 %v1914
      %v2045 = vpop.f32.mrb[0].mxu0
      %v2046 = vadd.f32 %v256, %v2045
      %v2047 = vpop.f32.mrb[0].mxu0
      %v2048 = vpop.f32.mrb[0].mxu0
      %v2049 = vadd.f32 %v256, %v2048
      %v2050 = vpop.f32.mrb[0].mxu0
      %2051 = vmatprep.mubr.bf16.mxu0 0
      %2052 = vmatmul.mubr.bf16.gmra.mrb[0].mxu0 %v1917
      %v2053 = vpop.f32.mrb[0].mxu0
      %v2054 = vadd.f32 %v256, %v2053
      %v2055 = vpop.f32.mrb[0].mxu0
      %v2056 = vpop.f32.mrb[0].mxu0
      %v2057 = vadd.f32 %v256, %v2056
      %v2058 = vpop.f32.mrb[0].mxu0
      %2059 = vmatprep.mubr.bf16.mxu0 0
      %2060 = vmatmul.mubr.bf16.gmra.mrb[0].mxu0 %v1920
      %v2061 = vpop.f32.mrb[0].mxu0
      %v2062 = vadd.f32 %v256, %v2061
      %v2063 = vpop.f32.mrb[0].mxu0
      %v2064 = vpop.f32.mrb[0].mxu0
      %v2065 = vadd.f32 %v256, %v2064
      %v2066 = vpop.f32.mrb[0].mxu0
      %2067 = vmatprep.mubr.bf16.mxu0 0
      %2068 = vmatmul.mubr.bf16.gmra.mrb[0].mxu0 %v1923
      %v2069 = vpop.f32.mrb[0].mxu0
      %v2070 = vadd.f32 %v256, %v2069
      %v2071 = vpop.f32.mrb[0].mxu0
      %v2072 = vpop.f32.mrb[0].mxu0
      %v2073 = vadd.f32 %v256, %v2072
      %v2074 = vpop.f32.mrb[0].mxu0
      %2075 = vmatprep.mubr.bf16.mxu0 0
      %2076 = vmatmul.mubr.bf16.gmra.mrb[0].mxu0 %v1926
      %v2077 = vpop.f32.mrb[0].mxu0
      %v2078 = vadd.f32 %v256, %v2077
      %v2079 = vpop.f32.mrb[0].mxu0
      %v2080 = vpop.f32.mrb[0].mxu0
      %v2081 = vadd.f32 %v256, %v2080
      %v2082 = vpop.f32.mrb[0].mxu0
      %2083 = vmatprep.mubr.bf16.mxu0 0
      %2084 = vmatmul.mubr.bf16.gmra.mrb[0].mxu0 %v1929
      %v2085 = vpop.f32.mrb[0].mxu0
      %v2086 = vadd.f32 %v256, %v2085
      %v2087 = vpop.f32.mrb[0].mxu0
      %v2088 = vpop.f32.mrb[0].mxu0
      %v2089 = vadd.f32 %v256, %v2088
      %v2090 = vpop.f32.mrb[0].mxu0
      %2091 = vdwg.mxu0
      %v2092 = vmax.f32 %v1966, 0.0
      %v2093 = vmax.f32 %v1969, 0.0
      %v2094 = vmax.f32 %v1974, 0.0
      %v2095 = vmax.f32 %v1977, 0.0
      %v2096 = vmax.f32 %v1982, 0.0
      %v2097 = vmax.f32 %v1985, 0.0
      %v2098 = vmax.f32 %v1990, 0.0
      %v2099 = vmax.f32 %v1993, 0.0
      %v2100 = vmax.f32 %v1998, 0.0
      %v2101 = vmax.f32 %v2001, 0.0
      %v2102 = vmax.f32 %v2006, 0.0
      %v2103 = vmax.f32 %v2009, 0.0
      %v2104 = vmax.f32 %v2014, 0.0
      %v2105 = vmax.f32 %v2017, 0.0
      %v2106 = vmax.f32 %v2022, 0.0
      %v2107 = vmax.f32 %v2025, 0.0
      %v2108 = vmax.f32 %v2030, 0.0
      %v2109 = vmax.f32 %v2033, 0.0
      %v2110 = vmax.f32 %v2038, 0.0
      %v2111 = vmax.f32 %v2041, 0.0
      %v2112 = vmax.f32 %v2046, 0.0
      %v2113 = vmax.f32 %v2049, 0.0
      %v2114 = vmax.f32 %v2054, 0.0
      %v2115 = vmax.f32 %v2057, 0.0
      %v2116 = vmax.f32 %v2062, 0.0
      %v2117 = vmax.f32 %v2065, 0.0
      %v2118 = vmax.f32 %v2070, 0.0
      %v2119 = vmax.f32 %v2073, 0.0
      %v2120 = vmax.f32 %v2078, 0.0
      %v2121 = vmax.f32 %v2081, 0.0
      %v2122 = vmax.f32 %v2086, 0.0
      %v2123 = vmax.f32 %v2089, 0.0
      %v2124 = vmax.f32 %v1739, %v2092
      %v2125 = vmax.f32 %v1740, %v2093
      %v2126 = vmax.f32 %v1741, %v2094
      %v2127 = vmax.f32 %v1742, %v2095
      %v2128 = vmax.f32 %v1743, %v2096
      %v2129 = vmax.f32 %v1744, %v2097
      %v2130 = vmax.f32 %v1745, %v2098
      %v2131 = vmax.f32 %v1746, %v2099
      %v2132 = vmax.f32 %v1747, %v2100
      %v2133 = vmax.f32 %v1748, %v2101
      %v2134 = vmax.f32 %v1749, %v2102
      %v2135 = vmax.f32 %v1750, %v2103
      %v2136 = vmax.f32 %v1751, %v2104
      %v2137 = vmax.f32 %v1752, %v2105
      %v2138 = vmax.f32 %v1753, %v2106
      %v2139 = vmax.f32 %v1754, %v2107
      %v2140 = vmax.f32 %v1755, %v2108
      %v2141 = vmax.f32 %v1756, %v2109
      %v2142 = vmax.f32 %v1757, %v2110
      %v2143 = vmax.f32 %v1758, %v2111
      %v2144 = vmax.f32 %v1759, %v2112
      %v2145 = vmax.f32 %v1760, %v2113
      %v2146 = vmax.f32 %v1761, %v2114
      %v2147 = vmax.f32 %v1762, %v2115
      %v2148 = vmax.f32 %v1763, %v2116
      %v2149 = vmax.f32 %v1764, %v2117
      %v2150 = vmax.f32 %v1765, %v2118
      %v2151 = vmax.f32 %v1766, %v2119
      %v2152 = vmax.f32 %v1767, %v2120
      %v2153 = vmax.f32 %v1768, %v2121
      %v2154 = vmax.f32 %v1769, %v2122
      %v2155 = vmax.f32 %v1770, %v2123
      %v2156 = vld [vmem:[%s197 + $0x280] sm:$0xf]
      %v2157 = vld [vmem:[%s197 + $0x284] sm:$0xf]
      %v2158 = vld [vmem:[%s197 + $0x288] sm:$0xf]
      %v2159 = vld [vmem:[%s197 + $0x28c] sm:$0xf]
      %v2160 = vld [vmem:[%s197 + $0x290] sm:$0xf]
      %v2161 = vld [vmem:[%s197 + $0x294] sm:$0xf]
      %v2162 = vld [vmem:[%s197 + $0x298] sm:$0xf]
      %v2163 = vld [vmem:[%s197 + $0x29c] sm:$0xf]
      %v2164 = vld [vmem:[%s197 + $0x2a0] sm:$0xf]
      %v2165 = vld [vmem:[%s197 + $0x2a4] sm:$0xf]
      %v2166 = vld [vmem:[%s197 + $0x2a8] sm:$0xf]
      %v2167 = vld [vmem:[%s197 + $0x2ac] sm:$0xf]
      %v2168 = vld [vmem:[%s197 + $0x2b0] sm:$0xf]
      %v2169 = vld [vmem:[%s197 + $0x2b4] sm:$0xf]
      %v2170 = vld [vmem:[%s197 + $0x2b8] sm:$0xf]
      %v2171 = vld [vmem:[%s197 + $0x2bc] sm:$0xf]
      %v2172 = vld [vmem:[%s197 + $0x2c0] sm:$0xf]
      %v2173 = vld [vmem:[%s197 + $0x2c4] sm:$0xf]
      %v2174 = vld [vmem:[%s197 + $0x2c8] sm:$0xf]
      %v2175 = vld [vmem:[%s197 + $0x2cc] sm:$0xf]
      %v2176 = vld [vmem:[%s197 + $0x2d0] sm:$0xf]
      %v2177 = vld [vmem:[%s197 + $0x2d4] sm:$0xf]
      %v2178 = vld [vmem:[%s197 + $0x2d8] sm:$0xf]
      %v2179 = vld [vmem:[%s197 + $0x2dc] sm:$0xf]
      %v2180 = vld [vmem:[%s197 + $0x2e0] sm:$0xf]
      %v2181 = vld [vmem:[%s197 + $0x2e4] sm:$0xf]
      %v2182 = vld [vmem:[%s197 + $0x2e8] sm:$0xf]
      %v2183 = vld [vmem:[%s197 + $0x2ec] sm:$0xf]
      %v2184 = vld [vmem:[%s197 + $0x2f0] sm:$0xf]
      %v2185 = vld [vmem:[%s197 + $0x2f4] sm:$0xf]
      %v2186 = vld [vmem:[%s197 + $0x2f8] sm:$0xf]
      %v2187 = vld [vmem:[%s197 + $0x2fc] sm:$0xf]
      %v2220 = vunpack.c.l.b16 %v2156
      %v2221 = vunpack.c.l.b16 %v2157
      %v2222 = vunpack.c.l.b16 %v2158
      %v2223 = vunpack.c.l.b16 %v2159
      %v2224 = vunpack.c.l.b16 %v2160
      %v2225 = vunpack.c.l.b16 %v2161
      %v2226 = vunpack.c.l.b16 %v2162
      %v2227 = vunpack.c.l.b16 %v2163
      %v2228 = vunpack.c.l.b16 %v2164
      %v2229 = vunpack.c.l.b16 %v2165
      %v2230 = vunpack.c.l.b16 %v2166
      %v2231 = vunpack.c.l.b16 %v2167
      %v2232 = vunpack.c.l.b16 %v2168
      %v2233 = vunpack.c.l.b16 %v2169
      %v2234 = vunpack.c.l.b16 %v2170
      %v2235 = vunpack.c.l.b16 %v2171
      %v2236 = vunpack.c.l.b16 %v2172
      %v2237 = vunpack.c.l.b16 %v2173
      %v2238 = vunpack.c.l.b16 %v2174
      %v2239 = vunpack.c.l.b16 %v2175
      %v2240 = vunpack.c.l.b16 %v2176
      %v2241 = vunpack.c.l.b16 %v2177
      %v2242 = vunpack.c.l.b16 %v2178
      %v2243 = vunpack.c.l.b16 %v2179
      %v2244 = vunpack.c.l.b16 %v2180
      %v2245 = vunpack.c.l.b16 %v2181
      %v2246 = vunpack.c.l.b16 %v2182
      %v2247 = vunpack.c.l.b16 %v2183
      %v2248 = vunpack.c.l.b16 %v2184
      %v2249 = vunpack.c.l.b16 %v2185
      %v2250 = vunpack.c.l.b16 %v2186
      %v2251 = vunpack.c.l.b16 %v2187
      %v2252 = vpack.c.b16 %v2221, %v2220
      %v2253 = vpack.c.b16 %v2223, %v2222
      %v2254 = vpack.c.b16 %v2225, %v2224
      %v2255 = vpack.c.b16 %v2227, %v2226
      %v2256 = vpack.c.b16 %v2229, %v2228
      %v2257 = vpack.c.b16 %v2231, %v2230
      %v2258 = vpack.c.b16 %v2233, %v2232
      %v2259 = vpack.c.b16 %v2235, %v2234
      %v2260 = vpack.c.b16 %v2237, %v2236
      %v2261 = vpack.c.b16 %v2239, %v2238
      %v2262 = vpack.c.b16 %v2241, %v2240
      %v2263 = vpack.c.b16 %v2243, %v2242
      %v2264 = vpack.c.b16 %v2245, %v2244
      %v2265 = vpack.c.b16 %v2247, %v2246
      %v2266 = vpack.c.b16 %v2249, %v2248
      %v2267 = vpack.c.b16 %v2251, %v2250
      %v2269 = vsel %vm367, %v2252, 0
      %v2272 = vsel %vm367, %v2253, 0
      %v2275 = vsel %vm367, %v2254, 0
      %v2278 = vsel %vm367, %v2255, 0
      %v2281 = vsel %vm367, %v2256, 0
      %v2284 = vsel %vm367, %v2257, 0
      %v2287 = vsel %vm367, %v2258, 0
      %v2290 = vsel %vm367, %v2259, 0
      %v2293 = vsel %vm367, %v2260, 0
      %v2296 = vsel %vm367, %v2261, 0
      %v2299 = vsel %vm367, %v2262, 0
      %v2302 = vsel %vm367, %v2263, 0
      %v2305 = vsel %vm367, %v2264, 0
      %v2308 = vsel %vm367, %v2265, 0
      %v2311 = vsel %vm367, %v2266, 0
      %v2314 = vsel %vm367, %v2267, 0
      %2316 = vmatprep.subr.bf16.mxu0 0
      %2317 = vmatpush1.bf16.msra.mxu0 %v358
      %2318 = vmatprep.subr.bf16.mxu0 0
      %2319 = vmatpush1.bf16.msra.mxu0 %v359
      %2320 = vmatprep.subr.bf16.mxu0 0
      %2321 = vmatpush1.bf16.msra.mxu0 %v360
      %2322 = vmatprep.subr.bf16.mxu0 0
      %2323 = vmatpush1.bf16.msra.mxu0 %v361
      %2324 = vmatprep.subr.bf16.mxu0 0
      %2325 = vmatpush1.bf16.msra.mxu0 %v421
      %2326 = vmatprep.subr.bf16.mxu0 0
      %2327 = vmatpush1.bf16.msra.mxu0 0
      %2328 = vmatprep.subr.bf16.mxu0 0
      %2329 = vmatpush1.bf16.msra.mxu0 0
      %2330 = vmatprep.subr.bf16.mxu0 0
      %2331 = vmatpush1.bf16.msra.mxu0 0
      %2332 = vmatprep.subr.bf16.mxu0 0
      %2333 = vmatpush1.bf16.msra.mxu0 0
      %2334 = vmatprep.subr.bf16.mxu0 0
      %2335 = vmatpush1.bf16.msra.mxu0 0
      %2336 = vmatprep.subr.bf16.mxu0 0
      %2337 = vmatpush1.bf16.msra.mxu0 0
      %2338 = vmatprep.subr.bf16.mxu0 0
      %2339 = vmatpush1.bf16.msra.mxu0 0
      %2340 = vmatprep.subr.bf16.mxu0 0
      %2341 = vmatpush1.bf16.msra.mxu0 0
      %2342 = vmatprep.subr.bf16.mxu0 0
      %2343 = vmatpush1.bf16.msra.mxu0 0
      %2344 = vmatprep.subr.bf16.mxu0 0
      %2345 = vmatpush1.bf16.msra.mxu0 0
      %2346 = vmatprep.subr.bf16.mxu0 0
      %2347 = vmatpush1.bf16.msra.mxu0 0
      %2348 = vmatprep.mubr.bf16.mxu0 0
      %2349 = vmatmul.mubr.bf16.gmra.mrb[0].mxu0 %v2269
      %v2350 = vpop.f32.mrb[0].mxu0
      %v2351 = vadd.f32 %v256, %v2350
      %v2352 = vpop.f32.mrb[0].mxu0
      %v2353 = vpop.f32.mrb[0].mxu0
      %v2354 = vadd.f32 %v256, %v2353
      %v2355 = vpop.f32.mrb[0].mxu0
      %2356 = vmatprep.mubr.bf16.mxu0 0
      %2357 = vmatmul.mubr.bf16.gmra.mrb[0].mxu0 %v2272
      %v2358 = vpop.f32.mrb[0].mxu0
      %v2359 = vadd.f32 %v256, %v2358
      %v2360 = vpop.f32.mrb[0].mxu0
      %v2361 = vpop.f32.mrb[0].mxu0
      %v2362 = vadd.f32 %v256, %v2361
      %v2363 = vpop.f32.mrb[0].mxu0
      %2364 = vmatprep.mubr.bf16.mxu0 0
      %2365 = vmatmul.mubr.bf16.gmra.mrb[0].mxu0 %v2275
      %v2366 = vpop.f32.mrb[0].mxu0
      %v2367 = vadd.f32 %v256, %v2366
      %v2368 = vpop.f32.mrb[0].mxu0
      %v2369 = vpop.f32.mrb[0].mxu0
      %v2370 = vadd.f32 %v256, %v2369
      %v2371 = vpop.f32.mrb[0].mxu0
      %2372 = vmatprep.mubr.bf16.mxu0 0
      %2373 = vmatmul.mubr.bf16.gmra.mrb[0].mxu0 %v2278
      %v2374 = vpop.f32.mrb[0].mxu0
      %v2375 = vadd.f32 %v256, %v2374
      %v2376 = vpop.f32.mrb[0].mxu0
      %v2377 = vpop.f32.mrb[0].mxu0
      %v2378 = vadd.f32 %v256, %v2377
      %v2379 = vpop.f32.mrb[0].mxu0
      %2380 = vmatprep.mubr.bf16.mxu0 0
      %2381 = vmatmul.mubr.bf16.gmra.mrb[0].mxu0 %v2281
      %v2382 = vpop.f32.mrb[0].mxu0
      %v2383 = vadd.f32 %v256, %v2382
      %v2384 = vpop.f32.mrb[0].mxu0
      %v2385 = vpop.f32.mrb[0].mxu0
      %v2386 = vadd.f32 %v256, %v2385
      %v2387 = vpop.f32.mrb[0].mxu0
      %2388 = vmatprep.mubr.bf16.mxu0 0
      %2389 = vmatmul.mubr.bf16.gmra.mrb[0].mxu0 %v2284
      %v2390 = vpop.f32.mrb[0].mxu0
      %v2391 = vadd.f32 %v256, %v2390
      %v2392 = vpop.f32.mrb[0].mxu0
      %v2393 = vpop.f32.mrb[0].mxu0
      %v2394 = vadd.f32 %v256, %v2393
      %v2395 = vpop.f32.mrb[0].mxu0
      %2396 = vmatprep.mubr.bf16.mxu0 0
      %2397 = vmatmul.mubr.bf16.gmra.mrb[0].mxu0 %v2287
      %v2398 = vpop.f32.mrb[0].mxu0
      %v2399 = vadd.f32 %v256, %v2398
      %v2400 = vpop.f32.mrb[0].mxu0
      %v2401 = vpop.f32.mrb[0].mxu0
      %v2402 = vadd.f32 %v256, %v2401
      %v2403 = vpop.f32.mrb[0].mxu0
      %2404 = vmatprep.mubr.bf16.mxu0 0
      %2405 = vmatmul.mubr.bf16.gmra.mrb[0].mxu0 %v2290
      %v2406 = vpop.f32.mrb[0].mxu0
      %v2407 = vadd.f32 %v256, %v2406
      %v2408 = vpop.f32.mrb[0].mxu0
      %v2409 = vpop.f32.mrb[0].mxu0
      %v2410 = vadd.f32 %v256, %v2409
      %v2411 = vpop.f32.mrb[0].mxu0
      %2412 = vmatprep.mubr.bf16.mxu0 0
      %2413 = vmatmul.mubr.bf16.gmra.mrb[0].mxu0 %v2293
      %v2414 = vpop.f32.mrb[0].mxu0
      %v2415 = vadd.f32 %v256, %v2414
      %v2416 = vpop.f32.mrb[0].mxu0
      %v2417 = vpop.f32.mrb[0].mxu0
      %v2418 = vadd.f32 %v256, %v2417
      %v2419 = vpop.f32.mrb[0].mxu0
      %2420 = vmatprep.mubr.bf16.mxu0 0
      %2421 = vmatmul.mubr.bf16.gmra.mrb[0].mxu0 %v2296
      %v2422 = vpop.f32.mrb[0].mxu0
      %v2423 = vadd.f32 %v256, %v2422
      %v2424 = vpop.f32.mrb[0].mxu0
      %v2425 = vpop.f32.mrb[0].mxu0
      %v2426 = vadd.f32 %v256, %v2425
      %v2427 = vpop.f32.mrb[0].mxu0
      %2428 = vmatprep.mubr.bf16.mxu0 0
      %2429 = vmatmul.mubr.bf16.gmra.mrb[0].mxu0 %v2299
      %v2430 = vpop.f32.mrb[0].mxu0
      %v2431 = vadd.f32 %v256, %v2430
      %v2432 = vpop.f32.mrb[0].mxu0
      %v2433 = vpop.f32.mrb[0].mxu0
      %v2434 = vadd.f32 %v256, %v2433
      %v2435 = vpop.f32.mrb[0].mxu0
      %2436 = vmatprep.mubr.bf16.mxu0 0
      %2437 = vmatmul.mubr.bf16.gmra.mrb[0].mxu0 %v2302
      %v2438 = vpop.f32.mrb[0].mxu0
      %v2439 = vadd.f32 %v256, %v2438
      %v2440 = vpop.f32.mrb[0].mxu0
      %v2441 = vpop.f32.mrb[0].mxu0
      %v2442 = vadd.f32 %v256, %v2441
      %v2443 = vpop.f32.mrb[0].mxu0
      %2444 = vmatprep.mubr.bf16.mxu0 0
      %2445 = vmatmul.mubr.bf16.gmra.mrb[0].mxu0 %v2305
      %v2446 = vpop.f32.mrb[0].mxu0
      %v2447 = vadd.f32 %v256, %v2446
      %v2448 = vpop.f32.mrb[0].mxu0
      %v2449 = vpop.f32.mrb[0].mxu0
      %v2450 = vadd.f32 %v256, %v2449
      %v2451 = vpop.f32.mrb[0].mxu0
      %2452 = vmatprep.mubr.bf16.mxu0 0
      %2453 = vmatmul.mubr.bf16.gmra.mrb[0].mxu0 %v2308
      %v2454 = vpop.f32.mrb[0].mxu0
      %v2455 = vadd.f32 %v256, %v2454
      %v2456 = vpop.f32.mrb[0].mxu0
      %v2457 = vpop.f32.mrb[0].mxu0
      %v2458 = vadd.f32 %v256, %v2457
      %v2459 = vpop.f32.mrb[0].mxu0
      %2460 = vmatprep.mubr.bf16.mxu0 0
      %2461 = vmatmul.mubr.bf16.gmra.mrb[0].mxu0 %v2311
      %v2462 = vpop.f32.mrb[0].mxu0
      %v2463 = vadd.f32 %v256, %v2462
      %v2464 = vpop.f32.mrb[0].mxu0
      %v2465 = vpop.f32.mrb[0].mxu0
      %v2466 = vadd.f32 %v256, %v2465
      %v2467 = vpop.f32.mrb[0].mxu0
      %2468 = vmatprep.mubr.bf16.mxu0 0
      %2469 = vmatmul.mubr.bf16.gmra.mrb[0].mxu0 %v2314
      %v2470 = vpop.f32.mrb[0].mxu0
      %v2471 = vadd.f32 %v256, %v2470
      %v2472 = vpop.f32.mrb[0].mxu0
      %v2473 = vpop.f32.mrb[0].mxu0
      %v2474 = vadd.f32 %v256, %v2473
      %v2475 = vpop.f32.mrb[0].mxu0
      %2476 = vdwg.mxu0
      %v2477 = vmax.f32 %v2351, 0.0
      %v2478 = vmax.f32 %v2354, 0.0
      %v2479 = vmax.f32 %v2359, 0.0
      %v2480 = vmax.f32 %v2362, 0.0
      %v2481 = vmax.f32 %v2367, 0.0
      %v2482 = vmax.f32 %v2370, 0.0
      %v2483 = vmax.f32 %v2375, 0.0
      %v2484 = vmax.f32 %v2378, 0.0
      %v2485 = vmax.f32 %v2383, 0.0
      %v2486 = vmax.f32 %v2386, 0.0
      %v2487 = vmax.f32 %v2391, 0.0
      %v2488 = vmax.f32 %v2394, 0.0
      %v2489 = vmax.f32 %v2399, 0.0
      %v2490 = vmax.f32 %v2402, 0.0
      %v2491 = vmax.f32 %v2407, 0.0
      %v2492 = vmax.f32 %v2410, 0.0
      %v2493 = vmax.f32 %v2415, 0.0
      %v2494 = vmax.f32 %v2418, 0.0
      %v2495 = vmax.f32 %v2423, 0.0
      %v2496 = vmax.f32 %v2426, 0.0
      %v2497 = vmax.f32 %v2431, 0.0
      %v2498 = vmax.f32 %v2434, 0.0
      %v2499 = vmax.f32 %v2439, 0.0
      %v2500 = vmax.f32 %v2442, 0.0
      %v2501 = vmax.f32 %v2447, 0.0
      %v2502 = vmax.f32 %v2450, 0.0
      %v2503 = vmax.f32 %v2455, 0.0
      %v2504 = vmax.f32 %v2458, 0.0
      %v2505 = vmax.f32 %v2463, 0.0
      %v2506 = vmax.f32 %v2466, 0.0
      %v2507 = vmax.f32 %v2471, 0.0
      %v2508 = vmax.f32 %v2474, 0.0
      %v2509 = vmax.f32 %v2124, %v2477
      %v2510 = vmax.f32 %v2125, %v2478
      %v2511 = vmax.f32 %v2126, %v2479
      %v2512 = vmax.f32 %v2127, %v2480
      %v2513 = vmax.f32 %v2128, %v2481
      %v2514 = vmax.f32 %v2129, %v2482
      %v2515 = vmax.f32 %v2130, %v2483
      %v2516 = vmax.f32 %v2131, %v2484
      %v2517 = vmax.f32 %v2132, %v2485
      %v2518 = vmax.f32 %v2133, %v2486
      %v2519 = vmax.f32 %v2134, %v2487
      %v2520 = vmax.f32 %v2135, %v2488
      %v2521 = vmax.f32 %v2136, %v2489
      %v2522 = vmax.f32 %v2137, %v2490
      %v2523 = vmax.f32 %v2138, %v2491
      %v2524 = vmax.f32 %v2139, %v2492
      %v2525 = vmax.f32 %v2140, %v2493
      %v2526 = vmax.f32 %v2141, %v2494
      %v2527 = vmax.f32 %v2142, %v2495
      %v2528 = vmax.f32 %v2143, %v2496
      %v2529 = vmax.f32 %v2144, %v2497
      %v2530 = vmax.f32 %v2145, %v2498
      %v2531 = vmax.f32 %v2146, %v2499
      %v2532 = vmax.f32 %v2147, %v2500
      %v2533 = vmax.f32 %v2148, %v2501
      %v2534 = vmax.f32 %v2149, %v2502
      %v2535 = vmax.f32 %v2150, %v2503
      %v2536 = vmax.f32 %v2151, %v2504
      %v2537 = vmax.f32 %v2152, %v2505
      %v2538 = vmax.f32 %v2153, %v2506
      %v2539 = vmax.f32 %v2154, %v2507
      %v2540 = vmax.f32 %v2155, %v2508
      %v2541 = vld [vmem:[%s197 + $0x300] sm:$0xf]
      %v2542 = vld [vmem:[%s197 + $0x304] sm:$0xf]
      %v2543 = vld [vmem:[%s197 + $0x308] sm:$0xf]
      %v2544 = vld [vmem:[%s197 + $0x30c] sm:$0xf]
      %v2545 = vld [vmem:[%s197 + $0x310] sm:$0xf]
      %v2546 = vld [vmem:[%s197 + $0x314] sm:$0xf]
      %v2547 = vld [vmem:[%s197 + $0x318] sm:$0xf]
      %v2548 = vld [vmem:[%s197 + $0x31c] sm:$0xf]
      %v2549 = vld [vmem:[%s197 + $0x320] sm:$0xf]
      %v2550 = vld [vmem:[%s197 + $0x324] sm:$0xf]
      %v2551 = vld [vmem:[%s197 + $0x328] sm:$0xf]
      %v2552 = vld [vmem:[%s197 + $0x32c] sm:$0xf]
      %v2553 = vld [vmem:[%s197 + $0x330] sm:$0xf]
      %v2554 = vld [vmem:[%s197 + $0x334] sm:$0xf]
      %v2555 = vld [vmem:[%s197 + $0x338] sm:$0xf]
      %v2556 = vld [vmem:[%s197 + $0x33c] sm:$0xf]
      %v2557 = vld [vmem:[%s197 + $0x340] sm:$0xf]
      %v2558 = vld [vmem:[%s197 + $0x344] sm:$0xf]
      %v2559 = vld [vmem:[%s197 + $0x348] sm:$0xf]
      %v2560 = vld [vmem:[%s197 + $0x34c] sm:$0xf]
      %v2561 = vld [vmem:[%s197 + $0x350] sm:$0xf]
      %v2562 = vld [vmem:[%s197 + $0x354] sm:$0xf]
      %v2563 = vld [vmem:[%s197 + $0x358] sm:$0xf]
      %v2564 = vld [vmem:[%s197 + $0x35c] sm:$0xf]
      %v2565 = vld [vmem:[%s197 + $0x360] sm:$0xf]
      %v2566 = vld [vmem:[%s197 + $0x364] sm:$0xf]
      %v2567 = vld [vmem:[%s197 + $0x368] sm:$0xf]
      %v2568 = vld [vmem:[%s197 + $0x36c] sm:$0xf]
      %v2569 = vld [vmem:[%s197 + $0x370] sm:$0xf]
      %v2570 = vld [vmem:[%s197 + $0x374] sm:$0xf]
      %v2571 = vld [vmem:[%s197 + $0x378] sm:$0xf]
      %v2572 = vld [vmem:[%s197 + $0x37c] sm:$0xf]
      %v2605 = vunpack.c.l.b16 %v2541
      %v2606 = vunpack.c.l.b16 %v2542
      %v2607 = vunpack.c.l.b16 %v2543
      %v2608 = vunpack.c.l.b16 %v2544
      %v2609 = vunpack.c.l.b16 %v2545
      %v2610 = vunpack.c.l.b16 %v2546
      %v2611 = vunpack.c.l.b16 %v2547
      %v2612 = vunpack.c.l.b16 %v2548
      %v2613 = vunpack.c.l.b16 %v2549
      %v2614 = vunpack.c.l.b16 %v2550
      %v2615 = vunpack.c.l.b16 %v2551
      %v2616 = vunpack.c.l.b16 %v2552
      %v2617 = vunpack.c.l.b16 %v2553
      %v2618 = vunpack.c.l.b16 %v2554
      %v2619 = vunpack.c.l.b16 %v2555
      %v2620 = vunpack.c.l.b16 %v2556
      %v2621 = vunpack.c.l.b16 %v2557
      %v2622 = vunpack.c.l.b16 %v2558
      %v2623 = vunpack.c.l.b16 %v2559
      %v2624 = vunpack.c.l.b16 %v2560
      %v2625 = vunpack.c.l.b16 %v2561
      %v2626 = vunpack.c.l.b16 %v2562
      %v2627 = vunpack.c.l.b16 %v2563
      %v2628 = vunpack.c.l.b16 %v2564
      %v2629 = vunpack.c.l.b16 %v2565
      %v2630 = vunpack.c.l.b16 %v2566
      %v2631 = vunpack.c.l.b16 %v2567
      %v2632 = vunpack.c.l.b16 %v2568
      %v2633 = vunpack.c.l.b16 %v2569
      %v2634 = vunpack.c.l.b16 %v2570
      %v2635 = vunpack.c.l.b16 %v2571
      %v2636 = vunpack.c.l.b16 %v2572
      %v2637 = vpack.c.b16 %v2606, %v2605
      %v2638 = vpack.c.b16 %v2608, %v2607
      %v2639 = vpack.c.b16 %v2610, %v2609
      %v2640 = vpack.c.b16 %v2612, %v2611
      %v2641 = vpack.c.b16 %v2614, %v2613
      %v2642 = vpack.c.b16 %v2616, %v2615
      %v2643 = vpack.c.b16 %v2618, %v2617
      %v2644 = vpack.c.b16 %v2620, %v2619
      %v2645 = vpack.c.b16 %v2622, %v2621
      %v2646 = vpack.c.b16 %v2624, %v2623
      %v2647 = vpack.c.b16 %v2626, %v2625
      %v2648 = vpack.c.b16 %v2628, %v2627
      %v2649 = vpack.c.b16 %v2630, %v2629
      %v2650 = vpack.c.b16 %v2632, %v2631
      %v2651 = vpack.c.b16 %v2634, %v2633
      %v2652 = vpack.c.b16 %v2636, %v2635
      %v2654 = vsel %vm367, %v2637, 0
      %v2657 = vsel %vm367, %v2638, 0
      %v2660 = vsel %vm367, %v2639, 0
      %v2663 = vsel %vm367, %v2640, 0
      %v2666 = vsel %vm367, %v2641, 0
      %v2669 = vsel %vm367, %v2642, 0
      %v2672 = vsel %vm367, %v2643, 0
      %v2675 = vsel %vm367, %v2644, 0
      %v2678 = vsel %vm367, %v2645, 0
      %v2681 = vsel %vm367, %v2646, 0
      %v2684 = vsel %vm367, %v2647, 0
      %v2687 = vsel %vm367, %v2648, 0
      %v2690 = vsel %vm367, %v2649, 0
      %v2693 = vsel %vm367, %v2650, 0
      %v2696 = vsel %vm367, %v2651, 0
      %v2699 = vsel %vm367, %v2652, 0
      %2701 = vmatprep.subr.bf16.mxu0 0
      %2702 = vmatpush1.bf16.msra.mxu0 %v358
      %2703 = vmatprep.subr.bf16.mxu0 0
      %2704 = vmatpush1.bf16.msra.mxu0 %v359
      %2705 = vmatprep.subr.bf16.mxu0 0
      %2706 = vmatpush1.bf16.msra.mxu0 %v360
      %2707 = vmatprep.subr.bf16.mxu0 0
      %2708 = vmatpush1.bf16.msra.mxu0 %v361
      %2709 = vmatprep.subr.bf16.mxu0 0
      %2710 = vmatpush1.bf16.msra.mxu0 %v421
      %2711 = vmatprep.subr.bf16.mxu0 0
      %2712 = vmatpush1.bf16.msra.mxu0 0
      %2713 = vmatprep.subr.bf16.mxu0 0
      %2714 = vmatpush1.bf16.msra.mxu0 0
      %2715 = vmatprep.subr.bf16.mxu0 0
      %2716 = vmatpush1.bf16.msra.mxu0 0
      %2717 = vmatprep.subr.bf16.mxu0 0
      %2718 = vmatpush1.bf16.msra.mxu0 0
      %2719 = vmatprep.subr.bf16.mxu0 0
      %2720 = vmatpush1.bf16.msra.mxu0 0
      %2721 = vmatprep.subr.bf16.mxu0 0
      %2722 = vmatpush1.bf16.msra.mxu0 0
      %2723 = vmatprep.subr.bf16.mxu0 0
      %2724 = vmatpush1.bf16.msra.mxu0 0
      %2725 = vmatprep.subr.bf16.mxu0 0
      %2726 = vmatpush1.bf16.msra.mxu0 0
      %2727 = vmatprep.subr.bf16.mxu0 0
      %2728 = vmatpush1.bf16.msra.mxu0 0
      %2729 = vmatprep.subr.bf16.mxu0 0
      %2730 = vmatpush1.bf16.msra.mxu0 0
      %2731 = vmatprep.subr.bf16.mxu0 0
      %2732 = vmatpush1.bf16.msra.mxu0 0
      %2733 = vmatprep.mubr.bf16.mxu0 0
      %2734 = vmatmul.mubr.bf16.gmra.mrb[0].mxu0 %v2654
      %v2735 = vpop.f32.mrb[0].mxu0
      %v2736 = vadd.f32 %v256, %v2735
      %v2737 = vpop.f32.mrb[0].mxu0
      %v2738 = vpop.f32.mrb[0].mxu0
      %v2739 = vadd.f32 %v256, %v2738
      %v2740 = vpop.f32.mrb[0].mxu0
      %2741 = vmatprep.mubr.bf16.mxu0 0
      %2742 = vmatmul.mubr.bf16.gmra.mrb[0].mxu0 %v2657
      %v2743 = vpop.f32.mrb[0].mxu0
      %v2744 = vadd.f32 %v256, %v2743
      %v2745 = vpop.f32.mrb[0].mxu0
      %v2746 = vpop.f32.mrb[0].mxu0
      %v2747 = vadd.f32 %v256, %v2746
      %v2748 = vpop.f32.mrb[0].mxu0
      %2749 = vmatprep.mubr.bf16.mxu0 0
      %2750 = vmatmul.mubr.bf16.gmra.mrb[0].mxu0 %v2660
      %v2751 = vpop.f32.mrb[0].mxu0
      %v2752 = vadd.f32 %v256, %v2751
      %v2753 = vpop.f32.mrb[0].mxu0
      %v2754 = vpop.f32.mrb[0].mxu0
      %v2755 = vadd.f32 %v256, %v2754
      %v2756 = vpop.f32.mrb[0].mxu0
      %2757 = vmatprep.mubr.bf16.mxu0 0
      %2758 = vmatmul.mubr.bf16.gmra.mrb[0].mxu0 %v2663
      %v2759 = vpop.f32.mrb[0].mxu0
      %v2760 = vadd.f32 %v256, %v2759
      %v2761 = vpop.f32.mrb[0].mxu0
      %v2762 = vpop.f32.mrb[0].mxu0
      %v2763 = vadd.f32 %v256, %v2762
      %v2764 = vpop.f32.mrb[0].mxu0
      %2765 = vmatprep.mubr.bf16.mxu0 0
      %2766 = vmatmul.mubr.bf16.gmra.mrb[0].mxu0 %v2666
      %v2767 = vpop.f32.mrb[0].mxu0
      %v2768 = vadd.f32 %v256, %v2767
      %v2769 = vpop.f32.mrb[0].mxu0
      %v2770 = vpop.f32.mrb[0].mxu0
      %v2771 = vadd.f32 %v256, %v2770
      %v2772 = vpop.f32.mrb[0].mxu0
      %2773 = vmatprep.mubr.bf16.mxu0 0
      %2774 = vmatmul.mubr.bf16.gmra.mrb[0].mxu0 %v2669
      %v2775 = vpop.f32.mrb[0].mxu0
      %v2776 = vadd.f32 %v256, %v2775
      %v2777 = vpop.f32.mrb[0].mxu0
      %v2778 = vpop.f32.mrb[0].mxu0
      %v2779 = vadd.f32 %v256, %v2778
      %v2780 = vpop.f32.mrb[0].mxu0
      %2781 = vmatprep.mubr.bf16.mxu0 0
      %2782 = vmatmul.mubr.bf16.gmra.mrb[0].mxu0 %v2672
      %v2783 = vpop.f32.mrb[0].mxu0
      %v2784 = vadd.f32 %v256, %v2783
      %v2785 = vpop.f32.mrb[0].mxu0
      %v2786 = vpop.f32.mrb[0].mxu0
      %v2787 = vadd.f32 %v256, %v2786
      %v2788 = vpop.f32.mrb[0].mxu0
      %2789 = vmatprep.mubr.bf16.mxu0 0
      %2790 = vmatmul.mubr.bf16.gmra.mrb[0].mxu0 %v2675
      %v2791 = vpop.f32.mrb[0].mxu0
      %v2792 = vadd.f32 %v256, %v2791
      %v2793 = vpop.f32.mrb[0].mxu0
      %v2794 = vpop.f32.mrb[0].mxu0
      %v2795 = vadd.f32 %v256, %v2794
      %v2796 = vpop.f32.mrb[0].mxu0
      %2797 = vmatprep.mubr.bf16.mxu0 0
      %2798 = vmatmul.mubr.bf16.gmra.mrb[0].mxu0 %v2678
      %v2799 = vpop.f32.mrb[0].mxu0
      %v2800 = vadd.f32 %v256, %v2799
      %v2801 = vpop.f32.mrb[0].mxu0
      %v2802 = vpop.f32.mrb[0].mxu0
      %v2803 = vadd.f32 %v256, %v2802
      %v2804 = vpop.f32.mrb[0].mxu0
      %2805 = vmatprep.mubr.bf16.mxu0 0
      %2806 = vmatmul.mubr.bf16.gmra.mrb[0].mxu0 %v2681
      %v2807 = vpop.f32.mrb[0].mxu0
      %v2808 = vadd.f32 %v256, %v2807
      %v2809 = vpop.f32.mrb[0].mxu0
      %v2810 = vpop.f32.mrb[0].mxu0
      %v2811 = vadd.f32 %v256, %v2810
      %v2812 = vpop.f32.mrb[0].mxu0
      %2813 = vmatprep.mubr.bf16.mxu0 0
      %2814 = vmatmul.mubr.bf16.gmra.mrb[0].mxu0 %v2684
      %v2815 = vpop.f32.mrb[0].mxu0
      %v2816 = vadd.f32 %v256, %v2815
      %v2817 = vpop.f32.mrb[0].mxu0
      %v2818 = vpop.f32.mrb[0].mxu0
      %v2819 = vadd.f32 %v256, %v2818
      %v2820 = vpop.f32.mrb[0].mxu0
      %2821 = vmatprep.mubr.bf16.mxu0 0
      %2822 = vmatmul.mubr.bf16.gmra.mrb[0].mxu0 %v2687
      %v2823 = vpop.f32.mrb[0].mxu0
      %v2824 = vadd.f32 %v256, %v2823
      %v2825 = vpop.f32.mrb[0].mxu0
      %v2826 = vpop.f32.mrb[0].mxu0
      %v2827 = vadd.f32 %v256, %v2826
      %v2828 = vpop.f32.mrb[0].mxu0
      %2829 = vmatprep.mubr.bf16.mxu0 0
      %2830 = vmatmul.mubr.bf16.gmra.mrb[0].mxu0 %v2690
      %v2831 = vpop.f32.mrb[0].mxu0
      %v2832 = vadd.f32 %v256, %v2831
      %v2833 = vpop.f32.mrb[0].mxu0
      %v2834 = vpop.f32.mrb[0].mxu0
      %v2835 = vadd.f32 %v256, %v2834
      %v2836 = vpop.f32.mrb[0].mxu0
      %2837 = vmatprep.mubr.bf16.mxu0 0
      %2838 = vmatmul.mubr.bf16.gmra.mrb[0].mxu0 %v2693
      %v2839 = vpop.f32.mrb[0].mxu0
      %v2840 = vadd.f32 %v256, %v2839
      %v2841 = vpop.f32.mrb[0].mxu0
      %v2842 = vpop.f32.mrb[0].mxu0
      %v2843 = vadd.f32 %v256, %v2842
      %v2844 = vpop.f32.mrb[0].mxu0
      %2845 = vmatprep.mubr.bf16.mxu0 0
      %2846 = vmatmul.mubr.bf16.gmra.mrb[0].mxu0 %v2696
      %v2847 = vpop.f32.mrb[0].mxu0
      %v2848 = vadd.f32 %v256, %v2847
      %v2849 = vpop.f32.mrb[0].mxu0
      %v2850 = vpop.f32.mrb[0].mxu0
      %v2851 = vadd.f32 %v256, %v2850
      %v2852 = vpop.f32.mrb[0].mxu0
      %2853 = vmatprep.mubr.bf16.mxu0 0
      %2854 = vmatmul.mubr.bf16.gmra.mrb[0].mxu0 %v2699
      %v2855 = vpop.f32.mrb[0].mxu0
      %v2856 = vadd.f32 %v256, %v2855
      %v2857 = vpop.f32.mrb[0].mxu0
      %v2858 = vpop.f32.mrb[0].mxu0
      %v2859 = vadd.f32 %v256, %v2858
      %v2860 = vpop.f32.mrb[0].mxu0
      %2861 = vdwg.mxu0
      %v2862 = vmax.f32 %v2736, 0.0
      %v2863 = vmax.f32 %v2739, 0.0
      %v2864 = vmax.f32 %v2744, 0.0
      %v2865 = vmax.f32 %v2747, 0.0
      %v2866 = vmax.f32 %v2752, 0.0
      %v2867 = vmax.f32 %v2755, 0.0
      %v2868 = vmax.f32 %v2760, 0.0
      %v2869 = vmax.f32 %v2763, 0.0
      %v2870 = vmax.f32 %v2768, 0.0
      %v2871 = vmax.f32 %v2771, 0.0
      %v2872 = vmax.f32 %v2776, 0.0
      %v2873 = vmax.f32 %v2779, 0.0
      %v2874 = vmax.f32 %v2784, 0.0
      %v2875 = vmax.f32 %v2787, 0.0
      %v2876 = vmax.f32 %v2792, 0.0
      %v2877 = vmax.f32 %v2795, 0.0
      %v2878 = vmax.f32 %v2800, 0.0
      %v2879 = vmax.f32 %v2803, 0.0
      %v2880 = vmax.f32 %v2808, 0.0
      %v2881 = vmax.f32 %v2811, 0.0
      %v2882 = vmax.f32 %v2816, 0.0
      %v2883 = vmax.f32 %v2819, 0.0
      %v2884 = vmax.f32 %v2824, 0.0
      %v2885 = vmax.f32 %v2827, 0.0
      %v2886 = vmax.f32 %v2832, 0.0
      %v2887 = vmax.f32 %v2835, 0.0
      %v2888 = vmax.f32 %v2840, 0.0
      %v2889 = vmax.f32 %v2843, 0.0
      %v2890 = vmax.f32 %v2848, 0.0
      %v2891 = vmax.f32 %v2851, 0.0
      %v2892 = vmax.f32 %v2856, 0.0
      %v2893 = vmax.f32 %v2859, 0.0
      %v2894 = vmax.f32 %v2509, %v2862
      %v2895 = vmax.f32 %v2510, %v2863
      %v2896 = vmax.f32 %v2511, %v2864
      %v2897 = vmax.f32 %v2512, %v2865
      %v2898 = vmax.f32 %v2513, %v2866
      %v2899 = vmax.f32 %v2514, %v2867
      %v2900 = vmax.f32 %v2515, %v2868
      %v2901 = vmax.f32 %v2516, %v2869
      %v2902 = vmax.f32 %v2517, %v2870
      %v2903 = vmax.f32 %v2518, %v2871
      %v2904 = vmax.f32 %v2519, %v2872
      %v2905 = vmax.f32 %v2520, %v2873
      %v2906 = vmax.f32 %v2521, %v2874
      %v2907 = vmax.f32 %v2522, %v2875
      %v2908 = vmax.f32 %v2523, %v2876
      %v2909 = vmax.f32 %v2524, %v2877
      %v2910 = vmax.f32 %v2525, %v2878
      %v2911 = vmax.f32 %v2526, %v2879
      %v2912 = vmax.f32 %v2527, %v2880
      %v2913 = vmax.f32 %v2528, %v2881
      %v2914 = vmax.f32 %v2529, %v2882
      %v2915 = vmax.f32 %v2530, %v2883
      %v2916 = vmax.f32 %v2531, %v2884
      %v2917 = vmax.f32 %v2532, %v2885
      %v2918 = vmax.f32 %v2533, %v2886
      %v2919 = vmax.f32 %v2534, %v2887
      %v2920 = vmax.f32 %v2535, %v2888
      %v2921 = vmax.f32 %v2536, %v2889
      %v2922 = vmax.f32 %v2537, %v2890
      %v2923 = vmax.f32 %v2538, %v2891
      %v2924 = vmax.f32 %v2539, %v2892
      %v2925 = vmax.f32 %v2540, %v2893
      %v2926 = vld [vmem:[%s197 + $0x380] sm:$0xf]
      %v2927 = vld [vmem:[%s197 + $0x384] sm:$0xf]
      %v2928 = vld [vmem:[%s197 + $0x388] sm:$0xf]
      %v2929 = vld [vmem:[%s197 + $0x38c] sm:$0xf]
      %v2930 = vld [vmem:[%s197 + $0x390] sm:$0xf]
      %v2931 = vld [vmem:[%s197 + $0x394] sm:$0xf]
      %v2932 = vld [vmem:[%s197 + $0x398] sm:$0xf]
      %v2933 = vld [vmem:[%s197 + $0x39c] sm:$0xf]
      %v2934 = vld [vmem:[%s197 + $0x3a0] sm:$0xf]
      %v2935 = vld [vmem:[%s197 + $0x3a4] sm:$0xf]
      %v2936 = vld [vmem:[%s197 + $0x3a8] sm:$0xf]
      %v2937 = vld [vmem:[%s197 + $0x3ac] sm:$0xf]
      %v2938 = vld [vmem:[%s197 + $0x3b0] sm:$0xf]
      %v2939 = vld [vmem:[%s197 + $0x3b4] sm:$0xf]
      %v2940 = vld [vmem:[%s197 + $0x3b8] sm:$0xf]
      %v2941 = vld [vmem:[%s197 + $0x3bc] sm:$0xf]
      %v2942 = vld [vmem:[%s197 + $0x3c0] sm:$0xf]
      %v2943 = vld [vmem:[%s197 + $0x3c4] sm:$0xf]
      %v2944 = vld [vmem:[%s197 + $0x3c8] sm:$0xf]
      %v2945 = vld [vmem:[%s197 + $0x3cc] sm:$0xf]
      %v2946 = vld [vmem:[%s197 + $0x3d0] sm:$0xf]
      %v2947 = vld [vmem:[%s197 + $0x3d4] sm:$0xf]
      %v2948 = vld [vmem:[%s197 + $0x3d8] sm:$0xf]
      %v2949 = vld [vmem:[%s197 + $0x3dc] sm:$0xf]
      %v2950 = vld [vmem:[%s197 + $0x3e0] sm:$0xf]
      %v2951 = vld [vmem:[%s197 + $0x3e4] sm:$0xf]
      %v2952 = vld [vmem:[%s197 + $0x3e8] sm:$0xf]
      %v2953 = vld [vmem:[%s197 + $0x3ec] sm:$0xf]
      %v2954 = vld [vmem:[%s197 + $0x3f0] sm:$0xf]
      %v2955 = vld [vmem:[%s197 + $0x3f4] sm:$0xf]
      %v2956 = vld [vmem:[%s197 + $0x3f8] sm:$0xf]
      %v2957 = vld [vmem:[%s197 + $0x3fc] sm:$0xf]
      %v2990 = vunpack.c.l.b16 %v2926
      %v2991 = vunpack.c.l.b16 %v2927
      %v2992 = vunpack.c.l.b16 %v2928
      %v2993 = vunpack.c.l.b16 %v2929
      %v2994 = vunpack.c.l.b16 %v2930
      %v2995 = vunpack.c.l.b16 %v2931
      %v2996 = vunpack.c.l.b16 %v2932
      %v2997 = vunpack.c.l.b16 %v2933
      %v2998 = vunpack.c.l.b16 %v2934
      %v2999 = vunpack.c.l.b16 %v2935
      %v3000 = vunpack.c.l.b16 %v2936
      %v3001 = vunpack.c.l.b16 %v2937
      %v3002 = vunpack.c.l.b16 %v2938
      %v3003 = vunpack.c.l.b16 %v2939
      %v3004 = vunpack.c.l.b16 %v2940
      %v3005 = vunpack.c.l.b16 %v2941
      %v3006 = vunpack.c.l.b16 %v2942
      %v3007 = vunpack.c.l.b16 %v2943
      %v3008 = vunpack.c.l.b16 %v2944
      %v3009 = vunpack.c.l.b16 %v2945
      %v3010 = vunpack.c.l.b16 %v2946
      %v3011 = vunpack.c.l.b16 %v2947
      %v3012 = vunpack.c.l.b16 %v2948
      %v3013 = vunpack.c.l.b16 %v2949
      %v3014 = vunpack.c.l.b16 %v2950
      %v3015 = vunpack.c.l.b16 %v2951
      %v3016 = vunpack.c.l.b16 %v2952
      %v3017 = vunpack.c.l.b16 %v2953
      %v3018 = vunpack.c.l.b16 %v2954
      %v3019 = vunpack.c.l.b16 %v2955
      %v3020 = vunpack.c.l.b16 %v2956
      %v3021 = vunpack.c.l.b16 %v2957
      %v3022 = vpack.c.b16 %v2991, %v2990
      %v3023 = vpack.c.b16 %v2993, %v2992
      %v3024 = vpack.c.b16 %v2995, %v2994
      %v3025 = vpack.c.b16 %v2997, %v2996
      %v3026 = vpack.c.b16 %v2999, %v2998
      %v3027 = vpack.c.b16 %v3001, %v3000
      %v3028 = vpack.c.b16 %v3003, %v3002
      %v3029 = vpack.c.b16 %v3005, %v3004
      %v3030 = vpack.c.b16 %v3007, %v3006
      %v3031 = vpack.c.b16 %v3009, %v3008
      %v3032 = vpack.c.b16 %v3011, %v3010
      %v3033 = vpack.c.b16 %v3013, %v3012
      %v3034 = vpack.c.b16 %v3015, %v3014
      %v3035 = vpack.c.b16 %v3017, %v3016
      %v3036 = vpack.c.b16 %v3019, %v3018
      %v3037 = vpack.c.b16 %v3021, %v3020
      %v3039 = vsel %vm367, %v3022, 0
      %v3042 = vsel %vm367, %v3023, 0
      %v3045 = vsel %vm367, %v3024, 0
      %v3048 = vsel %vm367, %v3025, 0
      %v3051 = vsel %vm367, %v3026, 0
      %v3054 = vsel %vm367, %v3027, 0
      %v3057 = vsel %vm367, %v3028, 0
      %v3060 = vsel %vm367, %v3029, 0
      %v3063 = vsel %vm367, %v3030, 0
      %v3066 = vsel %vm367, %v3031, 0
      %v3069 = vsel %vm367, %v3032, 0
      %v3072 = vsel %vm367, %v3033, 0
      %v3075 = vsel %vm367, %v3034, 0
      %v3078 = vsel %vm367, %v3035, 0
      %v3081 = vsel %vm367, %v3036, 0
      %v3084 = vsel %vm367, %v3037, 0
      %3086 = vmatprep.subr.bf16.mxu0 0
      %3087 = vmatpush1.bf16.msra.mxu0 %v358
      %3088 = vmatprep.subr.bf16.mxu0 0
      %3089 = vmatpush1.bf16.msra.mxu0 %v359
      %3090 = vmatprep.subr.bf16.mxu0 0
      %3091 = vmatpush1.bf16.msra.mxu0 %v360
      %3092 = vmatprep.subr.bf16.mxu0 0
      %3093 = vmatpush1.bf16.msra.mxu0 %v361
      %3094 = vmatprep.subr.bf16.mxu0 0
      %3095 = vmatpush1.bf16.msra.mxu0 %v421
      %3096 = vmatprep.subr.bf16.mxu0 0
      %3097 = vmatpush1.bf16.msra.mxu0 0
      %3098 = vmatprep.subr.bf16.mxu0 0
      %3099 = vmatpush1.bf16.msra.mxu0 0
      %3100 = vmatprep.subr.bf16.mxu0 0
      %3101 = vmatpush1.bf16.msra.mxu0 0
      %3102 = vmatprep.subr.bf16.mxu0 0
      %3103 = vmatpush1.bf16.msra.mxu0 0
      %3104 = vmatprep.subr.bf16.mxu0 0
      %3105 = vmatpush1.bf16.msra.mxu0 0
      %3106 = vmatprep.subr.bf16.mxu0 0
      %3107 = vmatpush1.bf16.msra.mxu0 0
      %3108 = vmatprep.subr.bf16.mxu0 0
      %3109 = vmatpush1.bf16.msra.mxu0 0
      %3110 = vmatprep.subr.bf16.mxu0 0
      %3111 = vmatpush1.bf16.msra.mxu0 0
      %3112 = vmatprep.subr.bf16.mxu0 0
      %3113 = vmatpush1.bf16.msra.mxu0 0
      %3114 = vmatprep.subr.bf16.mxu0 0
      %3115 = vmatpush1.bf16.msra.mxu0 0
      %3116 = vmatprep.subr.bf16.mxu0 0
      %3117 = vmatpush1.bf16.msra.mxu0 0
      %3118 = vmatprep.mubr.bf16.mxu0 0
      %3119 = vmatmul.mubr.bf16.gmra.mrb[0].mxu0 %v3039
      %v3120 = vpop.f32.mrb[0].mxu0
      %v3121 = vadd.f32 %v256, %v3120
      %v3122 = vpop.f32.mrb[0].mxu0
      %v3123 = vpop.f32.mrb[0].mxu0
      %v3124 = vadd.f32 %v256, %v3123
      %v3125 = vpop.f32.mrb[0].mxu0
      %3126 = vmatprep.mubr.bf16.mxu0 0
      %3127 = vmatmul.mubr.bf16.gmra.mrb[0].mxu0 %v3042
      %v3128 = vpop.f32.mrb[0].mxu0
      %v3129 = vadd.f32 %v256, %v3128
      %v3130 = vpop.f32.mrb[0].mxu0
      %v3131 = vpop.f32.mrb[0].mxu0
      %v3132 = vadd.f32 %v256, %v3131
      %v3133 = vpop.f32.mrb[0].mxu0
      %3134 = vmatprep.mubr.bf16.mxu0 0
      %3135 = vmatmul.mubr.bf16.gmra.mrb[0].mxu0 %v3045
      %v3136 = vpop.f32.mrb[0].mxu0
      %v3137 = vadd.f32 %v256, %v3136
      %v3138 = vpop.f32.mrb[0].mxu0
      %v3139 = vpop.f32.mrb[0].mxu0
      %v3140 = vadd.f32 %v256, %v3139
      %v3141 = vpop.f32.mrb[0].mxu0
      %3142 = vmatprep.mubr.bf16.mxu0 0
      %3143 = vmatmul.mubr.bf16.gmra.mrb[0].mxu0 %v3048
      %v3144 = vpop.f32.mrb[0].mxu0
      %v3145 = vadd.f32 %v256, %v3144
      %v3146 = vpop.f32.mrb[0].mxu0
      %v3147 = vpop.f32.mrb[0].mxu0
      %v3148 = vadd.f32 %v256, %v3147
      %v3149 = vpop.f32.mrb[0].mxu0
      %3150 = vmatprep.mubr.bf16.mxu0 0
      %3151 = vmatmul.mubr.bf16.gmra.mrb[0].mxu0 %v3051
      %v3152 = vpop.f32.mrb[0].mxu0
      %v3153 = vadd.f32 %v256, %v3152
      %v3154 = vpop.f32.mrb[0].mxu0
      %v3155 = vpop.f32.mrb[0].mxu0
      %v3156 = vadd.f32 %v256, %v3155
      %v3157 = vpop.f32.mrb[0].mxu0
      %3158 = vmatprep.mubr.bf16.mxu0 0
      %3159 = vmatmul.mubr.bf16.gmra.mrb[0].mxu0 %v3054
      %v3160 = vpop.f32.mrb[0].mxu0
      %v3161 = vadd.f32 %v256, %v3160
      %v3162 = vpop.f32.mrb[0].mxu0
      %v3163 = vpop.f32.mrb[0].mxu0
      %v3164 = vadd.f32 %v256, %v3163
      %v3165 = vpop.f32.mrb[0].mxu0
      %3166 = vmatprep.mubr.bf16.mxu0 0
      %3167 = vmatmul.mubr.bf16.gmra.mrb[0].mxu0 %v3057
      %v3168 = vpop.f32.mrb[0].mxu0
      %v3169 = vadd.f32 %v256, %v3168
      %v3170 = vpop.f32.mrb[0].mxu0
      %v3171 = vpop.f32.mrb[0].mxu0
      %v3172 = vadd.f32 %v256, %v3171
      %v3173 = vpop.f32.mrb[0].mxu0
      %3174 = vmatprep.mubr.bf16.mxu0 0
      %3175 = vmatmul.mubr.bf16.gmra.mrb[0].mxu0 %v3060
      %v3176 = vpop.f32.mrb[0].mxu0
      %v3177 = vadd.f32 %v256, %v3176
      %v3178 = vpop.f32.mrb[0].mxu0
      %v3179 = vpop.f32.mrb[0].mxu0
      %v3180 = vadd.f32 %v256, %v3179
      %v3181 = vpop.f32.mrb[0].mxu0
      %3182 = vmatprep.mubr.bf16.mxu0 0
      %3183 = vmatmul.mubr.bf16.gmra.mrb[0].mxu0 %v3063
      %v3184 = vpop.f32.mrb[0].mxu0
      %v3185 = vadd.f32 %v256, %v3184
      %v3186 = vpop.f32.mrb[0].mxu0
      %v3187 = vpop.f32.mrb[0].mxu0
      %v3188 = vadd.f32 %v256, %v3187
      %v3189 = vpop.f32.mrb[0].mxu0
      %3190 = vmatprep.mubr.bf16.mxu0 0
      %3191 = vmatmul.mubr.bf16.gmra.mrb[0].mxu0 %v3066
      %v3192 = vpop.f32.mrb[0].mxu0
      %v3193 = vadd.f32 %v256, %v3192
      %v3194 = vpop.f32.mrb[0].mxu0
      %v3195 = vpop.f32.mrb[0].mxu0
      %v3196 = vadd.f32 %v256, %v3195
      %v3197 = vpop.f32.mrb[0].mxu0
      %3198 = vmatprep.mubr.bf16.mxu0 0
      %3199 = vmatmul.mubr.bf16.gmra.mrb[0].mxu0 %v3069
      %v3200 = vpop.f32.mrb[0].mxu0
      %v3201 = vadd.f32 %v256, %v3200
      %v3202 = vpop.f32.mrb[0].mxu0
      %v3203 = vpop.f32.mrb[0].mxu0
      %v3204 = vadd.f32 %v256, %v3203
      %v3205 = vpop.f32.mrb[0].mxu0
      %3206 = vmatprep.mubr.bf16.mxu0 0
      %3207 = vmatmul.mubr.bf16.gmra.mrb[0].mxu0 %v3072
      %v3208 = vpop.f32.mrb[0].mxu0
      %v3209 = vadd.f32 %v256, %v3208
      %v3210 = vpop.f32.mrb[0].mxu0
      %v3211 = vpop.f32.mrb[0].mxu0
      %v3212 = vadd.f32 %v256, %v3211
      %v3213 = vpop.f32.mrb[0].mxu0
      %3214 = vmatprep.mubr.bf16.mxu0 0
      %3215 = vmatmul.mubr.bf16.gmra.mrb[0].mxu0 %v3075
      %v3216 = vpop.f32.mrb[0].mxu0
      %v3217 = vadd.f32 %v256, %v3216
      %v3218 = vpop.f32.mrb[0].mxu0
      %v3219 = vpop.f32.mrb[0].mxu0
      %v3220 = vadd.f32 %v256, %v3219
      %v3221 = vpop.f32.mrb[0].mxu0
      %3222 = vmatprep.mubr.bf16.mxu0 0
      %3223 = vmatmul.mubr.bf16.gmra.mrb[0].mxu0 %v3078
      %v3224 = vpop.f32.mrb[0].mxu0
      %v3225 = vadd.f32 %v256, %v3224
      %v3226 = vpop.f32.mrb[0].mxu0
      %v3227 = vpop.f32.mrb[0].mxu0
      %v3228 = vadd.f32 %v256, %v3227
      %v3229 = vpop.f32.mrb[0].mxu0
      %3230 = vmatprep.mubr.bf16.mxu0 0
      %3231 = vmatmul.mubr.bf16.gmra.mrb[0].mxu0 %v3081
      %v3232 = vpop.f32.mrb[0].mxu0
      %v3233 = vadd.f32 %v256, %v3232
      %v3234 = vpop.f32.mrb[0].mxu0
      %v3235 = vpop.f32.mrb[0].mxu0
      %v3236 = vadd.f32 %v256, %v3235
      %v3237 = vpop.f32.mrb[0].mxu0
      %3238 = vmatprep.mubr.bf16.mxu0 0
      %3239 = vmatmul.mubr.bf16.gmra.mrb[0].mxu0 %v3084
      %v3240 = vpop.f32.mrb[0].mxu0
      %v3241 = vadd.f32 %v256, %v3240
      %v3242 = vpop.f32.mrb[0].mxu0
      %v3243 = vpop.f32.mrb[0].mxu0
      %v3244 = vadd.f32 %v256, %v3243
      %v3245 = vpop.f32.mrb[0].mxu0
      %3246 = vdwg.mxu0
      %v3247 = vmax.f32 %v3121, 0.0
      %v3248 = vmax.f32 %v3124, 0.0
      %v3249 = vmax.f32 %v3129, 0.0
      %v3250 = vmax.f32 %v3132, 0.0
      %v3251 = vmax.f32 %v3137, 0.0
      %v3252 = vmax.f32 %v3140, 0.0
      %v3253 = vmax.f32 %v3145, 0.0
      %v3254 = vmax.f32 %v3148, 0.0
      %v3255 = vmax.f32 %v3153, 0.0
      %v3256 = vmax.f32 %v3156, 0.0
      %v3257 = vmax.f32 %v3161, 0.0
      %v3258 = vmax.f32 %v3164, 0.0
      %v3259 = vmax.f32 %v3169, 0.0
      %v3260 = vmax.f32 %v3172, 0.0
      %v3261 = vmax.f32 %v3177, 0.0
      %v3262 = vmax.f32 %v3180, 0.0
      %v3263 = vmax.f32 %v3185, 0.0
      %v3264 = vmax.f32 %v3188, 0.0
      %v3265 = vmax.f32 %v3193, 0.0
      %v3266 = vmax.f32 %v3196, 0.0
      %v3267 = vmax.f32 %v3201, 0.0
      %v3268 = vmax.f32 %v3204, 0.0
      %v3269 = vmax.f32 %v3209, 0.0
      %v3270 = vmax.f32 %v3212, 0.0
      %v3271 = vmax.f32 %v3217, 0.0
      %v3272 = vmax.f32 %v3220, 0.0
      %v3273 = vmax.f32 %v3225, 0.0
      %v3274 = vmax.f32 %v3228, 0.0
      %v3275 = vmax.f32 %v3233, 0.0
      %v3276 = vmax.f32 %v3236, 0.0
      %v3277 = vmax.f32 %v3241, 0.0
      %v3278 = vmax.f32 %v3244, 0.0
      %v3279 = vmax.f32 %v2894, %v3247
      %v3280 = vmax.f32 %v2895, %v3248
      %v3281 = vmax.f32 %v2896, %v3249
      %v3282 = vmax.f32 %v2897, %v3250
      %v3283 = vmax.f32 %v2898, %v3251
      %v3284 = vmax.f32 %v2899, %v3252
      %v3285 = vmax.f32 %v2900, %v3253
      %v3286 = vmax.f32 %v2901, %v3254
      %v3287 = vmax.f32 %v2902, %v3255
      %v3288 = vmax.f32 %v2903, %v3256
      %v3289 = vmax.f32 %v2904, %v3257
      %v3290 = vmax.f32 %v2905, %v3258
      %v3291 = vmax.f32 %v2906, %v3259
      %v3292 = vmax.f32 %v2907, %v3260
      %v3293 = vmax.f32 %v2908, %v3261
      %v3294 = vmax.f32 %v2909, %v3262
      %v3295 = vmax.f32 %v2910, %v3263
      %v3296 = vmax.f32 %v2911, %v3264
      %v3297 = vmax.f32 %v2912, %v3265
      %v3298 = vmax.f32 %v2913, %v3266
      %v3299 = vmax.f32 %v2914, %v3267
      %v3300 = vmax.f32 %v2915, %v3268
      %v3301 = vmax.f32 %v2916, %v3269
      %v3302 = vmax.f32 %v2917, %v3270
      %v3303 = vmax.f32 %v2918, %v3271
      %v3304 = vmax.f32 %v2919, %v3272
      %v3305 = vmax.f32 %v2920, %v3273
      %v3306 = vmax.f32 %v2921, %v3274
      %v3307 = vmax.f32 %v2922, %v3275
      %v3308 = vmax.f32 %v2923, %v3276
      %v3309 = vmax.f32 %v2924, %v3277
      %v3310 = vmax.f32 %v2925, %v3278
      %v3311 = vld [vmem:[%s197 + $0x400] sm:$0xf]
      %v3312 = vld [vmem:[%s197 + $0x404] sm:$0xf]
      %v3313 = vld [vmem:[%s197 + $0x408] sm:$0xf]
      %v3314 = vld [vmem:[%s197 + $0x40c] sm:$0xf]
      %v3315 = vld [vmem:[%s197 + $0x410] sm:$0xf]
      %v3316 = vld [vmem:[%s197 + $0x414] sm:$0xf]
      %v3317 = vld [vmem:[%s197 + $0x418] sm:$0xf]
      %v3318 = vld [vmem:[%s197 + $0x41c] sm:$0xf]
      %v3319 = vld [vmem:[%s197 + $0x420] sm:$0xf]
      %v3320 = vld [vmem:[%s197 + $0x424] sm:$0xf]
      %v3321 = vld [vmem:[%s197 + $0x428] sm:$0xf]
      %v3322 = vld [vmem:[%s197 + $0x42c] sm:$0xf]
      %v3323 = vld [vmem:[%s197 + $0x430] sm:$0xf]
      %v3324 = vld [vmem:[%s197 + $0x434] sm:$0xf]
      %v3325 = vld [vmem:[%s197 + $0x438] sm:$0xf]
      %v3326 = vld [vmem:[%s197 + $0x43c] sm:$0xf]
      %v3327 = vld [vmem:[%s197 + $0x440] sm:$0xf]
      %v3328 = vld [vmem:[%s197 + $0x444] sm:$0xf]
      %v3329 = vld [vmem:[%s197 + $0x448] sm:$0xf]
      %v3330 = vld [vmem:[%s197 + $0x44c] sm:$0xf]
      %v3331 = vld [vmem:[%s197 + $0x450] sm:$0xf]
      %v3332 = vld [vmem:[%s197 + $0x454] sm:$0xf]
      %v3333 = vld [vmem:[%s197 + $0x458] sm:$0xf]
      %v3334 = vld [vmem:[%s197 + $0x45c] sm:$0xf]
      %v3335 = vld [vmem:[%s197 + $0x460] sm:$0xf]
      %v3336 = vld [vmem:[%s197 + $0x464] sm:$0xf]
      %v3337 = vld [vmem:[%s197 + $0x468] sm:$0xf]
      %v3338 = vld [vmem:[%s197 + $0x46c] sm:$0xf]
      %v3339 = vld [vmem:[%s197 + $0x470] sm:$0xf]
      %v3340 = vld [vmem:[%s197 + $0x474] sm:$0xf]
      %v3341 = vld [vmem:[%s197 + $0x478] sm:$0xf]
      %v3342 = vld [vmem:[%s197 + $0x47c] sm:$0xf]
      %v3375 = vunpack.c.l.b16 %v3311
      %v3376 = vunpack.c.l.b16 %v3312
      %v3377 = vunpack.c.l.b16 %v3313
      %v3378 = vunpack.c.l.b16 %v3314
      %v3379 = vunpack.c.l.b16 %v3315
      %v3380 = vunpack.c.l.b16 %v3316
      %v3381 = vunpack.c.l.b16 %v3317
      %v3382 = vunpack.c.l.b16 %v3318
      %v3383 = vunpack.c.l.b16 %v3319
      %v3384 = vunpack.c.l.b16 %v3320
      %v3385 = vunpack.c.l.b16 %v3321
      %v3386 = vunpack.c.l.b16 %v3322
      %v3387 = vunpack.c.l.b16 %v3323
      %v3388 = vunpack.c.l.b16 %v3324
      %v3389 = vunpack.c.l.b16 %v3325
      %v3390 = vunpack.c.l.b16 %v3326
      %v3391 = vunpack.c.l.b16 %v3327
      %v3392 = vunpack.c.l.b16 %v3328
      %v3393 = vunpack.c.l.b16 %v3329
      %v3394 = vunpack.c.l.b16 %v3330
      %v3395 = vunpack.c.l.b16 %v3331
      %v3396 = vunpack.c.l.b16 %v3332
      %v3397 = vunpack.c.l.b16 %v3333
      %v3398 = vunpack.c.l.b16 %v3334
      %v3399 = vunpack.c.l.b16 %v3335
      %v3400 = vunpack.c.l.b16 %v3336
      %v3401 = vunpack.c.l.b16 %v3337
      %v3402 = vunpack.c.l.b16 %v3338
      %v3403 = vunpack.c.l.b16 %v3339
      %v3404 = vunpack.c.l.b16 %v3340
      %v3405 = vunpack.c.l.b16 %v3341
      %v3406 = vunpack.c.l.b16 %v3342
      %v3407 = vpack.c.b16 %v3376, %v3375
      %v3408 = vpack.c.b16 %v3378, %v3377
      %v3409 = vpack.c.b16 %v3380, %v3379
      %v3410 = vpack.c.b16 %v3382, %v3381
      %v3411 = vpack.c.b16 %v3384, %v3383
      %v3412 = vpack.c.b16 %v3386, %v3385
      %v3413 = vpack.c.b16 %v3388, %v3387
      %v3414 = vpack.c.b16 %v3390, %v3389
      %v3415 = vpack.c.b16 %v3392, %v3391
      %v3416 = vpack.c.b16 %v3394, %v3393
      %v3417 = vpack.c.b16 %v3396, %v3395
      %v3418 = vpack.c.b16 %v3398, %v3397
      %v3419 = vpack.c.b16 %v3400, %v3399
      %v3420 = vpack.c.b16 %v3402, %v3401
      %v3421 = vpack.c.b16 %v3404, %v3403
      %v3422 = vpack.c.b16 %v3406, %v3405
      %v3424 = vsel %vm367, %v3407, 0
      %v3427 = vsel %vm367, %v3408, 0
      %v3430 = vsel %vm367, %v3409, 0
      %v3433 = vsel %vm367, %v3410, 0
      %v3436 = vsel %vm367, %v3411, 0
      %v3439 = vsel %vm367, %v3412, 0
      %v3442 = vsel %vm367, %v3413, 0
      %v3445 = vsel %vm367, %v3414, 0
      %v3448 = vsel %vm367, %v3415, 0
      %v3451 = vsel %vm367, %v3416, 0
      %v3454 = vsel %vm367, %v3417, 0
      %v3457 = vsel %vm367, %v3418, 0
      %v3460 = vsel %vm367, %v3419, 0
      %v3463 = vsel %vm367, %v3420, 0
      %v3466 = vsel %vm367, %v3421, 0
      %v3469 = vsel %vm367, %v3422, 0
      %3471 = vmatprep.subr.bf16.mxu0 0
      %3472 = vmatpush1.bf16.msra.mxu0 %v358
      %3473 = vmatprep.subr.bf16.mxu0 0
      %3474 = vmatpush1.bf16.msra.mxu0 %v359
      %3475 = vmatprep.subr.bf16.mxu0 0
      %3476 = vmatpush1.bf16.msra.mxu0 %v360
      %3477 = vmatprep.subr.bf16.mxu0 0
      %3478 = vmatpush1.bf16.msra.mxu0 %v361
      %3479 = vmatprep.subr.bf16.mxu0 0
      %3480 = vmatpush1.bf16.msra.mxu0 %v421
      %3481 = vmatprep.subr.bf16.mxu0 0
      %3482 = vmatpush1.bf16.msra.mxu0 0
      %3483 = vmatprep.subr.bf16.mxu0 0
      %3484 = vmatpush1.bf16.msra.mxu0 0
      %3485 = vmatprep.subr.bf16.mxu0 0
      %3486 = vmatpush1.bf16.msra.mxu0 0
      %3487 = vmatprep.subr.bf16.mxu0 0
      %3488 = vmatpush1.bf16.msra.mxu0 0
      %3489 = vmatprep.subr.bf16.mxu0 0
      %3490 = vmatpush1.bf16.msra.mxu0 0
      %3491 = vmatprep.subr.bf16.mxu0 0
      %3492 = vmatpush1.bf16.msra.mxu0 0
      %3493 = vmatprep.subr.bf16.mxu0 0
      %3494 = vmatpush1.bf16.msra.mxu0 0
      %3495 = vmatprep.subr.bf16.mxu0 0
      %3496 = vmatpush1.bf16.msra.mxu0 0
      %3497 = vmatprep.subr.bf16.mxu0 0
      %3498 = vmatpush1.bf16.msra.mxu0 0
      %3499 = vmatprep.subr.bf16.mxu0 0
      %3500 = vmatpush1.bf16.msra.mxu0 0
      %3501 = vmatprep.subr.bf16.mxu0 0
      %3502 = vmatpush1.bf16.msra.mxu0 0
      %3503 = vmatprep.mubr.bf16.mxu0 0
      %3504 = vmatmul.mubr.bf16.gmra.mrb[0].mxu0 %v3424
      %v3505 = vpop.f32.mrb[0].mxu0
      %v3506 = vadd.f32 %v256, %v3505
      %v3507 = vpop.f32.mrb[0].mxu0
      %v3508 = vpop.f32.mrb[0].mxu0
      %v3509 = vadd.f32 %v256, %v3508
      %v3510 = vpop.f32.mrb[0].mxu0
      %3511 = vmatprep.mubr.bf16.mxu0 0
      %3512 = vmatmul.mubr.bf16.gmra.mrb[0].mxu0 %v3427
      %v3513 = vpop.f32.mrb[0].mxu0
      %v3514 = vadd.f32 %v256, %v3513
      %v3515 = vpop.f32.mrb[0].mxu0
      %v3516 = vpop.f32.mrb[0].mxu0
      %v3517 = vadd.f32 %v256, %v3516
      %v3518 = vpop.f32.mrb[0].mxu0
      %3519 = vmatprep.mubr.bf16.mxu0 0
      %3520 = vmatmul.mubr.bf16.gmra.mrb[0].mxu0 %v3430
      %v3521 = vpop.f32.mrb[0].mxu0
      %v3522 = vadd.f32 %v256, %v3521
      %v3523 = vpop.f32.mrb[0].mxu0
      %v3524 = vpop.f32.mrb[0].mxu0
      %v3525 = vadd.f32 %v256, %v3524
      %v3526 = vpop.f32.mrb[0].mxu0
      %3527 = vmatprep.mubr.bf16.mxu0 0
      %3528 = vmatmul.mubr.bf16.gmra.mrb[0].mxu0 %v3433
      %v3529 = vpop.f32.mrb[0].mxu0
      %v3530 = vadd.f32 %v256, %v3529
      %v3531 = vpop.f32.mrb[0].mxu0
      %v3532 = vpop.f32.mrb[0].mxu0
      %v3533 = vadd.f32 %v256, %v3532
      %v3534 = vpop.f32.mrb[0].mxu0
      %3535 = vmatprep.mubr.bf16.mxu0 0
      %3536 = vmatmul.mubr.bf16.gmra.mrb[0].mxu0 %v3436
      %v3537 = vpop.f32.mrb[0].mxu0
      %v3538 = vadd.f32 %v256, %v3537
      %v3539 = vpop.f32.mrb[0].mxu0
      %v3540 = vpop.f32.mrb[0].mxu0
      %v3541 = vadd.f32 %v256, %v3540
      %v3542 = vpop.f32.mrb[0].mxu0
      %3543 = vmatprep.mubr.bf16.mxu0 0
      %3544 = vmatmul.mubr.bf16.gmra.mrb[0].mxu0 %v3439
      %v3545 = vpop.f32.mrb[0].mxu0
      %v3546 = vadd.f32 %v256, %v3545
      %v3547 = vpop.f32.mrb[0].mxu0
      %v3548 = vpop.f32.mrb[0].mxu0
      %v3549 = vadd.f32 %v256, %v3548
      %v3550 = vpop.f32.mrb[0].mxu0
      %3551 = vmatprep.mubr.bf16.mxu0 0
      %3552 = vmatmul.mubr.bf16.gmra.mrb[0].mxu0 %v3442
      %v3553 = vpop.f32.mrb[0].mxu0
      %v3554 = vadd.f32 %v256, %v3553
      %v3555 = vpop.f32.mrb[0].mxu0
      %v3556 = vpop.f32.mrb[0].mxu0
      %v3557 = vadd.f32 %v256, %v3556
      %v3558 = vpop.f32.mrb[0].mxu0
      %3559 = vmatprep.mubr.bf16.mxu0 0
      %3560 = vmatmul.mubr.bf16.gmra.mrb[0].mxu0 %v3445
      %v3561 = vpop.f32.mrb[0].mxu0
      %v3562 = vadd.f32 %v256, %v3561
      %v3563 = vpop.f32.mrb[0].mxu0
      %v3564 = vpop.f32.mrb[0].mxu0
      %v3565 = vadd.f32 %v256, %v3564
      %v3566 = vpop.f32.mrb[0].mxu0
      %3567 = vmatprep.mubr.bf16.mxu0 0
      %3568 = vmatmul.mubr.bf16.gmra.mrb[0].mxu0 %v3448
      %v3569 = vpop.f32.mrb[0].mxu0
      %v3570 = vadd.f32 %v256, %v3569
      %v3571 = vpop.f32.mrb[0].mxu0
      %v3572 = vpop.f32.mrb[0].mxu0
      %v3573 = vadd.f32 %v256, %v3572
      %v3574 = vpop.f32.mrb[0].mxu0
      %3575 = vmatprep.mubr.bf16.mxu0 0
      %3576 = vmatmul.mubr.bf16.gmra.mrb[0].mxu0 %v3451
      %v3577 = vpop.f32.mrb[0].mxu0
      %v3578 = vadd.f32 %v256, %v3577
      %v3579 = vpop.f32.mrb[0].mxu0
      %v3580 = vpop.f32.mrb[0].mxu0
      %v3581 = vadd.f32 %v256, %v3580
      %v3582 = vpop.f32.mrb[0].mxu0
      %3583 = vmatprep.mubr.bf16.mxu0 0
      %3584 = vmatmul.mubr.bf16.gmra.mrb[0].mxu0 %v3454
      %v3585 = vpop.f32.mrb[0].mxu0
      %v3586 = vadd.f32 %v256, %v3585
      %v3587 = vpop.f32.mrb[0].mxu0
      %v3588 = vpop.f32.mrb[0].mxu0
      %v3589 = vadd.f32 %v256, %v3588
      %v3590 = vpop.f32.mrb[0].mxu0
      %3591 = vmatprep.mubr.bf16.mxu0 0
      %3592 = vmatmul.mubr.bf16.gmra.mrb[0].mxu0 %v3457
      %v3593 = vpop.f32.mrb[0].mxu0
      %v3594 = vadd.f32 %v256, %v3593
      %v3595 = vpop.f32.mrb[0].mxu0
      %v3596 = vpop.f32.mrb[0].mxu0
      %v3597 = vadd.f32 %v256, %v3596
      %v3598 = vpop.f32.mrb[0].mxu0
      %3599 = vmatprep.mubr.bf16.mxu0 0
      %3600 = vmatmul.mubr.bf16.gmra.mrb[0].mxu0 %v3460
      %v3601 = vpop.f32.mrb[0].mxu0
      %v3602 = vadd.f32 %v256, %v3601
      %v3603 = vpop.f32.mrb[0].mxu0
      %v3604 = vpop.f32.mrb[0].mxu0
      %v3605 = vadd.f32 %v256, %v3604
      %v3606 = vpop.f32.mrb[0].mxu0
      %3607 = vmatprep.mubr.bf16.mxu0 0
      %3608 = vmatmul.mubr.bf16.gmra.mrb[0].mxu0 %v3463
      %v3609 = vpop.f32.mrb[0].mxu0
      %v3610 = vadd.f32 %v256, %v3609
      %v3611 = vpop.f32.mrb[0].mxu0
      %v3612 = vpop.f32.mrb[0].mxu0
      %v3613 = vadd.f32 %v256, %v3612
      %v3614 = vpop.f32.mrb[0].mxu0
      %3615 = vmatprep.mubr.bf16.mxu0 0
      %3616 = vmatmul.mubr.bf16.gmra.mrb[0].mxu0 %v3466
      %v3617 = vpop.f32.mrb[0].mxu0
      %v3618 = vadd.f32 %v256, %v3617
      %v3619 = vpop.f32.mrb[0].mxu0
      %v3620 = vpop.f32.mrb[0].mxu0
      %v3621 = vadd.f32 %v256, %v3620
      %v3622 = vpop.f32.mrb[0].mxu0
      %3623 = vmatprep.mubr.bf16.mxu0 0
      %3624 = vmatmul.mubr.bf16.gmra.mrb[0].mxu0 %v3469
      %v3625 = vpop.f32.mrb[0].mxu0
      %v3626 = vadd.f32 %v256, %v3625
      %v3627 = vpop.f32.mrb[0].mxu0
      %v3628 = vpop.f32.mrb[0].mxu0
      %v3629 = vadd.f32 %v256, %v3628
      %v3630 = vpop.f32.mrb[0].mxu0
      %3631 = vdwg.mxu0
      %v3632 = vmax.f32 %v3506, 0.0
      %v3633 = vmax.f32 %v3509, 0.0
      %v3634 = vmax.f32 %v3514, 0.0
      %v3635 = vmax.f32 %v3517, 0.0
      %v3636 = vmax.f32 %v3522, 0.0
      %v3637 = vmax.f32 %v3525, 0.0
      %v3638 = vmax.f32 %v3530, 0.0
      %v3639 = vmax.f32 %v3533, 0.0
      %v3640 = vmax.f32 %v3538, 0.0
      %v3641 = vmax.f32 %v3541, 0.0
      %v3642 = vmax.f32 %v3546, 0.0
      %v3643 = vmax.f32 %v3549, 0.0
      %v3644 = vmax.f32 %v3554, 0.0
      %v3645 = vmax.f32 %v3557, 0.0
      %v3646 = vmax.f32 %v3562, 0.0
      %v3647 = vmax.f32 %v3565, 0.0
      %v3648 = vmax.f32 %v3570, 0.0
      %v3649 = vmax.f32 %v3573, 0.0
      %v3650 = vmax.f32 %v3578, 0.0
      %v3651 = vmax.f32 %v3581, 0.0
      %v3652 = vmax.f32 %v3586, 0.0
      %v3653 = vmax.f32 %v3589, 0.0
      %v3654 = vmax.f32 %v3594, 0.0
      %v3655 = vmax.f32 %v3597, 0.0
      %v3656 = vmax.f32 %v3602, 0.0
      %v3657 = vmax.f32 %v3605, 0.0
      %v3658 = vmax.f32 %v3610, 0.0
      %v3659 = vmax.f32 %v3613, 0.0
      %v3660 = vmax.f32 %v3618, 0.0
      %v3661 = vmax.f32 %v3621, 0.0
      %v3662 = vmax.f32 %v3626, 0.0
      %v3663 = vmax.f32 %v3629, 0.0
      %v3664 = vmax.f32 %v3279, %v3632
      %v3665 = vmax.f32 %v3280, %v3633
      %v3666 = vmax.f32 %v3281, %v3634
      %v3667 = vmax.f32 %v3282, %v3635
      %v3668 = vmax.f32 %v3283, %v3636
      %v3669 = vmax.f32 %v3284, %v3637
      %v3670 = vmax.f32 %v3285, %v3638
      %v3671 = vmax.f32 %v3286, %v3639
      %v3672 = vmax.f32 %v3287, %v3640
      %v3673 = vmax.f32 %v3288, %v3641
      %v3674 = vmax.f32 %v3289, %v3642
      %v3675 = vmax.f32 %v3290, %v3643
      %v3676 = vmax.f32 %v3291, %v3644
      %v3677 = vmax.f32 %v3292, %v3645
      %v3678 = vmax.f32 %v3293, %v3646
      %v3679 = vmax.f32 %v3294, %v3647
      %v3680 = vmax.f32 %v3295, %v3648
      %v3681 = vmax.f32 %v3296, %v3649
      %v3682 = vmax.f32 %v3297, %v3650
      %v3683 = vmax.f32 %v3298, %v3651
      %v3684 = vmax.f32 %v3299, %v3652
      %v3685 = vmax.f32 %v3300, %v3653
      %v3686 = vmax.f32 %v3301, %v3654
      %v3687 = vmax.f32 %v3302, %v3655
      %v3688 = vmax.f32 %v3303, %v3656
      %v3689 = vmax.f32 %v3304, %v3657
      %v3690 = vmax.f32 %v3305, %v3658
      %v3691 = vmax.f32 %v3306, %v3659
      %v3692 = vmax.f32 %v3307, %v3660
      %v3693 = vmax.f32 %v3308, %v3661
      %v3694 = vmax.f32 %v3309, %v3662
      %v3695 = vmax.f32 %v3310, %v3663
      %v3696 = vpack.c.bf16 %v3665, %v3664
      %v3697 = vpack.c.bf16 %v3667, %v3666
      %v3698 = vpack.c.bf16 %v3669, %v3668
      %v3699 = vpack.c.bf16 %v3671, %v3670
      %v3700 = vpack.c.bf16 %v3673, %v3672
      %v3701 = vpack.c.bf16 %v3675, %v3674
      %v3702 = vpack.c.bf16 %v3677, %v3676
      %v3703 = vpack.c.bf16 %v3679, %v3678
      %v3704 = vpack.c.bf16 %v3681, %v3680
      %v3705 = vpack.c.bf16 %v3683, %v3682
      %v3706 = vpack.c.bf16 %v3685, %v3684
      %v3707 = vpack.c.bf16 %v3687, %v3686
      %v3708 = vpack.c.bf16 %v3689, %v3688
      %v3709 = vpack.c.bf16 %v3691, %v3690
      %v3710 = vpack.c.bf16 %v3693, %v3692
      %v3711 = vpack.c.bf16 %v3695, %v3694
      %v3728 = vunpack.c.l.b16 %v3696
      %v3729 = vunpack.c.h.b16 %v3696
      %v3730 = vunpack.c.l.b16 %v3697
      %v3731 = vunpack.c.h.b16 %v3697
      %v3732 = vunpack.c.l.b16 %v3698
      %v3733 = vunpack.c.h.b16 %v3698
      %v3734 = vunpack.c.l.b16 %v3699
      %v3735 = vunpack.c.h.b16 %v3699
      %v3736 = vunpack.c.l.b16 %v3700
      %v3737 = vunpack.c.h.b16 %v3700
      %v3738 = vunpack.c.l.b16 %v3701
      %v3739 = vunpack.c.h.b16 %v3701
      %v3740 = vunpack.c.l.b16 %v3702
      %v3741 = vunpack.c.h.b16 %v3702
      %v3742 = vunpack.c.l.b16 %v3703
      %v3743 = vunpack.c.h.b16 %v3703
      %v3744 = vunpack.c.l.b16 %v3704
      %v3745 = vunpack.c.h.b16 %v3704
      %v3746 = vunpack.c.l.b16 %v3705
      %v3747 = vunpack.c.h.b16 %v3705
      %v3748 = vunpack.c.l.b16 %v3706
      %v3749 = vunpack.c.h.b16 %v3706
      %v3750 = vunpack.c.l.b16 %v3707
      %v3751 = vunpack.c.h.b16 %v3707
      %v3752 = vunpack.c.l.b16 %v3708
      %v3753 = vunpack.c.h.b16 %v3708
      %v3754 = vunpack.c.l.b16 %v3709
      %v3755 = vunpack.c.h.b16 %v3709
      %v3756 = vunpack.c.l.b16 %v3710
      %v3757 = vunpack.c.h.b16 %v3710
      %v3758 = vunpack.c.l.b16 %v3711
      %v3759 = vunpack.c.h.b16 %v3711
      %v3760 = vpack.c.b16 %v3728, %v3728
      %v3761 = vpack.c.b16 %v3729, %v3729
      %v3762 = vpack.c.b16 %v3730, %v3730
      %v3763 = vpack.c.b16 %v3731, %v3731
      %v3764 = vpack.c.b16 %v3732, %v3732
      %v3765 = vpack.c.b16 %v3733, %v3733
      %v3766 = vpack.c.b16 %v3734, %v3734
      %v3767 = vpack.c.b16 %v3735, %v3735
      %v3768 = vpack.c.b16 %v3736, %v3736
      %v3769 = vpack.c.b16 %v3737, %v3737
      %v3770 = vpack.c.b16 %v3738, %v3738
      %v3771 = vpack.c.b16 %v3739, %v3739
      %v3772 = vpack.c.b16 %v3740, %v3740
      %v3773 = vpack.c.b16 %v3741, %v3741
      %v3774 = vpack.c.b16 %v3742, %v3742
      %v3775 = vpack.c.b16 %v3743, %v3743
      %v3776 = vpack.c.b16 %v3744, %v3744
      %v3777 = vpack.c.b16 %v3745, %v3745
      %v3778 = vpack.c.b16 %v3746, %v3746
      %v3779 = vpack.c.b16 %v3747, %v3747
      %v3780 = vpack.c.b16 %v3748, %v3748
      %v3781 = vpack.c.b16 %v3749, %v3749
      %v3782 = vpack.c.b16 %v3750, %v3750
      %v3783 = vpack.c.b16 %v3751, %v3751
      %v3784 = vpack.c.b16 %v3752, %v3752
      %v3785 = vpack.c.b16 %v3753, %v3753
      %v3786 = vpack.c.b16 %v3754, %v3754
      %v3787 = vpack.c.b16 %v3755, %v3755
      %v3788 = vpack.c.b16 %v3756, %v3756
      %v3789 = vpack.c.b16 %v3757, %v3757
      %v3790 = vpack.c.b16 %v3758, %v3758
      %v3791 = vpack.c.b16 %v3759, %v3759
      %vm3824 = vcmask 125952
      %3825 = vst.msk [vmem:[%s206] sm:$0xf] %vm3824, %v3760
      %3826 = vst.msk [vmem:[%s206 + $0x4] sm:$0xf] %vm3824, %v3761
      %3827 = vst.msk [vmem:[%s206 + $0x8] sm:$0xf] %vm3824, %v3762
      %3828 = vst.msk [vmem:[%s206 + $0xc] sm:$0xf] %vm3824, %v3763
      %3829 = vst.msk [vmem:[%s206 + $0x10] sm:$0xf] %vm3824, %v3764
      %3830 = vst.msk [vmem:[%s206 + $0x14] sm:$0xf] %vm3824, %v3765
      %3831 = vst.msk [vmem:[%s206 + $0x18] sm:$0xf] %vm3824, %v3766
      %3832 = vst.msk [vmem:[%s206 + $0x1c] sm:$0xf] %vm3824, %v3767
      %3833 = vst.msk [vmem:[%s206 + $0x20] sm:$0xf] %vm3824, %v3768
      %3834 = vst.msk [vmem:[%s206 + $0x24] sm:$0xf] %vm3824, %v3769
      %3835 = vst.msk [vmem:[%s206 + $0x28] sm:$0xf] %vm3824, %v3770
      %3836 = vst.msk [vmem:[%s206 + $0x2c] sm:$0xf] %vm3824, %v3771
      %3837 = vst.msk [vmem:[%s206 + $0x30] sm:$0xf] %vm3824, %v3772
      %3838 = vst.msk [vmem:[%s206 + $0x34] sm:$0xf] %vm3824, %v3773
      %3839 = vst.msk [vmem:[%s206 + $0x38] sm:$0xf] %vm3824, %v3774
      %3840 = vst.msk [vmem:[%s206 + $0x3c] sm:$0xf] %vm3824, %v3775
      %3841 = vst.msk [vmem:[%s206 + $0x40] sm:$0xf] %vm3824, %v3776
      %3842 = vst.msk [vmem:[%s206 + $0x44] sm:$0xf] %vm3824, %v3777
      %3843 = vst.msk [vmem:[%s206 + $0x48] sm:$0xf] %vm3824, %v3778
      %3844 = vst.msk [vmem:[%s206 + $0x4c] sm:$0xf] %vm3824, %v3779
      %3845 = vst.msk [vmem:[%s206 + $0x50] sm:$0xf] %vm3824, %v3780
      %3846 = vst.msk [vmem:[%s206 + $0x54] sm:$0xf] %vm3824, %v3781
      %3847 = vst.msk [vmem:[%s206 + $0x58] sm:$0xf] %vm3824, %v3782
      %3848 = vst.msk [vmem:[%s206 + $0x5c] sm:$0xf] %vm3824, %v3783
      %3849 = vst.msk [vmem:[%s206 + $0x60] sm:$0xf] %vm3824, %v3784
      %3850 = vst.msk [vmem:[%s206 + $0x64] sm:$0xf] %vm3824, %v3785
      %3851 = vst.msk [vmem:[%s206 + $0x68] sm:$0xf] %vm3824, %v3786
      %3852 = vst.msk [vmem:[%s206 + $0x6c] sm:$0xf] %vm3824, %v3787
      %3853 = vst.msk [vmem:[%s206 + $0x70] sm:$0xf] %vm3824, %v3788
      %3854 = vst.msk [vmem:[%s206 + $0x74] sm:$0xf] %vm3824, %v3789
      %3855 = vst.msk [vmem:[%s206 + $0x78] sm:$0xf] %vm3824, %v3790
      %3856 = vst.msk [vmem:[%s206 + $0x7c] sm:$0xf] %vm3824, %v3791
      %s3857 = smul.u32 32, %s19
      %p3858 = scmp.lt.s32.totalorder %s18, 1
      %s3859 = scalar_select %p3858, %s18, 1
      %p3860 = scmp.lt.s32.totalorder %s3857, 127
      %s3861 = scalar_select %p3860, %s3857, 127
      %s3862 = smul.addr %s3859, 128
      %s3863 = sadd.s32 %s3861, %s3862
      %s3864 = smul.addr %s3863, 4
      %s3865 = scalar_lea.vmem %s3, %s3864
      // Predicated region
      $region33: #{pokenet_forward.4} parent=31 // pred_check
        %p3866 = pneg %p116
      $region34: #{pokenet_forward.4} parent=31 // pred_check_branch
        %3868 = sbr.rel (%p3866) target = $region36
      $region35: #{pokenet_forward.4} parent=31 // pred_region
        %s3869 = smul.u32 32, %s19
      $region36: #{pokenet_forward.4} parent=31 // pred_fallthru
        _
    $region32: #{pokenet_forward.4} parent=5 // pred_fallthru
      _
    %p3870 = scmp.le.s32.totalorder 2, %s9
    // Predicated region
    $region37: #{pokenet_forward.4} parent=5 // pred_check
      %p3871 = pneg %p3870
    $region38: #{pokenet_forward.4} parent=5 // pred_check_branch
      %3873 = sbr.rel (%p3871) target = $region40
    $region39: #{pokenet_forward.4} parent=5 // pred_region
      %s3874 = ssub.s32 %s9, 2
      // Predicated region
      $region41: #{pokenet_forward.4} parent=39 // pred_check
        %p3875 = pneg %p122
      $region42: #{pokenet_forward.4} parent=39 // pred_check_branch
        %3877 = sbr.rel (%p3875) target = $region44
      $region43: #{pokenet_forward.4} parent=39 // pred_region
        %s3878 = smul.u32 32, %s21
        %p3879 = scmp.lt.s32.totalorder %s20, 1
        %s3880 = scalar_select %p3879, %s20, 1
        %p3881 = scmp.lt.s32.totalorder %s3878, 127
        %s3882 = scalar_select %p3881, %s3878, 127
        %s3883 = smul.addr %s3880, 128
        %s3884 = sadd.s32 %s3882, %s3883
        %s3885 = smul.addr %s3884, 4
        %s3886 = scalar_lea.vmem %s3, %s3885
      $region44: #{pokenet_forward.4} parent=39 // pred_fallthru
        _
    $region40: #{pokenet_forward.4} parent=5 // pred_fallthru
      _
  $region6: #{pokenet_forward.4} parent=0 // loop_footer
    %s13 = sadd.s32 1, %s9
  $region7: #{pokenet_forward.4} parent=0 // loop_footer_branch
    %8 = sbr.rel target = $region3
  $region8: #{pokenet_forward.4} parent=0 // loop_exit
    _

// kernel: pokenet_forward.5
$region0: #{pokenet_forward.5}
  #allocation0 [shape = 'u32[]', space=smem, size = 0x4, offset = 0x4, fixed_abs, tag = 'smem constant byte address 0x4 - core index']
  #allocation1 [shape = 'u32[144,128]{1,0:T(1,128)}', space=vmem, size = 0x12000, scoped, tag = 'internal scratch']
  %s0 = inlined_call_operand.vmem [shape: bf16[2,1,1872,144], index: 0, kind: input, shape index: {}]
  %s1 = inlined_call_operand.vmem [shape: bf16[144,16], index: 1, kind: input, shape index: {}]
  %s2 = inlined_call_operand.vmem [shape: f32[1,16], index: 2, kind: input, shape index: {}]
  %s3 = inlined_call_operand.vmem [shape: bf16[2,208,16], index: 3, kind: output, shape index: {}]
  %s4 = sld [smem:[#allocation0]]
  $region45: #{pokenet_forward.5} parent=0
    _
  %s6 = ssub.s32 1, %s4
  %s7 = scalar_select 0, %s6, %s4
  loop: start=0, step=1, limit=4
  $region2: #{pokenet_forward.5} parent=0 // loop_pre_header
    _
  $region3: #{pokenet_forward.5} parent=0 // loop_header
    %s9 = sphi 0, %s13
    %p10 = scmp.ge.s32.totalorder %s9, 4
    %s16 = sphi 0, %s28
    %s17 = sphi 0, %s24
    %s18 = sphi 0, %s16
    %s19 = sphi 0, %s17
    %s20 = sphi 0, %s18
    %s21 = sphi 0, %s19
    %s33 = sphi 0, %s35
    %s36 = sphi 0, %s33
    %s37 = sphi 0, %s36
    %s53 = sphi 0, %s37
    %s57 = sphi 0, %s57
    %s59 = sphi 0, %s57
    %s60 = sphi 0, %s59
    %s74 = sphi 0, %s60
    %s78 = sphi 0, %s78
    %s80 = sphi 0, %s78
    %s81 = sphi 0, %s80
    %s95 = sphi 0, %s81
    %s103 = sphi 0, %s105
    %s106 = sphi 0, %s103
    %s107 = sphi 0, %s106
    %s123 = sphi 0, %s107
  $region4: #{pokenet_forward.5} parent=0 // loop_header_branch
    %12 = sbr.rel (%p10) target = $region8
  $region5: #{pokenet_forward.5} parent=0 // loop_body
    %s14 = ssub.s32 %s9, 1
    %s15 = ssub.s32 %s9, 2
    %s22 = sadd.s32 1, %s17
    %p23 = scmp.ge.s32.totalorder %s22, 1
    %s24 = scalar_select %p23, 0, %s22
    %s25 = sadd.s32 1, %s16
    %s26 = scalar_select %p23, %s25, %s16
    %p27 = scmp.ge.s32.totalorder %s26, 2
    %s28 = scalar_select %p27, 0, %s26
    %s29 = ssub.s32 %s16, %s28
    %s30 = ssub.s32 %s17, %s24
    %s31 = sor.u32 %s29, %s30
    %p32 = scmp.eq.s32.totalorder %s31, 0
    %s34 = sadd.s32 %s33, 1
    %s35 = scalar_select %p32, %s33, %s34
    %p38 = pneg %p32
    %p39 = scmp.eq.s32.totalorder %s9, 1
    %p40 = por %p38, %p39
    %p41 = scmp.ne.s32.totalorder %s33, %s36
    %p42 = scmp.eq.s32.totalorder %s9, 0
    %p43 = por %p41, %p42
    %p44 = scmp.ne.s32.totalorder %s33, %s36
    %p45 = scmp.eq.s32.totalorder %s14, 1
    %p46 = por %p44, %p45
    %p47 = scmp.ne.s32.totalorder %s36, %s37
    %p48 = scmp.eq.s32.totalorder %s14, 0
    %p49 = por %p47, %p48
    %p50 = scmp.ne.s32.totalorder %s36, %s37
    %p51 = scmp.eq.s32.totalorder %s15, 1
    %p52 = por %p50, %p51
    %p54 = scmp.ne.s32.totalorder %s37, %s53
    %p55 = scmp.eq.s32.totalorder %s15, 0
    %p56 = por %p54, %p55
    %s58 = sadd.s32 %s57, 1
    %p61 = scmp.eq.s32.totalorder %s9, 1
    %p62 = scmp.ne.s32.totalorder %s57, %s59
    %p63 = scmp.eq.s32.totalorder %s9, 0
    %p64 = por %p62, %p63
    %p65 = scmp.ne.s32.totalorder %s57, %s59
    %p66 = scmp.eq.s32.totalorder %s14, 1
    %p67 = por %p65, %p66
    %p68 = scmp.ne.s32.totalorder %s59, %s60
    %p69 = scmp.eq.s32.totalorder %s14, 0
    %p70 = por %p68, %p69
    %p71 = scmp.ne.s32.totalorder %s59, %s60
    %p72 = scmp.eq.s32.totalorder %s15, 1
    %p73 = por %p71, %p72
    %p75 = scmp.ne.s32.totalorder %s60, %s74
    %p76 = scmp.eq.s32.totalorder %s15, 0
    %p77 = por %p75, %p76
    %s79 = sadd.s32 %s78, 1
    %p82 = scmp.eq.s32.totalorder %s9, 1
    %p83 = scmp.ne.s32.totalorder %s78, %s80
    %p84 = scmp.eq.s32.totalorder %s9, 0
    %p85 = por %p83, %p84
    %p86 = scmp.ne.s32.totalorder %s78, %s80
    %p87 = scmp.eq.s32.totalorder %s14, 1
    %p88 = por %p86, %p87
    %p89 = scmp.ne.s32.totalorder %s80, %s81
    %p90 = scmp.eq.s32.totalorder %s14, 0
    %p91 = por %p89, %p90
    %p92 = scmp.ne.s32.totalorder %s80, %s81
    %p93 = scmp.eq.s32.totalorder %s15, 1
    %p94 = por %p92, %p93
    %p96 = scmp.ne.s32.totalorder %s81, %s95
    %p97 = scmp.eq.s32.totalorder %s15, 0
    %p98 = por %p96, %p97
    %s99 = ssub.s32 %s16, %s28
    %s100 = ssub.s32 %s17, %s24
    %s101 = sor.u32 %s99, %s100
    %p102 = scmp.eq.s32.totalorder %s101, 0
    %s104 = sadd.s32 %s103, 1
    %s105 = scalar_select %p102, %s103, %s104
    %p108 = pneg %p102
    %p109 = scmp.eq.s32.totalorder %s9, 1
    %p110 = por %p108, %p109
    %p111 = scmp.ne.s32.totalorder %s103, %s106
    %p112 = scmp.eq.s32.totalorder %s9, 0
    %p113 = por %p111, %p112
    %p114 = scmp.ne.s32.totalorder %s103, %s106
    %p115 = scmp.eq.s32.totalorder %s14, 1
    %p116 = por %p114, %p115
    %p117 = scmp.ne.s32.totalorder %s106, %s107
    %p118 = scmp.eq.s32.totalorder %s14, 0
    %p119 = por %p117, %p118
    %p120 = scmp.ne.s32.totalorder %s106, %s107
    %p121 = scmp.eq.s32.totalorder %s15, 1
    %p122 = por %p120, %p121
    %p124 = scmp.ne.s32.totalorder %s107, %s123
    %p125 = scmp.eq.s32.totalorder %s15, 0
    %p126 = por %p124, %p125
    %p127 = scmp.le.s32.totalorder 1, %s9
    %p128 = scmp.lt.s32.totalorder %s9, 3
    %p129 = pnand %p127, %p128
    %p130 = pneg %p129
    // Predicated region
    $region9: #{pokenet_forward.5} parent=5 // pred_check
      _
    $region10: #{pokenet_forward.5} parent=5 // pred_check_branch
      %132 = sbr.rel (%p129) target = $region12
    $region11: #{pokenet_forward.5} parent=5 // pred_region
      %s133 = ssub.s32 %s9, 1
      // Predicated region
      $region13: #{pokenet_forward.5} parent=11 // pred_check
        %p134 = pneg %p70
      $region14: #{pokenet_forward.5} parent=11 // pred_check_branch
        %136 = sbr.rel (%p134) target = $region16
      $region15: #{pokenet_forward.5} parent=11 // pred_region
        _
      $region16: #{pokenet_forward.5} parent=11 // pred_fallthru
        _
      // Predicated region
      $region17: #{pokenet_forward.5} parent=11 // pred_check
        %p137 = pneg %p91
      $region18: #{pokenet_forward.5} parent=11 // pred_check_branch
        %139 = sbr.rel (%p137) target = $region20
      $region19: #{pokenet_forward.5} parent=11 // pred_region
        _
      $region20: #{pokenet_forward.5} parent=11 // pred_fallthru
        _
    $region12: #{pokenet_forward.5} parent=5 // pred_fallthru
      _
    %p140 = scmp.lt.s32.totalorder %s9, 2
    // Predicated region
    $region21: #{pokenet_forward.5} parent=5 // pred_check
      %p141 = pneg %p140
    $region22: #{pokenet_forward.5} parent=5 // pred_check_branch
      %143 = sbr.rel (%p141) target = $region24
    $region23: #{pokenet_forward.5} parent=5 // pred_region
      // Predicated region
      $region25: #{pokenet_forward.5} parent=23 // pred_check
        %p144 = pneg %p43
      $region26: #{pokenet_forward.5} parent=23 // pred_check_branch
        %146 = sbr.rel (%p144) target = $region28
      $region27: #{pokenet_forward.5} parent=23 // pred_region
        %p147 = scmp.lt.s32.totalorder %s16, 1
        %s148 = scalar_select %p147, %s16, 1
        %p149 = scmp.lt.s32.totalorder %s17, 0
        %s150 = scalar_select %p149, %s17, 0
        %s151 = smul.addr %s150, 468
        %s152 = smul.addr %s148, 468
        %s153 = sadd.s32 %s151, %s152
        %s154 = smul.addr %s153, 4
        %s155 = scalar_lea.vmem %s0, %s154
      $region28: #{pokenet_forward.5} parent=23 // pred_fallthru
        _
    $region24: #{pokenet_forward.5} parent=5 // pred_fallthru
      _
    %p156 = scmp.le.s32.totalorder 1, %s9
    %p157 = scmp.lt.s32.totalorder %s9, 3
    %p158 = pnand %p156, %p157
    %p159 = pneg %p158
    // Predicated region
    $region29: #{pokenet_forward.5} parent=5 // pred_check
      _
    $region30: #{pokenet_forward.5} parent=5 // pred_check_branch
      %161 = sbr.rel (%p158) target = $region32
    $region31: #{pokenet_forward.5} parent=5 // pred_region
      %s162 = ssub.s32 %s9, 1
      %p163 = scmp.lt.s32.totalorder %s18, 1
      %s164 = scalar_select %p163, %s18, 1
      %p165 = scmp.lt.s32.totalorder %s19, 0
      %s166 = scalar_select %p165, %s19, 0
      %s167 = smul.addr %s166, 468
      %s168 = smul.addr %s164, 468
      %s169 = sadd.s32 %s167, %s168
      %s170 = smul.addr %s169, 4
      %s171 = scalar_lea.vmem %s0, %s170
      %p172 = pneg %p49
      %p173 = pneg %p46
      %p174 = pneg %p70
      %p175 = pneg %p67
      %p176 = pneg %p91
      %p177 = pneg %p88
      %p178 = pneg %p119
      %p179 = pneg %p116
      %s180 = smul.u32 26, %s19
      %p181 = scmp.lt.s32.totalorder %s18, 1
      %s182 = scalar_select %p181, %s18, 1
      %p183 = scmp.lt.s32.totalorder %s180, 25
      %s184 = scalar_select %p183, %s180, 25
      %s185 = smul.addr %s182, 26
      %s186 = sadd.s32 %s184, %s185
      %s187 = smul.addr %s186, 4
      %s188 = scalar_lea.vmem %s3, %s187
      %p189 = scmp.lt.s32.totalorder %s18, 1
      %s190 = scalar_select %p189, %s18, 1
      %p191 = scmp.lt.s32.totalorder %s19, 0
      %s192 = scalar_select %p191, %s19, 0
      %s193 = smul.addr %s192, 468
      %s194 = smul.addr %s190, 468
      %s195 = sadd.s32 %s193, %s194
      %s196 = smul.addr %s195, 4
      %s197 = scalar_lea.vmem %s0, %s196
      %s198 = smul.u32 26, %s19
      %p199 = scmp.lt.s32.totalorder %s18, 1
      %s200 = scalar_select %p199, %s18, 1
      %p201 = scmp.lt.s32.totalorder %s198, 25
      %s202 = scalar_select %p201, %s198, 25
      %s203 = smul.addr %s200, 26
      %s204 = sadd.s32 %s202, %s203
      %s205 = smul.addr %s204, 4
      %s206 = scalar_lea.vmem %s3, %s205
      %s207 = smul.u32 26, %s19
      %v209 = vld [vmem:[%s1] sm:$0xf]
      %v210 = vld [vmem:[%s1 + $0x4] sm:$0xf]
      %v211 = vld [vmem:[%s1 + $0x8] sm:$0xf]
      %v212 = vld [vmem:[%s1 + $0xc] sm:$0xf]
      %v213 = vld [vmem:[%s1 + $0x10] sm:$0xf]
      %v214 = vld [vmem:[%s1 + $0x14] sm:$0xf]
      %v215 = vld [vmem:[%s1 + $0x18] sm:$0xf]
      %v216 = vld [vmem:[%s1 + $0x1c] sm:$0xf]
      %v217 = vld [vmem:[%s1 + $0x20] sm:$0xf]
      %v218 = vld [vmem:[%s1 + $0x24] sm:$0xf]
      %v219 = vld [vmem:[%s1 + $0x28] sm:$0xf]
      %v220 = vld [vmem:[%s1 + $0x2c] sm:$0xf]
      %v221 = vld [vmem:[%s1 + $0x30] sm:$0xf]
      %v222 = vld [vmem:[%s1 + $0x34] sm:$0xf]
      %v223 = vld [vmem:[%s1 + $0x38] sm:$0xf]
      %v224 = vld [vmem:[%s1 + $0x3c] sm:$0xf]
      %v225 = vld [vmem:[%s1 + $0x40] sm:$0xf]
      %v226 = vld [vmem:[%s1 + $0x44] sm:$0xf]
      %v227 = vld [vmem:[%s2] sm:$0x1]
      %v228 = vld [vmem:[%s197] sm:$0xff]
      %v229 = vld [vmem:[%s197 + $0x8] sm:$0xff]
      %v230 = vld [vmem:[%s197 + $0x10] sm:$0xff]
      %v231 = vld [vmem:[%s197 + $0x18] sm:$0xff]
      %v232 = vld [vmem:[%s197 + $0x20] sm:$0xff]
      %v233 = vld [vmem:[%s197 + $0x28] sm:$0xff]
      %v234 = vld [vmem:[%s197 + $0x30] sm:$0xff]
      %v235 = vld [vmem:[%s197 + $0x38] sm:$0xff]
      %v236 = vld [vmem:[%s197 + $0x40] sm:$0xff]
      %v237 = vld [vmem:[%s197 + $0x48] sm:$0xff]
      %v238 = vld [vmem:[%s197 + $0x50] sm:$0xff]
      %v239 = vld [vmem:[%s197 + $0x58] sm:$0xff]
      %v240 = vld [vmem:[%s197 + $0x60] sm:$0xff]
      %v241 = vld [vmem:[%s197 + $0x68] sm:$0xff]
      %v242 = vld [vmem:[%s197 + $0x70] sm:$0xff]
      %v243 = vld [vmem:[%s197 + $0x78] sm:$0xff]
      %v244 = vld [vmem:[%s197 + $0x80] sm:$0xff]
      %v245 = vld [vmem:[%s197 + $0x88] sm:$0xff]
      %v246 = vld [vmem:[%s197 + $0x90] sm:$0xff]
      %v247 = vld [vmem:[%s197 + $0x98] sm:$0xff]
      %v248 = vld [vmem:[%s197 + $0xa0] sm:$0xff]
      %v249 = vld [vmem:[%s197 + $0xa8] sm:$0xff]
      %v250 = vld [vmem:[%s197 + $0xb0] sm:$0xff]
      %v251 = vld [vmem:[%s197 + $0xb8] sm:$0xff]
      %v252 = vld [vmem:[%s197 + $0xc0] sm:$0xff]
      %v253 = vld [vmem:[%s197 + $0xc8] sm:$0xff]
      %v255 = vlaneseq
      %v256 = vshrl.u32 %v255, 7
      %v257 = vsub.s32 0, %v256
      %v258 = vrot.slane %v227, %v257
      %v286 = vunpack.c.l.b16 %v228
      %v287 = vunpack.c.h.b16 %v228
      %v288 = vunpack.c.l.b16 %v229
      %v289 = vunpack.c.h.b16 %v229
      %v290 = vunpack.c.l.b16 %v230
      %v291 = vunpack.c.h.b16 %v230
      %v292 = vunpack.c.l.b16 %v231
      %v293 = vunpack.c.h.b16 %v231
      %v294 = vunpack.c.l.b16 %v232
      %v295 = vunpack.c.h.b16 %v232
      %v296 = vunpack.c.l.b16 %v233
      %v297 = vunpack.c.h.b16 %v233
      %v298 = vunpack.c.l.b16 %v234
      %v299 = vunpack.c.h.b16 %v234
      %v300 = vunpack.c.l.b16 %v235
      %v301 = vunpack.c.h.b16 %v235
      %v302 = vunpack.c.l.b16 %v236
      %v303 = vunpack.c.h.b16 %v236
      %v304 = vunpack.c.l.b16 %v237
      %v305 = vunpack.c.h.b16 %v237
      %v306 = vunpack.c.l.b16 %v238
      %v307 = vunpack.c.h.b16 %v238
      %v308 = vunpack.c.l.b16 %v239
      %v309 = vunpack.c.h.b16 %v239
      %v310 = vunpack.c.l.b16 %v240
      %v311 = vunpack.c.h.b16 %v240
      %v312 = vunpack.c.l.b16 %v241
      %v313 = vunpack.c.h.b16 %v241
      %v314 = vunpack.c.l.b16 %v242
      %v315 = vunpack.c.h.b16 %v242
      %v316 = vunpack.c.l.b16 %v243
      %v317 = vunpack.c.h.b16 %v243
      %v318 = vunpack.c.l.b16 %v244
      %v319 = vunpack.c.h.b16 %v244
      %v320 = vunpack.c.l.b16 %v245
      %v321 = vunpack.c.h.b16 %v245
      %v322 = vunpack.c.l.b16 %v246
      %v323 = vunpack.c.h.b16 %v246
      %v324 = vunpack.c.l.b16 %v247
      %v325 = vunpack.c.h.b16 %v247
      %v326 = vunpack.c.l.b16 %v248
      %v327 = vunpack.c.h.b16 %v248
      %v328 = vunpack.c.l.b16 %v249
      %v329 = vunpack.c.h.b16 %v249
      %v330 = vunpack.c.l.b16 %v250
      %v331 = vunpack.c.h.b16 %v250
      %v332 = vunpack.c.l.b16 %v251
      %v333 = vunpack.c.h.b16 %v251
      %v334 = vunpack.c.l.b16 %v252
      %v335 = vunpack.c.h.b16 %v252
      %v336 = vunpack.c.l.b16 %v253
      %v337 = vunpack.c.h.b16 %v253
      %v338 = vpack.c.b16 %v288, %v286
      %v339 = vpack.c.b16 %v289, %v287
      %v340 = vpack.c.b16 %v292, %v290
      %v341 = vpack.c.b16 %v293, %v291
      %v342 = vpack.c.b16 %v296, %v294
      %v343 = vpack.c.b16 %v297, %v295
      %v344 = vpack.c.b16 %v300, %v298
      %v345 = vpack.c.b16 %v301, %v299
      %v346 = vpack.c.b16 %v304, %v302
      %v347 = vpack.c.b16 %v305, %v303
      %v348 = vpack.c.b16 %v308, %v306
      %v349 = vpack.c.b16 %v309, %v307
      %v350 = vpack.c.b16 %v312, %v310
      %v351 = vpack.c.b16 %v313, %v311
      %v352 = vpack.c.b16 %v316, %v314
      %v353 = vpack.c.b16 %v317, %v315
      %v354 = vpack.c.b16 %v320, %v318
      %v355 = vpack.c.b16 %v321, %v319
      %v356 = vpack.c.b16 %v324, %v322
      %v357 = vpack.c.b16 %v325, %v323
      %v358 = vpack.c.b16 %v328, %v326
      %v359 = vpack.c.b16 %v329, %v327
      %v360 = vpack.c.b16 %v332, %v330
      %v361 = vpack.c.b16 %v333, %v331
      %v362 = vpack.c.b16 %v336, %v334
      %v363 = vpack.c.b16 %v337, %v335
      %v395 = vunpack.c.l.b16 %v209
      %v396 = vunpack.c.l.b16 %v210
      %v397 = vunpack.c.l.b16 %v211
      %v398 = vunpack.c.l.b16 %v212
      %v399 = vunpack.c.l.b16 %v213
      %v400 = vunpack.c.l.b16 %v214
      %v401 = vunpack.c.l.b16 %v215
      %v402 = vunpack.c.l.b16 %v216
      %v403 = vunpack.c.l.b16 %v217
      %v404 = vunpack.c.l.b16 %v218
      %v405 = vunpack.c.l.b16 %v219
      %v406 = vunpack.c.l.b16 %v220
      %v407 = vunpack.c.l.b16 %v221
      %v408 = vunpack.c.l.b16 %v222
      %v409 = vunpack.c.l.b16 %v223
      %v410 = vunpack.c.l.b16 %v224
      %v411 = vunpack.c.l.b16 %v225
      %v412 = vunpack.c.l.b16 %v226
      %v413 = vpack.c.b16 %v396, %v395
      %v414 = vpack.c.b16 %v398, %v397
      %v415 = vpack.c.b16 %v400, %v399
      %v416 = vpack.c.b16 %v402, %v401
      %v417 = vpack.c.b16 %v404, %v403
      %v418 = vpack.c.b16 %v406, %v405
      %v419 = vpack.c.b16 %v408, %v407
      %v420 = vpack.c.b16 %v410, %v409
      %v421 = vpack.c.b16 %v412, %v411
      %vm431 = vcmask 130048
      %v433 = vsel %vm431, %v339, 0
      %v436 = vsel %vm431, %v341, 0
      %v439 = vsel %vm431, %v343, 0
      %v442 = vsel %vm431, %v345, 0
      %v445 = vsel %vm431, %v347, 0
      %v448 = vsel %vm431, %v349, 0
      %v451 = vsel %vm431, %v351, 0
      %v454 = vsel %vm431, %v353, 0
      %v457 = vsel %vm431, %v355, 0
      %v460 = vsel %vm431, %v357, 0
      %v463 = vsel %vm431, %v359, 0
      %v466 = vsel %vm431, %v361, 0
      %v469 = vsel %vm431, %v363, 0
      %471 = vmatprep.subr.bf16.mxu0 0
      %472 = vmatpush1.bf16.msra.mxu0 %v413
      %473 = vmatprep.subr.bf16.mxu0 0
      %474 = vmatpush1.bf16.msra.mxu0 %v414
      %475 = vmatprep.subr.bf16.mxu0 0
      %476 = vmatpush1.bf16.msra.mxu0 %v415
      %477 = vmatprep.subr.bf16.mxu0 0
      %478 = vmatpush1.bf16.msra.mxu0 %v416
      %479 = vmatprep.subr.bf16.mxu0 0
      %480 = vmatpush1.bf16.msra.mxu0 %v417
      %481 = vmatprep.subr.bf16.mxu0 0
      %482 = vmatpush1.bf16.msra.mxu0 %v418
      %483 = vmatprep.subr.bf16.mxu0 0
      %484 = vmatpush1.bf16.msra.mxu0 %v419
      %485 = vmatprep.subr.bf16.mxu0 0
      %486 = vmatpush1.bf16.msra.mxu0 %v420
      %487 = vmatprep.subr.bf16.mxu0 0
      %488 = vmatpush1.bf16.msra.mxu0 %v421
      %489 = vmatprep.subr.bf16.mxu0 0
      %490 = vmatpush1.bf16.msra.mxu0 0
      %491 = vmatprep.subr.bf16.mxu0 0
      %492 = vmatpush1.bf16.msra.mxu0 0
      %493 = vmatprep.subr.bf16.mxu0 0
      %494 = vmatpush1.bf16.msra.mxu0 0
      %495 = vmatprep.subr.bf16.mxu0 0
      %496 = vmatpush1.bf16.msra.mxu0 0
      %497 = vmatprep.subr.bf16.mxu0 0
      %498 = vmatpush1.bf16.msra.mxu0 0
      %499 = vmatprep.subr.bf16.mxu0 0
      %500 = vmatpush1.bf16.msra.mxu0 0
      %501 = vmatprep.subr.bf16.mxu0 0
      %502 = vmatpush1.bf16.msra.mxu0 0
      %503 = vmatprep.mubr.bf16.mxu0 %v433
      %504 = vmatmul.mubr.bf16.gmra.mrb[0].mxu0 %v338
      %v505 = vpop.f32.mrb[0].mxu0
      %v506 = vadd.f32 %v258, %v505
      %v507 = vpop.f32.mrb[0].mxu0
      %v508 = vpop.f32.mrb[0].mxu0
      %v509 = vadd.f32 %v258, %v508
      %v510 = vpop.f32.mrb[0].mxu0
      %511 = vmatprep.mubr.bf16.mxu0 %v436
      %512 = vmatmul.mubr.bf16.gmra.mrb[0].mxu0 %v340
      %v513 = vpop.f32.mrb[0].mxu0
      %v514 = vadd.f32 %v258, %v513
      %v515 = vpop.f32.mrb[0].mxu0
      %v516 = vpop.f32.mrb[0].mxu0
      %v517 = vadd.f32 %v258, %v516
      %v518 = vpop.f32.mrb[0].mxu0
      %519 = vmatprep.mubr.bf16.mxu0 %v439
      %520 = vmatmul.mubr.bf16.gmra.mrb[0].mxu0 %v342
      %v521 = vpop.f32.mrb[0].mxu0
      %v522 = vadd.f32 %v258, %v521
      %v523 = vpop.f32.mrb[0].mxu0
      %v524 = vpop.f32.mrb[0].mxu0
      %v525 = vadd.f32 %v258, %v524
      %v526 = vpop.f32.mrb[0].mxu0
      %527 = vmatprep.mubr.bf16.mxu0 %v442
      %528 = vmatmul.mubr.bf16.gmra.mrb[0].mxu0 %v344
      %v529 = vpop.f32.mrb[0].mxu0
      %v530 = vadd.f32 %v258, %v529
      %v531 = vpop.f32.mrb[0].mxu0
      %v532 = vpop.f32.mrb[0].mxu0
      %v533 = vadd.f32 %v258, %v532
      %v534 = vpop.f32.mrb[0].mxu0
      %535 = vmatprep.mubr.bf16.mxu0 %v445
      %536 = vmatmul.mubr.bf16.gmra.mrb[0].mxu0 %v346
      %v537 = vpop.f32.mrb[0].mxu0
      %v538 = vadd.f32 %v258, %v537
      %v539 = vpop.f32.mrb[0].mxu0
      %v540 = vpop.f32.mrb[0].mxu0
      %v541 = vadd.f32 %v258, %v540
      %v542 = vpop.f32.mrb[0].mxu0
      %543 = vmatprep.mubr.bf16.mxu0 %v448
      %544 = vmatmul.mubr.bf16.gmra.mrb[0].mxu0 %v348
      %v545 = vpop.f32.mrb[0].mxu0
      %v546 = vadd.f32 %v258, %v545
      %v547 = vpop.f32.mrb[0].mxu0
      %v548 = vpop.f32.mrb[0].mxu0
      %v549 = vadd.f32 %v258, %v548
      %v550 = vpop.f32.mrb[0].mxu0
      %551 = vmatprep.mubr.bf16.mxu0 %v451
      %552 = vmatmul.mubr.bf16.gmra.mrb[0].mxu0 %v350
      %v553 = vpop.f32.mrb[0].mxu0
      %v554 = vadd.f32 %v258, %v553
      %v555 = vpop.f32.mrb[0].mxu0
      %v556 = vpop.f32.mrb[0].mxu0
      %v557 = vadd.f32 %v258, %v556
      %v558 = vpop.f32.mrb[0].mxu0
      %559 = vmatprep.mubr.bf16.mxu0 %v454
      %560 = vmatmul.mubr.bf16.gmra.mrb[0].mxu0 %v352
      %v561 = vpop.f32.mrb[0].mxu0
      %v562 = vadd.f32 %v258, %v561
      %v563 = vpop.f32.mrb[0].mxu0
      %v564 = vpop.f32.mrb[0].mxu0
      %v565 = vadd.f32 %v258, %v564
      %v566 = vpop.f32.mrb[0].mxu0
      %567 = vmatprep.mubr.bf16.mxu0 %v457
      %568 = vmatmul.mubr.bf16.gmra.mrb[0].mxu0 %v354
      %v569 = vpop.f32.mrb[0].mxu0
      %v570 = vadd.f32 %v258, %v569
      %v571 = vpop.f32.mrb[0].mxu0
      %v572 = vpop.f32.mrb[0].mxu0
      %v573 = vadd.f32 %v258, %v572
      %v574 = vpop.f32.mrb[0].mxu0
      %575 = vmatprep.mubr.bf16.mxu0 %v460
      %576 = vmatmul.mubr.bf16.gmra.mrb[0].mxu0 %v356
      %v577 = vpop.f32.mrb[0].mxu0
      %v578 = vadd.f32 %v258, %v577
      %v579 = vpop.f32.mrb[0].mxu0
      %v580 = vpop.f32.mrb[0].mxu0
      %v581 = vadd.f32 %v258, %v580
      %v582 = vpop.f32.mrb[0].mxu0
      %583 = vmatprep.mubr.bf16.mxu0 %v463
      %584 = vmatmul.mubr.bf16.gmra.mrb[0].mxu0 %v358
      %v585 = vpop.f32.mrb[0].mxu0
      %v586 = vadd.f32 %v258, %v585
      %v587 = vpop.f32.mrb[0].mxu0
      %v588 = vpop.f32.mrb[0].mxu0
      %v589 = vadd.f32 %v258, %v588
      %v590 = vpop.f32.mrb[0].mxu0
      %591 = vmatprep.mubr.bf16.mxu0 %v466
      %592 = vmatmul.mubr.bf16.gmra.mrb[0].mxu0 %v360
      %v593 = vpop.f32.mrb[0].mxu0
      %v594 = vadd.f32 %v258, %v593
      %v595 = vpop.f32.mrb[0].mxu0
      %v596 = vpop.f32.mrb[0].mxu0
      %v597 = vadd.f32 %v258, %v596
      %v598 = vpop.f32.mrb[0].mxu0
      %599 = vmatprep.mubr.bf16.mxu0 %v469
      %600 = vmatmul.mubr.bf16.gmra.mrb[0].mxu0 %v362
      %v601 = vpop.f32.mrb[0].mxu0
      %v602 = vadd.f32 %v258, %v601
      %v603 = vpop.f32.mrb[0].mxu0
      %v604 = vpop.f32.mrb[0].mxu0
      %v605 = vadd.f32 %v258, %v604
      %v606 = vpop.f32.mrb[0].mxu0
      %607 = vdwg.mxu0
      %v608 = vmax.f32 %v506, 0.0
      %v609 = vmax.f32 %v509, 0.0
      %v610 = vmax.f32 %v514, 0.0
      %v611 = vmax.f32 %v517, 0.0
      %v612 = vmax.f32 %v522, 0.0
      %v613 = vmax.f32 %v525, 0.0
      %v614 = vmax.f32 %v530, 0.0
      %v615 = vmax.f32 %v533, 0.0
      %v616 = vmax.f32 %v538, 0.0
      %v617 = vmax.f32 %v541, 0.0
      %v618 = vmax.f32 %v546, 0.0
      %v619 = vmax.f32 %v549, 0.0
      %v620 = vmax.f32 %v554, 0.0
      %v621 = vmax.f32 %v557, 0.0
      %v622 = vmax.f32 %v562, 0.0
      %v623 = vmax.f32 %v565, 0.0
      %v624 = vmax.f32 %v570, 0.0
      %v625 = vmax.f32 %v573, 0.0
      %v626 = vmax.f32 %v578, 0.0
      %v627 = vmax.f32 %v581, 0.0
      %v628 = vmax.f32 %v586, 0.0
      %v629 = vmax.f32 %v589, 0.0
      %v630 = vmax.f32 %v594, 0.0
      %v631 = vmax.f32 %v597, 0.0
      %v632 = vmax.f32 %v602, 0.0
      %v633 = vmax.f32 %v605, 0.0
      %v634 = vld [vmem:[%s197 + $0xd0] sm:$0xff]
      %v635 = vld [vmem:[%s197 + $0xd8] sm:$0xff]
      %v636 = vld [vmem:[%s197 + $0xe0] sm:$0xff]
      %v637 = vld [vmem:[%s197 + $0xe8] sm:$0xff]
      %v638 = vld [vmem:[%s197 + $0xf0] sm:$0xff]
      %v639 = vld [vmem:[%s197 + $0xf8] sm:$0xff]
      %v640 = vld [vmem:[%s197 + $0x100] sm:$0xff]
      %v641 = vld [vmem:[%s197 + $0x108] sm:$0xff]
      %v642 = vld [vmem:[%s197 + $0x110] sm:$0xff]
      %v643 = vld [vmem:[%s197 + $0x118] sm:$0xff]
      %v644 = vld [vmem:[%s197 + $0x120] sm:$0xff]
      %v645 = vld [vmem:[%s197 + $0x128] sm:$0xff]
      %v646 = vld [vmem:[%s197 + $0x130] sm:$0xff]
      %v647 = vld [vmem:[%s197 + $0x138] sm:$0xff]
      %v648 = vld [vmem:[%s197 + $0x140] sm:$0xff]
      %v649 = vld [vmem:[%s197 + $0x148] sm:$0xff]
      %v650 = vld [vmem:[%s197 + $0x150] sm:$0xff]
      %v651 = vld [vmem:[%s197 + $0x158] sm:$0xff]
      %v652 = vld [vmem:[%s197 + $0x160] sm:$0xff]
      %v653 = vld [vmem:[%s197 + $0x168] sm:$0xff]
      %v654 = vld [vmem:[%s197 + $0x170] sm:$0xff]
      %v655 = vld [vmem:[%s197 + $0x178] sm:$0xff]
      %v656 = vld [vmem:[%s197 + $0x180] sm:$0xff]
      %v657 = vld [vmem:[%s197 + $0x188] sm:$0xff]
      %v658 = vld [vmem:[%s197 + $0x190] sm:$0xff]
      %v659 = vld [vmem:[%s197 + $0x198] sm:$0xff]
      %v686 = vunpack.c.l.b16 %v634
      %v687 = vunpack.c.h.b16 %v634
      %v688 = vunpack.c.l.b16 %v635
      %v689 = vunpack.c.h.b16 %v635
      %v690 = vunpack.c.l.b16 %v636
      %v691 = vunpack.c.h.b16 %v636
      %v692 = vunpack.c.l.b16 %v637
      %v693 = vunpack.c.h.b16 %v637
      %v694 = vunpack.c.l.b16 %v638
      %v695 = vunpack.c.h.b16 %v638
      %v696 = vunpack.c.l.b16 %v639
      %v697 = vunpack.c.h.b16 %v639
      %v698 = vunpack.c.l.b16 %v640
      %v699 = vunpack.c.h.b16 %v640
      %v700 = vunpack.c.l.b16 %v641
      %v701 = vunpack.c.h.b16 %v641
      %v702 = vunpack.c.l.b16 %v642
      %v703 = vunpack.c.h.b16 %v642
      %v704 = vunpack.c.l.b16 %v643
      %v705 = vunpack.c.h.b16 %v643
      %v706 = vunpack.c.l.b16 %v644
      %v707 = vunpack.c.h.b16 %v644
      %v708 = vunpack.c.l.b16 %v645
      %v709 = vunpack.c.h.b16 %v645
      %v710 = vunpack.c.l.b16 %v646
      %v711 = vunpack.c.h.b16 %v646
      %v712 = vunpack.c.l.b16 %v647
      %v713 = vunpack.c.h.b16 %v647
      %v714 = vunpack.c.l.b16 %v648
      %v715 = vunpack.c.h.b16 %v648
      %v716 = vunpack.c.l.b16 %v649
      %v717 = vunpack.c.h.b16 %v649
      %v718 = vunpack.c.l.b16 %v650
      %v719 = vunpack.c.h.b16 %v650
      %v720 = vunpack.c.l.b16 %v651
      %v721 = vunpack.c.h.b16 %v651
      %v722 = vunpack.c.l.b16 %v652
      %v723 = vunpack.c.h.b16 %v652
      %v724 = vunpack.c.l.b16 %v653
      %v725 = vunpack.c.h.b16 %v653
      %v726 = vunpack.c.l.b16 %v654
      %v727 = vunpack.c.h.b16 %v654
      %v728 = vunpack.c.l.b16 %v655
      %v729 = vunpack.c.h.b16 %v655
      %v730 = vunpack.c.l.b16 %v656
      %v731 = vunpack.c.h.b16 %v656
      %v732 = vunpack.c.l.b16 %v657
      %v733 = vunpack.c.h.b16 %v657
      %v734 = vunpack.c.l.b16 %v658
      %v735 = vunpack.c.h.b16 %v658
      %v736 = vunpack.c.l.b16 %v659
      %v737 = vunpack.c.h.b16 %v659
      %v738 = vpack.c.b16 %v688, %v686
      %v739 = vpack.c.b16 %v689, %v687
      %v740 = vpack.c.b16 %v692, %v690
      %v741 = vpack.c.b16 %v693, %v691
      %v742 = vpack.c.b16 %v696, %v694
      %v743 = vpack.c.b16 %v697, %v695
      %v744 = vpack.c.b16 %v700, %v698
      %v745 = vpack.c.b16 %v701, %v699
      %v746 = vpack.c.b16 %v704, %v702
      %v747 = vpack.c.b16 %v705, %v703
      %v748 = vpack.c.b16 %v708, %v706
      %v749 = vpack.c.b16 %v709, %v707
      %v750 = vpack.c.b16 %v712, %v710
      %v751 = vpack.c.b16 %v713, %v711
      %v752 = vpack.c.b16 %v716, %v714
      %v753 = vpack.c.b16 %v717, %v715
      %v754 = vpack.c.b16 %v720, %v718
      %v755 = vpack.c.b16 %v721, %v719
      %v756 = vpack.c.b16 %v724, %v722
      %v757 = vpack.c.b16 %v725, %v723
      %v758 = vpack.c.b16 %v728, %v726
      %v759 = vpack.c.b16 %v729, %v727
      %v760 = vpack.c.b16 %v732, %v730
      %v761 = vpack.c.b16 %v733, %v731
      %v762 = vpack.c.b16 %v736, %v734
      %v763 = vpack.c.b16 %v737, %v735
      %v778 = vsel %vm431, %v739, 0
      %v781 = vsel %vm431, %v741, 0
      %v784 = vsel %vm431, %v743, 0
      %v787 = vsel %vm431, %v745, 0
      %v790 = vsel %vm431, %v747, 0
      %v793 = vsel %vm431, %v749, 0
      %v796 = vsel %vm431, %v751, 0
      %v799 = vsel %vm431, %v753, 0
      %v802 = vsel %vm431, %v755, 0
      %v805 = vsel %vm431, %v757, 0
      %v808 = vsel %vm431, %v759, 0
      %v811 = vsel %vm431, %v761, 0
      %v814 = vsel %vm431, %v763, 0
      %816 = vmatprep.subr.bf16.mxu0 0
      %817 = vmatpush1.bf16.msra.mxu0 %v413
      %818 = vmatprep.subr.bf16.mxu0 0
      %819 = vmatpush1.bf16.msra.mxu0 %v414
      %820 = vmatprep.subr.bf16.mxu0 0
      %821 = vmatpush1.bf16.msra.mxu0 %v415
      %822 = vmatprep.subr.bf16.mxu0 0
      %823 = vmatpush1.bf16.msra.mxu0 %v416
      %824 = vmatprep.subr.bf16.mxu0 0
      %825 = vmatpush1.bf16.msra.mxu0 %v417
      %826 = vmatprep.subr.bf16.mxu0 0
      %827 = vmatpush1.bf16.msra.mxu0 %v418
      %828 = vmatprep.subr.bf16.mxu0 0
      %829 = vmatpush1.bf16.msra.mxu0 %v419
      %830 = vmatprep.subr.bf16.mxu0 0
      %831 = vmatpush1.bf16.msra.mxu0 %v420
      %832 = vmatprep.subr.bf16.mxu0 0
      %833 = vmatpush1.bf16.msra.mxu0 %v421
      %834 = vmatprep.subr.bf16.mxu0 0
      %835 = vmatpush1.bf16.msra.mxu0 0
      %836 = vmatprep.subr.bf16.mxu0 0
      %837 = vmatpush1.bf16.msra.mxu0 0
      %838 = vmatprep.subr.bf16.mxu0 0
      %839 = vmatpush1.bf16.msra.mxu0 0
      %840 = vmatprep.subr.bf16.mxu0 0
      %841 = vmatpush1.bf16.msra.mxu0 0
      %842 = vmatprep.subr.bf16.mxu0 0
      %843 = vmatpush1.bf16.msra.mxu0 0
      %844 = vmatprep.subr.bf16.mxu0 0
      %845 = vmatpush1.bf16.msra.mxu0 0
      %846 = vmatprep.subr.bf16.mxu0 0
      %847 = vmatpush1.bf16.msra.mxu0 0
      %848 = vmatprep.mubr.bf16.mxu0 %v778
      %849 = vmatmul.mubr.bf16.gmra.mrb[0].mxu0 %v738
      %v850 = vpop.f32.mrb[0].mxu0
      %v851 = vadd.f32 %v258, %v850
      %v852 = vpop.f32.mrb[0].mxu0
      %v853 = vpop.f32.mrb[0].mxu0
      %v854 = vadd.f32 %v258, %v853
      %v855 = vpop.f32.mrb[0].mxu0
      %856 = vmatprep.mubr.bf16.mxu0 %v781
      %857 = vmatmul.mubr.bf16.gmra.mrb[0].mxu0 %v740
      %v858 = vpop.f32.mrb[0].mxu0
      %v859 = vadd.f32 %v258, %v858
      %v860 = vpop.f32.mrb[0].mxu0
      %v861 = vpop.f32.mrb[0].mxu0
      %v862 = vadd.f32 %v258, %v861
      %v863 = vpop.f32.mrb[0].mxu0
      %864 = vmatprep.mubr.bf16.mxu0 %v784
      %865 = vmatmul.mubr.bf16.gmra.mrb[0].mxu0 %v742
      %v866 = vpop.f32.mrb[0].mxu0
      %v867 = vadd.f32 %v258, %v866
      %v868 = vpop.f32.mrb[0].mxu0
      %v869 = vpop.f32.mrb[0].mxu0
      %v870 = vadd.f32 %v258, %v869
      %v871 = vpop.f32.mrb[0].mxu0
      %872 = vmatprep.mubr.bf16.mxu0 %v787
      %873 = vmatmul.mubr.bf16.gmra.mrb[0].mxu0 %v744
      %v874 = vpop.f32.mrb[0].mxu0
      %v875 = vadd.f32 %v258, %v874
      %v876 = vpop.f32.mrb[0].mxu0
      %v877 = vpop.f32.mrb[0].mxu0
      %v878 = vadd.f32 %v258, %v877
      %v879 = vpop.f32.mrb[0].mxu0
      %880 = vmatprep.mubr.bf16.mxu0 %v790
      %881 = vmatmul.mubr.bf16.gmra.mrb[0].mxu0 %v746
      %v882 = vpop.f32.mrb[0].mxu0
      %v883 = vadd.f32 %v258, %v882
      %v884 = vpop.f32.mrb[0].mxu0
      %v885 = vpop.f32.mrb[0].mxu0
      %v886 = vadd.f32 %v258, %v885
      %v887 = vpop.f32.mrb[0].mxu0
      %888 = vmatprep.mubr.bf16.mxu0 %v793
      %889 = vmatmul.mubr.bf16.gmra.mrb[0].mxu0 %v748
      %v890 = vpop.f32.mrb[0].mxu0
      %v891 = vadd.f32 %v258, %v890
      %v892 = vpop.f32.mrb[0].mxu0
      %v893 = vpop.f32.mrb[0].mxu0
      %v894 = vadd.f32 %v258, %v893
      %v895 = vpop.f32.mrb[0].mxu0
      %896 = vmatprep.mubr.bf16.mxu0 %v796
      %897 = vmatmul.mubr.bf16.gmra.mrb[0].mxu0 %v750
      %v898 = vpop.f32.mrb[0].mxu0
      %v899 = vadd.f32 %v258, %v898
      %v900 = vpop.f32.mrb[0].mxu0
      %v901 = vpop.f32.mrb[0].mxu0
      %v902 = vadd.f32 %v258, %v901
      %v903 = vpop.f32.mrb[0].mxu0
      %904 = vmatprep.mubr.bf16.mxu0 %v799
      %905 = vmatmul.mubr.bf16.gmra.mrb[0].mxu0 %v752
      %v906 = vpop.f32.mrb[0].mxu0
      %v907 = vadd.f32 %v258, %v906
      %v908 = vpop.f32.mrb[0].mxu0
      %v909 = vpop.f32.mrb[0].mxu0
      %v910 = vadd.f32 %v258, %v909
      %v911 = vpop.f32.mrb[0].mxu0
      %912 = vmatprep.mubr.bf16.mxu0 %v802
      %913 = vmatmul.mubr.bf16.gmra.mrb[0].mxu0 %v754
      %v914 = vpop.f32.mrb[0].mxu0
      %v915 = vadd.f32 %v258, %v914
      %v916 = vpop.f32.mrb[0].mxu0
      %v917 = vpop.f32.mrb[0].mxu0
      %v918 = vadd.f32 %v258, %v917
      %v919 = vpop.f32.mrb[0].mxu0
      %920 = vmatprep.mubr.bf16.mxu0 %v805
      %921 = vmatmul.mubr.bf16.gmra.mrb[0].mxu0 %v756
      %v922 = vpop.f32.mrb[0].mxu0
      %v923 = vadd.f32 %v258, %v922
      %v924 = vpop.f32.mrb[0].mxu0
      %v925 = vpop.f32.mrb[0].mxu0
      %v926 = vadd.f32 %v258, %v925
      %v927 = vpop.f32.mrb[0].mxu0
      %928 = vmatprep.mubr.bf16.mxu0 %v808
      %929 = vmatmul.mubr.bf16.gmra.mrb[0].mxu0 %v758
      %v930 = vpop.f32.mrb[0].mxu0
      %v931 = vadd.f32 %v258, %v930
      %v932 = vpop.f32.mrb[0].mxu0
      %v933 = vpop.f32.mrb[0].mxu0
      %v934 = vadd.f32 %v258, %v933
      %v935 = vpop.f32.mrb[0].mxu0
      %936 = vmatprep.mubr.bf16.mxu0 %v811
      %937 = vmatmul.mubr.bf16.gmra.mrb[0].mxu0 %v760
      %v938 = vpop.f32.mrb[0].mxu0
      %v939 = vadd.f32 %v258, %v938
      %v940 = vpop.f32.mrb[0].mxu0
      %v941 = vpop.f32.mrb[0].mxu0
      %v942 = vadd.f32 %v258, %v941
      %v943 = vpop.f32.mrb[0].mxu0
      %944 = vmatprep.mubr.bf16.mxu0 %v814
      %945 = vmatmul.mubr.bf16.gmra.mrb[0].mxu0 %v762
      %v946 = vpop.f32.mrb[0].mxu0
      %v947 = vadd.f32 %v258, %v946
      %v948 = vpop.f32.mrb[0].mxu0
      %v949 = vpop.f32.mrb[0].mxu0
      %v950 = vadd.f32 %v258, %v949
      %v951 = vpop.f32.mrb[0].mxu0
      %952 = vdwg.mxu0
      %v953 = vmax.f32 %v851, 0.0
      %v954 = vmax.f32 %v854, 0.0
      %v955 = vmax.f32 %v859, 0.0
      %v956 = vmax.f32 %v862, 0.0
      %v957 = vmax.f32 %v867, 0.0
      %v958 = vmax.f32 %v870, 0.0
      %v959 = vmax.f32 %v875, 0.0
      %v960 = vmax.f32 %v878, 0.0
      %v961 = vmax.f32 %v883, 0.0
      %v962 = vmax.f32 %v886, 0.0
      %v963 = vmax.f32 %v891, 0.0
      %v964 = vmax.f32 %v894, 0.0
      %v965 = vmax.f32 %v899, 0.0
      %v966 = vmax.f32 %v902, 0.0
      %v967 = vmax.f32 %v907, 0.0
      %v968 = vmax.f32 %v910, 0.0
      %v969 = vmax.f32 %v915, 0.0
      %v970 = vmax.f32 %v918, 0.0
      %v971 = vmax.f32 %v923, 0.0
      %v972 = vmax.f32 %v926, 0.0
      %v973 = vmax.f32 %v931, 0.0
      %v974 = vmax.f32 %v934, 0.0
      %v975 = vmax.f32 %v939, 0.0
      %v976 = vmax.f32 %v942, 0.0
      %v977 = vmax.f32 %v947, 0.0
      %v978 = vmax.f32 %v950, 0.0
      %v979 = vmax.f32 %v608, %v953
      %v980 = vmax.f32 %v609, %v954
      %v981 = vmax.f32 %v610, %v955
      %v982 = vmax.f32 %v611, %v956
      %v983 = vmax.f32 %v612, %v957
      %v984 = vmax.f32 %v613, %v958
      %v985 = vmax.f32 %v614, %v959
      %v986 = vmax.f32 %v615, %v960
      %v987 = vmax.f32 %v616, %v961
      %v988 = vmax.f32 %v617, %v962
      %v989 = vmax.f32 %v618, %v963
      %v990 = vmax.f32 %v619, %v964
      %v991 = vmax.f32 %v620, %v965
      %v992 = vmax.f32 %v621, %v966
      %v993 = vmax.f32 %v622, %v967
      %v994 = vmax.f32 %v623, %v968
      %v995 = vmax.f32 %v624, %v969
      %v996 = vmax.f32 %v625, %v970
      %v997 = vmax.f32 %v626, %v971
      %v998 = vmax.f32 %v627, %v972
      %v999 = vmax.f32 %v628, %v973
      %v1000 = vmax.f32 %v629, %v974
      %v1001 = vmax.f32 %v630, %v975
      %v1002 = vmax.f32 %v631, %v976
      %v1003 = vmax.f32 %v632, %v977
      %v1004 = vmax.f32 %v633, %v978
      %v1005 = vld [vmem:[%s197 + $0x1a0] sm:$0xff]
      %v1006 = vld [vmem:[%s197 + $0x1a8] sm:$0xff]
      %v1007 = vld [vmem:[%s197 + $0x1b0] sm:$0xff]
      %v1008 = vld [vmem:[%s197 + $0x1b8] sm:$0xff]
      %v1009 = vld [vmem:[%s197 + $0x1c0] sm:$0xff]
      %v1010 = vld [vmem:[%s197 + $0x1c8] sm:$0xff]
      %v1011 = vld [vmem:[%s197 + $0x1d0] sm:$0xff]
      %v1012 = vld [vmem:[%s197 + $0x1d8] sm:$0xff]
      %v1013 = vld [vmem:[%s197 + $0x1e0] sm:$0xff]
      %v1014 = vld [vmem:[%s197 + $0x1e8] sm:$0xff]
      %v1015 = vld [vmem:[%s197 + $0x1f0] sm:$0xff]
      %v1016 = vld [vmem:[%s197 + $0x1f8] sm:$0xff]
      %v1017 = vld [vmem:[%s197 + $0x200] sm:$0xff]
      %v1018 = vld [vmem:[%s197 + $0x208] sm:$0xff]
      %v1019 = vld [vmem:[%s197 + $0x210] sm:$0xff]
      %v1020 = vld [vmem:[%s197 + $0x218] sm:$0xff]
      %v1021 = vld [vmem:[%s197 + $0x220] sm:$0xff]
      %v1022 = vld [vmem:[%s197 + $0x228] sm:$0xff]
      %v1023 = vld [vmem:[%s197 + $0x230] sm:$0xff]
      %v1024 = vld [vmem:[%s197 + $0x238] sm:$0xff]
      %v1025 = vld [vmem:[%s197 + $0x240] sm:$0xff]
      %v1026 = vld [vmem:[%s197 + $0x248] sm:$0xff]
      %v1027 = vld [vmem:[%s197 + $0x250] sm:$0xff]
      %v1028 = vld [vmem:[%s197 + $0x258] sm:$0xff]
      %v1029 = vld [vmem:[%s197 + $0x260] sm:$0xff]
      %v1030 = vld [vmem:[%s197 + $0x268] sm:$0xff]
      %v1057 = vunpack.c.l.b16 %v1005
      %v1058 = vunpack.c.h.b16 %v1005
      %v1059 = vunpack.c.l.b16 %v1006
      %v1060 = vunpack.c.h.b16 %v1006
      %v1061 = vunpack.c.l.b16 %v1007
      %v1062 = vunpack.c.h.b16 %v1007
      %v1063 = vunpack.c.l.b16 %v1008
      %v1064 = vunpack.c.h.b16 %v1008
      %v1065 = vunpack.c.l.b16 %v1009
      %v1066 = vunpack.c.h.b16 %v1009
      %v1067 = vunpack.c.l.b16 %v1010
      %v1068 = vunpack.c.h.b16 %v1010
      %v1069 = vunpack.c.l.b16 %v1011
      %v1070 = vunpack.c.h.b16 %v1011
      %v1071 = vunpack.c.l.b16 %v1012
      %v1072 = vunpack.c.h.b16 %v1012
      %v1073 = vunpack.c.l.b16 %v1013
      %v1074 = vunpack.c.h.b16 %v1013
      %v1075 = vunpack.c.l.b16 %v1014
      %v1076 = vunpack.c.h.b16 %v1014
      %v1077 = vunpack.c.l.b16 %v1015
      %v1078 = vunpack.c.h.b16 %v1015
      %v1079 = vunpack.c.l.b16 %v1016
      %v1080 = vunpack.c.h.b16 %v1016
      %v1081 = vunpack.c.l.b16 %v1017
      %v1082 = vunpack.c.h.b16 %v1017
      %v1083 = vunpack.c.l.b16 %v1018
      %v1084 = vunpack.c.h.b16 %v1018
      %v1085 = vunpack.c.l.b16 %v1019
      %v1086 = vunpack.c.h.b16 %v1019
      %v1087 = vunpack.c.l.b16 %v1020
      %v1088 = vunpack.c.h.b16 %v1020
      %v1089 = vunpack.c.l.b16 %v1021
      %v1090 = vunpack.c.h.b16 %v1021
      %v1091 = vunpack.c.l.b16 %v1022
      %v1092 = vunpack.c.h.b16 %v1022
      %v1093 = vunpack.c.l.b16 %v1023
      %v1094 = vunpack.c.h.b16 %v1023
      %v1095 = vunpack.c.l.b16 %v1024
      %v1096 = vunpack.c.h.b16 %v1024
      %v1097 = vunpack.c.l.b16 %v1025
      %v1098 = vunpack.c.h.b16 %v1025
      %v1099 = vunpack.c.l.b16 %v1026
      %v1100 = vunpack.c.h.b16 %v1026
      %v1101 = vunpack.c.l.b16 %v1027
      %v1102 = vunpack.c.h.b16 %v1027
      %v1103 = vunpack.c.l.b16 %v1028
      %v1104 = vunpack.c.h.b16 %v1028
      %v1105 = vunpack.c.l.b16 %v1029
      %v1106 = vunpack.c.h.b16 %v1029
      %v1107 = vunpack.c.l.b16 %v1030
      %v1108 = vunpack.c.h.b16 %v1030
      %v1109 = vpack.c.b16 %v1059, %v1057
      %v1110 = vpack.c.b16 %v1060, %v1058
      %v1111 = vpack.c.b16 %v1063, %v1061
      %v1112 = vpack.c.b16 %v1064, %v1062
      %v1113 = vpack.c.b16 %v1067, %v1065
      %v1114 = vpack.c.b16 %v1068, %v1066
      %v1115 = vpack.c.b16 %v1071, %v1069
      %v1116 = vpack.c.b16 %v1072, %v1070
      %v1117 = vpack.c.b16 %v1075, %v1073
      %v1118 = vpack.c.b16 %v1076, %v1074
      %v1119 = vpack.c.b16 %v1079, %v1077
      %v1120 = vpack.c.b16 %v1080, %v1078
      %v1121 = vpack.c.b16 %v1083, %v1081
      %v1122 = vpack.c.b16 %v1084, %v1082
      %v1123 = vpack.c.b16 %v1087, %v1085
      %v1124 = vpack.c.b16 %v1088, %v1086
      %v1125 = vpack.c.b16 %v1091, %v1089
      %v1126 = vpack.c.b16 %v1092, %v1090
      %v1127 = vpack.c.b16 %v1095, %v1093
      %v1128 = vpack.c.b16 %v1096, %v1094
      %v1129 = vpack.c.b16 %v1099, %v1097
      %v1130 = vpack.c.b16 %v1100, %v1098
      %v1131 = vpack.c.b16 %v1103, %v1101
      %v1132 = vpack.c.b16 %v1104, %v1102
      %v1133 = vpack.c.b16 %v1107, %v1105
      %v1134 = vpack.c.b16 %v1108, %v1106
      %v1149 = vsel %vm431, %v1110, 0
      %v1152 = vsel %vm431, %v1112, 0
      %v1155 = vsel %vm431, %v1114, 0
      %v1158 = vsel %vm431, %v1116, 0
      %v1161 = vsel %vm431, %v1118, 0
      %v1164 = vsel %vm431, %v1120, 0
      %v1167 = vsel %vm431, %v1122, 0
      %v1170 = vsel %vm431, %v1124, 0
      %v1173 = vsel %vm431, %v1126, 0
      %v1176 = vsel %vm431, %v1128, 0
      %v1179 = vsel %vm431, %v1130, 0
      %v1182 = vsel %vm431, %v1132, 0
      %v1185 = vsel %vm431, %v1134, 0
      %1187 = vmatprep.subr.bf16.mxu0 0
      %1188 = vmatpush1.bf16.msra.mxu0 %v413
      %1189 = vmatprep.subr.bf16.mxu0 0
      %1190 = vmatpush1.bf16.msra.mxu0 %v414
      %1191 = vmatprep.subr.bf16.mxu0 0
      %1192 = vmatpush1.bf16.msra.mxu0 %v415
      %1193 = vmatprep.subr.bf16.mxu0 0
      %1194 = vmatpush1.bf16.msra.mxu0 %v416
      %1195 = vmatprep.subr.bf16.mxu0 0
      %1196 = vmatpush1.bf16.msra.mxu0 %v417
      %1197 = vmatprep.subr.bf16.mxu0 0
      %1198 = vmatpush1.bf16.msra.mxu0 %v418
      %1199 = vmatprep.subr.bf16.mxu0 0
      %1200 = vmatpush1.bf16.msra.mxu0 %v419
      %1201 = vmatprep.subr.bf16.mxu0 0
      %1202 = vmatpush1.bf16.msra.mxu0 %v420
      %1203 = vmatprep.subr.bf16.mxu0 0
      %1204 = vmatpush1.bf16.msra.mxu0 %v421
      %1205 = vmatprep.subr.bf16.mxu0 0
      %1206 = vmatpush1.bf16.msra.mxu0 0
      %1207 = vmatprep.subr.bf16.mxu0 0
      %1208 = vmatpush1.bf16.msra.mxu0 0
      %1209 = vmatprep.subr.bf16.mxu0 0
      %1210 = vmatpush1.bf16.msra.mxu0 0
      %1211 = vmatprep.subr.bf16.mxu0 0
      %1212 = vmatpush1.bf16.msra.mxu0 0
      %1213 = vmatprep.subr.bf16.mxu0 0
      %1214 = vmatpush1.bf16.msra.mxu0 0
      %1215 = vmatprep.subr.bf16.mxu0 0
      %1216 = vmatpush1.bf16.msra.mxu0 0
      %1217 = vmatprep.subr.bf16.mxu0 0
      %1218 = vmatpush1.bf16.msra.mxu0 0
      %1219 = vmatprep.mubr.bf16.mxu0 %v1149
      %1220 = vmatmul.mubr.bf16.gmra.mrb[0].mxu0 %v1109
      %v1221 = vpop.f32.mrb[0].mxu0
      %v1222 = vadd.f32 %v258, %v1221
      %v1223 = vpop.f32.mrb[0].mxu0
      %v1224 = vpop.f32.mrb[0].mxu0
      %v1225 = vadd.f32 %v258, %v1224
      %v1226 = vpop.f32.mrb[0].mxu0
      %1227 = vmatprep.mubr.bf16.mxu0 %v1152
      %1228 = vmatmul.mubr.bf16.gmra.mrb[0].mxu0 %v1111
      %v1229 = vpop.f32.mrb[0].mxu0
      %v1230 = vadd.f32 %v258, %v1229
      %v1231 = vpop.f32.mrb[0].mxu0
      %v1232 = vpop.f32.mrb[0].mxu0
      %v1233 = vadd.f32 %v258, %v1232
      %v1234 = vpop.f32.mrb[0].mxu0
      %1235 = vmatprep.mubr.bf16.mxu0 %v1155
      %1236 = vmatmul.mubr.bf16.gmra.mrb[0].mxu0 %v1113
      %v1237 = vpop.f32.mrb[0].mxu0
      %v1238 = vadd.f32 %v258, %v1237
      %v1239 = vpop.f32.mrb[0].mxu0
      %v1240 = vpop.f32.mrb[0].mxu0
      %v1241 = vadd.f32 %v258, %v1240
      %v1242 = vpop.f32.mrb[0].mxu0
      %1243 = vmatprep.mubr.bf16.mxu0 %v1158
      %1244 = vmatmul.mubr.bf16.gmra.mrb[0].mxu0 %v1115
      %v1245 = vpop.f32.mrb[0].mxu0
      %v1246 = vadd.f32 %v258, %v1245
      %v1247 = vpop.f32.mrb[0].mxu0
      %v1248 = vpop.f32.mrb[0].mxu0
      %v1249 = vadd.f32 %v258, %v1248
      %v1250 = vpop.f32.mrb[0].mxu0
      %1251 = vmatprep.mubr.bf16.mxu0 %v1161
      %1252 = vmatmul.mubr.bf16.gmra.mrb[0].mxu0 %v1117
      %v1253 = vpop.f32.mrb[0].mxu0
      %v1254 = vadd.f32 %v258, %v1253
      %v1255 = vpop.f32.mrb[0].mxu0
      %v1256 = vpop.f32.mrb[0].mxu0
      %v1257 = vadd.f32 %v258, %v1256
      %v1258 = vpop.f32.mrb[0].mxu0
      %1259 = vmatprep.mubr.bf16.mxu0 %v1164
      %1260 = vmatmul.mubr.bf16.gmra.mrb[0].mxu0 %v1119
      %v1261 = vpop.f32.mrb[0].mxu0
      %v1262 = vadd.f32 %v258, %v1261
      %v1263 = vpop.f32.mrb[0].mxu0
      %v1264 = vpop.f32.mrb[0].mxu0
      %v1265 = vadd.f32 %v258, %v1264
      %v1266 = vpop.f32.mrb[0].mxu0
      %1267 = vmatprep.mubr.bf16.mxu0 %v1167
      %1268 = vmatmul.mubr.bf16.gmra.mrb[0].mxu0 %v1121
      %v1269 = vpop.f32.mrb[0].mxu0
      %v1270 = vadd.f32 %v258, %v1269
      %v1271 = vpop.f32.mrb[0].mxu0
      %v1272 = vpop.f32.mrb[0].mxu0
      %v1273 = vadd.f32 %v258, %v1272
      %v1274 = vpop.f32.mrb[0].mxu0
      %1275 = vmatprep.mubr.bf16.mxu0 %v1170
      %1276 = vmatmul.mubr.bf16.gmra.mrb[0].mxu0 %v1123
      %v1277 = vpop.f32.mrb[0].mxu0
      %v1278 = vadd.f32 %v258, %v1277
      %v1279 = vpop.f32.mrb[0].mxu0
      %v1280 = vpop.f32.mrb[0].mxu0
      %v1281 = vadd.f32 %v258, %v1280
      %v1282 = vpop.f32.mrb[0].mxu0
      %1283 = vmatprep.mubr.bf16.mxu0 %v1173
      %1284 = vmatmul.mubr.bf16.gmra.mrb[0].mxu0 %v1125
      %v1285 = vpop.f32.mrb[0].mxu0
      %v1286 = vadd.f32 %v258, %v1285
      %v1287 = vpop.f32.mrb[0].mxu0
      %v1288 = vpop.f32.mrb[0].mxu0
      %v1289 = vadd.f32 %v258, %v1288
      %v1290 = vpop.f32.mrb[0].mxu0
      %1291 = vmatprep.mubr.bf16.mxu0 %v1176
      %1292 = vmatmul.mubr.bf16.gmra.mrb[0].mxu0 %v1127
      %v1293 = vpop.f32.mrb[0].mxu0
      %v1294 = vadd.f32 %v258, %v1293
      %v1295 = vpop.f32.mrb[0].mxu0
      %v1296 = vpop.f32.mrb[0].mxu0
      %v1297 = vadd.f32 %v258, %v1296
      %v1298 = vpop.f32.mrb[0].mxu0
      %1299 = vmatprep.mubr.bf16.mxu0 %v1179
      %1300 = vmatmul.mubr.bf16.gmra.mrb[0].mxu0 %v1129
      %v1301 = vpop.f32.mrb[0].mxu0
      %v1302 = vadd.f32 %v258, %v1301
      %v1303 = vpop.f32.mrb[0].mxu0
      %v1304 = vpop.f32.mrb[0].mxu0
      %v1305 = vadd.f32 %v258, %v1304
      %v1306 = vpop.f32.mrb[0].mxu0
      %1307 = vmatprep.mubr.bf16.mxu0 %v1182
      %1308 = vmatmul.mubr.bf16.gmra.mrb[0].mxu0 %v1131
      %v1309 = vpop.f32.mrb[0].mxu0
      %v1310 = vadd.f32 %v258, %v1309
      %v1311 = vpop.f32.mrb[0].mxu0
      %v1312 = vpop.f32.mrb[0].mxu0
      %v1313 = vadd.f32 %v258, %v1312
      %v1314 = vpop.f32.mrb[0].mxu0
      %1315 = vmatprep.mubr.bf16.mxu0 %v1185
      %1316 = vmatmul.mubr.bf16.gmra.mrb[0].mxu0 %v1133
      %v1317 = vpop.f32.mrb[0].mxu0
      %v1318 = vadd.f32 %v258, %v1317
      %v1319 = vpop.f32.mrb[0].mxu0
      %v1320 = vpop.f32.mrb[0].mxu0
      %v1321 = vadd.f32 %v258, %v1320
      %v1322 = vpop.f32.mrb[0].mxu0
      %1323 = vdwg.mxu0
      %v1324 = vmax.f32 %v1222, 0.0
      %v1325 = vmax.f32 %v1225, 0.0
      %v1326 = vmax.f32 %v1230, 0.0
      %v1327 = vmax.f32 %v1233, 0.0
      %v1328 = vmax.f32 %v1238, 0.0
      %v1329 = vmax.f32 %v1241, 0.0
      %v1330 = vmax.f32 %v1246, 0.0
      %v1331 = vmax.f32 %v1249, 0.0
      %v1332 = vmax.f32 %v1254, 0.0
      %v1333 = vmax.f32 %v1257, 0.0
      %v1334 = vmax.f32 %v1262, 0.0
      %v1335 = vmax.f32 %v1265, 0.0
      %v1336 = vmax.f32 %v1270, 0.0
      %v1337 = vmax.f32 %v1273, 0.0
      %v1338 = vmax.f32 %v1278, 0.0
      %v1339 = vmax.f32 %v1281, 0.0
      %v1340 = vmax.f32 %v1286, 0.0
      %v1341 = vmax.f32 %v1289, 0.0
      %v1342 = vmax.f32 %v1294, 0.0
      %v1343 = vmax.f32 %v1297, 0.0
      %v1344 = vmax.f32 %v1302, 0.0
      %v1345 = vmax.f32 %v1305, 0.0
      %v1346 = vmax.f32 %v1310, 0.0
      %v1347 = vmax.f32 %v1313, 0.0
      %v1348 = vmax.f32 %v1318, 0.0
      %v1349 = vmax.f32 %v1321, 0.0
      %v1350 = vmax.f32 %v979, %v1324
      %v1351 = vmax.f32 %v980, %v1325
      %v1352 = vmax.f32 %v981, %v1326
      %v1353 = vmax.f32 %v982, %v1327
      %v1354 = vmax.f32 %v983, %v1328
      %v1355 = vmax.f32 %v984, %v1329
      %v1356 = vmax.f32 %v985, %v1330
      %v1357 = vmax.f32 %v986, %v1331
      %v1358 = vmax.f32 %v987, %v1332
      %v1359 = vmax.f32 %v988, %v1333
      %v1360 = vmax.f32 %v989, %v1334
      %v1361 = vmax.f32 %v990, %v1335
      %v1362 = vmax.f32 %v991, %v1336
      %v1363 = vmax.f32 %v992, %v1337
      %v1364 = vmax.f32 %v993, %v1338
      %v1365 = vmax.f32 %v994, %v1339
      %v1366 = vmax.f32 %v995, %v1340
      %v1367 = vmax.f32 %v996, %v1341
      %v1368 = vmax.f32 %v997, %v1342
      %v1369 = vmax.f32 %v998, %v1343
      %v1370 = vmax.f32 %v999, %v1344
      %v1371 = vmax.f32 %v1000, %v1345
      %v1372 = vmax.f32 %v1001, %v1346
      %v1373 = vmax.f32 %v1002, %v1347
      %v1374 = vmax.f32 %v1003, %v1348
      %v1375 = vmax.f32 %v1004, %v1349
      %v1376 = vld [vmem:[%s197 + $0x270] sm:$0xff]
      %v1377 = vld [vmem:[%s197 + $0x278] sm:$0xff]
      %v1378 = vld [vmem:[%s197 + $0x280] sm:$0xff]
      %v1379 = vld [vmem:[%s197 + $0x288] sm:$0xff]
      %v1380 = vld [vmem:[%s197 + $0x290] sm:$0xff]
      %v1381 = vld [vmem:[%s197 + $0x298] sm:$0xff]
      %v1382 = vld [vmem:[%s197 + $0x2a0] sm:$0xff]
      %v1383 = vld [vmem:[%s197 + $0x2a8] sm:$0xff]
      %v1384 = vld [vmem:[%s197 + $0x2b0] sm:$0xff]
      %v1385 = vld [vmem:[%s197 + $0x2b8] sm:$0xff]
      %v1386 = vld [vmem:[%s197 + $0x2c0] sm:$0xff]
      %v1387 = vld [vmem:[%s197 + $0x2c8] sm:$0xff]
      %v1388 = vld [vmem:[%s197 + $0x2d0] sm:$0xff]
      %v1389 = vld [vmem:[%s197 + $0x2d8] sm:$0xff]
      %v1390 = vld [vmem:[%s197 + $0x2e0] sm:$0xff]
      %v1391 = vld [vmem:[%s197 + $0x2e8] sm:$0xff]
      %v1392 = vld [vmem:[%s197 + $0x2f0] sm:$0xff]
      %v1393 = vld [vmem:[%s197 + $0x2f8] sm:$0xff]
      %v1394 = vld [vmem:[%s197 + $0x300] sm:$0xff]
      %v1395 = vld [vmem:[%s197 + $0x308] sm:$0xff]
      %v1396 = vld [vmem:[%s197 + $0x310] sm:$0xff]
      %v1397 = vld [vmem:[%s197 + $0x318] sm:$0xff]
      %v1398 = vld [vmem:[%s197 + $0x320] sm:$0xff]
      %v1399 = vld [vmem:[%s197 + $0x328] sm:$0xff]
      %v1400 = vld [vmem:[%s197 + $0x330] sm:$0xff]
      %v1401 = vld [vmem:[%s197 + $0x338] sm:$0xff]
      %v1428 = vunpack.c.l.b16 %v1376
      %v1429 = vunpack.c.h.b16 %v1376
      %v1430 = vunpack.c.l.b16 %v1377
      %v1431 = vunpack.c.h.b16 %v1377
      %v1432 = vunpack.c.l.b16 %v1378
      %v1433 = vunpack.c.h.b16 %v1378
      %v1434 = vunpack.c.l.b16 %v1379
      %v1435 = vunpack.c.h.b16 %v1379
      %v1436 = vunpack.c.l.b16 %v1380
      %v1437 = vunpack.c.h.b16 %v1380
      %v1438 = vunpack.c.l.b16 %v1381
      %v1439 = vunpack.c.h.b16 %v1381
      %v1440 = vunpack.c.l.b16 %v1382
      %v1441 = vunpack.c.h.b16 %v1382
      %v1442 = vunpack.c.l.b16 %v1383
      %v1443 = vunpack.c.h.b16 %v1383
      %v1444 = vunpack.c.l.b16 %v1384
      %v1445 = vunpack.c.h.b16 %v1384
      %v1446 = vunpack.c.l.b16 %v1385
      %v1447 = vunpack.c.h.b16 %v1385
      %v1448 = vunpack.c.l.b16 %v1386
      %v1449 = vunpack.c.h.b16 %v1386
      %v1450 = vunpack.c.l.b16 %v1387
      %v1451 = vunpack.c.h.b16 %v1387
      %v1452 = vunpack.c.l.b16 %v1388
      %v1453 = vunpack.c.h.b16 %v1388
      %v1454 = vunpack.c.l.b16 %v1389
      %v1455 = vunpack.c.h.b16 %v1389
      %v1456 = vunpack.c.l.b16 %v1390
      %v1457 = vunpack.c.h.b16 %v1390
      %v1458 = vunpack.c.l.b16 %v1391
      %v1459 = vunpack.c.h.b16 %v1391
      %v1460 = vunpack.c.l.b16 %v1392
      %v1461 = vunpack.c.h.b16 %v1392
      %v1462 = vunpack.c.l.b16 %v1393
      %v1463 = vunpack.c.h.b16 %v1393
      %v1464 = vunpack.c.l.b16 %v1394
      %v1465 = vunpack.c.h.b16 %v1394
      %v1466 = vunpack.c.l.b16 %v1395
      %v1467 = vunpack.c.h.b16 %v1395
      %v1468 = vunpack.c.l.b16 %v1396
      %v1469 = vunpack.c.h.b16 %v1396
      %v1470 = vunpack.c.l.b16 %v1397
      %v1471 = vunpack.c.h.b16 %v1397
      %v1472 = vunpack.c.l.b16 %v1398
      %v1473 = vunpack.c.h.b16 %v1398
      %v1474 = vunpack.c.l.b16 %v1399
      %v1475 = vunpack.c.h.b16 %v1399
      %v1476 = vunpack.c.l.b16 %v1400
      %v1477 = vunpack.c.h.b16 %v1400
      %v1478 = vunpack.c.l.b16 %v1401
      %v1479 = vunpack.c.h.b16 %v1401
      %v1480 = vpack.c.b16 %v1430, %v1428
      %v1481 = vpack.c.b16 %v1431, %v1429
      %v1482 = vpack.c.b16 %v1434, %v1432
      %v1483 = vpack.c.b16 %v1435, %v1433
      %v1484 = vpack.c.b16 %v1438, %v1436
      %v1485 = vpack.c.b16 %v1439, %v1437
      %v1486 = vpack.c.b16 %v1442, %v1440
      %v1487 = vpack.c.b16 %v1443, %v1441
      %v1488 = vpack.c.b16 %v1446, %v1444
      %v1489 = vpack.c.b16 %v1447, %v1445
      %v1490 = vpack.c.b16 %v1450, %v1448
      %v1491 = vpack.c.b16 %v1451, %v1449
      %v1492 = vpack.c.b16 %v1454, %v1452
      %v1493 = vpack.c.b16 %v1455, %v1453
      %v1494 = vpack.c.b16 %v1458, %v1456
      %v1495 = vpack.c.b16 %v1459, %v1457
      %v1496 = vpack.c.b16 %v1462, %v1460
      %v1497 = vpack.c.b16 %v1463, %v1461
      %v1498 = vpack.c.b16 %v1466, %v1464
      %v1499 = vpack.c.b16 %v1467, %v1465
      %v1500 = vpack.c.b16 %v1470, %v1468
      %v1501 = vpack.c.b16 %v1471, %v1469
      %v1502 = vpack.c.b16 %v1474, %v1472
      %v1503 = vpack.c.b16 %v1475, %v1473
      %v1504 = vpack.c.b16 %v1478, %v1476
      %v1505 = vpack.c.b16 %v1479, %v1477
      %v1520 = vsel %vm431, %v1481, 0
      %v1523 = vsel %vm431, %v1483, 0
      %v1526 = vsel %vm431, %v1485, 0
      %v1529 = vsel %vm431, %v1487, 0
      %v1532 = vsel %vm431, %v1489, 0
      %v1535 = vsel %vm431, %v1491, 0
      %v1538 = vsel %vm431, %v1493, 0
      %v1541 = vsel %vm431, %v1495, 0
      %v1544 = vsel %vm431, %v1497, 0
      %v1547 = vsel %vm431, %v1499, 0
      %v1550 = vsel %vm431, %v1501, 0
      %v1553 = vsel %vm431, %v1503, 0
      %v1556 = vsel %vm431, %v1505, 0
      %1558 = vmatprep.subr.bf16.mxu0 0
      %1559 = vmatpush1.bf16.msra.mxu0 %v413
      %1560 = vmatprep.subr.bf16.mxu0 0
      %1561 = vmatpush1.bf16.msra.mxu0 %v414
      %1562 = vmatprep.subr.bf16.mxu0 0
      %1563 = vmatpush1.bf16.msra.mxu0 %v415
      %1564 = vmatprep.subr.bf16.mxu0 0
      %1565 = vmatpush1.bf16.msra.mxu0 %v416
      %1566 = vmatprep.subr.bf16.mxu0 0
      %1567 = vmatpush1.bf16.msra.mxu0 %v417
      %1568 = vmatprep.subr.bf16.mxu0 0
      %1569 = vmatpush1.bf16.msra.mxu0 %v418
      %1570 = vmatprep.subr.bf16.mxu0 0
      %1571 = vmatpush1.bf16.msra.mxu0 %v419
      %1572 = vmatprep.subr.bf16.mxu0 0
      %1573 = vmatpush1.bf16.msra.mxu0 %v420
      %1574 = vmatprep.subr.bf16.mxu0 0
      %1575 = vmatpush1.bf16.msra.mxu0 %v421
      %1576 = vmatprep.subr.bf16.mxu0 0
      %1577 = vmatpush1.bf16.msra.mxu0 0
      %1578 = vmatprep.subr.bf16.mxu0 0
      %1579 = vmatpush1.bf16.msra.mxu0 0
      %1580 = vmatprep.subr.bf16.mxu0 0
      %1581 = vmatpush1.bf16.msra.mxu0 0
      %1582 = vmatprep.subr.bf16.mxu0 0
      %1583 = vmatpush1.bf16.msra.mxu0 0
      %1584 = vmatprep.subr.bf16.mxu0 0
      %1585 = vmatpush1.bf16.msra.mxu0 0
      %1586 = vmatprep.subr.bf16.mxu0 0
      %1587 = vmatpush1.bf16.msra.mxu0 0
      %1588 = vmatprep.subr.bf16.mxu0 0
      %1589 = vmatpush1.bf16.msra.mxu0 0
      %1590 = vmatprep.mubr.bf16.mxu0 %v1520
      %1591 = vmatmul.mubr.bf16.gmra.mrb[0].mxu0 %v1480
      %v1592 = vpop.f32.mrb[0].mxu0
      %v1593 = vadd.f32 %v258, %v1592
      %v1594 = vpop.f32.mrb[0].mxu0
      %v1595 = vpop.f32.mrb[0].mxu0
      %v1596 = vadd.f32 %v258, %v1595
      %v1597 = vpop.f32.mrb[0].mxu0
      %1598 = vmatprep.mubr.bf16.mxu0 %v1523
      %1599 = vmatmul.mubr.bf16.gmra.mrb[0].mxu0 %v1482
      %v1600 = vpop.f32.mrb[0].mxu0
      %v1601 = vadd.f32 %v258, %v1600
      %v1602 = vpop.f32.mrb[0].mxu0
      %v1603 = vpop.f32.mrb[0].mxu0
      %v1604 = vadd.f32 %v258, %v1603
      %v1605 = vpop.f32.mrb[0].mxu0
      %1606 = vmatprep.mubr.bf16.mxu0 %v1526
      %1607 = vmatmul.mubr.bf16.gmra.mrb[0].mxu0 %v1484
      %v1608 = vpop.f32.mrb[0].mxu0
      %v1609 = vadd.f32 %v258, %v1608
      %v1610 = vpop.f32.mrb[0].mxu0
      %v1611 = vpop.f32.mrb[0].mxu0
      %v1612 = vadd.f32 %v258, %v1611
      %v1613 = vpop.f32.mrb[0].mxu0
      %1614 = vmatprep.mubr.bf16.mxu0 %v1529
      %1615 = vmatmul.mubr.bf16.gmra.mrb[0].mxu0 %v1486
      %v1616 = vpop.f32.mrb[0].mxu0
      %v1617 = vadd.f32 %v258, %v1616
      %v1618 = vpop.f32.mrb[0].mxu0
      %v1619 = vpop.f32.mrb[0].mxu0
      %v1620 = vadd.f32 %v258, %v1619
      %v1621 = vpop.f32.mrb[0].mxu0
      %1622 = vmatprep.mubr.bf16.mxu0 %v1532
      %1623 = vmatmul.mubr.bf16.gmra.mrb[0].mxu0 %v1488
      %v1624 = vpop.f32.mrb[0].mxu0
      %v1625 = vadd.f32 %v258, %v1624
      %v1626 = vpop.f32.mrb[0].mxu0
      %v1627 = vpop.f32.mrb[0].mxu0
      %v1628 = vadd.f32 %v258, %v1627
      %v1629 = vpop.f32.mrb[0].mxu0
      %1630 = vmatprep.mubr.bf16.mxu0 %v1535
      %1631 = vmatmul.mubr.bf16.gmra.mrb[0].mxu0 %v1490
      %v1632 = vpop.f32.mrb[0].mxu0
      %v1633 = vadd.f32 %v258, %v1632
      %v1634 = vpop.f32.mrb[0].mxu0
      %v1635 = vpop.f32.mrb[0].mxu0
      %v1636 = vadd.f32 %v258, %v1635
      %v1637 = vpop.f32.mrb[0].mxu0
      %1638 = vmatprep.mubr.bf16.mxu0 %v1538
      %1639 = vmatmul.mubr.bf16.gmra.mrb[0].mxu0 %v1492
      %v1640 = vpop.f32.mrb[0].mxu0
      %v1641 = vadd.f32 %v258, %v1640
      %v1642 = vpop.f32.mrb[0].mxu0
      %v1643 = vpop.f32.mrb[0].mxu0
      %v1644 = vadd.f32 %v258, %v1643
      %v1645 = vpop.f32.mrb[0].mxu0
      %1646 = vmatprep.mubr.bf16.mxu0 %v1541
      %1647 = vmatmul.mubr.bf16.gmra.mrb[0].mxu0 %v1494
      %v1648 = vpop.f32.mrb[0].mxu0
      %v1649 = vadd.f32 %v258, %v1648
      %v1650 = vpop.f32.mrb[0].mxu0
      %v1651 = vpop.f32.mrb[0].mxu0
      %v1652 = vadd.f32 %v258, %v1651
      %v1653 = vpop.f32.mrb[0].mxu0
      %1654 = vmatprep.mubr.bf16.mxu0 %v1544
      %1655 = vmatmul.mubr.bf16.gmra.mrb[0].mxu0 %v1496
      %v1656 = vpop.f32.mrb[0].mxu0
      %v1657 = vadd.f32 %v258, %v1656
      %v1658 = vpop.f32.mrb[0].mxu0
      %v1659 = vpop.f32.mrb[0].mxu0
      %v1660 = vadd.f32 %v258, %v1659
      %v1661 = vpop.f32.mrb[0].mxu0
      %1662 = vmatprep.mubr.bf16.mxu0 %v1547
      %1663 = vmatmul.mubr.bf16.gmra.mrb[0].mxu0 %v1498
      %v1664 = vpop.f32.mrb[0].mxu0
      %v1665 = vadd.f32 %v258, %v1664
      %v1666 = vpop.f32.mrb[0].mxu0
      %v1667 = vpop.f32.mrb[0].mxu0
      %v1668 = vadd.f32 %v258, %v1667
      %v1669 = vpop.f32.mrb[0].mxu0
      %1670 = vmatprep.mubr.bf16.mxu0 %v1550
      %1671 = vmatmul.mubr.bf16.gmra.mrb[0].mxu0 %v1500
      %v1672 = vpop.f32.mrb[0].mxu0
      %v1673 = vadd.f32 %v258, %v1672
      %v1674 = vpop.f32.mrb[0].mxu0
      %v1675 = vpop.f32.mrb[0].mxu0
      %v1676 = vadd.f32 %v258, %v1675
      %v1677 = vpop.f32.mrb[0].mxu0
      %1678 = vmatprep.mubr.bf16.mxu0 %v1553
      %1679 = vmatmul.mubr.bf16.gmra.mrb[0].mxu0 %v1502
      %v1680 = vpop.f32.mrb[0].mxu0
      %v1681 = vadd.f32 %v258, %v1680
      %v1682 = vpop.f32.mrb[0].mxu0
      %v1683 = vpop.f32.mrb[0].mxu0
      %v1684 = vadd.f32 %v258, %v1683
      %v1685 = vpop.f32.mrb[0].mxu0
      %1686 = vmatprep.mubr.bf16.mxu0 %v1556
      %1687 = vmatmul.mubr.bf16.gmra.mrb[0].mxu0 %v1504
      %v1688 = vpop.f32.mrb[0].mxu0
      %v1689 = vadd.f32 %v258, %v1688
      %v1690 = vpop.f32.mrb[0].mxu0
      %v1691 = vpop.f32.mrb[0].mxu0
      %v1692 = vadd.f32 %v258, %v1691
      %v1693 = vpop.f32.mrb[0].mxu0
      %1694 = vdwg.mxu0
      %v1695 = vmax.f32 %v1593, 0.0
      %v1696 = vmax.f32 %v1596, 0.0
      %v1697 = vmax.f32 %v1601, 0.0
      %v1698 = vmax.f32 %v1604, 0.0
      %v1699 = vmax.f32 %v1609, 0.0
      %v1700 = vmax.f32 %v1612, 0.0
      %v1701 = vmax.f32 %v1617, 0.0
      %v1702 = vmax.f32 %v1620, 0.0
      %v1703 = vmax.f32 %v1625, 0.0
      %v1704 = vmax.f32 %v1628, 0.0
      %v1705 = vmax.f32 %v1633, 0.0
      %v1706 = vmax.f32 %v1636, 0.0
      %v1707 = vmax.f32 %v1641, 0.0
      %v1708 = vmax.f32 %v1644, 0.0
      %v1709 = vmax.f32 %v1649, 0.0
      %v1710 = vmax.f32 %v1652, 0.0
      %v1711 = vmax.f32 %v1657, 0.0
      %v1712 = vmax.f32 %v1660, 0.0
      %v1713 = vmax.f32 %v1665, 0.0
      %v1714 = vmax.f32 %v1668, 0.0
      %v1715 = vmax.f32 %v1673, 0.0
      %v1716 = vmax.f32 %v1676, 0.0
      %v1717 = vmax.f32 %v1681, 0.0
      %v1718 = vmax.f32 %v1684, 0.0
      %v1719 = vmax.f32 %v1689, 0.0
      %v1720 = vmax.f32 %v1692, 0.0
      %v1721 = vmax.f32 %v1350, %v1695
      %v1722 = vmax.f32 %v1351, %v1696
      %v1723 = vmax.f32 %v1352, %v1697
      %v1724 = vmax.f32 %v1353, %v1698
      %v1725 = vmax.f32 %v1354, %v1699
      %v1726 = vmax.f32 %v1355, %v1700
      %v1727 = vmax.f32 %v1356, %v1701
      %v1728 = vmax.f32 %v1357, %v1702
      %v1729 = vmax.f32 %v1358, %v1703
      %v1730 = vmax.f32 %v1359, %v1704
      %v1731 = vmax.f32 %v1360, %v1705
      %v1732 = vmax.f32 %v1361, %v1706
      %v1733 = vmax.f32 %v1362, %v1707
      %v1734 = vmax.f32 %v1363, %v1708
      %v1735 = vmax.f32 %v1364, %v1709
      %v1736 = vmax.f32 %v1365, %v1710
      %v1737 = vmax.f32 %v1366, %v1711
      %v1738 = vmax.f32 %v1367, %v1712
      %v1739 = vmax.f32 %v1368, %v1713
      %v1740 = vmax.f32 %v1369, %v1714
      %v1741 = vmax.f32 %v1370, %v1715
      %v1742 = vmax.f32 %v1371, %v1716
      %v1743 = vmax.f32 %v1372, %v1717
      %v1744 = vmax.f32 %v1373, %v1718
      %v1745 = vmax.f32 %v1374, %v1719
      %v1746 = vmax.f32 %v1375, %v1720
      %v1747 = vld [vmem:[%s197 + $0x340] sm:$0xff]
      %v1748 = vld [vmem:[%s197 + $0x348] sm:$0xff]
      %v1749 = vld [vmem:[%s197 + $0x350] sm:$0xff]
      %v1750 = vld [vmem:[%s197 + $0x358] sm:$0xff]
      %v1751 = vld [vmem:[%s197 + $0x360] sm:$0xff]
      %v1752 = vld [vmem:[%s197 + $0x368] sm:$0xff]
      %v1753 = vld [vmem:[%s197 + $0x370] sm:$0xff]
      %v1754 = vld [vmem:[%s197 + $0x378] sm:$0xff]
      %v1755 = vld [vmem:[%s197 + $0x380] sm:$0xff]
      %v1756 = vld [vmem:[%s197 + $0x388] sm:$0xff]
      %v1757 = vld [vmem:[%s197 + $0x390] sm:$0xff]
      %v1758 = vld [vmem:[%s197 + $0x398] sm:$0xff]
      %v1759 = vld [vmem:[%s197 + $0x3a0] sm:$0xff]
      %v1760 = vld [vmem:[%s197 + $0x3a8] sm:$0xff]
      %v1761 = vld [vmem:[%s197 + $0x3b0] sm:$0xff]
      %v1762 = vld [vmem:[%s197 + $0x3b8] sm:$0xff]
      %v1763 = vld [vmem:[%s197 + $0x3c0] sm:$0xff]
      %v1764 = vld [vmem:[%s197 + $0x3c8] sm:$0xff]
      %v1765 = vld [vmem:[%s197 + $0x3d0] sm:$0xff]
      %v1766 = vld [vmem:[%s197 + $0x3d8] sm:$0xff]
      %v1767 = vld [vmem:[%s197 + $0x3e0] sm:$0xff]
      %v1768 = vld [vmem:[%s197 + $0x3e8] sm:$0xff]
      %v1769 = vld [vmem:[%s197 + $0x3f0] sm:$0xff]
      %v1770 = vld [vmem:[%s197 + $0x3f8] sm:$0xff]
      %v1771 = vld [vmem:[%s197 + $0x400] sm:$0xff]
      %v1772 = vld [vmem:[%s197 + $0x408] sm:$0xff]
      %v1799 = vunpack.c.l.b16 %v1747
      %v1800 = vunpack.c.h.b16 %v1747
      %v1801 = vunpack.c.l.b16 %v1748
      %v1802 = vunpack.c.h.b16 %v1748
      %v1803 = vunpack.c.l.b16 %v1749
      %v1804 = vunpack.c.h.b16 %v1749
      %v1805 = vunpack.c.l.b16 %v1750
      %v1806 = vunpack.c.h.b16 %v1750
      %v1807 = vunpack.c.l.b16 %v1751
      %v1808 = vunpack.c.h.b16 %v1751
      %v1809 = vunpack.c.l.b16 %v1752
      %v1810 = vunpack.c.h.b16 %v1752
      %v1811 = vunpack.c.l.b16 %v1753
      %v1812 = vunpack.c.h.b16 %v1753
      %v1813 = vunpack.c.l.b16 %v1754
      %v1814 = vunpack.c.h.b16 %v1754
      %v1815 = vunpack.c.l.b16 %v1755
      %v1816 = vunpack.c.h.b16 %v1755
      %v1817 = vunpack.c.l.b16 %v1756
      %v1818 = vunpack.c.h.b16 %v1756
      %v1819 = vunpack.c.l.b16 %v1757
      %v1820 = vunpack.c.h.b16 %v1757
      %v1821 = vunpack.c.l.b16 %v1758
      %v1822 = vunpack.c.h.b16 %v1758
      %v1823 = vunpack.c.l.b16 %v1759
      %v1824 = vunpack.c.h.b16 %v1759
      %v1825 = vunpack.c.l.b16 %v1760
      %v1826 = vunpack.c.h.b16 %v1760
      %v1827 = vunpack.c.l.b16 %v1761
      %v1828 = vunpack.c.h.b16 %v1761
      %v1829 = vunpack.c.l.b16 %v1762
      %v1830 = vunpack.c.h.b16 %v1762
      %v1831 = vunpack.c.l.b16 %v1763
      %v1832 = vunpack.c.h.b16 %v1763
      %v1833 = vunpack.c.l.b16 %v1764
      %v1834 = vunpack.c.h.b16 %v1764
      %v1835 = vunpack.c.l.b16 %v1765
      %v1836 = vunpack.c.h.b16 %v1765
      %v1837 = vunpack.c.l.b16 %v1766
      %v1838 = vunpack.c.h.b16 %v1766
      %v1839 = vunpack.c.l.b16 %v1767
      %v1840 = vunpack.c.h.b16 %v1767
      %v1841 = vunpack.c.l.b16 %v1768
      %v1842 = vunpack.c.h.b16 %v1768
      %v1843 = vunpack.c.l.b16 %v1769
      %v1844 = vunpack.c.h.b16 %v1769
      %v1845 = vunpack.c.l.b16 %v1770
      %v1846 = vunpack.c.h.b16 %v1770
      %v1847 = vunpack.c.l.b16 %v1771
      %v1848 = vunpack.c.h.b16 %v1771
      %v1849 = vunpack.c.l.b16 %v1772
      %v1850 = vunpack.c.h.b16 %v1772
      %v1851 = vpack.c.b16 %v1801, %v1799
      %v1852 = vpack.c.b16 %v1802, %v1800
      %v1853 = vpack.c.b16 %v1805, %v1803
      %v1854 = vpack.c.b16 %v1806, %v1804
      %v1855 = vpack.c.b16 %v1809, %v1807
      %v1856 = vpack.c.b16 %v1810, %v1808
      %v1857 = vpack.c.b16 %v1813, %v1811
      %v1858 = vpack.c.b16 %v1814, %v1812
      %v1859 = vpack.c.b16 %v1817, %v1815
      %v1860 = vpack.c.b16 %v1818, %v1816
      %v1861 = vpack.c.b16 %v1821, %v1819
      %v1862 = vpack.c.b16 %v1822, %v1820
      %v1863 = vpack.c.b16 %v1825, %v1823
      %v1864 = vpack.c.b16 %v1826, %v1824
      %v1865 = vpack.c.b16 %v1829, %v1827
      %v1866 = vpack.c.b16 %v1830, %v1828
      %v1867 = vpack.c.b16 %v1833, %v1831
      %v1868 = vpack.c.b16 %v1834, %v1832
      %v1869 = vpack.c.b16 %v1837, %v1835
      %v1870 = vpack.c.b16 %v1838, %v1836
      %v1871 = vpack.c.b16 %v1841, %v1839
      %v1872 = vpack.c.b16 %v1842, %v1840
      %v1873 = vpack.c.b16 %v1845, %v1843
      %v1874 = vpack.c.b16 %v1846, %v1844
      %v1875 = vpack.c.b16 %v1849, %v1847
      %v1876 = vpack.c.b16 %v1850, %v1848
      %v1891 = vsel %vm431, %v1852, 0
      %v1894 = vsel %vm431, %v1854, 0
      %v1897 = vsel %vm431, %v1856, 0
      %v1900 = vsel %vm431, %v1858, 0
      %v1903 = vsel %vm431, %v1860, 0
      %v1906 = vsel %vm431, %v1862, 0
      %v1909 = vsel %vm431, %v1864, 0
      %v1912 = vsel %vm431, %v1866, 0
      %v1915 = vsel %vm431, %v1868, 0
      %v1918 = vsel %vm431, %v1870, 0
      %v1921 = vsel %vm431, %v1872, 0
      %v1924 = vsel %vm431, %v1874, 0
      %v1927 = vsel %vm431, %v1876, 0
      %1929 = vmatprep.subr.bf16.mxu0 0
      %1930 = vmatpush1.bf16.msra.mxu0 %v413
      %1931 = vmatprep.subr.bf16.mxu0 0
      %1932 = vmatpush1.bf16.msra.mxu0 %v414
      %1933 = vmatprep.subr.bf16.mxu0 0
      %1934 = vmatpush1.bf16.msra.mxu0 %v415
      %1935 = vmatprep.subr.bf16.mxu0 0
      %1936 = vmatpush1.bf16.msra.mxu0 %v416
      %1937 = vmatprep.subr.bf16.mxu0 0
      %1938 = vmatpush1.bf16.msra.mxu0 %v417
      %1939 = vmatprep.subr.bf16.mxu0 0
      %1940 = vmatpush1.bf16.msra.mxu0 %v418
      %1941 = vmatprep.subr.bf16.mxu0 0
      %1942 = vmatpush1.bf16.msra.mxu0 %v419
      %1943 = vmatprep.subr.bf16.mxu0 0
      %1944 = vmatpush1.bf16.msra.mxu0 %v420
      %1945 = vmatprep.subr.bf16.mxu0 0
      %1946 = vmatpush1.bf16.msra.mxu0 %v421
      %1947 = vmatprep.subr.bf16.mxu0 0
      %1948 = vmatpush1.bf16.msra.mxu0 0
      %1949 = vmatprep.subr.bf16.mxu0 0
      %1950 = vmatpush1.bf16.msra.mxu0 0
      %1951 = vmatprep.subr.bf16.mxu0 0
      %1952 = vmatpush1.bf16.msra.mxu0 0
      %1953 = vmatprep.subr.bf16.mxu0 0
      %1954 = vmatpush1.bf16.msra.mxu0 0
      %1955 = vmatprep.subr.bf16.mxu0 0
      %1956 = vmatpush1.bf16.msra.mxu0 0
      %1957 = vmatprep.subr.bf16.mxu0 0
      %1958 = vmatpush1.bf16.msra.mxu0 0
      %1959 = vmatprep.subr.bf16.mxu0 0
      %1960 = vmatpush1.bf16.msra.mxu0 0
      %1961 = vmatprep.mubr.bf16.mxu0 %v1891
      %1962 = vmatmul.mubr.bf16.gmra.mrb[0].mxu0 %v1851
      %v1963 = vpop.f32.mrb[0].mxu0
      %v1964 = vadd.f32 %v258, %v1963
      %v1965 = vpop.f32.mrb[0].mxu0
      %v1966 = vpop.f32.mrb[0].mxu0
      %v1967 = vadd.f32 %v258, %v1966
      %v1968 = vpop.f32.mrb[0].mxu0
      %1969 = vmatprep.mubr.bf16.mxu0 %v1894
      %1970 = vmatmul.mubr.bf16.gmra.mrb[0].mxu0 %v1853
      %v1971 = vpop.f32.mrb[0].mxu0
      %v1972 = vadd.f32 %v258, %v1971
      %v1973 = vpop.f32.mrb[0].mxu0
      %v1974 = vpop.f32.mrb[0].mxu0
      %v1975 = vadd.f32 %v258, %v1974
      %v1976 = vpop.f32.mrb[0].mxu0
      %1977 = vmatprep.mubr.bf16.mxu0 %v1897
      %1978 = vmatmul.mubr.bf16.gmra.mrb[0].mxu0 %v1855
      %v1979 = vpop.f32.mrb[0].mxu0
      %v1980 = vadd.f32 %v258, %v1979
      %v1981 = vpop.f32.mrb[0].mxu0
      %v1982 = vpop.f32.mrb[0].mxu0
      %v1983 = vadd.f32 %v258, %v1982
      %v1984 = vpop.f32.mrb[0].mxu0
      %1985 = vmatprep.mubr.bf16.mxu0 %v1900
      %1986 = vmatmul.mubr.bf16.gmra.mrb[0].mxu0 %v1857
      %v1987 = vpop.f32.mrb[0].mxu0
      %v1988 = vadd.f32 %v258, %v1987
      %v1989 = vpop.f32.mrb[0].mxu0
      %v1990 = vpop.f32.mrb[0].mxu0
      %v1991 = vadd.f32 %v258, %v1990
      %v1992 = vpop.f32.mrb[0].mxu0
      %1993 = vmatprep.mubr.bf16.mxu0 %v1903
      %1994 = vmatmul.mubr.bf16.gmra.mrb[0].mxu0 %v1859
      %v1995 = vpop.f32.mrb[0].mxu0
      %v1996 = vadd.f32 %v258, %v1995
      %v1997 = vpop.f32.mrb[0].mxu0
      %v1998 = vpop.f32.mrb[0].mxu0
      %v1999 = vadd.f32 %v258, %v1998
      %v2000 = vpop.f32.mrb[0].mxu0
      %2001 = vmatprep.mubr.bf16.mxu0 %v1906
      %2002 = vmatmul.mubr.bf16.gmra.mrb[0].mxu0 %v1861
      %v2003 = vpop.f32.mrb[0].mxu0
      %v2004 = vadd.f32 %v258, %v2003
      %v2005 = vpop.f32.mrb[0].mxu0
      %v2006 = vpop.f32.mrb[0].mxu0
      %v2007 = vadd.f32 %v258, %v2006
      %v2008 = vpop.f32.mrb[0].mxu0
      %2009 = vmatprep.mubr.bf16.mxu0 %v1909
      %2010 = vmatmul.mubr.bf16.gmra.mrb[0].mxu0 %v1863
      %v2011 = vpop.f32.mrb[0].mxu0
      %v2012 = vadd.f32 %v258, %v2011
      %v2013 = vpop.f32.mrb[0].mxu0
      %v2014 = vpop.f32.mrb[0].mxu0
      %v2015 = vadd.f32 %v258, %v2014
      %v2016 = vpop.f32.mrb[0].mxu0
      %2017 = vmatprep.mubr.bf16.mxu0 %v1912
      %2018 = vmatmul.mubr.bf16.gmra.mrb[0].mxu0 %v1865
      %v2019 = vpop.f32.mrb[0].mxu0
      %v2020 = vadd.f32 %v258, %v2019
      %v2021 = vpop.f32.mrb[0].mxu0
      %v2022 = vpop.f32.mrb[0].mxu0
      %v2023 = vadd.f32 %v258, %v2022
      %v2024 = vpop.f32.mrb[0].mxu0
      %2025 = vmatprep.mubr.bf16.mxu0 %v1915
      %2026 = vmatmul.mubr.bf16.gmra.mrb[0].mxu0 %v1867
      %v2027 = vpop.f32.mrb[0].mxu0
      %v2028 = vadd.f32 %v258, %v2027
      %v2029 = vpop.f32.mrb[0].mxu0
      %v2030 = vpop.f32.mrb[0].mxu0
      %v2031 = vadd.f32 %v258, %v2030
      %v2032 = vpop.f32.mrb[0].mxu0
      %2033 = vmatprep.mubr.bf16.mxu0 %v1918
      %2034 = vmatmul.mubr.bf16.gmra.mrb[0].mxu0 %v1869
      %v2035 = vpop.f32.mrb[0].mxu0
      %v2036 = vadd.f32 %v258, %v2035
      %v2037 = vpop.f32.mrb[0].mxu0
      %v2038 = vpop.f32.mrb[0].mxu0
      %v2039 = vadd.f32 %v258, %v2038
      %v2040 = vpop.f32.mrb[0].mxu0
      %2041 = vmatprep.mubr.bf16.mxu0 %v1921
      %2042 = vmatmul.mubr.bf16.gmra.mrb[0].mxu0 %v1871
      %v2043 = vpop.f32.mrb[0].mxu0
      %v2044 = vadd.f32 %v258, %v2043
      %v2045 = vpop.f32.mrb[0].mxu0
      %v2046 = vpop.f32.mrb[0].mxu0
      %v2047 = vadd.f32 %v258, %v2046
      %v2048 = vpop.f32.mrb[0].mxu0
      %2049 = vmatprep.mubr.bf16.mxu0 %v1924
      %2050 = vmatmul.mubr.bf16.gmra.mrb[0].mxu0 %v1873
      %v2051 = vpop.f32.mrb[0].mxu0
      %v2052 = vadd.f32 %v258, %v2051
      %v2053 = vpop.f32.mrb[0].mxu0
      %v2054 = vpop.f32.mrb[0].mxu0
      %v2055 = vadd.f32 %v258, %v2054
      %v2056 = vpop.f32.mrb[0].mxu0
      %2057 = vmatprep.mubr.bf16.mxu0 %v1927
      %2058 = vmatmul.mubr.bf16.gmra.mrb[0].mxu0 %v1875
      %v2059 = vpop.f32.mrb[0].mxu0
      %v2060 = vadd.f32 %v258, %v2059
      %v2061 = vpop.f32.mrb[0].mxu0
      %v2062 = vpop.f32.mrb[0].mxu0
      %v2063 = vadd.f32 %v258, %v2062
      %v2064 = vpop.f32.mrb[0].mxu0
      %2065 = vdwg.mxu0
      %v2066 = vmax.f32 %v1964, 0.0
      %v2067 = vmax.f32 %v1967, 0.0
      %v2068 = vmax.f32 %v1972, 0.0
      %v2069 = vmax.f32 %v1975, 0.0
      %v2070 = vmax.f32 %v1980, 0.0
      %v2071 = vmax.f32 %v1983, 0.0
      %v2072 = vmax.f32 %v1988, 0.0
      %v2073 = vmax.f32 %v1991, 0.0
      %v2074 = vmax.f32 %v1996, 0.0
      %v2075 = vmax.f32 %v1999, 0.0
      %v2076 = vmax.f32 %v2004, 0.0
      %v2077 = vmax.f32 %v2007, 0.0
      %v2078 = vmax.f32 %v2012, 0.0
      %v2079 = vmax.f32 %v2015, 0.0
      %v2080 = vmax.f32 %v2020, 0.0
      %v2081 = vmax.f32 %v2023, 0.0
      %v2082 = vmax.f32 %v2028, 0.0
      %v2083 = vmax.f32 %v2031, 0.0
      %v2084 = vmax.f32 %v2036, 0.0
      %v2085 = vmax.f32 %v2039, 0.0
      %v2086 = vmax.f32 %v2044, 0.0
      %v2087 = vmax.f32 %v2047, 0.0
      %v2088 = vmax.f32 %v2052, 0.0
      %v2089 = vmax.f32 %v2055, 0.0
      %v2090 = vmax.f32 %v2060, 0.0
      %v2091 = vmax.f32 %v2063, 0.0
      %v2092 = vmax.f32 %v1721, %v2066
      %v2093 = vmax.f32 %v1722, %v2067
      %v2094 = vmax.f32 %v1723, %v2068
      %v2095 = vmax.f32 %v1724, %v2069
      %v2096 = vmax.f32 %v1725, %v2070
      %v2097 = vmax.f32 %v1726, %v2071
      %v2098 = vmax.f32 %v1727, %v2072
      %v2099 = vmax.f32 %v1728, %v2073
      %v2100 = vmax.f32 %v1729, %v2074
      %v2101 = vmax.f32 %v1730, %v2075
      %v2102 = vmax.f32 %v1731, %v2076
      %v2103 = vmax.f32 %v1732, %v2077
      %v2104 = vmax.f32 %v1733, %v2078
      %v2105 = vmax.f32 %v1734, %v2079
      %v2106 = vmax.f32 %v1735, %v2080
      %v2107 = vmax.f32 %v1736, %v2081
      %v2108 = vmax.f32 %v1737, %v2082
      %v2109 = vmax.f32 %v1738, %v2083
      %v2110 = vmax.f32 %v1739, %v2084
      %v2111 = vmax.f32 %v1740, %v2085
      %v2112 = vmax.f32 %v1741, %v2086
      %v2113 = vmax.f32 %v1742, %v2087
      %v2114 = vmax.f32 %v1743, %v2088
      %v2115 = vmax.f32 %v1744, %v2089
      %v2116 = vmax.f32 %v1745, %v2090
      %v2117 = vmax.f32 %v1746, %v2091
      %v2118 = vld [vmem:[%s197 + $0x410] sm:$0xff]
      %v2119 = vld [vmem:[%s197 + $0x418] sm:$0xff]
      %v2120 = vld [vmem:[%s197 + $0x420] sm:$0xff]
      %v2121 = vld [vmem:[%s197 + $0x428] sm:$0xff]
      %v2122 = vld [vmem:[%s197 + $0x430] sm:$0xff]
      %v2123 = vld [vmem:[%s197 + $0x438] sm:$0xff]
      %v2124 = vld [vmem:[%s197 + $0x440] sm:$0xff]
      %v2125 = vld [vmem:[%s197 + $0x448] sm:$0xff]
      %v2126 = vld [vmem:[%s197 + $0x450] sm:$0xff]
      %v2127 = vld [vmem:[%s197 + $0x458] sm:$0xff]
      %v2128 = vld [vmem:[%s197 + $0x460] sm:$0xff]
      %v2129 = vld [vmem:[%s197 + $0x468] sm:$0xff]
      %v2130 = vld [vmem:[%s197 + $0x470] sm:$0xff]
      %v2131 = vld [vmem:[%s197 + $0x478] sm:$0xff]
      %v2132 = vld [vmem:[%s197 + $0x480] sm:$0xff]
      %v2133 = vld [vmem:[%s197 + $0x488] sm:$0xff]
      %v2134 = vld [vmem:[%s197 + $0x490] sm:$0xff]
      %v2135 = vld [vmem:[%s197 + $0x498] sm:$0xff]
      %v2136 = vld [vmem:[%s197 + $0x4a0] sm:$0xff]
      %v2137 = vld [vmem:[%s197 + $0x4a8] sm:$0xff]
      %v2138 = vld [vmem:[%s197 + $0x4b0] sm:$0xff]
      %v2139 = vld [vmem:[%s197 + $0x4b8] sm:$0xff]
      %v2140 = vld [vmem:[%s197 + $0x4c0] sm:$0xff]
      %v2141 = vld [vmem:[%s197 + $0x4c8] sm:$0xff]
      %v2142 = vld [vmem:[%s197 + $0x4d0] sm:$0xff]
      %v2143 = vld [vmem:[%s197 + $0x4d8] sm:$0xff]
      %v2170 = vunpack.c.l.b16 %v2118
      %v2171 = vunpack.c.h.b16 %v2118
      %v2172 = vunpack.c.l.b16 %v2119
      %v2173 = vunpack.c.h.b16 %v2119
      %v2174 = vunpack.c.l.b16 %v2120
      %v2175 = vunpack.c.h.b16 %v2120
      %v2176 = vunpack.c.l.b16 %v2121
      %v2177 = vunpack.c.h.b16 %v2121
      %v2178 = vunpack.c.l.b16 %v2122
      %v2179 = vunpack.c.h.b16 %v2122
      %v2180 = vunpack.c.l.b16 %v2123
      %v2181 = vunpack.c.h.b16 %v2123
      %v2182 = vunpack.c.l.b16 %v2124
      %v2183 = vunpack.c.h.b16 %v2124
      %v2184 = vunpack.c.l.b16 %v2125
      %v2185 = vunpack.c.h.b16 %v2125
      %v2186 = vunpack.c.l.b16 %v2126
      %v2187 = vunpack.c.h.b16 %v2126
      %v2188 = vunpack.c.l.b16 %v2127
      %v2189 = vunpack.c.h.b16 %v2127
      %v2190 = vunpack.c.l.b16 %v2128
      %v2191 = vunpack.c.h.b16 %v2128
      %v2192 = vunpack.c.l.b16 %v2129
      %v2193 = vunpack.c.h.b16 %v2129
      %v2194 = vunpack.c.l.b16 %v2130
      %v2195 = vunpack.c.h.b16 %v2130
      %v2196 = vunpack.c.l.b16 %v2131
      %v2197 = vunpack.c.h.b16 %v2131
      %v2198 = vunpack.c.l.b16 %v2132
      %v2199 = vunpack.c.h.b16 %v2132
      %v2200 = vunpack.c.l.b16 %v2133
      %v2201 = vunpack.c.h.b16 %v2133
      %v2202 = vunpack.c.l.b16 %v2134
      %v2203 = vunpack.c.h.b16 %v2134
      %v2204 = vunpack.c.l.b16 %v2135
      %v2205 = vunpack.c.h.b16 %v2135
      %v2206 = vunpack.c.l.b16 %v2136
      %v2207 = vunpack.c.h.b16 %v2136
      %v2208 = vunpack.c.l.b16 %v2137
      %v2209 = vunpack.c.h.b16 %v2137
      %v2210 = vunpack.c.l.b16 %v2138
      %v2211 = vunpack.c.h.b16 %v2138
      %v2212 = vunpack.c.l.b16 %v2139
      %v2213 = vunpack.c.h.b16 %v2139
      %v2214 = vunpack.c.l.b16 %v2140
      %v2215 = vunpack.c.h.b16 %v2140
      %v2216 = vunpack.c.l.b16 %v2141
      %v2217 = vunpack.c.h.b16 %v2141
      %v2218 = vunpack.c.l.b16 %v2142
      %v2219 = vunpack.c.h.b16 %v2142
      %v2220 = vunpack.c.l.b16 %v2143
      %v2221 = vunpack.c.h.b16 %v2143
      %v2222 = vpack.c.b16 %v2172, %v2170
      %v2223 = vpack.c.b16 %v2173, %v2171
      %v2224 = vpack.c.b16 %v2176, %v2174
      %v2225 = vpack.c.b16 %v2177, %v2175
      %v2226 = vpack.c.b16 %v2180, %v2178
      %v2227 = vpack.c.b16 %v2181, %v2179
      %v2228 = vpack.c.b16 %v2184, %v2182
      %v2229 = vpack.c.b16 %v2185, %v2183
      %v2230 = vpack.c.b16 %v2188, %v2186
      %v2231 = vpack.c.b16 %v2189, %v2187
      %v2232 = vpack.c.b16 %v2192, %v2190
      %v2233 = vpack.c.b16 %v2193, %v2191
      %v2234 = vpack.c.b16 %v2196, %v2194
      %v2235 = vpack.c.b16 %v2197, %v2195
      %v2236 = vpack.c.b16 %v2200, %v2198
      %v2237 = vpack.c.b16 %v2201, %v2199
      %v2238 = vpack.c.b16 %v2204, %v2202
      %v2239 = vpack.c.b16 %v2205, %v2203
      %v2240 = vpack.c.b16 %v2208, %v2206
      %v2241 = vpack.c.b16 %v2209, %v2207
      %v2242 = vpack.c.b16 %v2212, %v2210
      %v2243 = vpack.c.b16 %v2213, %v2211
      %v2244 = vpack.c.b16 %v2216, %v2214
      %v2245 = vpack.c.b16 %v2217, %v2215
      %v2246 = vpack.c.b16 %v2220, %v2218
      %v2247 = vpack.c.b16 %v2221, %v2219
      %v2262 = vsel %vm431, %v2223, 0
      %v2265 = vsel %vm431, %v2225, 0
      %v2268 = vsel %vm431, %v2227, 0
      %v2271 = vsel %vm431, %v2229, 0
      %v2274 = vsel %vm431, %v2231, 0
      %v2277 = vsel %vm431, %v2233, 0
      %v2280 = vsel %vm431, %v2235, 0
      %v2283 = vsel %vm431, %v2237, 0
      %v2286 = vsel %vm431, %v2239, 0
      %v2289 = vsel %vm431, %v2241, 0
      %v2292 = vsel %vm431, %v2243, 0
      %v2295 = vsel %vm431, %v2245, 0
      %v2298 = vsel %vm431, %v2247, 0
      %2300 = vmatprep.subr.bf16.mxu0 0
      %2301 = vmatpush1.bf16.msra.mxu0 %v413
      %2302 = vmatprep.subr.bf16.mxu0 0
      %2303 = vmatpush1.bf16.msra.mxu0 %v414
      %2304 = vmatprep.subr.bf16.mxu0 0
      %2305 = vmatpush1.bf16.msra.mxu0 %v415
      %2306 = vmatprep.subr.bf16.mxu0 0
      %2307 = vmatpush1.bf16.msra.mxu0 %v416
      %2308 = vmatprep.subr.bf16.mxu0 0
      %2309 = vmatpush1.bf16.msra.mxu0 %v417
      %2310 = vmatprep.subr.bf16.mxu0 0
      %2311 = vmatpush1.bf16.msra.mxu0 %v418
      %2312 = vmatprep.subr.bf16.mxu0 0
      %2313 = vmatpush1.bf16.msra.mxu0 %v419
      %2314 = vmatprep.subr.bf16.mxu0 0
      %2315 = vmatpush1.bf16.msra.mxu0 %v420
      %2316 = vmatprep.subr.bf16.mxu0 0
      %2317 = vmatpush1.bf16.msra.mxu0 %v421
      %2318 = vmatprep.subr.bf16.mxu0 0
      %2319 = vmatpush1.bf16.msra.mxu0 0
      %2320 = vmatprep.subr.bf16.mxu0 0
      %2321 = vmatpush1.bf16.msra.mxu0 0
      %2322 = vmatprep.subr.bf16.mxu0 0
      %2323 = vmatpush1.bf16.msra.mxu0 0
      %2324 = vmatprep.subr.bf16.mxu0 0
      %2325 = vmatpush1.bf16.msra.mxu0 0
      %2326 = vmatprep.subr.bf16.mxu0 0
      %2327 = vmatpush1.bf16.msra.mxu0 0
      %2328 = vmatprep.subr.bf16.mxu0 0
      %2329 = vmatpush1.bf16.msra.mxu0 0
      %2330 = vmatprep.subr.bf16.mxu0 0
      %2331 = vmatpush1.bf16.msra.mxu0 0
      %2332 = vmatprep.mubr.bf16.mxu0 %v2262
      %2333 = vmatmul.mubr.bf16.gmra.mrb[0].mxu0 %v2222
      %v2334 = vpop.f32.mrb[0].mxu0
      %v2335 = vadd.f32 %v258, %v2334
      %v2336 = vpop.f32.mrb[0].mxu0
      %v2337 = vpop.f32.mrb[0].mxu0
      %v2338 = vadd.f32 %v258, %v2337
      %v2339 = vpop.f32.mrb[0].mxu0
      %2340 = vmatprep.mubr.bf16.mxu0 %v2265
      %2341 = vmatmul.mubr.bf16.gmra.mrb[0].mxu0 %v2224
      %v2342 = vpop.f32.mrb[0].mxu0
      %v2343 = vadd.f32 %v258, %v2342
      %v2344 = vpop.f32.mrb[0].mxu0
      %v2345 = vpop.f32.mrb[0].mxu0
      %v2346 = vadd.f32 %v258, %v2345
      %v2347 = vpop.f32.mrb[0].mxu0
      %2348 = vmatprep.mubr.bf16.mxu0 %v2268
      %2349 = vmatmul.mubr.bf16.gmra.mrb[0].mxu0 %v2226
      %v2350 = vpop.f32.mrb[0].mxu0
      %v2351 = vadd.f32 %v258, %v2350
      %v2352 = vpop.f32.mrb[0].mxu0
      %v2353 = vpop.f32.mrb[0].mxu0
      %v2354 = vadd.f32 %v258, %v2353
      %v2355 = vpop.f32.mrb[0].mxu0
      %2356 = vmatprep.mubr.bf16.mxu0 %v2271
      %2357 = vmatmul.mubr.bf16.gmra.mrb[0].mxu0 %v2228
      %v2358 = vpop.f32.mrb[0].mxu0
      %v2359 = vadd.f32 %v258, %v2358
      %v2360 = vpop.f32.mrb[0].mxu0
      %v2361 = vpop.f32.mrb[0].mxu0
      %v2362 = vadd.f32 %v258, %v2361
      %v2363 = vpop.f32.mrb[0].mxu0
      %2364 = vmatprep.mubr.bf16.mxu0 %v2274
      %2365 = vmatmul.mubr.bf16.gmra.mrb[0].mxu0 %v2230
      %v2366 = vpop.f32.mrb[0].mxu0
      %v2367 = vadd.f32 %v258, %v2366
      %v2368 = vpop.f32.mrb[0].mxu0
      %v2369 = vpop.f32.mrb[0].mxu0
      %v2370 = vadd.f32 %v258, %v2369
      %v2371 = vpop.f32.mrb[0].mxu0
      %2372 = vmatprep.mubr.bf16.mxu0 %v2277
      %2373 = vmatmul.mubr.bf16.gmra.mrb[0].mxu0 %v2232
      %v2374 = vpop.f32.mrb[0].mxu0
      %v2375 = vadd.f32 %v258, %v2374
      %v2376 = vpop.f32.mrb[0].mxu0
      %v2377 = vpop.f32.mrb[0].mxu0
      %v2378 = vadd.f32 %v258, %v2377
      %v2379 = vpop.f32.mrb[0].mxu0
      %2380 = vmatprep.mubr.bf16.mxu0 %v2280
      %2381 = vmatmul.mubr.bf16.gmra.mrb[0].mxu0 %v2234
      %v2382 = vpop.f32.mrb[0].mxu0
      %v2383 = vadd.f32 %v258, %v2382
      %v2384 = vpop.f32.mrb[0].mxu0
      %v2385 = vpop.f32.mrb[0].mxu0
      %v2386 = vadd.f32 %v258, %v2385
      %v2387 = vpop.f32.mrb[0].mxu0
      %2388 = vmatprep.mubr.bf16.mxu0 %v2283
      %2389 = vmatmul.mubr.bf16.gmra.mrb[0].mxu0 %v2236
      %v2390 = vpop.f32.mrb[0].mxu0
      %v2391 = vadd.f32 %v258, %v2390
      %v2392 = vpop.f32.mrb[0].mxu0
      %v2393 = vpop.f32.mrb[0].mxu0
      %v2394 = vadd.f32 %v258, %v2393
      %v2395 = vpop.f32.mrb[0].mxu0
      %2396 = vmatprep.mubr.bf16.mxu0 %v2286
      %2397 = vmatmul.mubr.bf16.gmra.mrb[0].mxu0 %v2238
      %v2398 = vpop.f32.mrb[0].mxu0
      %v2399 = vadd.f32 %v258, %v2398
      %v2400 = vpop.f32.mrb[0].mxu0
      %v2401 = vpop.f32.mrb[0].mxu0
      %v2402 = vadd.f32 %v258, %v2401
      %v2403 = vpop.f32.mrb[0].mxu0
      %2404 = vmatprep.mubr.bf16.mxu0 %v2289
      %2405 = vmatmul.mubr.bf16.gmra.mrb[0].mxu0 %v2240
      %v2406 = vpop.f32.mrb[0].mxu0
      %v2407 = vadd.f32 %v258, %v2406
      %v2408 = vpop.f32.mrb[0].mxu0
      %v2409 = vpop.f32.mrb[0].mxu0
      %v2410 = vadd.f32 %v258, %v2409
      %v2411 = vpop.f32.mrb[0].mxu0
      %2412 = vmatprep.mubr.bf16.mxu0 %v2292
      %2413 = vmatmul.mubr.bf16.gmra.mrb[0].mxu0 %v2242
      %v2414 = vpop.f32.mrb[0].mxu0
      %v2415 = vadd.f32 %v258, %v2414
      %v2416 = vpop.f32.mrb[0].mxu0
      %v2417 = vpop.f32.mrb[0].mxu0
      %v2418 = vadd.f32 %v258, %v2417
      %v2419 = vpop.f32.mrb[0].mxu0
      %2420 = vmatprep.mubr.bf16.mxu0 %v2295
      %2421 = vmatmul.mubr.bf16.gmra.mrb[0].mxu0 %v2244
      %v2422 = vpop.f32.mrb[0].mxu0
      %v2423 = vadd.f32 %v258, %v2422
      %v2424 = vpop.f32.mrb[0].mxu0
      %v2425 = vpop.f32.mrb[0].mxu0
      %v2426 = vadd.f32 %v258, %v2425
      %v2427 = vpop.f32.mrb[0].mxu0
      %2428 = vmatprep.mubr.bf16.mxu0 %v2298
      %2429 = vmatmul.mubr.bf16.gmra.mrb[0].mxu0 %v2246
      %v2430 = vpop.f32.mrb[0].mxu0
      %v2431 = vadd.f32 %v258, %v2430
      %v2432 = vpop.f32.mrb[0].mxu0
      %v2433 = vpop.f32.mrb[0].mxu0
      %v2434 = vadd.f32 %v258, %v2433
      %v2435 = vpop.f32.mrb[0].mxu0
      %2436 = vdwg.mxu0
      %v2437 = vmax.f32 %v2335, 0.0
      %v2438 = vmax.f32 %v2338, 0.0
      %v2439 = vmax.f32 %v2343, 0.0
      %v2440 = vmax.f32 %v2346, 0.0
      %v2441 = vmax.f32 %v2351, 0.0
      %v2442 = vmax.f32 %v2354, 0.0
      %v2443 = vmax.f32 %v2359, 0.0
      %v2444 = vmax.f32 %v2362, 0.0
      %v2445 = vmax.f32 %v2367, 0.0
      %v2446 = vmax.f32 %v2370, 0.0
      %v2447 = vmax.f32 %v2375, 0.0
      %v2448 = vmax.f32 %v2378, 0.0
      %v2449 = vmax.f32 %v2383, 0.0
      %v2450 = vmax.f32 %v2386, 0.0
      %v2451 = vmax.f32 %v2391, 0.0
      %v2452 = vmax.f32 %v2394, 0.0
      %v2453 = vmax.f32 %v2399, 0.0
      %v2454 = vmax.f32 %v2402, 0.0
      %v2455 = vmax.f32 %v2407, 0.0
      %v2456 = vmax.f32 %v2410, 0.0
      %v2457 = vmax.f32 %v2415, 0.0
      %v2458 = vmax.f32 %v2418, 0.0
      %v2459 = vmax.f32 %v2423, 0.0
      %v2460 = vmax.f32 %v2426, 0.0
      %v2461 = vmax.f32 %v2431, 0.0
      %v2462 = vmax.f32 %v2434, 0.0
      %v2463 = vmax.f32 %v2092, %v2437
      %v2464 = vmax.f32 %v2093, %v2438
      %v2465 = vmax.f32 %v2094, %v2439
      %v2466 = vmax.f32 %v2095, %v2440
      %v2467 = vmax.f32 %v2096, %v2441
      %v2468 = vmax.f32 %v2097, %v2442
      %v2469 = vmax.f32 %v2098, %v2443
      %v2470 = vmax.f32 %v2099, %v2444
      %v2471 = vmax.f32 %v2100, %v2445
      %v2472 = vmax.f32 %v2101, %v2446
      %v2473 = vmax.f32 %v2102, %v2447
      %v2474 = vmax.f32 %v2103, %v2448
      %v2475 = vmax.f32 %v2104, %v2449
      %v2476 = vmax.f32 %v2105, %v2450
      %v2477 = vmax.f32 %v2106, %v2451
      %v2478 = vmax.f32 %v2107, %v2452
      %v2479 = vmax.f32 %v2108, %v2453
      %v2480 = vmax.f32 %v2109, %v2454
      %v2481 = vmax.f32 %v2110, %v2455
      %v2482 = vmax.f32 %v2111, %v2456
      %v2483 = vmax.f32 %v2112, %v2457
      %v2484 = vmax.f32 %v2113, %v2458
      %v2485 = vmax.f32 %v2114, %v2459
      %v2486 = vmax.f32 %v2115, %v2460
      %v2487 = vmax.f32 %v2116, %v2461
      %v2488 = vmax.f32 %v2117, %v2462
      %v2489 = vld [vmem:[%s197 + $0x4e0] sm:$0xff]
      %v2490 = vld [vmem:[%s197 + $0x4e8] sm:$0xff]
      %v2491 = vld [vmem:[%s197 + $0x4f0] sm:$0xff]
      %v2492 = vld [vmem:[%s197 + $0x4f8] sm:$0xff]
      %v2493 = vld [vmem:[%s197 + $0x500] sm:$0xff]
      %v2494 = vld [vmem:[%s197 + $0x508] sm:$0xff]
      %v2495 = vld [vmem:[%s197 + $0x510] sm:$0xff]
      %v2496 = vld [vmem:[%s197 + $0x518] sm:$0xff]
      %v2497 = vld [vmem:[%s197 + $0x520] sm:$0xff]
      %v2498 = vld [vmem:[%s197 + $0x528] sm:$0xff]
      %v2499 = vld [vmem:[%s197 + $0x530] sm:$0xff]
      %v2500 = vld [vmem:[%s197 + $0x538] sm:$0xff]
      %v2501 = vld [vmem:[%s197 + $0x540] sm:$0xff]
      %v2502 = vld [vmem:[%s197 + $0x548] sm:$0xff]
      %v2503 = vld [vmem:[%s197 + $0x550] sm:$0xff]
      %v2504 = vld [vmem:[%s197 + $0x558] sm:$0xff]
      %v2505 = vld [vmem:[%s197 + $0x560] sm:$0xff]
      %v2506 = vld [vmem:[%s197 + $0x568] sm:$0xff]
      %v2507 = vld [vmem:[%s197 + $0x570] sm:$0xff]
      %v2508 = vld [vmem:[%s197 + $0x578] sm:$0xff]
      %v2509 = vld [vmem:[%s197 + $0x580] sm:$0xff]
      %v2510 = vld [vmem:[%s197 + $0x588] sm:$0xff]
      %v2511 = vld [vmem:[%s197 + $0x590] sm:$0xff]
      %v2512 = vld [vmem:[%s197 + $0x598] sm:$0xff]
      %v2513 = vld [vmem:[%s197 + $0x5a0] sm:$0xff]
      %v2514 = vld [vmem:[%s197 + $0x5a8] sm:$0xff]
      %v2541 = vunpack.c.l.b16 %v2489
      %v2542 = vunpack.c.h.b16 %v2489
      %v2543 = vunpack.c.l.b16 %v2490
      %v2544 = vunpack.c.h.b16 %v2490
      %v2545 = vunpack.c.l.b16 %v2491
      %v2546 = vunpack.c.h.b16 %v2491
      %v2547 = vunpack.c.l.b16 %v2492
      %v2548 = vunpack.c.h.b16 %v2492
      %v2549 = vunpack.c.l.b16 %v2493
      %v2550 = vunpack.c.h.b16 %v2493
      %v2551 = vunpack.c.l.b16 %v2494
      %v2552 = vunpack.c.h.b16 %v2494
      %v2553 = vunpack.c.l.b16 %v2495
      %v2554 = vunpack.c.h.b16 %v2495
      %v2555 = vunpack.c.l.b16 %v2496
      %v2556 = vunpack.c.h.b16 %v2496
      %v2557 = vunpack.c.l.b16 %v2497
      %v2558 = vunpack.c.h.b16 %v2497
      %v2559 = vunpack.c.l.b16 %v2498
      %v2560 = vunpack.c.h.b16 %v2498
      %v2561 = vunpack.c.l.b16 %v2499
      %v2562 = vunpack.c.h.b16 %v2499
      %v2563 = vunpack.c.l.b16 %v2500
      %v2564 = vunpack.c.h.b16 %v2500
      %v2565 = vunpack.c.l.b16 %v2501
      %v2566 = vunpack.c.h.b16 %v2501
      %v2567 = vunpack.c.l.b16 %v2502
      %v2568 = vunpack.c.h.b16 %v2502
      %v2569 = vunpack.c.l.b16 %v2503
      %v2570 = vunpack.c.h.b16 %v2503
      %v2571 = vunpack.c.l.b16 %v2504
      %v2572 = vunpack.c.h.b16 %v2504
      %v2573 = vunpack.c.l.b16 %v2505
      %v2574 = vunpack.c.h.b16 %v2505
      %v2575 = vunpack.c.l.b16 %v2506
      %v2576 = vunpack.c.h.b16 %v2506
      %v2577 = vunpack.c.l.b16 %v2507
      %v2578 = vunpack.c.h.b16 %v2507
      %v2579 = vunpack.c.l.b16 %v2508
      %v2580 = vunpack.c.h.b16 %v2508
      %v2581 = vunpack.c.l.b16 %v2509
      %v2582 = vunpack.c.h.b16 %v2509
      %v2583 = vunpack.c.l.b16 %v2510
      %v2584 = vunpack.c.h.b16 %v2510
      %v2585 = vunpack.c.l.b16 %v2511
      %v2586 = vunpack.c.h.b16 %v2511
      %v2587 = vunpack.c.l.b16 %v2512
      %v2588 = vunpack.c.h.b16 %v2512
      %v2589 = vunpack.c.l.b16 %v2513
      %v2590 = vunpack.c.h.b16 %v2513
      %v2591 = vunpack.c.l.b16 %v2514
      %v2592 = vunpack.c.h.b16 %v2514
      %v2593 = vpack.c.b16 %v2543, %v2541
      %v2594 = vpack.c.b16 %v2544, %v2542
      %v2595 = vpack.c.b16 %v2547, %v2545
      %v2596 = vpack.c.b16 %v2548, %v2546
      %v2597 = vpack.c.b16 %v2551, %v2549
      %v2598 = vpack.c.b16 %v2552, %v2550
      %v2599 = vpack.c.b16 %v2555, %v2553
      %v2600 = vpack.c.b16 %v2556, %v2554
      %v2601 = vpack.c.b16 %v2559, %v2557
      %v2602 = vpack.c.b16 %v2560, %v2558
      %v2603 = vpack.c.b16 %v2563, %v2561
      %v2604 = vpack.c.b16 %v2564, %v2562
      %v2605 = vpack.c.b16 %v2567, %v2565
      %v2606 = vpack.c.b16 %v2568, %v2566
      %v2607 = vpack.c.b16 %v2571, %v2569
      %v2608 = vpack.c.b16 %v2572, %v2570
      %v2609 = vpack.c.b16 %v2575, %v2573
      %v2610 = vpack.c.b16 %v2576, %v2574
      %v2611 = vpack.c.b16 %v2579, %v2577
      %v2612 = vpack.c.b16 %v2580, %v2578
      %v2613 = vpack.c.b16 %v2583, %v2581
      %v2614 = vpack.c.b16 %v2584, %v2582
      %v2615 = vpack.c.b16 %v2587, %v2585
      %v2616 = vpack.c.b16 %v2588, %v2586
      %v2617 = vpack.c.b16 %v2591, %v2589
      %v2618 = vpack.c.b16 %v2592, %v2590
      %v2633 = vsel %vm431, %v2594, 0
      %v2636 = vsel %vm431, %v2596, 0
      %v2639 = vsel %vm431, %v2598, 0
      %v2642 = vsel %vm431, %v2600, 0
      %v2645 = vsel %vm431, %v2602, 0
      %v2648 = vsel %vm431, %v2604, 0
      %v2651 = vsel %vm431, %v2606, 0
      %v2654 = vsel %vm431, %v2608, 0
      %v2657 = vsel %vm431, %v2610, 0
      %v2660 = vsel %vm431, %v2612, 0
      %v2663 = vsel %vm431, %v2614, 0
      %v2666 = vsel %vm431, %v2616, 0
      %v2669 = vsel %vm431, %v2618, 0
      %2671 = vmatprep.subr.bf16.mxu0 0
      %2672 = vmatpush1.bf16.msra.mxu0 %v413
      %2673 = vmatprep.subr.bf16.mxu0 0
      %2674 = vmatpush1.bf16.msra.mxu0 %v414
      %2675 = vmatprep.subr.bf16.mxu0 0
      %2676 = vmatpush1.bf16.msra.mxu0 %v415
      %2677 = vmatprep.subr.bf16.mxu0 0
      %2678 = vmatpush1.bf16.msra.mxu0 %v416
      %2679 = vmatprep.subr.bf16.mxu0 0
      %2680 = vmatpush1.bf16.msra.mxu0 %v417
      %2681 = vmatprep.subr.bf16.mxu0 0
      %2682 = vmatpush1.bf16.msra.mxu0 %v418
      %2683 = vmatprep.subr.bf16.mxu0 0
      %2684 = vmatpush1.bf16.msra.mxu0 %v419
      %2685 = vmatprep.subr.bf16.mxu0 0
      %2686 = vmatpush1.bf16.msra.mxu0 %v420
      %2687 = vmatprep.subr.bf16.mxu0 0
      %2688 = vmatpush1.bf16.msra.mxu0 %v421
      %2689 = vmatprep.subr.bf16.mxu0 0
      %2690 = vmatpush1.bf16.msra.mxu0 0
      %2691 = vmatprep.subr.bf16.mxu0 0
      %2692 = vmatpush1.bf16.msra.mxu0 0
      %2693 = vmatprep.subr.bf16.mxu0 0
      %2694 = vmatpush1.bf16.msra.mxu0 0
      %2695 = vmatprep.subr.bf16.mxu0 0
      %2696 = vmatpush1.bf16.msra.mxu0 0
      %2697 = vmatprep.subr.bf16.mxu0 0
      %2698 = vmatpush1.bf16.msra.mxu0 0
      %2699 = vmatprep.subr.bf16.mxu0 0
      %2700 = vmatpush1.bf16.msra.mxu0 0
      %2701 = vmatprep.subr.bf16.mxu0 0
      %2702 = vmatpush1.bf16.msra.mxu0 0
      %2703 = vmatprep.mubr.bf16.mxu0 %v2633
      %2704 = vmatmul.mubr.bf16.gmra.mrb[0].mxu0 %v2593
      %v2705 = vpop.f32.mrb[0].mxu0
      %v2706 = vadd.f32 %v258, %v2705
      %v2707 = vpop.f32.mrb[0].mxu0
      %v2708 = vpop.f32.mrb[0].mxu0
      %v2709 = vadd.f32 %v258, %v2708
      %v2710 = vpop.f32.mrb[0].mxu0
      %2711 = vmatprep.mubr.bf16.mxu0 %v2636
      %2712 = vmatmul.mubr.bf16.gmra.mrb[0].mxu0 %v2595
      %v2713 = vpop.f32.mrb[0].mxu0
      %v2714 = vadd.f32 %v258, %v2713
      %v2715 = vpop.f32.mrb[0].mxu0
      %v2716 = vpop.f32.mrb[0].mxu0
      %v2717 = vadd.f32 %v258, %v2716
      %v2718 = vpop.f32.mrb[0].mxu0
      %2719 = vmatprep.mubr.bf16.mxu0 %v2639
      %2720 = vmatmul.mubr.bf16.gmra.mrb[0].mxu0 %v2597
      %v2721 = vpop.f32.mrb[0].mxu0
      %v2722 = vadd.f32 %v258, %v2721
      %v2723 = vpop.f32.mrb[0].mxu0
      %v2724 = vpop.f32.mrb[0].mxu0
      %v2725 = vadd.f32 %v258, %v2724
      %v2726 = vpop.f32.mrb[0].mxu0
      %2727 = vmatprep.mubr.bf16.mxu0 %v2642
      %2728 = vmatmul.mubr.bf16.gmra.mrb[0].mxu0 %v2599
      %v2729 = vpop.f32.mrb[0].mxu0
      %v2730 = vadd.f32 %v258, %v2729
      %v2731 = vpop.f32.mrb[0].mxu0
      %v2732 = vpop.f32.mrb[0].mxu0
      %v2733 = vadd.f32 %v258, %v2732
      %v2734 = vpop.f32.mrb[0].mxu0
      %2735 = vmatprep.mubr.bf16.mxu0 %v2645
      %2736 = vmatmul.mubr.bf16.gmra.mrb[0].mxu0 %v2601
      %v2737 = vpop.f32.mrb[0].mxu0
      %v2738 = vadd.f32 %v258, %v2737
      %v2739 = vpop.f32.mrb[0].mxu0
      %v2740 = vpop.f32.mrb[0].mxu0
      %v2741 = vadd.f32 %v258, %v2740
      %v2742 = vpop.f32.mrb[0].mxu0
      %2743 = vmatprep.mubr.bf16.mxu0 %v2648
      %2744 = vmatmul.mubr.bf16.gmra.mrb[0].mxu0 %v2603
      %v2745 = vpop.f32.mrb[0].mxu0
      %v2746 = vadd.f32 %v258, %v2745
      %v2747 = vpop.f32.mrb[0].mxu0
      %v2748 = vpop.f32.mrb[0].mxu0
      %v2749 = vadd.f32 %v258, %v2748
      %v2750 = vpop.f32.mrb[0].mxu0
      %2751 = vmatprep.mubr.bf16.mxu0 %v2651
      %2752 = vmatmul.mubr.bf16.gmra.mrb[0].mxu0 %v2605
      %v2753 = vpop.f32.mrb[0].mxu0
      %v2754 = vadd.f32 %v258, %v2753
      %v2755 = vpop.f32.mrb[0].mxu0
      %v2756 = vpop.f32.mrb[0].mxu0
      %v2757 = vadd.f32 %v258, %v2756
      %v2758 = vpop.f32.mrb[0].mxu0
      %2759 = vmatprep.mubr.bf16.mxu0 %v2654
      %2760 = vmatmul.mubr.bf16.gmra.mrb[0].mxu0 %v2607
      %v2761 = vpop.f32.mrb[0].mxu0
      %v2762 = vadd.f32 %v258, %v2761
      %v2763 = vpop.f32.mrb[0].mxu0
      %v2764 = vpop.f32.mrb[0].mxu0
      %v2765 = vadd.f32 %v258, %v2764
      %v2766 = vpop.f32.mrb[0].mxu0
      %2767 = vmatprep.mubr.bf16.mxu0 %v2657
      %2768 = vmatmul.mubr.bf16.gmra.mrb[0].mxu0 %v2609
      %v2769 = vpop.f32.mrb[0].mxu0
      %v2770 = vadd.f32 %v258, %v2769
      %v2771 = vpop.f32.mrb[0].mxu0
      %v2772 = vpop.f32.mrb[0].mxu0
      %v2773 = vadd.f32 %v258, %v2772
      %v2774 = vpop.f32.mrb[0].mxu0
      %2775 = vmatprep.mubr.bf16.mxu0 %v2660
      %2776 = vmatmul.mubr.bf16.gmra.mrb[0].mxu0 %v2611
      %v2777 = vpop.f32.mrb[0].mxu0
      %v2778 = vadd.f32 %v258, %v2777
      %v2779 = vpop.f32.mrb[0].mxu0
      %v2780 = vpop.f32.mrb[0].mxu0
      %v2781 = vadd.f32 %v258, %v2780
      %v2782 = vpop.f32.mrb[0].mxu0
      %2783 = vmatprep.mubr.bf16.mxu0 %v2663
      %2784 = vmatmul.mubr.bf16.gmra.mrb[0].mxu0 %v2613
      %v2785 = vpop.f32.mrb[0].mxu0
      %v2786 = vadd.f32 %v258, %v2785
      %v2787 = vpop.f32.mrb[0].mxu0
      %v2788 = vpop.f32.mrb[0].mxu0
      %v2789 = vadd.f32 %v258, %v2788
      %v2790 = vpop.f32.mrb[0].mxu0
      %2791 = vmatprep.mubr.bf16.mxu0 %v2666
      %2792 = vmatmul.mubr.bf16.gmra.mrb[0].mxu0 %v2615
      %v2793 = vpop.f32.mrb[0].mxu0
      %v2794 = vadd.f32 %v258, %v2793
      %v2795 = vpop.f32.mrb[0].mxu0
      %v2796 = vpop.f32.mrb[0].mxu0
      %v2797 = vadd.f32 %v258, %v2796
      %v2798 = vpop.f32.mrb[0].mxu0
      %2799 = vmatprep.mubr.bf16.mxu0 %v2669
      %2800 = vmatmul.mubr.bf16.gmra.mrb[0].mxu0 %v2617
      %v2801 = vpop.f32.mrb[0].mxu0
      %v2802 = vadd.f32 %v258, %v2801
      %v2803 = vpop.f32.mrb[0].mxu0
      %v2804 = vpop.f32.mrb[0].mxu0
      %v2805 = vadd.f32 %v258, %v2804
      %v2806 = vpop.f32.mrb[0].mxu0
      %2807 = vdwg.mxu0
      %v2808 = vmax.f32 %v2706, 0.0
      %v2809 = vmax.f32 %v2709, 0.0
      %v2810 = vmax.f32 %v2714, 0.0
      %v2811 = vmax.f32 %v2717, 0.0
      %v2812 = vmax.f32 %v2722, 0.0
      %v2813 = vmax.f32 %v2725, 0.0
      %v2814 = vmax.f32 %v2730, 0.0
      %v2815 = vmax.f32 %v2733, 0.0
      %v2816 = vmax.f32 %v2738, 0.0
      %v2817 = vmax.f32 %v2741, 0.0
      %v2818 = vmax.f32 %v2746, 0.0
      %v2819 = vmax.f32 %v2749, 0.0
      %v2820 = vmax.f32 %v2754, 0.0
      %v2821 = vmax.f32 %v2757, 0.0
      %v2822 = vmax.f32 %v2762, 0.0
      %v2823 = vmax.f32 %v2765, 0.0
      %v2824 = vmax.f32 %v2770, 0.0
      %v2825 = vmax.f32 %v2773, 0.0
      %v2826 = vmax.f32 %v2778, 0.0
      %v2827 = vmax.f32 %v2781, 0.0
      %v2828 = vmax.f32 %v2786, 0.0
      %v2829 = vmax.f32 %v2789, 0.0
      %v2830 = vmax.f32 %v2794, 0.0
      %v2831 = vmax.f32 %v2797, 0.0
      %v2832 = vmax.f32 %v2802, 0.0
      %v2833 = vmax.f32 %v2805, 0.0
      %v2834 = vmax.f32 %v2463, %v2808
      %v2835 = vmax.f32 %v2464, %v2809
      %v2836 = vmax.f32 %v2465, %v2810
      %v2837 = vmax.f32 %v2466, %v2811
      %v2838 = vmax.f32 %v2467, %v2812
      %v2839 = vmax.f32 %v2468, %v2813
      %v2840 = vmax.f32 %v2469, %v2814
      %v2841 = vmax.f32 %v2470, %v2815
      %v2842 = vmax.f32 %v2471, %v2816
      %v2843 = vmax.f32 %v2472, %v2817
      %v2844 = vmax.f32 %v2473, %v2818
      %v2845 = vmax.f32 %v2474, %v2819
      %v2846 = vmax.f32 %v2475, %v2820
      %v2847 = vmax.f32 %v2476, %v2821
      %v2848 = vmax.f32 %v2477, %v2822
      %v2849 = vmax.f32 %v2478, %v2823
      %v2850 = vmax.f32 %v2479, %v2824
      %v2851 = vmax.f32 %v2480, %v2825
      %v2852 = vmax.f32 %v2481, %v2826
      %v2853 = vmax.f32 %v2482, %v2827
      %v2854 = vmax.f32 %v2483, %v2828
      %v2855 = vmax.f32 %v2484, %v2829
      %v2856 = vmax.f32 %v2485, %v2830
      %v2857 = vmax.f32 %v2486, %v2831
      %v2858 = vmax.f32 %v2487, %v2832
      %v2859 = vmax.f32 %v2488, %v2833
      %v2860 = vld [vmem:[%s197 + $0x5b0] sm:$0xff]
      %v2861 = vld [vmem:[%s197 + $0x5b8] sm:$0xff]
      %v2862 = vld [vmem:[%s197 + $0x5c0] sm:$0xff]
      %v2863 = vld [vmem:[%s197 + $0x5c8] sm:$0xff]
      %v2864 = vld [vmem:[%s197 + $0x5d0] sm:$0xff]
      %v2865 = vld [vmem:[%s197 + $0x5d8] sm:$0xff]
      %v2866 = vld [vmem:[%s197 + $0x5e0] sm:$0xff]
      %v2867 = vld [vmem:[%s197 + $0x5e8] sm:$0xff]
      %v2868 = vld [vmem:[%s197 + $0x5f0] sm:$0xff]
      %v2869 = vld [vmem:[%s197 + $0x5f8] sm:$0xff]
      %v2870 = vld [vmem:[%s197 + $0x600] sm:$0xff]
      %v2871 = vld [vmem:[%s197 + $0x608] sm:$0xff]
      %v2872 = vld [vmem:[%s197 + $0x610] sm:$0xff]
      %v2873 = vld [vmem:[%s197 + $0x618] sm:$0xff]
      %v2874 = vld [vmem:[%s197 + $0x620] sm:$0xff]
      %v2875 = vld [vmem:[%s197 + $0x628] sm:$0xff]
      %v2876 = vld [vmem:[%s197 + $0x630] sm:$0xff]
      %v2877 = vld [vmem:[%s197 + $0x638] sm:$0xff]
      %v2878 = vld [vmem:[%s197 + $0x640] sm:$0xff]
      %v2879 = vld [vmem:[%s197 + $0x648] sm:$0xff]
      %v2880 = vld [vmem:[%s197 + $0x650] sm:$0xff]
      %v2881 = vld [vmem:[%s197 + $0x658] sm:$0xff]
      %v2882 = vld [vmem:[%s197 + $0x660] sm:$0xff]
      %v2883 = vld [vmem:[%s197 + $0x668] sm:$0xff]
      %v2884 = vld [vmem:[%s197 + $0x670] sm:$0xff]
      %v2885 = vld [vmem:[%s197 + $0x678] sm:$0xff]
      %v2912 = vunpack.c.l.b16 %v2860
      %v2913 = vunpack.c.h.b16 %v2860
      %v2914 = vunpack.c.l.b16 %v2861
      %v2915 = vunpack.c.h.b16 %v2861
      %v2916 = vunpack.c.l.b16 %v2862
      %v2917 = vunpack.c.h.b16 %v2862
      %v2918 = vunpack.c.l.b16 %v2863
      %v2919 = vunpack.c.h.b16 %v2863
      %v2920 = vunpack.c.l.b16 %v2864
      %v2921 = vunpack.c.h.b16 %v2864
      %v2922 = vunpack.c.l.b16 %v2865
      %v2923 = vunpack.c.h.b16 %v2865
      %v2924 = vunpack.c.l.b16 %v2866
      %v2925 = vunpack.c.h.b16 %v2866
      %v2926 = vunpack.c.l.b16 %v2867
      %v2927 = vunpack.c.h.b16 %v2867
      %v2928 = vunpack.c.l.b16 %v2868
      %v2929 = vunpack.c.h.b16 %v2868
      %v2930 = vunpack.c.l.b16 %v2869
      %v2931 = vunpack.c.h.b16 %v2869
      %v2932 = vunpack.c.l.b16 %v2870
      %v2933 = vunpack.c.h.b16 %v2870
      %v2934 = vunpack.c.l.b16 %v2871
      %v2935 = vunpack.c.h.b16 %v2871
      %v2936 = vunpack.c.l.b16 %v2872
      %v2937 = vunpack.c.h.b16 %v2872
      %v2938 = vunpack.c.l.b16 %v2873
      %v2939 = vunpack.c.h.b16 %v2873
      %v2940 = vunpack.c.l.b16 %v2874
      %v2941 = vunpack.c.h.b16 %v2874
      %v2942 = vunpack.c.l.b16 %v2875
      %v2943 = vunpack.c.h.b16 %v2875
      %v2944 = vunpack.c.l.b16 %v2876
      %v2945 = vunpack.c.h.b16 %v2876
      %v2946 = vunpack.c.l.b16 %v2877
      %v2947 = vunpack.c.h.b16 %v2877
      %v2948 = vunpack.c.l.b16 %v2878
      %v2949 = vunpack.c.h.b16 %v2878
      %v2950 = vunpack.c.l.b16 %v2879
      %v2951 = vunpack.c.h.b16 %v2879
      %v2952 = vunpack.c.l.b16 %v2880
      %v2953 = vunpack.c.h.b16 %v2880
      %v2954 = vunpack.c.l.b16 %v2881
      %v2955 = vunpack.c.h.b16 %v2881
      %v2956 = vunpack.c.l.b16 %v2882
      %v2957 = vunpack.c.h.b16 %v2882
      %v2958 = vunpack.c.l.b16 %v2883
      %v2959 = vunpack.c.h.b16 %v2883
      %v2960 = vunpack.c.l.b16 %v2884
      %v2961 = vunpack.c.h.b16 %v2884
      %v2962 = vunpack.c.l.b16 %v2885
      %v2963 = vunpack.c.h.b16 %v2885
      %v2964 = vpack.c.b16 %v2914, %v2912
      %v2965 = vpack.c.b16 %v2915, %v2913
      %v2966 = vpack.c.b16 %v2918, %v2916
      %v2967 = vpack.c.b16 %v2919, %v2917
      %v2968 = vpack.c.b16 %v2922, %v2920
      %v2969 = vpack.c.b16 %v2923, %v2921
      %v2970 = vpack.c.b16 %v2926, %v2924
      %v2971 = vpack.c.b16 %v2927, %v2925
      %v2972 = vpack.c.b16 %v2930, %v2928
      %v2973 = vpack.c.b16 %v2931, %v2929
      %v2974 = vpack.c.b16 %v2934, %v2932
      %v2975 = vpack.c.b16 %v2935, %v2933
      %v2976 = vpack.c.b16 %v2938, %v2936
      %v2977 = vpack.c.b16 %v2939, %v2937
      %v2978 = vpack.c.b16 %v2942, %v2940
      %v2979 = vpack.c.b16 %v2943, %v2941
      %v2980 = vpack.c.b16 %v2946, %v2944
      %v2981 = vpack.c.b16 %v2947, %v2945
      %v2982 = vpack.c.b16 %v2950, %v2948
      %v2983 = vpack.c.b16 %v2951, %v2949
      %v2984 = vpack.c.b16 %v2954, %v2952
      %v2985 = vpack.c.b16 %v2955, %v2953
      %v2986 = vpack.c.b16 %v2958, %v2956
      %v2987 = vpack.c.b16 %v2959, %v2957
      %v2988 = vpack.c.b16 %v2962, %v2960
      %v2989 = vpack.c.b16 %v2963, %v2961
      %v3004 = vsel %vm431, %v2965, 0
      %v3007 = vsel %vm431, %v2967, 0
      %v3010 = vsel %vm431, %v2969, 0
      %v3013 = vsel %vm431, %v2971, 0
      %v3016 = vsel %vm431, %v2973, 0
      %v3019 = vsel %vm431, %v2975, 0
      %v3022 = vsel %vm431, %v2977, 0
      %v3025 = vsel %vm431, %v2979, 0
      %v3028 = vsel %vm431, %v2981, 0
      %v3031 = vsel %vm431, %v2983, 0
      %v3034 = vsel %vm431, %v2985, 0
      %v3037 = vsel %vm431, %v2987, 0
      %v3040 = vsel %vm431, %v2989, 0
      %3042 = vmatprep.subr.bf16.mxu0 0
      %3043 = vmatpush1.bf16.msra.mxu0 %v413
      %3044 = vmatprep.subr.bf16.mxu0 0
      %3045 = vmatpush1.bf16.msra.mxu0 %v414
      %3046 = vmatprep.subr.bf16.mxu0 0
      %3047 = vmatpush1.bf16.msra.mxu0 %v415
      %3048 = vmatprep.subr.bf16.mxu0 0
      %3049 = vmatpush1.bf16.msra.mxu0 %v416
      %3050 = vmatprep.subr.bf16.mxu0 0
      %3051 = vmatpush1.bf16.msra.mxu0 %v417
      %3052 = vmatprep.subr.bf16.mxu0 0
      %3053 = vmatpush1.bf16.msra.mxu0 %v418
      %3054 = vmatprep.subr.bf16.mxu0 0
      %3055 = vmatpush1.bf16.msra.mxu0 %v419
      %3056 = vmatprep.subr.bf16.mxu0 0
      %3057 = vmatpush1.bf16.msra.mxu0 %v420
      %3058 = vmatprep.subr.bf16.mxu0 0
      %3059 = vmatpush1.bf16.msra.mxu0 %v421
      %3060 = vmatprep.subr.bf16.mxu0 0
      %3061 = vmatpush1.bf16.msra.mxu0 0
      %3062 = vmatprep.subr.bf16.mxu0 0
      %3063 = vmatpush1.bf16.msra.mxu0 0
      %3064 = vmatprep.subr.bf16.mxu0 0
      %3065 = vmatpush1.bf16.msra.mxu0 0
      %3066 = vmatprep.subr.bf16.mxu0 0
      %3067 = vmatpush1.bf16.msra.mxu0 0
      %3068 = vmatprep.subr.bf16.mxu0 0
      %3069 = vmatpush1.bf16.msra.mxu0 0
      %3070 = vmatprep.subr.bf16.mxu0 0
      %3071 = vmatpush1.bf16.msra.mxu0 0
      %3072 = vmatprep.subr.bf16.mxu0 0
      %3073 = vmatpush1.bf16.msra.mxu0 0
      %3074 = vmatprep.mubr.bf16.mxu0 %v3004
      %3075 = vmatmul.mubr.bf16.gmra.mrb[0].mxu0 %v2964
      %v3076 = vpop.f32.mrb[0].mxu0
      %v3077 = vadd.f32 %v258, %v3076
      %v3078 = vpop.f32.mrb[0].mxu0
      %v3079 = vpop.f32.mrb[0].mxu0
      %v3080 = vadd.f32 %v258, %v3079
      %v3081 = vpop.f32.mrb[0].mxu0
      %3082 = vmatprep.mubr.bf16.mxu0 %v3007
      %3083 = vmatmul.mubr.bf16.gmra.mrb[0].mxu0 %v2966
      %v3084 = vpop.f32.mrb[0].mxu0
      %v3085 = vadd.f32 %v258, %v3084
      %v3086 = vpop.f32.mrb[0].mxu0
      %v3087 = vpop.f32.mrb[0].mxu0
      %v3088 = vadd.f32 %v258, %v3087
      %v3089 = vpop.f32.mrb[0].mxu0
      %3090 = vmatprep.mubr.bf16.mxu0 %v3010
      %3091 = vmatmul.mubr.bf16.gmra.mrb[0].mxu0 %v2968
      %v3092 = vpop.f32.mrb[0].mxu0
      %v3093 = vadd.f32 %v258, %v3092
      %v3094 = vpop.f32.mrb[0].mxu0
      %v3095 = vpop.f32.mrb[0].mxu0
      %v3096 = vadd.f32 %v258, %v3095
      %v3097 = vpop.f32.mrb[0].mxu0
      %3098 = vmatprep.mubr.bf16.mxu0 %v3013
      %3099 = vmatmul.mubr.bf16.gmra.mrb[0].mxu0 %v2970
      %v3100 = vpop.f32.mrb[0].mxu0
      %v3101 = vadd.f32 %v258, %v3100
      %v3102 = vpop.f32.mrb[0].mxu0
      %v3103 = vpop.f32.mrb[0].mxu0
      %v3104 = vadd.f32 %v258, %v3103
      %v3105 = vpop.f32.mrb[0].mxu0
      %3106 = vmatprep.mubr.bf16.mxu0 %v3016
      %3107 = vmatmul.mubr.bf16.gmra.mrb[0].mxu0 %v2972
      %v3108 = vpop.f32.mrb[0].mxu0
      %v3109 = vadd.f32 %v258, %v3108
      %v3110 = vpop.f32.mrb[0].mxu0
      %v3111 = vpop.f32.mrb[0].mxu0
      %v3112 = vadd.f32 %v258, %v3111
      %v3113 = vpop.f32.mrb[0].mxu0
      %3114 = vmatprep.mubr.bf16.mxu0 %v3019
      %3115 = vmatmul.mubr.bf16.gmra.mrb[0].mxu0 %v2974
      %v3116 = vpop.f32.mrb[0].mxu0
      %v3117 = vadd.f32 %v258, %v3116
      %v3118 = vpop.f32.mrb[0].mxu0
      %v3119 = vpop.f32.mrb[0].mxu0
      %v3120 = vadd.f32 %v258, %v3119
      %v3121 = vpop.f32.mrb[0].mxu0
      %3122 = vmatprep.mubr.bf16.mxu0 %v3022
      %3123 = vmatmul.mubr.bf16.gmra.mrb[0].mxu0 %v2976
      %v3124 = vpop.f32.mrb[0].mxu0
      %v3125 = vadd.f32 %v258, %v3124
      %v3126 = vpop.f32.mrb[0].mxu0
      %v3127 = vpop.f32.mrb[0].mxu0
      %v3128 = vadd.f32 %v258, %v3127
      %v3129 = vpop.f32.mrb[0].mxu0
      %3130 = vmatprep.mubr.bf16.mxu0 %v3025
      %3131 = vmatmul.mubr.bf16.gmra.mrb[0].mxu0 %v2978
      %v3132 = vpop.f32.mrb[0].mxu0
      %v3133 = vadd.f32 %v258, %v3132
      %v3134 = vpop.f32.mrb[0].mxu0
      %v3135 = vpop.f32.mrb[0].mxu0
      %v3136 = vadd.f32 %v258, %v3135
      %v3137 = vpop.f32.mrb[0].mxu0
      %3138 = vmatprep.mubr.bf16.mxu0 %v3028
      %3139 = vmatmul.mubr.bf16.gmra.mrb[0].mxu0 %v2980
      %v3140 = vpop.f32.mrb[0].mxu0
      %v3141 = vadd.f32 %v258, %v3140
      %v3142 = vpop.f32.mrb[0].mxu0
      %v3143 = vpop.f32.mrb[0].mxu0
      %v3144 = vadd.f32 %v258, %v3143
      %v3145 = vpop.f32.mrb[0].mxu0
      %3146 = vmatprep.mubr.bf16.mxu0 %v3031
      %3147 = vmatmul.mubr.bf16.gmra.mrb[0].mxu0 %v2982
      %v3148 = vpop.f32.mrb[0].mxu0
      %v3149 = vadd.f32 %v258, %v3148
      %v3150 = vpop.f32.mrb[0].mxu0
      %v3151 = vpop.f32.mrb[0].mxu0
      %v3152 = vadd.f32 %v258, %v3151
      %v3153 = vpop.f32.mrb[0].mxu0
      %3154 = vmatprep.mubr.bf16.mxu0 %v3034
      %3155 = vmatmul.mubr.bf16.gmra.mrb[0].mxu0 %v2984
      %v3156 = vpop.f32.mrb[0].mxu0
      %v3157 = vadd.f32 %v258, %v3156
      %v3158 = vpop.f32.mrb[0].mxu0
      %v3159 = vpop.f32.mrb[0].mxu0
      %v3160 = vadd.f32 %v258, %v3159
      %v3161 = vpop.f32.mrb[0].mxu0
      %3162 = vmatprep.mubr.bf16.mxu0 %v3037
      %3163 = vmatmul.mubr.bf16.gmra.mrb[0].mxu0 %v2986
      %v3164 = vpop.f32.mrb[0].mxu0
      %v3165 = vadd.f32 %v258, %v3164
      %v3166 = vpop.f32.mrb[0].mxu0
      %v3167 = vpop.f32.mrb[0].mxu0
      %v3168 = vadd.f32 %v258, %v3167
      %v3169 = vpop.f32.mrb[0].mxu0
      %3170 = vmatprep.mubr.bf16.mxu0 %v3040
      %3171 = vmatmul.mubr.bf16.gmra.mrb[0].mxu0 %v2988
      %v3172 = vpop.f32.mrb[0].mxu0
      %v3173 = vadd.f32 %v258, %v3172
      %v3174 = vpop.f32.mrb[0].mxu0
      %v3175 = vpop.f32.mrb[0].mxu0
      %v3176 = vadd.f32 %v258, %v3175
      %v3177 = vpop.f32.mrb[0].mxu0
      %3178 = vdwg.mxu0
      %v3179 = vmax.f32 %v3077, 0.0
      %v3180 = vmax.f32 %v3080, 0.0
      %v3181 = vmax.f32 %v3085, 0.0
      %v3182 = vmax.f32 %v3088, 0.0
      %v3183 = vmax.f32 %v3093, 0.0
      %v3184 = vmax.f32 %v3096, 0.0
      %v3185 = vmax.f32 %v3101, 0.0
      %v3186 = vmax.f32 %v3104, 0.0
      %v3187 = vmax.f32 %v3109, 0.0
      %v3188 = vmax.f32 %v3112, 0.0
      %v3189 = vmax.f32 %v3117, 0.0
      %v3190 = vmax.f32 %v3120, 0.0
      %v3191 = vmax.f32 %v3125, 0.0
      %v3192 = vmax.f32 %v3128, 0.0
      %v3193 = vmax.f32 %v3133, 0.0
      %v3194 = vmax.f32 %v3136, 0.0
      %v3195 = vmax.f32 %v3141, 0.0
      %v3196 = vmax.f32 %v3144, 0.0
      %v3197 = vmax.f32 %v3149, 0.0
      %v3198 = vmax.f32 %v3152, 0.0
      %v3199 = vmax.f32 %v3157, 0.0
      %v3200 = vmax.f32 %v3160, 0.0
      %v3201 = vmax.f32 %v3165, 0.0
      %v3202 = vmax.f32 %v3168, 0.0
      %v3203 = vmax.f32 %v3173, 0.0
      %v3204 = vmax.f32 %v3176, 0.0
      %v3205 = vmax.f32 %v2834, %v3179
      %v3206 = vmax.f32 %v2835, %v3180
      %v3207 = vmax.f32 %v2836, %v3181
      %v3208 = vmax.f32 %v2837, %v3182
      %v3209 = vmax.f32 %v2838, %v3183
      %v3210 = vmax.f32 %v2839, %v3184
      %v3211 = vmax.f32 %v2840, %v3185
      %v3212 = vmax.f32 %v2841, %v3186
      %v3213 = vmax.f32 %v2842, %v3187
      %v3214 = vmax.f32 %v2843, %v3188
      %v3215 = vmax.f32 %v2844, %v3189
      %v3216 = vmax.f32 %v2845, %v3190
      %v3217 = vmax.f32 %v2846, %v3191
      %v3218 = vmax.f32 %v2847, %v3192
      %v3219 = vmax.f32 %v2848, %v3193
      %v3220 = vmax.f32 %v2849, %v3194
      %v3221 = vmax.f32 %v2850, %v3195
      %v3222 = vmax.f32 %v2851, %v3196
      %v3223 = vmax.f32 %v2852, %v3197
      %v3224 = vmax.f32 %v2853, %v3198
      %v3225 = vmax.f32 %v2854, %v3199
      %v3226 = vmax.f32 %v2855, %v3200
      %v3227 = vmax.f32 %v2856, %v3201
      %v3228 = vmax.f32 %v2857, %v3202
      %v3229 = vmax.f32 %v2858, %v3203
      %v3230 = vmax.f32 %v2859, %v3204
      %v3231 = vld [vmem:[%s197 + $0x680] sm:$0xff]
      %v3232 = vld [vmem:[%s197 + $0x688] sm:$0xff]
      %v3233 = vld [vmem:[%s197 + $0x690] sm:$0xff]
      %v3234 = vld [vmem:[%s197 + $0x698] sm:$0xff]
      %v3235 = vld [vmem:[%s197 + $0x6a0] sm:$0xff]
      %v3236 = vld [vmem:[%s197 + $0x6a8] sm:$0xff]
      %v3237 = vld [vmem:[%s197 + $0x6b0] sm:$0xff]
      %v3238 = vld [vmem:[%s197 + $0x6b8] sm:$0xff]
      %v3239 = vld [vmem:[%s197 + $0x6c0] sm:$0xff]
      %v3240 = vld [vmem:[%s197 + $0x6c8] sm:$0xff]
      %v3241 = vld [vmem:[%s197 + $0x6d0] sm:$0xff]
      %v3242 = vld [vmem:[%s197 + $0x6d8] sm:$0xff]
      %v3243 = vld [vmem:[%s197 + $0x6e0] sm:$0xff]
      %v3244 = vld [vmem:[%s197 + $0x6e8] sm:$0xff]
      %v3245 = vld [vmem:[%s197 + $0x6f0] sm:$0xff]
      %v3246 = vld [vmem:[%s197 + $0x6f8] sm:$0xff]
      %v3247 = vld [vmem:[%s197 + $0x700] sm:$0xff]
      %v3248 = vld [vmem:[%s197 + $0x708] sm:$0xff]
      %v3249 = vld [vmem:[%s197 + $0x710] sm:$0xff]
      %v3250 = vld [vmem:[%s197 + $0x718] sm:$0xff]
      %v3251 = vld [vmem:[%s197 + $0x720] sm:$0xff]
      %v3252 = vld [vmem:[%s197 + $0x728] sm:$0xff]
      %v3253 = vld [vmem:[%s197 + $0x730] sm:$0xff]
      %v3254 = vld [vmem:[%s197 + $0x738] sm:$0xff]
      %v3255 = vld [vmem:[%s197 + $0x740] sm:$0xff]
      %v3256 = vld [vmem:[%s197 + $0x748] sm:$0xff]
      %v3283 = vunpack.c.l.b16 %v3231
      %v3284 = vunpack.c.h.b16 %v3231
      %v3285 = vunpack.c.l.b16 %v3232
      %v3286 = vunpack.c.h.b16 %v3232
      %v3287 = vunpack.c.l.b16 %v3233
      %v3288 = vunpack.c.h.b16 %v3233
      %v3289 = vunpack.c.l.b16 %v3234
      %v3290 = vunpack.c.h.b16 %v3234
      %v3291 = vunpack.c.l.b16 %v3235
      %v3292 = vunpack.c.h.b16 %v3235
      %v3293 = vunpack.c.l.b16 %v3236
      %v3294 = vunpack.c.h.b16 %v3236
      %v3295 = vunpack.c.l.b16 %v3237
      %v3296 = vunpack.c.h.b16 %v3237
      %v3297 = vunpack.c.l.b16 %v3238
      %v3298 = vunpack.c.h.b16 %v3238
      %v3299 = vunpack.c.l.b16 %v3239
      %v3300 = vunpack.c.h.b16 %v3239
      %v3301 = vunpack.c.l.b16 %v3240
      %v3302 = vunpack.c.h.b16 %v3240
      %v3303 = vunpack.c.l.b16 %v3241
      %v3304 = vunpack.c.h.b16 %v3241
      %v3305 = vunpack.c.l.b16 %v3242
      %v3306 = vunpack.c.h.b16 %v3242
      %v3307 = vunpack.c.l.b16 %v3243
      %v3308 = vunpack.c.h.b16 %v3243
      %v3309 = vunpack.c.l.b16 %v3244
      %v3310 = vunpack.c.h.b16 %v3244
      %v3311 = vunpack.c.l.b16 %v3245
      %v3312 = vunpack.c.h.b16 %v3245
      %v3313 = vunpack.c.l.b16 %v3246
      %v3314 = vunpack.c.h.b16 %v3246
      %v3315 = vunpack.c.l.b16 %v3247
      %v3316 = vunpack.c.h.b16 %v3247
      %v3317 = vunpack.c.l.b16 %v3248
      %v3318 = vunpack.c.h.b16 %v3248
      %v3319 = vunpack.c.l.b16 %v3249
      %v3320 = vunpack.c.h.b16 %v3249
      %v3321 = vunpack.c.l.b16 %v3250
      %v3322 = vunpack.c.h.b16 %v3250
      %v3323 = vunpack.c.l.b16 %v3251
      %v3324 = vunpack.c.h.b16 %v3251
      %v3325 = vunpack.c.l.b16 %v3252
      %v3326 = vunpack.c.h.b16 %v3252
      %v3327 = vunpack.c.l.b16 %v3253
      %v3328 = vunpack.c.h.b16 %v3253
      %v3329 = vunpack.c.l.b16 %v3254
      %v3330 = vunpack.c.h.b16 %v3254
      %v3331 = vunpack.c.l.b16 %v3255
      %v3332 = vunpack.c.h.b16 %v3255
      %v3333 = vunpack.c.l.b16 %v3256
      %v3334 = vunpack.c.h.b16 %v3256
      %v3335 = vpack.c.b16 %v3285, %v3283
      %v3336 = vpack.c.b16 %v3286, %v3284
      %v3337 = vpack.c.b16 %v3289, %v3287
      %v3338 = vpack.c.b16 %v3290, %v3288
      %v3339 = vpack.c.b16 %v3293, %v3291
      %v3340 = vpack.c.b16 %v3294, %v3292
      %v3341 = vpack.c.b16 %v3297, %v3295
      %v3342 = vpack.c.b16 %v3298, %v3296
      %v3343 = vpack.c.b16 %v3301, %v3299
      %v3344 = vpack.c.b16 %v3302, %v3300
      %v3345 = vpack.c.b16 %v3305, %v3303
      %v3346 = vpack.c.b16 %v3306, %v3304
      %v3347 = vpack.c.b16 %v3309, %v3307
      %v3348 = vpack.c.b16 %v3310, %v3308
      %v3349 = vpack.c.b16 %v3313, %v3311
      %v3350 = vpack.c.b16 %v3314, %v3312
      %v3351 = vpack.c.b16 %v3317, %v3315
      %v3352 = vpack.c.b16 %v3318, %v3316
      %v3353 = vpack.c.b16 %v3321, %v3319
      %v3354 = vpack.c.b16 %v3322, %v3320
      %v3355 = vpack.c.b16 %v3325, %v3323
      %v3356 = vpack.c.b16 %v3326, %v3324
      %v3357 = vpack.c.b16 %v3329, %v3327
      %v3358 = vpack.c.b16 %v3330, %v3328
      %v3359 = vpack.c.b16 %v3333, %v3331
      %v3360 = vpack.c.b16 %v3334, %v3332
      %v3375 = vsel %vm431, %v3336, 0
      %v3378 = vsel %vm431, %v3338, 0
      %v3381 = vsel %vm431, %v3340, 0
      %v3384 = vsel %vm431, %v3342, 0
      %v3387 = vsel %vm431, %v3344, 0
      %v3390 = vsel %vm431, %v3346, 0
      %v3393 = vsel %vm431, %v3348, 0
      %v3396 = vsel %vm431, %v3350, 0
      %v3399 = vsel %vm431, %v3352, 0
      %v3402 = vsel %vm431, %v3354, 0
      %v3405 = vsel %vm431, %v3356, 0
      %v3408 = vsel %vm431, %v3358, 0
      %v3411 = vsel %vm431, %v3360, 0
      %3413 = vmatprep.subr.bf16.mxu0 0
      %3414 = vmatpush1.bf16.msra.mxu0 %v413
      %3415 = vmatprep.subr.bf16.mxu0 0
      %3416 = vmatpush1.bf16.msra.mxu0 %v414
      %3417 = vmatprep.subr.bf16.mxu0 0
      %3418 = vmatpush1.bf16.msra.mxu0 %v415
      %3419 = vmatprep.subr.bf16.mxu0 0
      %3420 = vmatpush1.bf16.msra.mxu0 %v416
      %3421 = vmatprep.subr.bf16.mxu0 0
      %3422 = vmatpush1.bf16.msra.mxu0 %v417
      %3423 = vmatprep.subr.bf16.mxu0 0
      %3424 = vmatpush1.bf16.msra.mxu0 %v418
      %3425 = vmatprep.subr.bf16.mxu0 0
      %3426 = vmatpush1.bf16.msra.mxu0 %v419
      %3427 = vmatprep.subr.bf16.mxu0 0
      %3428 = vmatpush1.bf16.msra.mxu0 %v420
      %3429 = vmatprep.subr.bf16.mxu0 0
      %3430 = vmatpush1.bf16.msra.mxu0 %v421
      %3431 = vmatprep.subr.bf16.mxu0 0
      %3432 = vmatpush1.bf16.msra.mxu0 0
      %3433 = vmatprep.subr.bf16.mxu0 0
      %3434 = vmatpush1.bf16.msra.mxu0 0
      %3435 = vmatprep.subr.bf16.mxu0 0
      %3436 = vmatpush1.bf16.msra.mxu0 0
      %3437 = vmatprep.subr.bf16.mxu0 0
      %3438 = vmatpush1.bf16.msra.mxu0 0
      %3439 = vmatprep.subr.bf16.mxu0 0
      %3440 = vmatpush1.bf16.msra.mxu0 0
      %3441 = vmatprep.subr.bf16.mxu0 0
      %3442 = vmatpush1.bf16.msra.mxu0 0
      %3443 = vmatprep.subr.bf16.mxu0 0
      %3444 = vmatpush1.bf16.msra.mxu0 0
      %3445 = vmatprep.mubr.bf16.mxu0 %v3375
      %3446 = vmatmul.mubr.bf16.gmra.mrb[0].mxu0 %v3335
      %v3447 = vpop.f32.mrb[0].mxu0
      %v3448 = vadd.f32 %v258, %v3447
      %v3449 = vpop.f32.mrb[0].mxu0
      %v3450 = vpop.f32.mrb[0].mxu0
      %v3451 = vadd.f32 %v258, %v3450
      %v3452 = vpop.f32.mrb[0].mxu0
      %3453 = vmatprep.mubr.bf16.mxu0 %v3378
      %3454 = vmatmul.mubr.bf16.gmra.mrb[0].mxu0 %v3337
      %v3455 = vpop.f32.mrb[0].mxu0
      %v3456 = vadd.f32 %v258, %v3455
      %v3457 = vpop.f32.mrb[0].mxu0
      %v3458 = vpop.f32.mrb[0].mxu0
      %v3459 = vadd.f32 %v258, %v3458
      %v3460 = vpop.f32.mrb[0].mxu0
      %3461 = vmatprep.mubr.bf16.mxu0 %v3381
      %3462 = vmatmul.mubr.bf16.gmra.mrb[0].mxu0 %v3339
      %v3463 = vpop.f32.mrb[0].mxu0
      %v3464 = vadd.f32 %v258, %v3463
      %v3465 = vpop.f32.mrb[0].mxu0
      %v3466 = vpop.f32.mrb[0].mxu0
      %v3467 = vadd.f32 %v258, %v3466
      %v3468 = vpop.f32.mrb[0].mxu0
      %3469 = vmatprep.mubr.bf16.mxu0 %v3384
      %3470 = vmatmul.mubr.bf16.gmra.mrb[0].mxu0 %v3341
      %v3471 = vpop.f32.mrb[0].mxu0
      %v3472 = vadd.f32 %v258, %v3471
      %v3473 = vpop.f32.mrb[0].mxu0
      %v3474 = vpop.f32.mrb[0].mxu0
      %v3475 = vadd.f32 %v258, %v3474
      %v3476 = vpop.f32.mrb[0].mxu0
      %3477 = vmatprep.mubr.bf16.mxu0 %v3387
      %3478 = vmatmul.mubr.bf16.gmra.mrb[0].mxu0 %v3343
      %v3479 = vpop.f32.mrb[0].mxu0
      %v3480 = vadd.f32 %v258, %v3479
      %v3481 = vpop.f32.mrb[0].mxu0
      %v3482 = vpop.f32.mrb[0].mxu0
      %v3483 = vadd.f32 %v258, %v3482
      %v3484 = vpop.f32.mrb[0].mxu0
      %3485 = vmatprep.mubr.bf16.mxu0 %v3390
      %3486 = vmatmul.mubr.bf16.gmra.mrb[0].mxu0 %v3345
      %v3487 = vpop.f32.mrb[0].mxu0
      %v3488 = vadd.f32 %v258, %v3487
      %v3489 = vpop.f32.mrb[0].mxu0
      %v3490 = vpop.f32.mrb[0].mxu0
      %v3491 = vadd.f32 %v258, %v3490
      %v3492 = vpop.f32.mrb[0].mxu0
      %3493 = vmatprep.mubr.bf16.mxu0 %v3393
      %3494 = vmatmul.mubr.bf16.gmra.mrb[0].mxu0 %v3347
      %v3495 = vpop.f32.mrb[0].mxu0
      %v3496 = vadd.f32 %v258, %v3495
      %v3497 = vpop.f32.mrb[0].mxu0
      %v3498 = vpop.f32.mrb[0].mxu0
      %v3499 = vadd.f32 %v258, %v3498
      %v3500 = vpop.f32.mrb[0].mxu0
      %3501 = vmatprep.mubr.bf16.mxu0 %v3396
      %3502 = vmatmul.mubr.bf16.gmra.mrb[0].mxu0 %v3349
      %v3503 = vpop.f32.mrb[0].mxu0
      %v3504 = vadd.f32 %v258, %v3503
      %v3505 = vpop.f32.mrb[0].mxu0
      %v3506 = vpop.f32.mrb[0].mxu0
      %v3507 = vadd.f32 %v258, %v3506
      %v3508 = vpop.f32.mrb[0].mxu0
      %3509 = vmatprep.mubr.bf16.mxu0 %v3399
      %3510 = vmatmul.mubr.bf16.gmra.mrb[0].mxu0 %v3351
      %v3511 = vpop.f32.mrb[0].mxu0
      %v3512 = vadd.f32 %v258, %v3511
      %v3513 = vpop.f32.mrb[0].mxu0
      %v3514 = vpop.f32.mrb[0].mxu0
      %v3515 = vadd.f32 %v258, %v3514
      %v3516 = vpop.f32.mrb[0].mxu0
      %3517 = vmatprep.mubr.bf16.mxu0 %v3402
      %3518 = vmatmul.mubr.bf16.gmra.mrb[0].mxu0 %v3353
      %v3519 = vpop.f32.mrb[0].mxu0
      %v3520 = vadd.f32 %v258, %v3519
      %v3521 = vpop.f32.mrb[0].mxu0
      %v3522 = vpop.f32.mrb[0].mxu0
      %v3523 = vadd.f32 %v258, %v3522
      %v3524 = vpop.f32.mrb[0].mxu0
      %3525 = vmatprep.mubr.bf16.mxu0 %v3405
      %3526 = vmatmul.mubr.bf16.gmra.mrb[0].mxu0 %v3355
      %v3527 = vpop.f32.mrb[0].mxu0
      %v3528 = vadd.f32 %v258, %v3527
      %v3529 = vpop.f32.mrb[0].mxu0
      %v3530 = vpop.f32.mrb[0].mxu0
      %v3531 = vadd.f32 %v258, %v3530
      %v3532 = vpop.f32.mrb[0].mxu0
      %3533 = vmatprep.mubr.bf16.mxu0 %v3408
      %3534 = vmatmul.mubr.bf16.gmra.mrb[0].mxu0 %v3357
      %v3535 = vpop.f32.mrb[0].mxu0
      %v3536 = vadd.f32 %v258, %v3535
      %v3537 = vpop.f32.mrb[0].mxu0
      %v3538 = vpop.f32.mrb[0].mxu0
      %v3539 = vadd.f32 %v258, %v3538
      %v3540 = vpop.f32.mrb[0].mxu0
      %3541 = vmatprep.mubr.bf16.mxu0 %v3411
      %3542 = vmatmul.mubr.bf16.gmra.mrb[0].mxu0 %v3359
      %v3543 = vpop.f32.mrb[0].mxu0
      %v3544 = vadd.f32 %v258, %v3543
      %v3545 = vpop.f32.mrb[0].mxu0
      %v3546 = vpop.f32.mrb[0].mxu0
      %v3547 = vadd.f32 %v258, %v3546
      %v3548 = vpop.f32.mrb[0].mxu0
      %3549 = vdwg.mxu0
      %v3550 = vmax.f32 %v3448, 0.0
      %v3551 = vmax.f32 %v3451, 0.0
      %v3552 = vmax.f32 %v3456, 0.0
      %v3553 = vmax.f32 %v3459, 0.0
      %v3554 = vmax.f32 %v3464, 0.0
      %v3555 = vmax.f32 %v3467, 0.0
      %v3556 = vmax.f32 %v3472, 0.0
      %v3557 = vmax.f32 %v3475, 0.0
      %v3558 = vmax.f32 %v3480, 0.0
      %v3559 = vmax.f32 %v3483, 0.0
      %v3560 = vmax.f32 %v3488, 0.0
      %v3561 = vmax.f32 %v3491, 0.0
      %v3562 = vmax.f32 %v3496, 0.0
      %v3563 = vmax.f32 %v3499, 0.0
      %v3564 = vmax.f32 %v3504, 0.0
      %v3565 = vmax.f32 %v3507, 0.0
      %v3566 = vmax.f32 %v3512, 0.0
      %v3567 = vmax.f32 %v3515, 0.0
      %v3568 = vmax.f32 %v3520, 0.0
      %v3569 = vmax.f32 %v3523, 0.0
      %v3570 = vmax.f32 %v3528, 0.0
      %v3571 = vmax.f32 %v3531, 0.0
      %v3572 = vmax.f32 %v3536, 0.0
      %v3573 = vmax.f32 %v3539, 0.0
      %v3574 = vmax.f32 %v3544, 0.0
      %v3575 = vmax.f32 %v3547, 0.0
      %v3576 = vmax.f32 %v3205, %v3550
      %v3577 = vmax.f32 %v3206, %v3551
      %v3578 = vmax.f32 %v3207, %v3552
      %v3579 = vmax.f32 %v3208, %v3553
      %v3580 = vmax.f32 %v3209, %v3554
      %v3581 = vmax.f32 %v3210, %v3555
      %v3582 = vmax.f32 %v3211, %v3556
      %v3583 = vmax.f32 %v3212, %v3557
      %v3584 = vmax.f32 %v3213, %v3558
      %v3585 = vmax.f32 %v3214, %v3559
      %v3586 = vmax.f32 %v3215, %v3560
      %v3587 = vmax.f32 %v3216, %v3561
      %v3588 = vmax.f32 %v3217, %v3562
      %v3589 = vmax.f32 %v3218, %v3563
      %v3590 = vmax.f32 %v3219, %v3564
      %v3591 = vmax.f32 %v3220, %v3565
      %v3592 = vmax.f32 %v3221, %v3566
      %v3593 = vmax.f32 %v3222, %v3567
      %v3594 = vmax.f32 %v3223, %v3568
      %v3595 = vmax.f32 %v3224, %v3569
      %v3596 = vmax.f32 %v3225, %v3570
      %v3597 = vmax.f32 %v3226, %v3571
      %v3598 = vmax.f32 %v3227, %v3572
      %v3599 = vmax.f32 %v3228, %v3573
      %v3600 = vmax.f32 %v3229, %v3574
      %v3601 = vmax.f32 %v3230, %v3575
      %v3602 = vpack.c.bf16 %v3577, %v3576
      %v3603 = vpack.c.bf16 %v3579, %v3578
      %v3604 = vpack.c.bf16 %v3581, %v3580
      %v3605 = vpack.c.bf16 %v3583, %v3582
      %v3606 = vpack.c.bf16 %v3585, %v3584
      %v3607 = vpack.c.bf16 %v3587, %v3586
      %v3608 = vpack.c.bf16 %v3589, %v3588
      %v3609 = vpack.c.bf16 %v3591, %v3590
      %v3610 = vpack.c.bf16 %v3593, %v3592
      %v3611 = vpack.c.bf16 %v3595, %v3594
      %v3612 = vpack.c.bf16 %v3597, %v3596
      %v3613 = vpack.c.bf16 %v3599, %v3598
      %v3614 = vpack.c.bf16 %v3601, %v3600
      %v3628 = vunpack.c.l.b16 %v3602
      %v3629 = vunpack.c.h.b16 %v3602
      %v3630 = vunpack.c.l.b16 %v3603
      %v3631 = vunpack.c.h.b16 %v3603
      %v3632 = vunpack.c.l.b16 %v3604
      %v3633 = vunpack.c.h.b16 %v3604
      %v3634 = vunpack.c.l.b16 %v3605
      %v3635 = vunpack.c.h.b16 %v3605
      %v3636 = vunpack.c.l.b16 %v3606
      %v3637 = vunpack.c.h.b16 %v3606
      %v3638 = vunpack.c.l.b16 %v3607
      %v3639 = vunpack.c.h.b16 %v3607
      %v3640 = vunpack.c.l.b16 %v3608
      %v3641 = vunpack.c.h.b16 %v3608
      %v3642 = vunpack.c.l.b16 %v3609
      %v3643 = vunpack.c.h.b16 %v3609
      %v3644 = vunpack.c.l.b16 %v3610
      %v3645 = vunpack.c.h.b16 %v3610
      %v3646 = vunpack.c.l.b16 %v3611
      %v3647 = vunpack.c.h.b16 %v3611
      %v3648 = vunpack.c.l.b16 %v3612
      %v3649 = vunpack.c.h.b16 %v3612
      %v3650 = vunpack.c.l.b16 %v3613
      %v3651 = vunpack.c.h.b16 %v3613
      %v3652 = vunpack.c.l.b16 %v3614
      %v3653 = vunpack.c.h.b16 %v3614
      %v3654 = vpack.c.b16 %v3628, %v3628
      %v3655 = vpack.c.b16 %v3629, %v3629
      %v3656 = vpack.c.b16 %v3630, %v3630
      %v3657 = vpack.c.b16 %v3631, %v3631
      %v3658 = vpack.c.b16 %v3632, %v3632
      %v3659 = vpack.c.b16 %v3633, %v3633
      %v3660 = vpack.c.b16 %v3634, %v3634
      %v3661 = vpack.c.b16 %v3635, %v3635
      %v3662 = vpack.c.b16 %v3636, %v3636
      %v3663 = vpack.c.b16 %v3637, %v3637
      %v3664 = vpack.c.b16 %v3638, %v3638
      %v3665 = vpack.c.b16 %v3639, %v3639
      %v3666 = vpack.c.b16 %v3640, %v3640
      %v3667 = vpack.c.b16 %v3641, %v3641
      %v3668 = vpack.c.b16 %v3642, %v3642
      %v3669 = vpack.c.b16 %v3643, %v3643
      %v3670 = vpack.c.b16 %v3644, %v3644
      %v3671 = vpack.c.b16 %v3645, %v3645
      %v3672 = vpack.c.b16 %v3646, %v3646
      %v3673 = vpack.c.b16 %v3647, %v3647
      %v3674 = vpack.c.b16 %v3648, %v3648
      %v3675 = vpack.c.b16 %v3649, %v3649
      %v3676 = vpack.c.b16 %v3650, %v3650
      %v3677 = vpack.c.b16 %v3651, %v3651
      %v3678 = vpack.c.b16 %v3652, %v3652
      %v3679 = vpack.c.b16 %v3653, %v3653
      %vm3706 = vcmask 125952
      %3707 = vst.msk [vmem:[%s206] sm:$0xf] %vm3706, %v3654
      %3708 = vst.msk [vmem:[%s206 + $0x4] sm:$0xf] %vm3706, %v3655
      %3709 = vst.msk [vmem:[%s206 + $0x8] sm:$0xf] %vm3706, %v3656
      %3710 = vst.msk [vmem:[%s206 + $0xc] sm:$0xf] %vm3706, %v3657
      %3711 = vst.msk [vmem:[%s206 + $0x10] sm:$0xf] %vm3706, %v3658
      %3712 = vst.msk [vmem:[%s206 + $0x14] sm:$0xf] %vm3706, %v3659
      %3713 = vst.msk [vmem:[%s206 + $0x18] sm:$0xf] %vm3706, %v3660
      %3714 = vst.msk [vmem:[%s206 + $0x1c] sm:$0xf] %vm3706, %v3661
      %3715 = vst.msk [vmem:[%s206 + $0x20] sm:$0xf] %vm3706, %v3662
      %3716 = vst.msk [vmem:[%s206 + $0x24] sm:$0xf] %vm3706, %v3663
      %3717 = vst.msk [vmem:[%s206 + $0x28] sm:$0xf] %vm3706, %v3664
      %3718 = vst.msk [vmem:[%s206 + $0x2c] sm:$0xf] %vm3706, %v3665
      %3719 = vst.msk [vmem:[%s206 + $0x30] sm:$0xf] %vm3706, %v3666
      %3720 = vst.msk [vmem:[%s206 + $0x34] sm:$0xf] %vm3706, %v3667
      %3721 = vst.msk [vmem:[%s206 + $0x38] sm:$0xf] %vm3706, %v3668
      %3722 = vst.msk [vmem:[%s206 + $0x3c] sm:$0xf] %vm3706, %v3669
      %3723 = vst.msk [vmem:[%s206 + $0x40] sm:$0xf] %vm3706, %v3670
      %3724 = vst.msk [vmem:[%s206 + $0x44] sm:$0xf] %vm3706, %v3671
      %3725 = vst.msk [vmem:[%s206 + $0x48] sm:$0xf] %vm3706, %v3672
      %3726 = vst.msk [vmem:[%s206 + $0x4c] sm:$0xf] %vm3706, %v3673
      %3727 = vst.msk [vmem:[%s206 + $0x50] sm:$0xf] %vm3706, %v3674
      %3728 = vst.msk [vmem:[%s206 + $0x54] sm:$0xf] %vm3706, %v3675
      %3729 = vst.msk [vmem:[%s206 + $0x58] sm:$0xf] %vm3706, %v3676
      %3730 = vst.msk [vmem:[%s206 + $0x5c] sm:$0xf] %vm3706, %v3677
      %3731 = vst.msk [vmem:[%s206 + $0x60] sm:$0xf] %vm3706, %v3678
      %3732 = vst.msk [vmem:[%s206 + $0x64] sm:$0xf] %vm3706, %v3679
      %s3733 = smul.u32 26, %s19
      %p3734 = scmp.lt.s32.totalorder %s18, 1
      %s3735 = scalar_select %p3734, %s18, 1
      %p3736 = scmp.lt.s32.totalorder %s3733, 25
      %s3737 = scalar_select %p3736, %s3733, 25
      %s3738 = smul.addr %s3735, 26
      %s3739 = sadd.s32 %s3737, %s3738
      %s3740 = smul.addr %s3739, 4
      %s3741 = scalar_lea.vmem %s3, %s3740
      // Predicated region
      $region33: #{pokenet_forward.5} parent=31 // pred_check
        %p3742 = pneg %p116
      $region34: #{pokenet_forward.5} parent=31 // pred_check_branch
        %3744 = sbr.rel (%p3742) target = $region36
      $region35: #{pokenet_forward.5} parent=31 // pred_region
        %s3745 = smul.u32 26, %s19
      $region36: #{pokenet_forward.5} parent=31 // pred_fallthru
        _
    $region32: #{pokenet_forward.5} parent=5 // pred_fallthru
      _
    %p3746 = scmp.le.s32.totalorder 2, %s9
    // Predicated region
    $region37: #{pokenet_forward.5} parent=5 // pred_check
      %p3747 = pneg %p3746
    $region38: #{pokenet_forward.5} parent=5 // pred_check_branch
      %3749 = sbr.rel (%p3747) target = $region40
    $region39: #{pokenet_forward.5} parent=5 // pred_region
      %s3750 = ssub.s32 %s9, 2
      // Predicated region
      $region41: #{pokenet_forward.5} parent=39 // pred_check
        %p3751 = pneg %p122
      $region42: #{pokenet_forward.5} parent=39 // pred_check_branch
        %3753 = sbr.rel (%p3751) target = $region44
      $region43: #{pokenet_forward.5} parent=39 // pred_region
        %s3754 = smul.u32 26, %s21
        %p3755 = scmp.lt.s32.totalorder %s20, 1
        %s3756 = scalar_select %p3755, %s20, 1
        %p3757 = scmp.lt.s32.totalorder %s3754, 25
        %s3758 = scalar_select %p3757, %s3754, 25
        %s3759 = smul.addr %s3756, 26
        %s3760 = sadd.s32 %s3758, %s3759
        %s3761 = smul.addr %s3760, 4
        %s3762 = scalar_lea.vmem %s3, %s3761
      $region44: #{pokenet_forward.5} parent=39 // pred_fallthru
        _
    $region40: #{pokenet_forward.5} parent=5 // pred_fallthru
      _
  $region6: #{pokenet_forward.5} parent=0 // loop_footer
    %s13 = sadd.s32 1, %s9
  $region7: #{pokenet_forward.5} parent=0 // loop_footer_branch
    %8 = sbr.rel target = $region3
  $region8: #{pokenet_forward.5} parent=0 // loop_exit
    _

// kernel: pokenet_forward.6
$region0: #{pokenet_forward.6}
  #allocation0 [shape = 'u32[]', space=smem, size = 0x4, offset = 0x4, fixed_abs, tag = 'smem constant byte address 0x4 - core index']
  #allocation1 [shape = 'u32[144,128]{1,0:T(1,128)}', space=vmem, size = 0x12000, scoped, tag = 'internal scratch']
  %s0 = inlined_call_operand.vmem [shape: bf16[2,1,288,144], index: 0, kind: input, shape index: {}]
  %s1 = inlined_call_operand.vmem [shape: bf16[144,32], index: 1, kind: input, shape index: {}]
  %s2 = inlined_call_operand.vmem [shape: f32[1,32], index: 2, kind: input, shape index: {}]
  %s3 = inlined_call_operand.vmem [shape: bf16[2,32,32], index: 3, kind: output, shape index: {}]
  %s4 = sld [smem:[#allocation0]]
  $region45: #{pokenet_forward.6} parent=0
    _
  %s6 = ssub.s32 1, %s4
  %s7 = scalar_select 0, %s6, %s4
  loop: start=0, step=1, limit=4
  $region2: #{pokenet_forward.6} parent=0 // loop_pre_header
    _
  $region3: #{pokenet_forward.6} parent=0 // loop_header
    %s9 = sphi 0, %s13
    %p10 = scmp.ge.s32.totalorder %s9, 4
    %s16 = sphi 0, %s28
    %s17 = sphi 0, %s24
    %s18 = sphi 0, %s16
    %s19 = sphi 0, %s17
    %s20 = sphi 0, %s18
    %s21 = sphi 0, %s19
    %s33 = sphi 0, %s35
    %s36 = sphi 0, %s33
    %s37 = sphi 0, %s36
    %s53 = sphi 0, %s37
    %s57 = sphi 0, %s57
    %s59 = sphi 0, %s57
    %s60 = sphi 0, %s59
    %s74 = sphi 0, %s60
    %s78 = sphi 0, %s78
    %s80 = sphi 0, %s78
    %s81 = sphi 0, %s80
    %s95 = sphi 0, %s81
    %s103 = sphi 0, %s105
    %s106 = sphi 0, %s103
    %s107 = sphi 0, %s106
    %s123 = sphi 0, %s107
  $region4: #{pokenet_forward.6} parent=0 // loop_header_branch
    %12 = sbr.rel (%p10) target = $region8
  $region5: #{pokenet_forward.6} parent=0 // loop_body
    %s14 = ssub.s32 %s9, 1
    %s15 = ssub.s32 %s9, 2
    %s22 = sadd.s32 1, %s17
    %p23 = scmp.ge.s32.totalorder %s22, 1
    %s24 = scalar_select %p23, 0, %s22
    %s25 = sadd.s32 1, %s16
    %s26 = scalar_select %p23, %s25, %s16
    %p27 = scmp.ge.s32.totalorder %s26, 2
    %s28 = scalar_select %p27, 0, %s26
    %s29 = ssub.s32 %s16, %s28
    %s30 = ssub.s32 %s17, %s24
    %s31 = sor.u32 %s29, %s30
    %p32 = scmp.eq.s32.totalorder %s31, 0
    %s34 = sadd.s32 %s33, 1
    %s35 = scalar_select %p32, %s33, %s34
    %p38 = pneg %p32
    %p39 = scmp.eq.s32.totalorder %s9, 1
    %p40 = por %p38, %p39
    %p41 = scmp.ne.s32.totalorder %s33, %s36
    %p42 = scmp.eq.s32.totalorder %s9, 0
    %p43 = por %p41, %p42
    %p44 = scmp.ne.s32.totalorder %s33, %s36
    %p45 = scmp.eq.s32.totalorder %s14, 1
    %p46 = por %p44, %p45
    %p47 = scmp.ne.s32.totalorder %s36, %s37
    %p48 = scmp.eq.s32.totalorder %s14, 0
    %p49 = por %p47, %p48
    %p50 = scmp.ne.s32.totalorder %s36, %s37
    %p51 = scmp.eq.s32.totalorder %s15, 1
    %p52 = por %p50, %p51
    %p54 = scmp.ne.s32.totalorder %s37, %s53
    %p55 = scmp.eq.s32.totalorder %s15, 0
    %p56 = por %p54, %p55
    %s58 = sadd.s32 %s57, 1
    %p61 = scmp.eq.s32.totalorder %s9, 1
    %p62 = scmp.ne.s32.totalorder %s57, %s59
    %p63 = scmp.eq.s32.totalorder %s9, 0
    %p64 = por %p62, %p63
    %p65 = scmp.ne.s32.totalorder %s57, %s59
    %p66 = scmp.eq.s32.totalorder %s14, 1
    %p67 = por %p65, %p66
    %p68 = scmp.ne.s32.totalorder %s59, %s60
    %p69 = scmp.eq.s32.totalorder %s14, 0
    %p70 = por %p68, %p69
    %p71 = scmp.ne.s32.totalorder %s59, %s60
    %p72 = scmp.eq.s32.totalorder %s15, 1
    %p73 = por %p71, %p72
    %p75 = scmp.ne.s32.totalorder %s60, %s74
    %p76 = scmp.eq.s32.totalorder %s15, 0
    %p77 = por %p75, %p76
    %s79 = sadd.s32 %s78, 1
    %p82 = scmp.eq.s32.totalorder %s9, 1
    %p83 = scmp.ne.s32.totalorder %s78, %s80
    %p84 = scmp.eq.s32.totalorder %s9, 0
    %p85 = por %p83, %p84
    %p86 = scmp.ne.s32.totalorder %s78, %s80
    %p87 = scmp.eq.s32.totalorder %s14, 1
    %p88 = por %p86, %p87
    %p89 = scmp.ne.s32.totalorder %s80, %s81
    %p90 = scmp.eq.s32.totalorder %s14, 0
    %p91 = por %p89, %p90
    %p92 = scmp.ne.s32.totalorder %s80, %s81
    %p93 = scmp.eq.s32.totalorder %s15, 1
    %p94 = por %p92, %p93
    %p96 = scmp.ne.s32.totalorder %s81, %s95
    %p97 = scmp.eq.s32.totalorder %s15, 0
    %p98 = por %p96, %p97
    %s99 = ssub.s32 %s16, %s28
    %s100 = ssub.s32 %s17, %s24
    %s101 = sor.u32 %s99, %s100
    %p102 = scmp.eq.s32.totalorder %s101, 0
    %s104 = sadd.s32 %s103, 1
    %s105 = scalar_select %p102, %s103, %s104
    %p108 = pneg %p102
    %p109 = scmp.eq.s32.totalorder %s9, 1
    %p110 = por %p108, %p109
    %p111 = scmp.ne.s32.totalorder %s103, %s106
    %p112 = scmp.eq.s32.totalorder %s9, 0
    %p113 = por %p111, %p112
    %p114 = scmp.ne.s32.totalorder %s103, %s106
    %p115 = scmp.eq.s32.totalorder %s14, 1
    %p116 = por %p114, %p115
    %p117 = scmp.ne.s32.totalorder %s106, %s107
    %p118 = scmp.eq.s32.totalorder %s14, 0
    %p119 = por %p117, %p118
    %p120 = scmp.ne.s32.totalorder %s106, %s107
    %p121 = scmp.eq.s32.totalorder %s15, 1
    %p122 = por %p120, %p121
    %p124 = scmp.ne.s32.totalorder %s107, %s123
    %p125 = scmp.eq.s32.totalorder %s15, 0
    %p126 = por %p124, %p125
    %p127 = scmp.le.s32.totalorder 1, %s9
    %p128 = scmp.lt.s32.totalorder %s9, 3
    %p129 = pnand %p127, %p128
    %p130 = pneg %p129
    // Predicated region
    $region9: #{pokenet_forward.6} parent=5 // pred_check
      _
    $region10: #{pokenet_forward.6} parent=5 // pred_check_branch
      %132 = sbr.rel (%p129) target = $region12
    $region11: #{pokenet_forward.6} parent=5 // pred_region
      %s133 = ssub.s32 %s9, 1
      // Predicated region
      $region13: #{pokenet_forward.6} parent=11 // pred_check
        %p134 = pneg %p70
      $region14: #{pokenet_forward.6} parent=11 // pred_check_branch
        %136 = sbr.rel (%p134) target = $region16
      $region15: #{pokenet_forward.6} parent=11 // pred_region
        _
      $region16: #{pokenet_forward.6} parent=11 // pred_fallthru
        _
      // Predicated region
      $region17: #{pokenet_forward.6} parent=11 // pred_check
        %p137 = pneg %p91
      $region18: #{pokenet_forward.6} parent=11 // pred_check_branch
        %139 = sbr.rel (%p137) target = $region20
      $region19: #{pokenet_forward.6} parent=11 // pred_region
        _
      $region20: #{pokenet_forward.6} parent=11 // pred_fallthru
        _
    $region12: #{pokenet_forward.6} parent=5 // pred_fallthru
      _
    %p140 = scmp.lt.s32.totalorder %s9, 2
    // Predicated region
    $region21: #{pokenet_forward.6} parent=5 // pred_check
      %p141 = pneg %p140
    $region22: #{pokenet_forward.6} parent=5 // pred_check_branch
      %143 = sbr.rel (%p141) target = $region24
    $region23: #{pokenet_forward.6} parent=5 // pred_region
      // Predicated region
      $region25: #{pokenet_forward.6} parent=23 // pred_check
        %p144 = pneg %p43
      $region26: #{pokenet_forward.6} parent=23 // pred_check_branch
        %146 = sbr.rel (%p144) target = $region28
      $region27: #{pokenet_forward.6} parent=23 // pred_region
        %p147 = scmp.lt.s32.totalorder %s16, 1
        %s148 = scalar_select %p147, %s16, 1
        %p149 = scmp.lt.s32.totalorder %s17, 0
        %s150 = scalar_select %p149, %s17, 0
        %s151 = smul.addr %s150, 72
        %s152 = smul.addr %s148, 72
        %s153 = sadd.s32 %s151, %s152
        %s154 = smul.addr %s153, 4
        %s155 = scalar_lea.vmem %s0, %s154
      $region28: #{pokenet_forward.6} parent=23 // pred_fallthru
        _
    $region24: #{pokenet_forward.6} parent=5 // pred_fallthru
      _
    %p156 = scmp.le.s32.totalorder 1, %s9
    %p157 = scmp.lt.s32.totalorder %s9, 3
    %p158 = pnand %p156, %p157
    %p159 = pneg %p158
    // Predicated region
    $region29: #{pokenet_forward.6} parent=5 // pred_check
      _
    $region30: #{pokenet_forward.6} parent=5 // pred_check_branch
      %161 = sbr.rel (%p158) target = $region32
    $region31: #{pokenet_forward.6} parent=5 // pred_region
      %s162 = ssub.s32 %s9, 1
      %p163 = scmp.lt.s32.totalorder %s18, 1
      %s164 = scalar_select %p163, %s18, 1
      %p165 = scmp.lt.s32.totalorder %s19, 0
      %s166 = scalar_select %p165, %s19, 0
      %s167 = smul.addr %s166, 72
      %s168 = smul.addr %s164, 72
      %s169 = sadd.s32 %s167, %s168
      %s170 = smul.addr %s169, 4
      %s171 = scalar_lea.vmem %s0, %s170
      %p172 = pneg %p49
      %p173 = pneg %p46
      %p174 = pneg %p70
      %p175 = pneg %p67
      %p176 = pneg %p91
      %p177 = pneg %p88
      %p178 = pneg %p119
      %p179 = pneg %p116
      %s180 = smul.u32 4, %s19
      %p181 = scmp.lt.s32.totalorder %s18, 1
      %s182 = scalar_select %p181, %s18, 1
      %p183 = scmp.lt.s32.totalorder %s180, 3
      %s184 = scalar_select %p183, %s180, 3
      %s185 = smul.addr %s182, 4
      %s186 = sadd.s32 %s184, %s185
      %s187 = smul.addr %s186, 4
      %s188 = scalar_lea.vmem %s3, %s187
      %p189 = scmp.lt.s32.totalorder %s18, 1
      %s190 = scalar_select %p189, %s18, 1
      %p191 = scmp.lt.s32.totalorder %s19, 0
      %s192 = scalar_select %p191, %s19, 0
      %s193 = smul.addr %s192, 72
      %s194 = smul.addr %s190, 72
      %s195 = sadd.s32 %s193, %s194
      %s196 = smul.addr %s195, 4
      %s197 = scalar_lea.vmem %s0, %s196
      %s198 = smul.u32 4, %s19
      %p199 = scmp.lt.s32.totalorder %s18, 1
      %s200 = scalar_select %p199, %s18, 1
      %p201 = scmp.lt.s32.totalorder %s198, 3
      %s202 = scalar_select %p201, %s198, 3
      %s203 = smul.addr %s200, 4
      %s204 = sadd.s32 %s202, %s203
      %s205 = smul.addr %s204, 4
      %s206 = scalar_lea.vmem %s3, %s205
      %s207 = smul.u32 4, %s19
      %v209 = vld [vmem:[%s1] sm:$0xf]
      %v210 = vld [vmem:[%s1 + $0x4] sm:$0xf]
      %v211 = vld [vmem:[%s1 + $0x8] sm:$0xf]
      %v212 = vld [vmem:[%s1 + $0xc] sm:$0xf]
      %v213 = vld [vmem:[%s1 + $0x10] sm:$0xf]
      %v214 = vld [vmem:[%s1 + $0x14] sm:$0xf]
      %v215 = vld [vmem:[%s1 + $0x18] sm:$0xf]
      %v216 = vld [vmem:[%s1 + $0x1c] sm:$0xf]
      %v217 = vld [vmem:[%s1 + $0x20] sm:$0xf]
      %v218 = vld [vmem:[%s1 + $0x24] sm:$0xf]
      %v219 = vld [vmem:[%s1 + $0x28] sm:$0xf]
      %v220 = vld [vmem:[%s1 + $0x2c] sm:$0xf]
      %v221 = vld [vmem:[%s1 + $0x30] sm:$0xf]
      %v222 = vld [vmem:[%s1 + $0x34] sm:$0xf]
      %v223 = vld [vmem:[%s1 + $0x38] sm:$0xf]
      %v224 = vld [vmem:[%s1 + $0x3c] sm:$0xf]
      %v225 = vld [vmem:[%s1 + $0x40] sm:$0xf]
      %v226 = vld [vmem:[%s1 + $0x44] sm:$0xf]
      %v227 = vld [vmem:[%s2] sm:$0x1]
      %v228 = vld [vmem:[%s197] sm:$0xff]
      %v229 = vld [vmem:[%s197 + $0x8] sm:$0xff]
      %v230 = vld [vmem:[%s197 + $0x10] sm:$0xff]
      %v231 = vld [vmem:[%s197 + $0x18] sm:$0xff]
      %v233 = vlaneseq
      %v234 = vshrl.u32 %v233, 7
      %v235 = vsub.s32 0, %v234
      %v236 = vrot.slane %v227, %v235
      %v242 = vunpack.c.l.b16 %v228
      %v243 = vunpack.c.h.b16 %v228
      %v244 = vunpack.c.l.b16 %v229
      %v245 = vunpack.c.h.b16 %v229
      %v246 = vunpack.c.l.b16 %v230
      %v247 = vunpack.c.h.b16 %v230
      %v248 = vunpack.c.l.b16 %v231
      %v249 = vunpack.c.h.b16 %v231
      %v250 = vpack.c.b16 %v244, %v242
      %v251 = vpack.c.b16 %v245, %v243
      %v252 = vpack.c.b16 %v248, %v246
      %v253 = vpack.c.b16 %v249, %v247
      %v274 = vunpack.c.l.b16 %v209
      %v275 = vunpack.c.l.b16 %v210
      %v276 = vunpack.c.l.b16 %v211
      %v277 = vunpack.c.l.b16 %v212
      %v278 = vunpack.c.l.b16 %v213
      %v279 = vunpack.c.l.b16 %v214
      %v280 = vunpack.c.l.b16 %v215
      %v281 = vunpack.c.l.b16 %v216
      %v282 = vunpack.c.l.b16 %v217
      %v283 = vunpack.c.l.b16 %v218
      %v284 = vunpack.c.l.b16 %v219
      %v285 = vunpack.c.l.b16 %v220
      %v286 = vunpack.c.l.b16 %v221
      %v287 = vunpack.c.l.b16 %v222
      %v288 = vunpack.c.l.b16 %v223
      %v289 = vunpack.c.l.b16 %v224
      %v290 = vunpack.c.l.b16 %v225
      %v291 = vunpack.c.l.b16 %v226
      %v292 = vpack.c.b16 %v275, %v274
      %v293 = vpack.c.b16 %v277, %v276
      %v294 = vpack.c.b16 %v279, %v278
      %v295 = vpack.c.b16 %v281, %v280
      %v296 = vpack.c.b16 %v283, %v282
      %v297 = vpack.c.b16 %v285, %v284
      %v298 = vpack.c.b16 %v287, %v286
      %v299 = vpack.c.b16 %v289, %v288
      %v300 = vpack.c.b16 %v291, %v290
      %vm310 = vcmask 130048
      %v312 = vsel %vm310, %v251, 0
      %v315 = vsel %vm310, %v253, 0
      %317 = vmatprep.subr.bf16.mxu0 0
      %318 = vmatpush1.bf16.msra.mxu0 %v292
      %319 = vmatprep.subr.bf16.mxu0 0
      %320 = vmatpush1.bf16.msra.mxu0 %v293
      %321 = vmatprep.subr.bf16.mxu0 0
      %322 = vmatpush1.bf16.msra.mxu0 %v294
      %323 = vmatprep.subr.bf16.mxu0 0
      %324 = vmatpush1.bf16.msra.mxu0 %v295
      %325 = vmatprep.subr.bf16.mxu0 0
      %326 = vmatpush1.bf16.msra.mxu0 %v296
      %327 = vmatprep.subr.bf16.mxu0 0
      %328 = vmatpush1.bf16.msra.mxu0 %v297
      %329 = vmatprep.subr.bf16.mxu0 0
      %330 = vmatpush1.bf16.msra.mxu0 %v298
      %331 = vmatprep.subr.bf16.mxu0 0
      %332 = vmatpush1.bf16.msra.mxu0 %v299
      %333 = vmatprep.subr.bf16.mxu0 0
      %334 = vmatpush1.bf16.msra.mxu0 %v300
      %335 = vmatprep.subr.bf16.mxu0 0
      %336 = vmatpush1.bf16.msra.mxu0 0
      %337 = vmatprep.subr.bf16.mxu0 0
      %338 = vmatpush1.bf16.msra.mxu0 0
      %339 = vmatprep.subr.bf16.mxu0 0
      %340 = vmatpush1.bf16.msra.mxu0 0
      %341 = vmatprep.subr.bf16.mxu0 0
      %342 = vmatpush1.bf16.msra.mxu0 0
      %343 = vmatprep.subr.bf16.mxu0 0
      %344 = vmatpush1.bf16.msra.mxu0 0
      %345 = vmatprep.subr.bf16.mxu0 0
      %346 = vmatpush1.bf16.msra.mxu0 0
      %347 = vmatprep.subr.bf16.mxu0 0
      %348 = vmatpush1.bf16.msra.mxu0 0
      %349 = vmatprep.mubr.bf16.mxu0 %v312
      %350 = vmatmul.mubr.bf16.gmra.mrb[0].mxu0 %v250
      %v351 = vpop.f32.mrb[0].mxu0
      %v352 = vadd.f32 %v236, %v351
      %v353 = vpop.f32.mrb[0].mxu0
      %v354 = vpop.f32.mrb[0].mxu0
      %v355 = vadd.f32 %v236, %v354
      %v356 = vpop.f32.mrb[0].mxu0
      %357 = vmatprep.mubr.bf16.mxu0 %v315
      %358 = vmatmul.mubr.bf16.gmra.mrb[0].mxu0 %v252
      %v359 = vpop.f32.mrb[0].mxu0
      %v360 = vadd.f32 %v236, %v359
      %v361 = vpop.f32.mrb[0].mxu0
      %v362 = vpop.f32.mrb[0].mxu0
      %v363 = vadd.f32 %v236, %v362
      %v364 = vpop.f32.mrb[0].mxu0
      %365 = vdwg.mxu0
      %v366 = vmax.f32 %v352, 0.0
      %v367 = vmax.f32 %v355, 0.0
      %v368 = vmax.f32 %v360, 0.0
      %v369 = vmax.f32 %v363, 0.0
      %v370 = vld [vmem:[%s197 + $0x20] sm:$0xff]
      %v371 = vld [vmem:[%s197 + $0x28] sm:$0xff]
      %v372 = vld [vmem:[%s197 + $0x30] sm:$0xff]
      %v373 = vld [vmem:[%s197 + $0x38] sm:$0xff]
      %v378 = vunpack.c.l.b16 %v370
      %v379 = vunpack.c.h.b16 %v370
      %v380 = vunpack.c.l.b16 %v371
      %v381 = vunpack.c.h.b16 %v371
      %v382 = vunpack.c.l.b16 %v372
      %v383 = vunpack.c.h.b16 %v372
      %v384 = vunpack.c.l.b16 %v373
      %v385 = vunpack.c.h.b16 %v373
      %v386 = vpack.c.b16 %v380, %v378
      %v387 = vpack.c.b16 %v381, %v379
      %v388 = vpack.c.b16 %v384, %v382
      %v389 = vpack.c.b16 %v385, %v383
      %v393 = vsel %vm310, %v387, 0
      %v396 = vsel %vm310, %v389, 0
      %398 = vmatprep.subr.bf16.mxu0 0
      %399 = vmatpush1.bf16.msra.mxu0 %v292
      %400 = vmatprep.subr.bf16.mxu0 0
      %401 = vmatpush1.bf16.msra.mxu0 %v293
      %402 = vmatprep.subr.bf16.mxu0 0
      %403 = vmatpush1.bf16.msra.mxu0 %v294
      %404 = vmatprep.subr.bf16.mxu0 0
      %405 = vmatpush1.bf16.msra.mxu0 %v295
      %406 = vmatprep.subr.bf16.mxu0 0
      %407 = vmatpush1.bf16.msra.mxu0 %v296
      %408 = vmatprep.subr.bf16.mxu0 0
      %409 = vmatpush1.bf16.msra.mxu0 %v297
      %410 = vmatprep.subr.bf16.mxu0 0
      %411 = vmatpush1.bf16.msra.mxu0 %v298
      %412 = vmatprep.subr.bf16.mxu0 0
      %413 = vmatpush1.bf16.msra.mxu0 %v299
      %414 = vmatprep.subr.bf16.mxu0 0
      %415 = vmatpush1.bf16.msra.mxu0 %v300
      %416 = vmatprep.subr.bf16.mxu0 0
      %417 = vmatpush1.bf16.msra.mxu0 0
      %418 = vmatprep.subr.bf16.mxu0 0
      %419 = vmatpush1.bf16.msra.mxu0 0
      %420 = vmatprep.subr.bf16.mxu0 0
      %421 = vmatpush1.bf16.msra.mxu0 0
      %422 = vmatprep.subr.bf16.mxu0 0
      %423 = vmatpush1.bf16.msra.mxu0 0
      %424 = vmatprep.subr.bf16.mxu0 0
      %425 = vmatpush1.bf16.msra.mxu0 0
      %426 = vmatprep.subr.bf16.mxu0 0
      %427 = vmatpush1.bf16.msra.mxu0 0
      %428 = vmatprep.subr.bf16.mxu0 0
      %429 = vmatpush1.bf16.msra.mxu0 0
      %430 = vmatprep.mubr.bf16.mxu0 %v393
      %431 = vmatmul.mubr.bf16.gmra.mrb[0].mxu0 %v386
      %v432 = vpop.f32.mrb[0].mxu0
      %v433 = vadd.f32 %v236, %v432
      %v434 = vpop.f32.mrb[0].mxu0
      %v435 = vpop.f32.mrb[0].mxu0
      %v436 = vadd.f32 %v236, %v435
      %v437 = vpop.f32.mrb[0].mxu0
      %438 = vmatprep.mubr.bf16.mxu0 %v396
      %439 = vmatmul.mubr.bf16.gmra.mrb[0].mxu0 %v388
      %v440 = vpop.f32.mrb[0].mxu0
      %v441 = vadd.f32 %v236, %v440
      %v442 = vpop.f32.mrb[0].mxu0
      %v443 = vpop.f32.mrb[0].mxu0
      %v444 = vadd.f32 %v236, %v443
      %v445 = vpop.f32.mrb[0].mxu0
      %446 = vdwg.mxu0
      %v447 = vmax.f32 %v433, 0.0
      %v448 = vmax.f32 %v436, 0.0
      %v449 = vmax.f32 %v441, 0.0
      %v450 = vmax.f32 %v444, 0.0
      %v451 = vmax.f32 %v366, %v447
      %v452 = vmax.f32 %v367, %v448
      %v453 = vmax.f32 %v368, %v449
      %v454 = vmax.f32 %v369, %v450
      %v455 = vld [vmem:[%s197 + $0x40] sm:$0xff]
      %v456 = vld [vmem:[%s197 + $0x48] sm:$0xff]
      %v457 = vld [vmem:[%s197 + $0x50] sm:$0xff]
      %v458 = vld [vmem:[%s197 + $0x58] sm:$0xff]
      %v463 = vunpack.c.l.b16 %v455
      %v464 = vunpack.c.h.b16 %v455
      %v465 = vunpack.c.l.b16 %v456
      %v466 = vunpack.c.h.b16 %v456
      %v467 = vunpack.c.l.b16 %v457
      %v468 = vunpack.c.h.b16 %v457
      %v469 = vunpack.c.l.b16 %v458
      %v470 = vunpack.c.h.b16 %v458
      %v471 = vpack.c.b16 %v465, %v463
      %v472 = vpack.c.b16 %v466, %v464
      %v473 = vpack.c.b16 %v469, %v467
      %v474 = vpack.c.b16 %v470, %v468
      %v478 = vsel %vm310, %v472, 0
      %v481 = vsel %vm310, %v474, 0
      %483 = vmatprep.subr.bf16.mxu0 0
      %484 = vmatpush1.bf16.msra.mxu0 %v292
      %485 = vmatprep.subr.bf16.mxu0 0
      %486 = vmatpush1.bf16.msra.mxu0 %v293
      %487 = vmatprep.subr.bf16.mxu0 0
      %488 = vmatpush1.bf16.msra.mxu0 %v294
      %489 = vmatprep.subr.bf16.mxu0 0
      %490 = vmatpush1.bf16.msra.mxu0 %v295
      %491 = vmatprep.subr.bf16.mxu0 0
      %492 = vmatpush1.bf16.msra.mxu0 %v296
      %493 = vmatprep.subr.bf16.mxu0 0
      %494 = vmatpush1.bf16.msra.mxu0 %v297
      %495 = vmatprep.subr.bf16.mxu0 0
      %496 = vmatpush1.bf16.msra.mxu0 %v298
      %497 = vmatprep.subr.bf16.mxu0 0
      %498 = vmatpush1.bf16.msra.mxu0 %v299
      %499 = vmatprep.subr.bf16.mxu0 0
      %500 = vmatpush1.bf16.msra.mxu0 %v300
      %501 = vmatprep.subr.bf16.mxu0 0
      %502 = vmatpush1.bf16.msra.mxu0 0
      %503 = vmatprep.subr.bf16.mxu0 0
      %504 = vmatpush1.bf16.msra.mxu0 0
      %505 = vmatprep.subr.bf16.mxu0 0
      %506 = vmatpush1.bf16.msra.mxu0 0
      %507 = vmatprep.subr.bf16.mxu0 0
      %508 = vmatpush1.bf16.msra.mxu0 0
      %509 = vmatprep.subr.bf16.mxu0 0
      %510 = vmatpush1.bf16.msra.mxu0 0
      %511 = vmatprep.subr.bf16.mxu0 0
      %512 = vmatpush1.bf16.msra.mxu0 0
      %513 = vmatprep.subr.bf16.mxu0 0
      %514 = vmatpush1.bf16.msra.mxu0 0
      %515 = vmatprep.mubr.bf16.mxu0 %v478
      %516 = vmatmul.mubr.bf16.gmra.mrb[0].mxu0 %v471
      %v517 = vpop.f32.mrb[0].mxu0
      %v518 = vadd.f32 %v236, %v517
      %v519 = vpop.f32.mrb[0].mxu0
      %v520 = vpop.f32.mrb[0].mxu0
      %v521 = vadd.f32 %v236, %v520
      %v522 = vpop.f32.mrb[0].mxu0
      %523 = vmatprep.mubr.bf16.mxu0 %v481
      %524 = vmatmul.mubr.bf16.gmra.mrb[0].mxu0 %v473
      %v525 = vpop.f32.mrb[0].mxu0
      %v526 = vadd.f32 %v236, %v525
      %v527 = vpop.f32.mrb[0].mxu0
      %v528 = vpop.f32.mrb[0].mxu0
      %v529 = vadd.f32 %v236, %v528
      %v530 = vpop.f32.mrb[0].mxu0
      %531 = vdwg.mxu0
      %v532 = vmax.f32 %v518, 0.0
      %v533 = vmax.f32 %v521, 0.0
      %v534 = vmax.f32 %v526, 0.0
      %v535 = vmax.f32 %v529, 0.0
      %v536 = vmax.f32 %v451, %v532
      %v537 = vmax.f32 %v452, %v533
      %v538 = vmax.f32 %v453, %v534
      %v539 = vmax.f32 %v454, %v535
      %v540 = vld [vmem:[%s197 + $0x60] sm:$0xff]
      %v541 = vld [vmem:[%s197 + $0x68] sm:$0xff]
      %v542 = vld [vmem:[%s197 + $0x70] sm:$0xff]
      %v543 = vld [vmem:[%s197 + $0x78] sm:$0xff]
      %v548 = vunpack.c.l.b16 %v540
      %v549 = vunpack.c.h.b16 %v540
      %v550 = vunpack.c.l.b16 %v541
      %v551 = vunpack.c.h.b16 %v541
      %v552 = vunpack.c.l.b16 %v542
      %v553 = vunpack.c.h.b16 %v542
      %v554 = vunpack.c.l.b16 %v543
      %v555 = vunpack.c.h.b16 %v543
      %v556 = vpack.c.b16 %v550, %v548
      %v557 = vpack.c.b16 %v551, %v549
      %v558 = vpack.c.b16 %v554, %v552
      %v559 = vpack.c.b16 %v555, %v553
      %v563 = vsel %vm310, %v557, 0
      %v566 = vsel %vm310, %v559, 0
      %568 = vmatprep.subr.bf16.mxu0 0
      %569 = vmatpush1.bf16.msra.mxu0 %v292
      %570 = vmatprep.subr.bf16.mxu0 0
      %571 = vmatpush1.bf16.msra.mxu0 %v293
      %572 = vmatprep.subr.bf16.mxu0 0
      %573 = vmatpush1.bf16.msra.mxu0 %v294
      %574 = vmatprep.subr.bf16.mxu0 0
      %575 = vmatpush1.bf16.msra.mxu0 %v295
      %576 = vmatprep.subr.bf16.mxu0 0
      %577 = vmatpush1.bf16.msra.mxu0 %v296
      %578 = vmatprep.subr.bf16.mxu0 0
      %579 = vmatpush1.bf16.msra.mxu0 %v297
      %580 = vmatprep.subr.bf16.mxu0 0
      %581 = vmatpush1.bf16.msra.mxu0 %v298
      %582 = vmatprep.subr.bf16.mxu0 0
      %583 = vmatpush1.bf16.msra.mxu0 %v299
      %584 = vmatprep.subr.bf16.mxu0 0
      %585 = vmatpush1.bf16.msra.mxu0 %v300
      %586 = vmatprep.subr.bf16.mxu0 0
      %587 = vmatpush1.bf16.msra.mxu0 0
      %588 = vmatprep.subr.bf16.mxu0 0
      %589 = vmatpush1.bf16.msra.mxu0 0
      %590 = vmatprep.subr.bf16.mxu0 0
      %591 = vmatpush1.bf16.msra.mxu0 0
      %592 = vmatprep.subr.bf16.mxu0 0
      %593 = vmatpush1.bf16.msra.mxu0 0
      %594 = vmatprep.subr.bf16.mxu0 0
      %595 = vmatpush1.bf16.msra.mxu0 0
      %596 = vmatprep.subr.bf16.mxu0 0
      %597 = vmatpush1.bf16.msra.mxu0 0
      %598 = vmatprep.subr.bf16.mxu0 0
      %599 = vmatpush1.bf16.msra.mxu0 0
      %600 = vmatprep.mubr.bf16.mxu0 %v563
      %601 = vmatmul.mubr.bf16.gmra.mrb[0].mxu0 %v556
      %v602 = vpop.f32.mrb[0].mxu0
      %v603 = vadd.f32 %v236, %v602
      %v604 = vpop.f32.mrb[0].mxu0
      %v605 = vpop.f32.mrb[0].mxu0
      %v606 = vadd.f32 %v236, %v605
      %v607 = vpop.f32.mrb[0].mxu0
      %608 = vmatprep.mubr.bf16.mxu0 %v566
      %609 = vmatmul.mubr.bf16.gmra.mrb[0].mxu0 %v558
      %v610 = vpop.f32.mrb[0].mxu0
      %v611 = vadd.f32 %v236, %v610
      %v612 = vpop.f32.mrb[0].mxu0
      %v613 = vpop.f32.mrb[0].mxu0
      %v614 = vadd.f32 %v236, %v613
      %v615 = vpop.f32.mrb[0].mxu0
      %616 = vdwg.mxu0
      %v617 = vmax.f32 %v603, 0.0
      %v618 = vmax.f32 %v606, 0.0
      %v619 = vmax.f32 %v611, 0.0
      %v620 = vmax.f32 %v614, 0.0
      %v621 = vmax.f32 %v536, %v617
      %v622 = vmax.f32 %v537, %v618
      %v623 = vmax.f32 %v538, %v619
      %v624 = vmax.f32 %v539, %v620
      %v625 = vld [vmem:[%s197 + $0x80] sm:$0xff]
      %v626 = vld [vmem:[%s197 + $0x88] sm:$0xff]
      %v627 = vld [vmem:[%s197 + $0x90] sm:$0xff]
      %v628 = vld [vmem:[%s197 + $0x98] sm:$0xff]
      %v633 = vunpack.c.l.b16 %v625
      %v634 = vunpack.c.h.b16 %v625
      %v635 = vunpack.c.l.b16 %v626
      %v636 = vunpack.c.h.b16 %v626
      %v637 = vunpack.c.l.b16 %v627
      %v638 = vunpack.c.h.b16 %v627
      %v639 = vunpack.c.l.b16 %v628
      %v640 = vunpack.c.h.b16 %v628
      %v641 = vpack.c.b16 %v635, %v633
      %v642 = vpack.c.b16 %v636, %v634
      %v643 = vpack.c.b16 %v639, %v637
      %v644 = vpack.c.b16 %v640, %v638
      %v648 = vsel %vm310, %v642, 0
      %v651 = vsel %vm310, %v644, 0
      %653 = vmatprep.subr.bf16.mxu0 0
      %654 = vmatpush1.bf16.msra.mxu0 %v292
      %655 = vmatprep.subr.bf16.mxu0 0
      %656 = vmatpush1.bf16.msra.mxu0 %v293
      %657 = vmatprep.subr.bf16.mxu0 0
      %658 = vmatpush1.bf16.msra.mxu0 %v294
      %659 = vmatprep.subr.bf16.mxu0 0
      %660 = vmatpush1.bf16.msra.mxu0 %v295
      %661 = vmatprep.subr.bf16.mxu0 0
      %662 = vmatpush1.bf16.msra.mxu0 %v296
      %663 = vmatprep.subr.bf16.mxu0 0
      %664 = vmatpush1.bf16.msra.mxu0 %v297
      %665 = vmatprep.subr.bf16.mxu0 0
      %666 = vmatpush1.bf16.msra.mxu0 %v298
      %667 = vmatprep.subr.bf16.mxu0 0
      %668 = vmatpush1.bf16.msra.mxu0 %v299
      %669 = vmatprep.subr.bf16.mxu0 0
      %670 = vmatpush1.bf16.msra.mxu0 %v300
      %671 = vmatprep.subr.bf16.mxu0 0
      %672 = vmatpush1.bf16.msra.mxu0 0
      %673 = vmatprep.subr.bf16.mxu0 0
      %674 = vmatpush1.bf16.msra.mxu0 0
      %675 = vmatprep.subr.bf16.mxu0 0
      %676 = vmatpush1.bf16.msra.mxu0 0
      %677 = vmatprep.subr.bf16.mxu0 0
      %678 = vmatpush1.bf16.msra.mxu0 0
      %679 = vmatprep.subr.bf16.mxu0 0
      %680 = vmatpush1.bf16.msra.mxu0 0
      %681 = vmatprep.subr.bf16.mxu0 0
      %682 = vmatpush1.bf16.msra.mxu0 0
      %683 = vmatprep.subr.bf16.mxu0 0
      %684 = vmatpush1.bf16.msra.mxu0 0
      %685 = vmatprep.mubr.bf16.mxu0 %v648
      %686 = vmatmul.mubr.bf16.gmra.mrb[0].mxu0 %v641
      %v687 = vpop.f32.mrb[0].mxu0
      %v688 = vadd.f32 %v236, %v687
      %v689 = vpop.f32.mrb[0].mxu0
      %v690 = vpop.f32.mrb[0].mxu0
      %v691 = vadd.f32 %v236, %v690
      %v692 = vpop.f32.mrb[0].mxu0
      %693 = vmatprep.mubr.bf16.mxu0 %v651
      %694 = vmatmul.mubr.bf16.gmra.mrb[0].mxu0 %v643
      %v695 = vpop.f32.mrb[0].mxu0
      %v696 = vadd.f32 %v236, %v695
      %v697 = vpop.f32.mrb[0].mxu0
      %v698 = vpop.f32.mrb[0].mxu0
      %v699 = vadd.f32 %v236, %v698
      %v700 = vpop.f32.mrb[0].mxu0
      %701 = vdwg.mxu0
      %v702 = vmax.f32 %v688, 0.0
      %v703 = vmax.f32 %v691, 0.0
      %v704 = vmax.f32 %v696, 0.0
      %v705 = vmax.f32 %v699, 0.0
      %v706 = vmax.f32 %v621, %v702
      %v707 = vmax.f32 %v622, %v703
      %v708 = vmax.f32 %v623, %v704
      %v709 = vmax.f32 %v624, %v705
      %v710 = vld [vmem:[%s197 + $0xa0] sm:$0xff]
      %v711 = vld [vmem:[%s197 + $0xa8] sm:$0xff]
      %v712 = vld [vmem:[%s197 + $0xb0] sm:$0xff]
      %v713 = vld [vmem:[%s197 + $0xb8] sm:$0xff]
      %v718 = vunpack.c.l.b16 %v710
      %v719 = vunpack.c.h.b16 %v710
      %v720 = vunpack.c.l.b16 %v711
      %v721 = vunpack.c.h.b16 %v711
      %v722 = vunpack.c.l.b16 %v712
      %v723 = vunpack.c.h.b16 %v712
      %v724 = vunpack.c.l.b16 %v713
      %v725 = vunpack.c.h.b16 %v713
      %v726 = vpack.c.b16 %v720, %v718
      %v727 = vpack.c.b16 %v721, %v719
      %v728 = vpack.c.b16 %v724, %v722
      %v729 = vpack.c.b16 %v725, %v723
      %v733 = vsel %vm310, %v727, 0
      %v736 = vsel %vm310, %v729, 0
      %738 = vmatprep.subr.bf16.mxu0 0
      %739 = vmatpush1.bf16.msra.mxu0 %v292
      %740 = vmatprep.subr.bf16.mxu0 0
      %741 = vmatpush1.bf16.msra.mxu0 %v293
      %742 = vmatprep.subr.bf16.mxu0 0
      %743 = vmatpush1.bf16.msra.mxu0 %v294
      %744 = vmatprep.subr.bf16.mxu0 0
      %745 = vmatpush1.bf16.msra.mxu0 %v295
      %746 = vmatprep.subr.bf16.mxu0 0
      %747 = vmatpush1.bf16.msra.mxu0 %v296
      %748 = vmatprep.subr.bf16.mxu0 0
      %749 = vmatpush1.bf16.msra.mxu0 %v297
      %750 = vmatprep.subr.bf16.mxu0 0
      %751 = vmatpush1.bf16.msra.mxu0 %v298
      %752 = vmatprep.subr.bf16.mxu0 0
      %753 = vmatpush1.bf16.msra.mxu0 %v299
      %754 = vmatprep.subr.bf16.mxu0 0
      %755 = vmatpush1.bf16.msra.mxu0 %v300
      %756 = vmatprep.subr.bf16.mxu0 0
      %757 = vmatpush1.bf16.msra.mxu0 0
      %758 = vmatprep.subr.bf16.mxu0 0
      %759 = vmatpush1.bf16.msra.mxu0 0
      %760 = vmatprep.subr.bf16.mxu0 0
      %761 = vmatpush1.bf16.msra.mxu0 0
      %762 = vmatprep.subr.bf16.mxu0 0
      %763 = vmatpush1.bf16.msra.mxu0 0
      %764 = vmatprep.subr.bf16.mxu0 0
      %765 = vmatpush1.bf16.msra.mxu0 0
      %766 = vmatprep.subr.bf16.mxu0 0
      %767 = vmatpush1.bf16.msra.mxu0 0
      %768 = vmatprep.subr.bf16.mxu0 0
      %769 = vmatpush1.bf16.msra.mxu0 0
      %770 = vmatprep.mubr.bf16.mxu0 %v733
      %771 = vmatmul.mubr.bf16.gmra.mrb[0].mxu0 %v726
      %v772 = vpop.f32.mrb[0].mxu0
      %v773 = vadd.f32 %v236, %v772
      %v774 = vpop.f32.mrb[0].mxu0
      %v775 = vpop.f32.mrb[0].mxu0
      %v776 = vadd.f32 %v236, %v775
      %v777 = vpop.f32.mrb[0].mxu0
      %778 = vmatprep.mubr.bf16.mxu0 %v736
      %779 = vmatmul.mubr.bf16.gmra.mrb[0].mxu0 %v728
      %v780 = vpop.f32.mrb[0].mxu0
      %v781 = vadd.f32 %v236, %v780
      %v782 = vpop.f32.mrb[0].mxu0
      %v783 = vpop.f32.mrb[0].mxu0
      %v784 = vadd.f32 %v236, %v783
      %v785 = vpop.f32.mrb[0].mxu0
      %786 = vdwg.mxu0
      %v787 = vmax.f32 %v773, 0.0
      %v788 = vmax.f32 %v776, 0.0
      %v789 = vmax.f32 %v781, 0.0
      %v790 = vmax.f32 %v784, 0.0
      %v791 = vmax.f32 %v706, %v787
      %v792 = vmax.f32 %v707, %v788
      %v793 = vmax.f32 %v708, %v789
      %v794 = vmax.f32 %v709, %v790
      %v795 = vld [vmem:[%s197 + $0xc0] sm:$0xff]
      %v796 = vld [vmem:[%s197 + $0xc8] sm:$0xff]
      %v797 = vld [vmem:[%s197 + $0xd0] sm:$0xff]
      %v798 = vld [vmem:[%s197 + $0xd8] sm:$0xff]
      %v803 = vunpack.c.l.b16 %v795
      %v804 = vunpack.c.h.b16 %v795
      %v805 = vunpack.c.l.b16 %v796
      %v806 = vunpack.c.h.b16 %v796
      %v807 = vunpack.c.l.b16 %v797
      %v808 = vunpack.c.h.b16 %v797
      %v809 = vunpack.c.l.b16 %v798
      %v810 = vunpack.c.h.b16 %v798
      %v811 = vpack.c.b16 %v805, %v803
      %v812 = vpack.c.b16 %v806, %v804
      %v813 = vpack.c.b16 %v809, %v807
      %v814 = vpack.c.b16 %v810, %v808
      %v818 = vsel %vm310, %v812, 0
      %v821 = vsel %vm310, %v814, 0
      %823 = vmatprep.subr.bf16.mxu0 0
      %824 = vmatpush1.bf16.msra.mxu0 %v292
      %825 = vmatprep.subr.bf16.mxu0 0
      %826 = vmatpush1.bf16.msra.mxu0 %v293
      %827 = vmatprep.subr.bf16.mxu0 0
      %828 = vmatpush1.bf16.msra.mxu0 %v294
      %829 = vmatprep.subr.bf16.mxu0 0
      %830 = vmatpush1.bf16.msra.mxu0 %v295
      %831 = vmatprep.subr.bf16.mxu0 0
      %832 = vmatpush1.bf16.msra.mxu0 %v296
      %833 = vmatprep.subr.bf16.mxu0 0
      %834 = vmatpush1.bf16.msra.mxu0 %v297
      %835 = vmatprep.subr.bf16.mxu0 0
      %836 = vmatpush1.bf16.msra.mxu0 %v298
      %837 = vmatprep.subr.bf16.mxu0 0
      %838 = vmatpush1.bf16.msra.mxu0 %v299
      %839 = vmatprep.subr.bf16.mxu0 0
      %840 = vmatpush1.bf16.msra.mxu0 %v300
      %841 = vmatprep.subr.bf16.mxu0 0
      %842 = vmatpush1.bf16.msra.mxu0 0
      %843 = vmatprep.subr.bf16.mxu0 0
      %844 = vmatpush1.bf16.msra.mxu0 0
      %845 = vmatprep.subr.bf16.mxu0 0
      %846 = vmatpush1.bf16.msra.mxu0 0
      %847 = vmatprep.subr.bf16.mxu0 0
      %848 = vmatpush1.bf16.msra.mxu0 0
      %849 = vmatprep.subr.bf16.mxu0 0
      %850 = vmatpush1.bf16.msra.mxu0 0
      %851 = vmatprep.subr.bf16.mxu0 0
      %852 = vmatpush1.bf16.msra.mxu0 0
      %853 = vmatprep.subr.bf16.mxu0 0
      %854 = vmatpush1.bf16.msra.mxu0 0
      %855 = vmatprep.mubr.bf16.mxu0 %v818
      %856 = vmatmul.mubr.bf16.gmra.mrb[0].mxu0 %v811
      %v857 = vpop.f32.mrb[0].mxu0
      %v858 = vadd.f32 %v236, %v857
      %v859 = vpop.f32.mrb[0].mxu0
      %v860 = vpop.f32.mrb[0].mxu0
      %v861 = vadd.f32 %v236, %v860
      %v862 = vpop.f32.mrb[0].mxu0
      %863 = vmatprep.mubr.bf16.mxu0 %v821
      %864 = vmatmul.mubr.bf16.gmra.mrb[0].mxu0 %v813
      %v865 = vpop.f32.mrb[0].mxu0
      %v866 = vadd.f32 %v236, %v865
      %v867 = vpop.f32.mrb[0].mxu0
      %v868 = vpop.f32.mrb[0].mxu0
      %v869 = vadd.f32 %v236, %v868
      %v870 = vpop.f32.mrb[0].mxu0
      %871 = vdwg.mxu0
      %v872 = vmax.f32 %v858, 0.0
      %v873 = vmax.f32 %v861, 0.0
      %v874 = vmax.f32 %v866, 0.0
      %v875 = vmax.f32 %v869, 0.0
      %v876 = vmax.f32 %v791, %v872
      %v877 = vmax.f32 %v792, %v873
      %v878 = vmax.f32 %v793, %v874
      %v879 = vmax.f32 %v794, %v875
      %v880 = vld [vmem:[%s197 + $0xe0] sm:$0xff]
      %v881 = vld [vmem:[%s197 + $0xe8] sm:$0xff]
      %v882 = vld [vmem:[%s197 + $0xf0] sm:$0xff]
      %v883 = vld [vmem:[%s197 + $0xf8] sm:$0xff]
      %v888 = vunpack.c.l.b16 %v880
      %v889 = vunpack.c.h.b16 %v880
      %v890 = vunpack.c.l.b16 %v881
      %v891 = vunpack.c.h.b16 %v881
      %v892 = vunpack.c.l.b16 %v882
      %v893 = vunpack.c.h.b16 %v882
      %v894 = vunpack.c.l.b16 %v883
      %v895 = vunpack.c.h.b16 %v883
      %v896 = vpack.c.b16 %v890, %v888
      %v897 = vpack.c.b16 %v891, %v889
      %v898 = vpack.c.b16 %v894, %v892
      %v899 = vpack.c.b16 %v895, %v893
      %v903 = vsel %vm310, %v897, 0
      %v906 = vsel %vm310, %v899, 0
      %908 = vmatprep.subr.bf16.mxu0 0
      %909 = vmatpush1.bf16.msra.mxu0 %v292
      %910 = vmatprep.subr.bf16.mxu0 0
      %911 = vmatpush1.bf16.msra.mxu0 %v293
      %912 = vmatprep.subr.bf16.mxu0 0
      %913 = vmatpush1.bf16.msra.mxu0 %v294
      %914 = vmatprep.subr.bf16.mxu0 0
      %915 = vmatpush1.bf16.msra.mxu0 %v295
      %916 = vmatprep.subr.bf16.mxu0 0
      %917 = vmatpush1.bf16.msra.mxu0 %v296
      %918 = vmatprep.subr.bf16.mxu0 0
      %919 = vmatpush1.bf16.msra.mxu0 %v297
      %920 = vmatprep.subr.bf16.mxu0 0
      %921 = vmatpush1.bf16.msra.mxu0 %v298
      %922 = vmatprep.subr.bf16.mxu0 0
      %923 = vmatpush1.bf16.msra.mxu0 %v299
      %924 = vmatprep.subr.bf16.mxu0 0
      %925 = vmatpush1.bf16.msra.mxu0 %v300
      %926 = vmatprep.subr.bf16.mxu0 0
      %927 = vmatpush1.bf16.msra.mxu0 0
      %928 = vmatprep.subr.bf16.mxu0 0
      %929 = vmatpush1.bf16.msra.mxu0 0
      %930 = vmatprep.subr.bf16.mxu0 0
      %931 = vmatpush1.bf16.msra.mxu0 0
      %932 = vmatprep.subr.bf16.mxu0 0
      %933 = vmatpush1.bf16.msra.mxu0 0
      %934 = vmatprep.subr.bf16.mxu0 0
      %935 = vmatpush1.bf16.msra.mxu0 0
      %936 = vmatprep.subr.bf16.mxu0 0
      %937 = vmatpush1.bf16.msra.mxu0 0
      %938 = vmatprep.subr.bf16.mxu0 0
      %939 = vmatpush1.bf16.msra.mxu0 0
      %940 = vmatprep.mubr.bf16.mxu0 %v903
      %941 = vmatmul.mubr.bf16.gmra.mrb[0].mxu0 %v896
      %v942 = vpop.f32.mrb[0].mxu0
      %v943 = vadd.f32 %v236, %v942
      %v944 = vpop.f32.mrb[0].mxu0
      %v945 = vpop.f32.mrb[0].mxu0
      %v946 = vadd.f32 %v236, %v945
      %v947 = vpop.f32.mrb[0].mxu0
      %948 = vmatprep.mubr.bf16.mxu0 %v906
      %949 = vmatmul.mubr.bf16.gmra.mrb[0].mxu0 %v898
      %v950 = vpop.f32.mrb[0].mxu0
      %v951 = vadd.f32 %v236, %v950
      %v952 = vpop.f32.mrb[0].mxu0
      %v953 = vpop.f32.mrb[0].mxu0
      %v954 = vadd.f32 %v236, %v953
      %v955 = vpop.f32.mrb[0].mxu0
      %956 = vdwg.mxu0
      %v957 = vmax.f32 %v943, 0.0
      %v958 = vmax.f32 %v946, 0.0
      %v959 = vmax.f32 %v951, 0.0
      %v960 = vmax.f32 %v954, 0.0
      %v961 = vmax.f32 %v876, %v957
      %v962 = vmax.f32 %v877, %v958
      %v963 = vmax.f32 %v878, %v959
      %v964 = vmax.f32 %v879, %v960
      %v965 = vld [vmem:[%s197 + $0x100] sm:$0xff]
      %v966 = vld [vmem:[%s197 + $0x108] sm:$0xff]
      %v967 = vld [vmem:[%s197 + $0x110] sm:$0xff]
      %v968 = vld [vmem:[%s197 + $0x118] sm:$0xff]
      %v973 = vunpack.c.l.b16 %v965
      %v974 = vunpack.c.h.b16 %v965
      %v975 = vunpack.c.l.b16 %v966
      %v976 = vunpack.c.h.b16 %v966
      %v977 = vunpack.c.l.b16 %v967
      %v978 = vunpack.c.h.b16 %v967
      %v979 = vunpack.c.l.b16 %v968
      %v980 = vunpack.c.h.b16 %v968
      %v981 = vpack.c.b16 %v975, %v973
      %v982 = vpack.c.b16 %v976, %v974
      %v983 = vpack.c.b16 %v979, %v977
      %v984 = vpack.c.b16 %v980, %v978
      %v988 = vsel %vm310, %v982, 0
      %v991 = vsel %vm310, %v984, 0
      %993 = vmatprep.subr.bf16.mxu0 0
      %994 = vmatpush1.bf16.msra.mxu0 %v292
      %995 = vmatprep.subr.bf16.mxu0 0
      %996 = vmatpush1.bf16.msra.mxu0 %v293
      %997 = vmatprep.subr.bf16.mxu0 0
      %998 = vmatpush1.bf16.msra.mxu0 %v294
      %999 = vmatprep.subr.bf16.mxu0 0
      %1000 = vmatpush1.bf16.msra.mxu0 %v295
      %1001 = vmatprep.subr.bf16.mxu0 0
      %1002 = vmatpush1.bf16.msra.mxu0 %v296
      %1003 = vmatprep.subr.bf16.mxu0 0
      %1004 = vmatpush1.bf16.msra.mxu0 %v297
      %1005 = vmatprep.subr.bf16.mxu0 0
      %1006 = vmatpush1.bf16.msra.mxu0 %v298
      %1007 = vmatprep.subr.bf16.mxu0 0
      %1008 = vmatpush1.bf16.msra.mxu0 %v299
      %1009 = vmatprep.subr.bf16.mxu0 0
      %1010 = vmatpush1.bf16.msra.mxu0 %v300
      %1011 = vmatprep.subr.bf16.mxu0 0
      %1012 = vmatpush1.bf16.msra.mxu0 0
      %1013 = vmatprep.subr.bf16.mxu0 0
      %1014 = vmatpush1.bf16.msra.mxu0 0
      %1015 = vmatprep.subr.bf16.mxu0 0
      %1016 = vmatpush1.bf16.msra.mxu0 0
      %1017 = vmatprep.subr.bf16.mxu0 0
      %1018 = vmatpush1.bf16.msra.mxu0 0
      %1019 = vmatprep.subr.bf16.mxu0 0
      %1020 = vmatpush1.bf16.msra.mxu0 0
      %1021 = vmatprep.subr.bf16.mxu0 0
      %1022 = vmatpush1.bf16.msra.mxu0 0
      %1023 = vmatprep.subr.bf16.mxu0 0
      %1024 = vmatpush1.bf16.msra.mxu0 0
      %1025 = vmatprep.mubr.bf16.mxu0 %v988
      %1026 = vmatmul.mubr.bf16.gmra.mrb[0].mxu0 %v981
      %v1027 = vpop.f32.mrb[0].mxu0
      %v1028 = vadd.f32 %v236, %v1027
      %v1029 = vpop.f32.mrb[0].mxu0
      %v1030 = vpop.f32.mrb[0].mxu0
      %v1031 = vadd.f32 %v236, %v1030
      %v1032 = vpop.f32.mrb[0].mxu0
      %1033 = vmatprep.mubr.bf16.mxu0 %v991
      %1034 = vmatmul.mubr.bf16.gmra.mrb[0].mxu0 %v983
      %v1035 = vpop.f32.mrb[0].mxu0
      %v1036 = vadd.f32 %v236, %v1035
      %v1037 = vpop.f32.mrb[0].mxu0
      %v1038 = vpop.f32.mrb[0].mxu0
      %v1039 = vadd.f32 %v236, %v1038
      %v1040 = vpop.f32.mrb[0].mxu0
      %1041 = vdwg.mxu0
      %v1042 = vmax.f32 %v1028, 0.0
      %v1043 = vmax.f32 %v1031, 0.0
      %v1044 = vmax.f32 %v1036, 0.0
      %v1045 = vmax.f32 %v1039, 0.0
      %v1046 = vmax.f32 %v961, %v1042
      %v1047 = vmax.f32 %v962, %v1043
      %v1048 = vmax.f32 %v963, %v1044
      %v1049 = vmax.f32 %v964, %v1045
      %v1050 = vpack.c.bf16 %v1047, %v1046
      %v1051 = vpack.c.bf16 %v1049, %v1048
      %v1054 = vunpack.c.l.b16 %v1050
      %v1055 = vunpack.c.h.b16 %v1050
      %v1056 = vunpack.c.l.b16 %v1051
      %v1057 = vunpack.c.h.b16 %v1051
      %v1058 = vpack.c.b16 %v1054, %v1054
      %v1059 = vpack.c.b16 %v1055, %v1055
      %v1060 = vpack.c.b16 %v1056, %v1056
      %v1061 = vpack.c.b16 %v1057, %v1057
      %vm1066 = vcmask 257024
      %1067 = vst.msk [vmem:[%s206] sm:$0xf] %vm1066, %v1058
      %1068 = vst.msk [vmem:[%s206 + $0x4] sm:$0xf] %vm1066, %v1059
      %1069 = vst.msk [vmem:[%s206 + $0x8] sm:$0xf] %vm1066, %v1060
      %1070 = vst.msk [vmem:[%s206 + $0xc] sm:$0xf] %vm1066, %v1061
      %s1071 = smul.u32 4, %s19
      %p1072 = scmp.lt.s32.totalorder %s18, 1
      %s1073 = scalar_select %p1072, %s18, 1
      %p1074 = scmp.lt.s32.totalorder %s1071, 3
      %s1075 = scalar_select %p1074, %s1071, 3
      %s1076 = smul.addr %s1073, 4
      %s1077 = sadd.s32 %s1075, %s1076
      %s1078 = smul.addr %s1077, 4
      %s1079 = scalar_lea.vmem %s3, %s1078
      // Predicated region
      $region33: #{pokenet_forward.6} parent=31 // pred_check
        %p1080 = pneg %p116
      $region34: #{pokenet_forward.6} parent=31 // pred_check_branch
        %1082 = sbr.rel (%p1080) target = $region36
      $region35: #{pokenet_forward.6} parent=31 // pred_region
        %s1083 = smul.u32 4, %s19
      $region36: #{pokenet_forward.6} parent=31 // pred_fallthru
        _
    $region32: #{pokenet_forward.6} parent=5 // pred_fallthru
      _
    %p1084 = scmp.le.s32.totalorder 2, %s9
    // Predicated region
    $region37: #{pokenet_forward.6} parent=5 // pred_check
      %p1085 = pneg %p1084
    $region38: #{pokenet_forward.6} parent=5 // pred_check_branch
      %1087 = sbr.rel (%p1085) target = $region40
    $region39: #{pokenet_forward.6} parent=5 // pred_region
      %s1088 = ssub.s32 %s9, 2
      // Predicated region
      $region41: #{pokenet_forward.6} parent=39 // pred_check
        %p1089 = pneg %p122
      $region42: #{pokenet_forward.6} parent=39 // pred_check_branch
        %1091 = sbr.rel (%p1089) target = $region44
      $region43: #{pokenet_forward.6} parent=39 // pred_region
        %s1092 = smul.u32 4, %s21
        %p1093 = scmp.lt.s32.totalorder %s20, 1
        %s1094 = scalar_select %p1093, %s20, 1
        %p1095 = scmp.lt.s32.totalorder %s1092, 3
        %s1096 = scalar_select %p1095, %s1092, 3
        %s1097 = smul.addr %s1094, 4
        %s1098 = sadd.s32 %s1096, %s1097
        %s1099 = smul.addr %s1098, 4
        %s1100 = scalar_lea.vmem %s3, %s1099
      $region44: #{pokenet_forward.6} parent=39 // pred_fallthru
        _
    $region40: #{pokenet_forward.6} parent=5 // pred_fallthru
      _
  $region6: #{pokenet_forward.6} parent=0 // loop_footer
    %s13 = sadd.s32 1, %s9
  $region7: #{pokenet_forward.6} parent=0 // loop_footer_branch
    %8 = sbr.rel target = $region3
  $region8: #{pokenet_forward.6} parent=0 // loop_exit
    _

// kernel: pokenet_forward.7
$region0: #{pokenet_forward.7}
  #allocation0 [shape = 'u32[]', space=smem, size = 0x4, offset = 0x4, fixed_abs, tag = 'smem constant byte address 0x4 - core index']
  #allocation1 [shape = 'u32[144,128]{1,0:T(1,128)}', space=vmem, size = 0x12000, scoped, tag = 'internal scratch']
  %s0 = inlined_call_operand.vmem [shape: bf16[16,800], index: 0, kind: input, shape index: {}]
  %s1 = inlined_call_operand.vmem [shape: bf16[800,120], index: 1, kind: input, shape index: {}]
  %s2 = inlined_call_operand.vmem [shape: f32[1,120], index: 2, kind: input, shape index: {}]
  %s3 = inlined_call_operand.vmem [shape: bf16[120,84], index: 3, kind: input, shape index: {}]
  %s4 = inlined_call_operand.vmem [shape: f32[1,84], index: 4, kind: input, shape index: {}]
  %s5 = inlined_call_operand.vmem [shape: bf16[84,8], index: 5, kind: input, shape index: {}]
  %s6 = inlined_call_operand.vmem [shape: f32[1,8], index: 6, kind: input, shape index: {}]
  %s7 = inlined_call_operand.vmem [shape: f32[16,8], index: 7, kind: output, shape index: {}]
  %s8 = sld [smem:[#allocation0]]
  $region38: #{pokenet_forward.7} parent=0
    _
  %s10 = ssub.s32 1, %s8
  %s11 = scalar_select 0, %s10, %s8
  // Predicated region
  $region2: #{pokenet_forward.7} parent=0 // pred_check
    _
  $region3: #{pokenet_forward.7} parent=0 // pred_check_branch
    %13 = sbr.rel (0) target = $region5
  $region4: #{pokenet_forward.7} parent=0 // pred_region
    _
  $region5: #{pokenet_forward.7} parent=0 // pred_fallthru
    _
  // Predicated region
  $region6: #{pokenet_forward.7} parent=0 // pred_check
    _
  $region7: #{pokenet_forward.7} parent=0 // pred_check_branch
    %15 = sbr.rel (0) target = $region9
  $region8: #{pokenet_forward.7} parent=0 // pred_region
    _
  $region9: #{pokenet_forward.7} parent=0 // pred_fallthru
    _
  // Predicated region
  $region10: #{pokenet_forward.7} parent=0 // pred_check
    _
  $region11: #{pokenet_forward.7} parent=0 // pred_check_branch
    %17 = sbr.rel (0) target = $region13
  $region12: #{pokenet_forward.7} parent=0 // pred_region
    _
  $region13: #{pokenet_forward.7} parent=0 // pred_fallthru
    _
  // Predicated region
  $region14: #{pokenet_forward.7} parent=0 // pred_check
    _
  $region15: #{pokenet_forward.7} parent=0 // pred_check_branch
    %19 = sbr.rel (0) target = $region17
  $region16: #{pokenet_forward.7} parent=0 // pred_region
    _
  $region17: #{pokenet_forward.7} parent=0 // pred_fallthru
    _
  // Predicated region
  $region18: #{pokenet_forward.7} parent=0 // pred_check
    _
  $region19: #{pokenet_forward.7} parent=0 // pred_check_branch
    %21 = sbr.rel (0) target = $region21
  $region20: #{pokenet_forward.7} parent=0 // pred_region
    _
  $region21: #{pokenet_forward.7} parent=0 // pred_fallthru
    _
  // Predicated region
  $region22: #{pokenet_forward.7} parent=0 // pred_check
    _
  $region23: #{pokenet_forward.7} parent=0 // pred_check_branch
    %23 = sbr.rel (0) target = $region25
  $region24: #{pokenet_forward.7} parent=0 // pred_region
    _
  $region25: #{pokenet_forward.7} parent=0 // pred_fallthru
    _
  // Predicated region
  $region26: #{pokenet_forward.7} parent=0 // pred_check
    _
  $region27: #{pokenet_forward.7} parent=0 // pred_check_branch
    %25 = sbr.rel (0) target = $region29
  $region28: #{pokenet_forward.7} parent=0 // pred_region
    _
  $region29: #{pokenet_forward.7} parent=0 // pred_fallthru
    _
  %v27 = vld [vmem:[%s0] sm:$0xff]
  %v28 = vld [vmem:[%s0 + $0x8] sm:$0xff]
  %v29 = vld [vmem:[%s0 + $0x10] sm:$0xff]
  %v30 = vld [vmem:[%s0 + $0x18] sm:$0xf]
  %v31 = vld [vmem:[%s0 + $0x1c] sm:$0xff]
  %v32 = vld [vmem:[%s0 + $0x24] sm:$0xff]
  %v33 = vld [vmem:[%s0 + $0x2c] sm:$0xff]
  %v34 = vld [vmem:[%s0 + $0x34] sm:$0xf]
  %v35 = vld [vmem:[%s1] sm:$0xf]
  %v36 = vld [vmem:[%s1 + $0x4] sm:$0xf]
  %v37 = vld [vmem:[%s1 + $0x8] sm:$0xf]
  %v38 = vld [vmem:[%s1 + $0xc] sm:$0xf]
  %v39 = vld [vmem:[%s1 + $0x10] sm:$0xf]
  %v40 = vld [vmem:[%s1 + $0x14] sm:$0xf]
  %v41 = vld [vmem:[%s1 + $0x18] sm:$0xf]
  %v42 = vld [vmem:[%s1 + $0x1c] sm:$0xf]
  %v43 = vld [vmem:[%s1 + $0x20] sm:$0xf]
  %v44 = vld [vmem:[%s1 + $0x24] sm:$0xf]
  %v45 = vld [vmem:[%s1 + $0x28] sm:$0xf]
  %v46 = vld [vmem:[%s1 + $0x2c] sm:$0xf]
  %v47 = vld [vmem:[%s1 + $0x30] sm:$0xf]
  %v48 = vld [vmem:[%s1 + $0x34] sm:$0xf]
  %v49 = vld [vmem:[%s1 + $0x38] sm:$0xf]
  %v50 = vld [vmem:[%s1 + $0x3c] sm:$0xf]
  %v51 = vld [vmem:[%s1 + $0x40] sm:$0xf]
  %v52 = vld [vmem:[%s1 + $0x44] sm:$0xf]
  %v53 = vld [vmem:[%s1 + $0x48] sm:$0xf]
  %v54 = vld [vmem:[%s1 + $0x4c] sm:$0xf]
  %v55 = vld [vmem:[%s1 + $0x50] sm:$0xf]
  %v56 = vld [vmem:[%s1 + $0x54] sm:$0xf]
  %v57 = vld [vmem:[%s1 + $0x58] sm:$0xf]
  %v58 = vld [vmem:[%s1 + $0x5c] sm:$0xf]
  %v59 = vld [vmem:[%s1 + $0x60] sm:$0xf]
  %v60 = vld [vmem:[%s1 + $0x64] sm:$0xf]
  %v61 = vld [vmem:[%s1 + $0x68] sm:$0xf]
  %v62 = vld [vmem:[%s1 + $0x6c] sm:$0xf]
  %v63 = vld [vmem:[%s1 + $0x70] sm:$0xf]
  %v64 = vld [vmem:[%s1 + $0x74] sm:$0xf]
  %v65 = vld [vmem:[%s1 + $0x78] sm:$0xf]
  %v66 = vld [vmem:[%s1 + $0x7c] sm:$0xf]
  %v67 = vld [vmem:[%s1 + $0x80] sm:$0xf]
  %v68 = vld [vmem:[%s1 + $0x84] sm:$0xf]
  %v69 = vld [vmem:[%s1 + $0x88] sm:$0xf]
  %v70 = vld [vmem:[%s1 + $0x8c] sm:$0xf]
  %v71 = vld [vmem:[%s1 + $0x90] sm:$0xf]
  %v72 = vld [vmem:[%s1 + $0x94] sm:$0xf]
  %v73 = vld [vmem:[%s1 + $0x98] sm:$0xf]
  %v74 = vld [vmem:[%s1 + $0x9c] sm:$0xf]
  %v75 = vld [vmem:[%s1 + $0xa0] sm:$0xf]
  %v76 = vld [vmem:[%s1 + $0xa4] sm:$0xf]
  %v77 = vld [vmem:[%s1 + $0xa8] sm:$0xf]
  %v78 = vld [vmem:[%s1 + $0xac] sm:$0xf]
  %v79 = vld [vmem:[%s1 + $0xb0] sm:$0xf]
  %v80 = vld [vmem:[%s1 + $0xb4] sm:$0xf]
  %v81 = vld [vmem:[%s1 + $0xb8] sm:$0xf]
  %v82 = vld [vmem:[%s1 + $0xbc] sm:$0xf]
  %v83 = vld [vmem:[%s1 + $0xc0] sm:$0xf]
  %v84 = vld [vmem:[%s1 + $0xc4] sm:$0xf]
  %v85 = vld [vmem:[%s1 + $0xc8] sm:$0xf]
  %v86 = vld [vmem:[%s1 + $0xcc] sm:$0xf]
  %v87 = vld [vmem:[%s1 + $0xd0] sm:$0xf]
  %v88 = vld [vmem:[%s1 + $0xd4] sm:$0xf]
  %v89 = vld [vmem:[%s1 + $0xd8] sm:$0xf]
  %v90 = vld [vmem:[%s1 + $0xdc] sm:$0xf]
  %v91 = vld [vmem:[%s1 + $0xe0] sm:$0xf]
  %v92 = vld [vmem:[%s1 + $0xe4] sm:$0xf]
  %v93 = vld [vmem:[%s1 + $0xe8] sm:$0xf]
  %v94 = vld [vmem:[%s1 + $0xec] sm:$0xf]
  %v95 = vld [vmem:[%s1 + $0xf0] sm:$0xf]
  %v96 = vld [vmem:[%s1 + $0xf4] sm:$0xf]
  %v97 = vld [vmem:[%s1 + $0xf8] sm:$0xf]
  %v98 = vld [vmem:[%s1 + $0xfc] sm:$0xf]
  %v99 = vld [vmem:[%s1 + $0x100] sm:$0xf]
  %v100 = vld [vmem:[%s1 + $0x104] sm:$0xf]
  %v101 = vld [vmem:[%s1 + $0x108] sm:$0xf]
  %v102 = vld [vmem:[%s1 + $0x10c] sm:$0xf]
  %v103 = vld [vmem:[%s1 + $0x110] sm:$0xf]
  %v104 = vld [vmem:[%s1 + $0x114] sm:$0xf]
  %v105 = vld [vmem:[%s1 + $0x118] sm:$0xf]
  %v106 = vld [vmem:[%s1 + $0x11c] sm:$0xf]
  %v107 = vld [vmem:[%s1 + $0x120] sm:$0xf]
  %v108 = vld [vmem:[%s1 + $0x124] sm:$0xf]
  %v109 = vld [vmem:[%s1 + $0x128] sm:$0xf]
  %v110 = vld [vmem:[%s1 + $0x12c] sm:$0xf]
  %v111 = vld [vmem:[%s1 + $0x130] sm:$0xf]
  %v112 = vld [vmem:[%s1 + $0x134] sm:$0xf]
  %v113 = vld [vmem:[%s1 + $0x138] sm:$0xf]
  %v114 = vld [vmem:[%s1 + $0x13c] sm:$0xf]
  %v115 = vld [vmem:[%s1 + $0x140] sm:$0xf]
  %v116 = vld [vmem:[%s1 + $0x144] sm:$0xf]
  %v117 = vld [vmem:[%s1 + $0x148] sm:$0xf]
  %v118 = vld [vmem:[%s1 + $0x14c] sm:$0xf]
  %v119 = vld [vmem:[%s1 + $0x150] sm:$0xf]
  %v120 = vld [vmem:[%s1 + $0x154] sm:$0xf]
  %v121 = vld [vmem:[%s1 + $0x158] sm:$0xf]
  %v122 = vld [vmem:[%s1 + $0x15c] sm:$0xf]
  %v123 = vld [vmem:[%s1 + $0x160] sm:$0xf]
  %v124 = vld [vmem:[%s1 + $0x164] sm:$0xf]
  %v125 = vld [vmem:[%s1 + $0x168] sm:$0xf]
  %v126 = vld [vmem:[%s1 + $0x16c] sm:$0xf]
  %v127 = vld [vmem:[%s1 + $0x170] sm:$0xf]
  %v128 = vld [vmem:[%s1 + $0x174] sm:$0xf]
  %v129 = vld [vmem:[%s1 + $0x178] sm:$0xf]
  %v130 = vld [vmem:[%s1 + $0x17c] sm:$0xf]
  %v131 = vld [vmem:[%s1 + $0x180] sm:$0xf]
  %v132 = vld [vmem:[%s1 + $0x184] sm:$0xf]
  %v133 = vld [vmem:[%s1 + $0x188] sm:$0xf]
  %v134 = vld [vmem:[%s1 + $0x18c] sm:$0xf]
  %v135 = vld [vmem:[%s2] sm:$0x1]
  %v137 = vlaneseq
  %v138 = vshrl.u32 %v137, 7
  %v139 = vsub.s32 0, %v138
  %v140 = vrot.slane %v135, %v139
  %v150 = vunpack.c.l.b16 %v27
  %v151 = vunpack.c.h.b16 %v27
  %v152 = vunpack.c.l.b16 %v28
  %v153 = vunpack.c.h.b16 %v28
  %v154 = vunpack.c.l.b16 %v29
  %v155 = vunpack.c.h.b16 %v29
  %v156 = vunpack.c.l.b16 %v30
  %v157 = vunpack.c.l.b16 %v31
  %v158 = vunpack.c.h.b16 %v31
  %v159 = vunpack.c.l.b16 %v32
  %v160 = vunpack.c.h.b16 %v32
  %v161 = vunpack.c.l.b16 %v33
  %v162 = vunpack.c.h.b16 %v33
  %v163 = vunpack.c.l.b16 %v34
  %v164 = vpack.c.b16 %v157, %v150
  %v165 = vpack.c.b16 %v158, %v151
  %v166 = vpack.c.b16 %v159, %v152
  %v167 = vpack.c.b16 %v160, %v153
  %v168 = vpack.c.b16 %v161, %v154
  %v169 = vpack.c.b16 %v162, %v155
  %v170 = vpack.c.b16 %v163, %v156
  %v277 = vunpack.c.l.b16 %v35
  %v278 = vunpack.c.l.b16 %v36
  %v279 = vunpack.c.l.b16 %v37
  %v280 = vunpack.c.l.b16 %v38
  %v281 = vunpack.c.l.b16 %v39
  %v282 = vunpack.c.l.b16 %v40
  %v283 = vunpack.c.l.b16 %v41
  %v284 = vunpack.c.l.b16 %v42
  %v285 = vunpack.c.l.b16 %v43
  %v286 = vunpack.c.l.b16 %v44
  %v287 = vunpack.c.l.b16 %v45
  %v288 = vunpack.c.l.b16 %v46
  %v289 = vunpack.c.l.b16 %v47
  %v290 = vunpack.c.l.b16 %v48
  %v291 = vunpack.c.l.b16 %v49
  %v292 = vunpack.c.l.b16 %v50
  %v293 = vunpack.c.l.b16 %v51
  %v294 = vunpack.c.l.b16 %v52
  %v295 = vunpack.c.l.b16 %v53
  %v296 = vunpack.c.l.b16 %v54
  %v297 = vunpack.c.l.b16 %v55
  %v298 = vunpack.c.l.b16 %v56
  %v299 = vunpack.c.l.b16 %v57
  %v300 = vunpack.c.l.b16 %v58
  %v301 = vunpack.c.l.b16 %v59
  %v302 = vunpack.c.l.b16 %v60
  %v303 = vunpack.c.l.b16 %v61
  %v304 = vunpack.c.l.b16 %v62
  %v305 = vunpack.c.l.b16 %v63
  %v306 = vunpack.c.l.b16 %v64
  %v307 = vunpack.c.l.b16 %v65
  %v308 = vunpack.c.l.b16 %v66
  %v309 = vunpack.c.l.b16 %v67
  %v310 = vunpack.c.l.b16 %v68
  %v311 = vunpack.c.l.b16 %v69
  %v312 = vunpack.c.l.b16 %v70
  %v313 = vunpack.c.l.b16 %v71
  %v314 = vunpack.c.l.b16 %v72
  %v315 = vunpack.c.l.b16 %v73
  %v316 = vunpack.c.l.b16 %v74
  %v317 = vunpack.c.l.b16 %v75
  %v318 = vunpack.c.l.b16 %v76
  %v319 = vunpack.c.l.b16 %v77
  %v320 = vunpack.c.l.b16 %v78
  %v321 = vunpack.c.l.b16 %v79
  %v322 = vunpack.c.l.b16 %v80
  %v323 = vunpack.c.l.b16 %v81
  %v324 = vunpack.c.l.b16 %v82
  %v325 = vunpack.c.l.b16 %v83
  %v326 = vunpack.c.l.b16 %v84
  %v327 = vunpack.c.l.b16 %v85
  %v328 = vunpack.c.l.b16 %v86
  %v329 = vunpack.c.l.b16 %v87
  %v330 = vunpack.c.l.b16 %v88
  %v331 = vunpack.c.l.b16 %v89
  %v332 = vunpack.c.l.b16 %v90
  %v333 = vunpack.c.l.b16 %v91
  %v334 = vunpack.c.l.b16 %v92
  %v335 = vunpack.c.l.b16 %v93
  %v336 = vunpack.c.l.b16 %v94
  %v337 = vunpack.c.l.b16 %v95
  %v338 = vunpack.c.l.b16 %v96
  %v339 = vunpack.c.l.b16 %v97
  %v340 = vunpack.c.l.b16 %v98
  %v341 = vunpack.c.l.b16 %v99
  %v342 = vunpack.c.l.b16 %v100
  %v343 = vunpack.c.l.b16 %v101
  %v344 = vunpack.c.l.b16 %v102
  %v345 = vunpack.c.l.b16 %v103
  %v346 = vunpack.c.l.b16 %v104
  %v347 = vunpack.c.l.b16 %v105
  %v348 = vunpack.c.l.b16 %v106
  %v349 = vunpack.c.l.b16 %v107
  %v350 = vunpack.c.l.b16 %v108
  %v351 = vunpack.c.l.b16 %v109
  %v352 = vunpack.c.l.b16 %v110
  %v353 = vunpack.c.l.b16 %v111
  %v354 = vunpack.c.l.b16 %v112
  %v355 = vunpack.c.l.b16 %v113
  %v356 = vunpack.c.l.b16 %v114
  %v357 = vunpack.c.l.b16 %v115
  %v358 = vunpack.c.l.b16 %v116
  %v359 = vunpack.c.l.b16 %v117
  %v360 = vunpack.c.l.b16 %v118
  %v361 = vunpack.c.l.b16 %v119
  %v362 = vunpack.c.l.b16 %v120
  %v363 = vunpack.c.l.b16 %v121
  %v364 = vunpack.c.l.b16 %v122
  %v365 = vunpack.c.l.b16 %v123
  %v366 = vunpack.c.l.b16 %v124
  %v367 = vunpack.c.l.b16 %v125
  %v368 = vunpack.c.l.b16 %v126
  %v369 = vunpack.c.l.b16 %v127
  %v370 = vunpack.c.l.b16 %v128
  %v371 = vunpack.c.l.b16 %v129
  %v372 = vunpack.c.l.b16 %v130
  %v373 = vunpack.c.l.b16 %v131
  %v374 = vunpack.c.l.b16 %v132
  %v375 = vunpack.c.l.b16 %v133
  %v376 = vunpack.c.l.b16 %v134
  %v377 = vpack.c.b16 %v278, %v277
  %v378 = vpack.c.b16 %v280, %v279
  %v379 = vpack.c.b16 %v282, %v281
  %v380 = vpack.c.b16 %v284, %v283
  %v381 = vpack.c.b16 %v286, %v285
  %v382 = vpack.c.b16 %v288, %v287
  %v383 = vpack.c.b16 %v290, %v289
  %v384 = vpack.c.b16 %v292, %v291
  %v385 = vpack.c.b16 %v294, %v293
  %v386 = vpack.c.b16 %v296, %v295
  %v387 = vpack.c.b16 %v298, %v297
  %v388 = vpack.c.b16 %v300, %v299
  %v389 = vpack.c.b16 %v302, %v301
  %v390 = vpack.c.b16 %v304, %v303
  %v391 = vpack.c.b16 %v306, %v305
  %v392 = vpack.c.b16 %v308, %v307
  %v393 = vpack.c.b16 %v310, %v309
  %v394 = vpack.c.b16 %v312, %v311
  %v395 = vpack.c.b16 %v314, %v313
  %v396 = vpack.c.b16 %v316, %v315
  %v397 = vpack.c.b16 %v318, %v317
  %v398 = vpack.c.b16 %v320, %v319
  %v399 = vpack.c.b16 %v322, %v321
  %v400 = vpack.c.b16 %v324, %v323
  %v401 = vpack.c.b16 %v326, %v325
  %v402 = vpack.c.b16 %v328, %v327
  %v403 = vpack.c.b16 %v330, %v329
  %v404 = vpack.c.b16 %v332, %v331
  %v405 = vpack.c.b16 %v334, %v333
  %v406 = vpack.c.b16 %v336, %v335
  %v407 = vpack.c.b16 %v338, %v337
  %v408 = vpack.c.b16 %v340, %v339
  %v409 = vpack.c.b16 %v342, %v341
  %v410 = vpack.c.b16 %v344, %v343
  %v411 = vpack.c.b16 %v346, %v345
  %v412 = vpack.c.b16 %v348, %v347
  %v413 = vpack.c.b16 %v350, %v349
  %v414 = vpack.c.b16 %v352, %v351
  %v415 = vpack.c.b16 %v354, %v353
  %v416 = vpack.c.b16 %v356, %v355
  %v417 = vpack.c.b16 %v358, %v357
  %v418 = vpack.c.b16 %v360, %v359
  %v419 = vpack.c.b16 %v362, %v361
  %v420 = vpack.c.b16 %v364, %v363
  %v421 = vpack.c.b16 %v366, %v365
  %v422 = vpack.c.b16 %v368, %v367
  %v423 = vpack.c.b16 %v370, %v369
  %v424 = vpack.c.b16 %v372, %v371
  %v425 = vpack.c.b16 %v374, %v373
  %v426 = vpack.c.b16 %v376, %v375
  %vm477 = vcmask 261120
  %v479 = vsel %vm477, %v170, 0
  %481 = vmatprep.subr.bf16.mxu0 0
  %482 = vmatpush1.bf16.msra.mxu0 %v377
  %483 = vmatprep.subr.bf16.mxu0 0
  %484 = vmatpush1.bf16.msra.mxu0 %v378
  %485 = vmatprep.subr.bf16.mxu0 0
  %486 = vmatpush1.bf16.msra.mxu0 %v379
  %487 = vmatprep.subr.bf16.mxu0 0
  %488 = vmatpush1.bf16.msra.mxu0 %v380
  %489 = vmatprep.subr.bf16.mxu0 0
  %490 = vmatpush1.bf16.msra.mxu0 %v381
  %491 = vmatprep.subr.bf16.mxu0 0
  %492 = vmatpush1.bf16.msra.mxu0 %v382
  %493 = vmatprep.subr.bf16.mxu0 0
  %494 = vmatpush1.bf16.msra.mxu0 %v383
  %495 = vmatprep.subr.bf16.mxu0 0
  %496 = vmatpush1.bf16.msra.mxu0 %v384
  %497 = vmatprep.subr.bf16.mxu0 0
  %498 = vmatpush1.bf16.msra.mxu0 %v385
  %499 = vmatprep.subr.bf16.mxu0 0
  %500 = vmatpush1.bf16.msra.mxu0 %v386
  %501 = vmatprep.subr.bf16.mxu0 0
  %502 = vmatpush1.bf16.msra.mxu0 %v387
  %503 = vmatprep.subr.bf16.mxu0 0
  %504 = vmatpush1.bf16.msra.mxu0 %v388
  %505 = vmatprep.subr.bf16.mxu0 0
  %506 = vmatpush1.bf16.msra.mxu0 %v389
  %507 = vmatprep.subr.bf16.mxu0 0
  %508 = vmatpush1.bf16.msra.mxu0 %v390
  %509 = vmatprep.subr.bf16.mxu0 0
  %510 = vmatpush1.bf16.msra.mxu0 %v391
  %511 = vmatprep.subr.bf16.mxu0 0
  %512 = vmatpush1.bf16.msra.mxu0 %v392
  %513 = vmatprep.mubr.bf16.mxu0 %v165
  %514 = vmatmul.mubr.bf16.gmra.mrb[0].mxu0 %v164
  %v515 = vpop.f32.mrb[0].mxu0
  %v516 = vadd.f32 %v140, %v515
  %v517 = vpop.f32.mrb[0].mxu0
  %v518 = vpop.f32.mrb[0].mxu0
  %v519 = vadd.f32 %v140, %v518
  %v520 = vpop.f32.mrb[0].mxu0
  %521 = vdwg.mxu0
  %522 = vmatprep.subr.bf16.mxu0 0
  %523 = vmatpush1.bf16.msra.mxu0 %v393
  %524 = vmatprep.subr.bf16.mxu0 0
  %525 = vmatpush1.bf16.msra.mxu0 %v394
  %526 = vmatprep.subr.bf16.mxu0 0
  %527 = vmatpush1.bf16.msra.mxu0 %v395
  %528 = vmatprep.subr.bf16.mxu0 0
  %529 = vmatpush1.bf16.msra.mxu0 %v396
  %530 = vmatprep.subr.bf16.mxu0 0
  %531 = vmatpush1.bf16.msra.mxu0 %v397
  %532 = vmatprep.subr.bf16.mxu0 0
  %533 = vmatpush1.bf16.msra.mxu0 %v398
  %534 = vmatprep.subr.bf16.mxu0 0
  %535 = vmatpush1.bf16.msra.mxu0 %v399
  %536 = vmatprep.subr.bf16.mxu0 0
  %537 = vmatpush1.bf16.msra.mxu0 %v400
  %538 = vmatprep.subr.bf16.mxu0 0
  %539 = vmatpush1.bf16.msra.mxu0 %v401
  %540 = vmatprep.subr.bf16.mxu0 0
  %541 = vmatpush1.bf16.msra.mxu0 %v402
  %542 = vmatprep.subr.bf16.mxu0 0
  %543 = vmatpush1.bf16.msra.mxu0 %v403
  %544 = vmatprep.subr.bf16.mxu0 0
  %545 = vmatpush1.bf16.msra.mxu0 %v404
  %546 = vmatprep.subr.bf16.mxu0 0
  %547 = vmatpush1.bf16.msra.mxu0 %v405
  %548 = vmatprep.subr.bf16.mxu0 0
  %549 = vmatpush1.bf16.msra.mxu0 %v406
  %550 = vmatprep.subr.bf16.mxu0 0
  %551 = vmatpush1.bf16.msra.mxu0 %v407
  %552 = vmatprep.subr.bf16.mxu0 0
  %553 = vmatpush1.bf16.msra.mxu0 %v408
  %554 = vmatprep.mubr.bf16.mxu0 %v167
  %555 = vmatmul.mubr.bf16.gmra.mrb[0].mxu0 %v166
  %v556 = vpop.f32.mrb[0].mxu0
  %v557 = vadd.f32 %v516, %v556
  %v558 = vpop.f32.mrb[0].mxu0
  %v559 = vpop.f32.mrb[0].mxu0
  %v560 = vadd.f32 %v519, %v559
  %v561 = vpop.f32.mrb[0].mxu0
  %562 = vdwg.mxu0
  %563 = vmatprep.subr.bf16.mxu0 0
  %564 = vmatpush1.bf16.msra.mxu0 %v409
  %565 = vmatprep.subr.bf16.mxu0 0
  %566 = vmatpush1.bf16.msra.mxu0 %v410
  %567 = vmatprep.subr.bf16.mxu0 0
  %568 = vmatpush1.bf16.msra.mxu0 %v411
  %569 = vmatprep.subr.bf16.mxu0 0
  %570 = vmatpush1.bf16.msra.mxu0 %v412
  %571 = vmatprep.subr.bf16.mxu0 0
  %572 = vmatpush1.bf16.msra.mxu0 %v413
  %573 = vmatprep.subr.bf16.mxu0 0
  %574 = vmatpush1.bf16.msra.mxu0 %v414
  %575 = vmatprep.subr.bf16.mxu0 0
  %576 = vmatpush1.bf16.msra.mxu0 %v415
  %577 = vmatprep.subr.bf16.mxu0 0
  %578 = vmatpush1.bf16.msra.mxu0 %v416
  %579 = vmatprep.subr.bf16.mxu0 0
  %580 = vmatpush1.bf16.msra.mxu0 %v417
  %581 = vmatprep.subr.bf16.mxu0 0
  %582 = vmatpush1.bf16.msra.mxu0 %v418
  %583 = vmatprep.subr.bf16.mxu0 0
  %584 = vmatpush1.bf16.msra.mxu0 %v419
  %585 = vmatprep.subr.bf16.mxu0 0
  %586 = vmatpush1.bf16.msra.mxu0 %v420
  %587 = vmatprep.subr.bf16.mxu0 0
  %588 = vmatpush1.bf16.msra.mxu0 %v421
  %589 = vmatprep.subr.bf16.mxu0 0
  %590 = vmatpush1.bf16.msra.mxu0 %v422
  %591 = vmatprep.subr.bf16.mxu0 0
  %592 = vmatpush1.bf16.msra.mxu0 %v423
  %593 = vmatprep.subr.bf16.mxu0 0
  %594 = vmatpush1.bf16.msra.mxu0 %v424
  %595 = vmatprep.mubr.bf16.mxu0 %v169
  %596 = vmatmul.mubr.bf16.gmra.mrb[0].mxu0 %v168
  %v597 = vpop.f32.mrb[0].mxu0
  %v598 = vadd.f32 %v557, %v597
  %v599 = vpop.f32.mrb[0].mxu0
  %v600 = vpop.f32.mrb[0].mxu0
  %v601 = vadd.f32 %v560, %v600
  %v602 = vpop.f32.mrb[0].mxu0
  %603 = vdwg.mxu0
  %604 = vmatprep.subr.bf16.mxu0 0
  %605 = vmatpush1.bf16.msra.mxu0 %v425
  %606 = vmatprep.subr.bf16.mxu0 0
  %607 = vmatpush1.bf16.msra.mxu0 %v426
  %608 = vmatprep.subr.bf16.mxu0 0
  %609 = vmatpush1.bf16.msra.mxu0 0
  %610 = vmatprep.subr.bf16.mxu0 0
  %611 = vmatpush1.bf16.msra.mxu0 0
  %612 = vmatprep.subr.bf16.mxu0 0
  %613 = vmatpush1.bf16.msra.mxu0 0
  %614 = vmatprep.subr.bf16.mxu0 0
  %615 = vmatpush1.bf16.msra.mxu0 0
  %616 = vmatprep.subr.bf16.mxu0 0
  %617 = vmatpush1.bf16.msra.mxu0 0
  %618 = vmatprep.subr.bf16.mxu0 0
  %619 = vmatpush1.bf16.msra.mxu0 0
  %620 = vmatprep.subr.bf16.mxu0 0
  %621 = vmatpush1.bf16.msra.mxu0 0
  %622 = vmatprep.subr.bf16.mxu0 0
  %623 = vmatpush1.bf16.msra.mxu0 0
  %624 = vmatprep.subr.bf16.mxu0 0
  %625 = vmatpush1.bf16.msra.mxu0 0
  %626 = vmatprep.subr.bf16.mxu0 0
  %627 = vmatpush1.bf16.msra.mxu0 0
  %628 = vmatprep.subr.bf16.mxu0 0
  %629 = vmatpush1.bf16.msra.mxu0 0
  %630 = vmatprep.subr.bf16.mxu0 0
  %631 = vmatpush1.bf16.msra.mxu0 0
  %632 = vmatprep.subr.bf16.mxu0 0
  %633 = vmatpush1.bf16.msra.mxu0 0
  %634 = vmatprep.subr.bf16.mxu0 0
  %635 = vmatpush1.bf16.msra.mxu0 0
  %636 = vmatprep.mubr.bf16.mxu0 0
  %637 = vmatmul.mubr.bf16.gmra.mrb[0].mxu0 %v479
  %v638 = vpop.f32.mrb[0].mxu0
  %v639 = vadd.f32 %v598, %v638
  %v640 = vpop.f32.mrb[0].mxu0
  %v641 = vpop.f32.mrb[0].mxu0
  %v642 = vadd.f32 %v601, %v641
  %v643 = vpop.f32.mrb[0].mxu0
  %644 = vdwg.mxu0
  %v645 = vmax.f32 %v639, 0.0
  %v646 = vmax.f32 %v642, 0.0
  %v647 = vpack.c.bf16 %v646, %v645
  %v648 = vld [vmem:[%s3] sm:$0xf]
  %v649 = vld [vmem:[%s3 + $0x4] sm:$0xf]
  %v650 = vld [vmem:[%s3 + $0x8] sm:$0xf]
  %v651 = vld [vmem:[%s3 + $0xc] sm:$0xf]
  %v652 = vld [vmem:[%s3 + $0x10] sm:$0xf]
  %v653 = vld [vmem:[%s3 + $0x14] sm:$0xf]
  %v654 = vld [vmem:[%s3 + $0x18] sm:$0xf]
  %v655 = vld [vmem:[%s3 + $0x1c] sm:$0xf]
  %v656 = vld [vmem:[%s3 + $0x20] sm:$0xf]
  %v657 = vld [vmem:[%s3 + $0x24] sm:$0xf]
  %v658 = vld [vmem:[%s3 + $0x28] sm:$0xf]
  %v659 = vld [vmem:[%s3 + $0x2c] sm:$0xf]
  %v660 = vld [vmem:[%s3 + $0x30] sm:$0xf]
  %v661 = vld [vmem:[%s3 + $0x34] sm:$0xf]
  %v662 = vld [vmem:[%s3 + $0x38] sm:$0xf]
  %v663 = vld [vmem:[%s4] sm:$0x1]
  %v665 = vlaneseq
  %v666 = vshrl.u32 %v665, 7
  %v667 = vsub.s32 0, %v666
  %v668 = vrot.slane %v663, %v667
  %v685 = vunpack.c.l.b16 %v648
  %v686 = vunpack.c.l.b16 %v649
  %v687 = vunpack.c.l.b16 %v650
  %v688 = vunpack.c.l.b16 %v651
  %v689 = vunpack.c.l.b16 %v652
  %v690 = vunpack.c.l.b16 %v653
  %v691 = vunpack.c.l.b16 %v654
  %v692 = vunpack.c.l.b16 %v655
  %v693 = vunpack.c.l.b16 %v656
  %v694 = vunpack.c.l.b16 %v657
  %v695 = vunpack.c.l.b16 %v658
  %v696 = vunpack.c.l.b16 %v659
  %v697 = vunpack.c.l.b16 %v660
  %v698 = vunpack.c.l.b16 %v661
  %v699 = vunpack.c.l.b16 %v662
  %v700 = vpack.c.b16 %v686, %v685
  %v701 = vpack.c.b16 %v688, %v687
  %v702 = vpack.c.b16 %v690, %v689
  %v703 = vpack.c.b16 %v692, %v691
  %v704 = vpack.c.b16 %v694, %v693
  %v705 = vpack.c.b16 %v696, %v695
  %v706 = vpack.c.b16 %v698, %v697
  %v707 = vpack.c.b16 %v699, %v699
  %vm715 = vcmask 982016
  %v717 = vsel %vm715, %v647, 0
  %vm719 = vcmask 1043456
  %v721 = vsel %vm719, %v707, 0
  %723 = vmatprep.subr.bf16.mxu0 0
  %724 = vmatpush1.bf16.msra.mxu0 %v700
  %725 = vmatprep.subr.bf16.mxu0 0
  %726 = vmatpush1.bf16.msra.mxu0 %v701
  %727 = vmatprep.subr.bf16.mxu0 0
  %728 = vmatpush1.bf16.msra.mxu0 %v702
  %729 = vmatprep.subr.bf16.mxu0 0
  %730 = vmatpush1.bf16.msra.mxu0 %v703
  %731 = vmatprep.subr.bf16.mxu0 0
  %732 = vmatpush1.bf16.msra.mxu0 %v704
  %733 = vmatprep.subr.bf16.mxu0 0
  %734 = vmatpush1.bf16.msra.mxu0 %v705
  %735 = vmatprep.subr.bf16.mxu0 0
  %736 = vmatpush1.bf16.msra.mxu0 %v706
  %737 = vmatprep.subr.bf16.mxu0 0
  %738 = vmatpush1.bf16.msra.mxu0 %v721
  %739 = vmatprep.subr.bf16.mxu0 0
  %740 = vmatpush1.bf16.msra.mxu0 0
  %741 = vmatprep.subr.bf16.mxu0 0
  %742 = vmatpush1.bf16.msra.mxu0 0
  %743 = vmatprep.subr.bf16.mxu0 0
  %744 = vmatpush1.bf16.msra.mxu0 0
  %745 = vmatprep.subr.bf16.mxu0 0
  %746 = vmatpush1.bf16.msra.mxu0 0
  %747 = vmatprep.subr.bf16.mxu0 0
  %748 = vmatpush1.bf16.msra.mxu0 0
  %749 = vmatprep.subr.bf16.mxu0 0
  %750 = vmatpush1.bf16.msra.mxu0 0
  %751 = vmatprep.subr.bf16.mxu0 0
  %752 = vmatpush1.bf16.msra.mxu0 0
  %753 = vmatprep.subr.bf16.mxu0 0
  %754 = vmatpush1.bf16.msra.mxu0 0
  %755 = vmatprep.mubr.bf16.mxu0 0
  %756 = vmatmul.mubr.bf16.gmra.mrb[0].mxu0 %v717
  %v757 = vpop.f32.mrb[0].mxu0
  %v758 = vadd.f32 %v668, %v757
  %v759 = vpop.f32.mrb[0].mxu0
  %v760 = vpop.f32.mrb[0].mxu0
  %v761 = vadd.f32 %v668, %v760
  %v762 = vpop.f32.mrb[0].mxu0
  %763 = vdwg.mxu0
  %v764 = vmax.f32 %v758, 0.0
  %v765 = vmax.f32 %v761, 0.0
  %v766 = vpack.c.bf16 %v765, %v764
  %v767 = vld [vmem:[%s5] sm:$0xf]
  %v768 = vld [vmem:[%s5 + $0x4] sm:$0xf]
  %v769 = vld [vmem:[%s5 + $0x8] sm:$0xf]
  %v770 = vld [vmem:[%s5 + $0xc] sm:$0xf]
  %v771 = vld [vmem:[%s5 + $0x10] sm:$0xf]
  %v772 = vld [vmem:[%s5 + $0x14] sm:$0xf]
  %v773 = vld [vmem:[%s5 + $0x18] sm:$0xf]
  %v774 = vld [vmem:[%s5 + $0x1c] sm:$0xf]
  %v775 = vld [vmem:[%s5 + $0x20] sm:$0xf]
  %v776 = vld [vmem:[%s5 + $0x24] sm:$0xf]
  %v777 = vld [vmem:[%s5 + $0x28] sm:$0x3]
  %v778 = vld [vmem:[%s6] sm:$0x1]
  %v780 = vlaneseq
  %v781 = vshrl.u32 %v780, 7
  %v782 = vsub.s32 0, %v781
  %v783 = vrot.slane %v778, %v782
  %v796 = vunpack.c.l.b16 %v767
  %v797 = vunpack.c.l.b16 %v768
  %v798 = vunpack.c.l.b16 %v769
  %v799 = vunpack.c.l.b16 %v770
  %v800 = vunpack.c.l.b16 %v771
  %v801 = vunpack.c.l.b16 %v772
  %v802 = vunpack.c.l.b16 %v773
  %v803 = vunpack.c.l.b16 %v774
  %v804 = vunpack.c.l.b16 %v775
  %v805 = vunpack.c.l.b16 %v776
  %v806 = vunpack.c.l.b16 %v777
  %v807 = vpack.c.b16 %v797, %v796
  %v808 = vpack.c.b16 %v799, %v798
  %v809 = vpack.c.b16 %v801, %v800
  %v810 = vpack.c.b16 %v803, %v802
  %v811 = vpack.c.b16 %v805, %v804
  %v812 = vpack.c.b16 %v806, %v806
  %vm818 = vcmask 687104
  %v820 = vsel %vm818, %v766, 0
  %vm822 = vcmask 1041408
  %v824 = vsel %vm822, %v812, 0
  %826 = vmatprep.subr.bf16.mxu0 0
  %827 = vmatpush1.bf16.msra.mxu0 %v807
  %828 = vmatprep.subr.bf16.mxu0 0
  %829 = vmatpush1.bf16.msra.mxu0 %v808
  %830 = vmatprep.subr.bf16.mxu0 0
  %831 = vmatpush1.bf16.msra.mxu0 %v809
  %832 = vmatprep.subr.bf16.mxu0 0
  %833 = vmatpush1.bf16.msra.mxu0 %v810
  %834 = vmatprep.subr.bf16.mxu0 0
  %835 = vmatpush1.bf16.msra.mxu0 %v811
  %836 = vmatprep.subr.bf16.mxu0 0
  %837 = vmatpush1.bf16.msra.mxu0 %v824
  %838 = vmatprep.subr.bf16.mxu0 0
  %839 = vmatpush1.bf16.msra.mxu0 0
  %840 = vmatprep.subr.bf16.mxu0 0
  %841 = vmatpush1.bf16.msra.mxu0 0
  %842 = vmatprep.subr.bf16.mxu0 0
  %843 = vmatpush1.bf16.msra.mxu0 0
  %844 = vmatprep.subr.bf16.mxu0 0
  %845 = vmatpush1.bf16.msra.mxu0 0
  %846 = vmatprep.subr.bf16.mxu0 0
  %847 = vmatpush1.bf16.msra.mxu0 0
  %848 = vmatprep.subr.bf16.mxu0 0
  %849 = vmatpush1.bf16.msra.mxu0 0
  %850 = vmatprep.subr.bf16.mxu0 0
  %851 = vmatpush1.bf16.msra.mxu0 0
  %852 = vmatprep.subr.bf16.mxu0 0
  %853 = vmatpush1.bf16.msra.mxu0 0
  %854 = vmatprep.subr.bf16.mxu0 0
  %855 = vmatpush1.bf16.msra.mxu0 0
  %856 = vmatprep.subr.bf16.mxu0 0
  %857 = vmatpush1.bf16.msra.mxu0 0
  %858 = vmatprep.mubr.bf16.mxu0 0
  %859 = vmatmul.mubr.bf16.gmra.mrb[0].mxu0 %v820
  %v860 = vpop.f32.mrb[0].mxu0
  %v861 = vadd.f32 %v783, %v860
  %v862 = vpop.f32.mrb[0].mxu0
  %v863 = vpop.f32.mrb[0].mxu0
  %v864 = vadd.f32 %v783, %v863
  %v865 = vpop.f32.mrb[0].mxu0
  %866 = vdwg.mxu0
  %vm867 = vcmask 64512
  %868 = vst.msk [vmem:[%s7] sm:$0xff] %vm867, %v861
  %869 = vst.msk [vmem:[%s7 + $0x8] sm:$0xff] %vm867, %v864
  // Predicated region
  $region30: #{pokenet_forward.7} parent=0 // pred_check
    _
  $region31: #{pokenet_forward.7} parent=0 // pred_check_branch
    %871 = sbr.rel (0) target = $region33
  $region32: #{pokenet_forward.7} parent=0 // pred_region
    _
  $region33: #{pokenet_forward.7} parent=0 // pred_fallthru
    _
  // Predicated region
  $region34: #{pokenet_forward.7} parent=0 // pred_check
    _
  $region35: #{pokenet_forward.7} parent=0 // pred_check_branch
    %873 = sbr.rel (0) target = $region37
  $region36: #{pokenet_forward.7} parent=0 // pred_region
    _
  $region37: #{pokenet_forward.7} parent=0 // pred_fallthru
    _

</llo_original>
